<compile_context>
chip_gen: v5e
topology: v5e:2x2
jax: 0.10.0
libtpu: 0.0.40
codegen_flags: <defaults>
</compile_context>

<pallas_src>
import numpy as np
import jax
import jax.numpy as jnp
from jax import lax
from jax.experimental import pallas as pl
from jax.experimental.pallas import tpu as pltpu

# f32-accurate MXU passes.  Lower to lax.Precision.HIGH (bf16x3) or DEFAULT for
# throughput at large shapes (esp. v5e), gated on the reference tolerance.
_DOT_PRECISION = lax.Precision.HIGHEST


def _dot(a, b):
    return jnp.dot(a, b, preferred_element_type=jnp.float32,
                   precision=_DOT_PRECISION)


# ------------------------- DFT-matrix construction (host-side numpy) ---------

def _centered_forward_dft(n):
    """Fc with Fc @ x == torch_fftshift(fft(torch_ifftshift(x)))/sqrt(n)."""
    k = np.arange(n)
    F = np.exp(-2j * np.pi * np.outer(k, k) / n) / np.sqrt(n)
    return np.roll(np.roll(F, n // 2, axis=0), -((n + 1) // 2), axis=1)


def _centered_inverse_dft(m):
    """Gc with Gc @ X == torch_fftshift(ifft(torch_ifftshift(X)))/sqrt(m)."""
    k = np.arange(m)
    G = np.exp(2j * np.pi * np.outer(k, k) / m) / np.sqrt(m)
    return np.roll(np.roll(G, m // 2, axis=0), -((m + 1) // 2), axis=1)


def _combined_axis_matrix(n, m):
    """(m x n) complex: centered fwd DFT(n) -> center zero-pad to m (floor/ceil
    split, matching F.pad) -> centered inverse DFT(m)."""
    p0 = (m - n) // 2
    return _centered_inverse_dft(m)[:, p0:p0 + n] @ _centered_forward_dft(n)


# ------------------------- hardware-aware VMEM budget -------------------------

def _vmem_caps():
    cap = 64 << 20                      # conservative fallback (v7x per-core)
    try:
        cap = int(pltpu.get_tpu_info().vmem_capacity_bytes)
    except Exception:
        pass
    budget = min(cap // 2, 32 << 20)    # chooser budget, safe on v5e/v6e/v7x
    return cap, budget


def _compiler_params(cap, need_bytes):
    # Never below the 32 MiB scoped default; never above 3/4 of physical VMEM.
    vmem_limit = int(min(cap * 3 // 4, max(2 * need_bytes, 32 << 20)))
    return pltpu.CompilerParams(dimension_semantics=("parallel",),
                                vmem_limit_bytes=vmem_limit)


# ------------------------- fused path (small operators) -----------------------

def _fused_kernel(x_ref, b_ref, s_ref, y_ref):
    # x_ref: (2*pb, H*W)        rows alternate (real, imag) per complex channel
    # b_ref: (2, H*W, upH*upW)  (Br, Bi) of [kron(A_H, A_W)]^T
    # s_ref: (2*pb, 2*pb)       signed pair-swap:  out = U + S @ V
    # y_ref: (2*pb, upH*upW)    rows alternate (real, imag)
    x2 = x_ref[...]
    u = _dot(x2, b_ref[0])              # X @ Br
    v = _dot(x2, b_ref[1])              # X @ Bi
    y_ref[...] = u + _dot(s_ref[...], v)


def _fused_need(pb, HW, upHW):
    io = 4 * 2 * (2 * pb) * (HW + upHW)            # in/out blocks, double-buffered
    consts = 4 * (2 * HW * upHW + (2 * pb) ** 2)   # single-buffered (Buffered(1))
    interm = 4 * 3 * (2 * pb) * upHW               # u, v, S@V f32 temporaries
    return io + consts + interm


def _choose_fused_pb(P, HW, upHW, budget):
    if _fused_need(P, HW, upHW) <= budget:
        return P                                   # single grid step
    pb = max(4, (P // 2) // 4 * 4)                 # multi-block: 2*pb % 8 == 0
    while pb > 4 and _fused_need(pb, HW, upHW) > budget:
        pb -= 4
    return pb


def _fft_interpolate_fused(x, up_size, cap, budget):
    _, C, H, W = x.shape
    upH, upW = up_size
    P = C // 2
    HW, upHW = H * W, upH * upW

    pb = _choose_fused_pb(P, HW, upHW, budget)
    nb = -(-P // pb)
    Ppad = nb * pb

    AH = _combined_axis_matrix(H, upH)             # (upH, H) complex
    AW = _combined_axis_matrix(W, upW)             # (upW, W) complex
    MT = np.kron(AH, AW).T                         # (H*W, upH*upW): Y_flat = X_flat @ MT
    b_pack = jnp.asarray(np.stack([MT.real, MT.imag]).astype(np.float32))

    S = np.zeros((2 * pb, 2 * pb), np.float32)     # (U + S@V) interleaves r/i rows
    S[0::2, 1::2] = -np.eye(pb, dtype=np.float32)  # out[2p]   = U[2p]   - V[2p+1]
    S[1::2, 0::2] = np.eye(pb, dtype=np.float32)   # out[2p+1] = U[2p+1] + V[2p]
    s_mat = jnp.asarray(S)

    x2 = x.reshape(C, HW)                          # pure reshape, no transpose
    if Ppad != P:
        x2 = jnp.concatenate(
            [x2, jnp.zeros((2 * (Ppad - P), HW), x.dtype)], axis=0)

    need = _fused_need(pb, HW, upHW)
    y = pl.pallas_call(
        _fused_kernel,
        out_shape=jax.ShapeDtypeStruct((2 * Ppad, upHW), jnp.float32),
        grid=(nb,),
        in_specs=[
            pl.BlockSpec((2 * pb, HW), lambda b: (b, 0)),
            pl.BlockSpec((2, HW, upHW), lambda b: (0, 0, 0),
                         pipeline_mode=pl.Buffered(1)),
            pl.BlockSpec((2 * pb, 2 * pb), lambda b: (0, 0),
                         pipeline_mode=pl.Buffered(1)),
        ],
        out_specs=pl.BlockSpec((2 * pb, upHW), lambda b: (b, 0)),
        compiler_params=_compiler_params(cap, need),
    )(x2, b_pack, s_mat)

    return y[:2 * P].reshape(1, C, upH, upW)       # pure reshape back to NCHW


# ------------------------- two-stage slab path (large images) -----------------

def _two_stage_kernel(x_ref, ah_ref, awt_ref, y_ref):
    # x_ref:   (1, 2, H, pb*W)       real / imag slabs (pb channels along lanes)
    # ah_ref:  (3, upH, H)           (Ar, Ai, Ar+Ai) of the row transform
    # awt_ref: (3, pb*W, pb*upW)     (Br, Bi-Br, Br+Bi) of block-diag column tf.
    # y_ref:   (1, 2, upH, pb*upW)   lane-dense output slab
    xr = x_ref[0, 0]
    xi = x_ref[0, 1]
    ahr, ahi, ahs = ah_ref[0], ah_ref[1], ah_ref[2]
    bwr, bwd, bws = awt_ref[0], awt_ref[1], awt_ref[2]

    # Stage 1: T = A_H @ X   (complex, Gauss 3-mult, constants on the left)
    k1 = _dot(ahs, xr)            # (Ar+Ai) @ Xr
    k2 = _dot(ahr, xi - xr)       # Ar @ (Xi-Xr)
    k3 = _dot(ahi, xr + xi)       # Ai @ (Xr+Xi)
    t_r = k1 - k3
    t_i = k1 + k2

    # Stage 2: Y = T @ blockdiag(A_W^T)  (Gauss 3-mult, constants on the right)
    m1 = _dot(t_r + t_i, bwr)     # (Tr+Ti) @ Br
    m2 = _dot(t_r, bwd)           # Tr @ (Bi-Br)
    m3 = _dot(t_i, bws)           # Ti @ (Br+Bi)
    y_ref[0, 0] = m1 - m3
    y_ref[0, 1] = m1 + m2


def _two_stage_need(pb, H, W, upH, upW):
    io = 4 * 2 * 2 * pb * (H * W + upH * upW)             # in/out slabs, r/i, x2 buffers
    consts = 4 * 3 * (upH * H + (pb * W) * (pb * upW))    # single-buffered constants
    interm = 4 * (6 * upH * pb * W + 4 * upH * pb * upW)  # f32 temporaries
    return io + consts + interm


def _choose_two_stage_pb(P, H, W, upH, upW, budget):
    # Cap the kron(I_pb, A_W^T) blow-up (pb^2 VMEM / pb-fold stage-2 MACs): once
    # upW fills the MXU lanes there is nothing to gain from a wider block-diag.
    pb = max(1, min(P, 1024 // max(upW, 1)))
    while pb > 1 and _two_stage_need(pb, H, W, upH, upW) > budget:
        pb -= 1

    def score(c):  # MXU alignment + divisibility preference among nearby sizes
        s = 0
        if (c * upW) % 256 == 0:
            s += 4
        elif (c * upW) % 128 == 0:
            s += 2
        if (c * W) % 128 == 0:
            s += 1
        if P % c == 0:
            s += 2
        return (s, c)

    lo = max(1, (2 * pb) // 3)
    return max(range(lo, pb + 1), key=score)


def _fft_interpolate_two_stage(x, up_size, cap, budget, channels_per_block=None):
    _, C, H, W = x.shape
    upH, upW = up_size
    P = C // 2

    pb = channels_per_block or _choose_two_stage_pb(P, H, W, upH, upW, budget)
    nb = -(-P // pb)
    Ppad = nb * pb

    AH = _combined_axis_matrix(H, upH)              # (upH, H) complex
    AWt = _combined_axis_matrix(W, upW).T           # (W, upW) complex
    AWb = np.kron(np.eye(pb), AWt)                  # block-diag (pb*W, pb*upW)
    ah_pack = jnp.asarray(np.stack(
        [AH.real, AH.imag, AH.real + AH.imag]).astype(np.float32))
    awt_pack = jnp.asarray(np.stack(
        [AWb.real, AWb.imag - AWb.real, AWb.real + AWb.imag]).astype(np.float32))

    # layout plumbing: NCHW -> (nb, 2, H, pb*W) lane-dense slabs
    xp = x.reshape(P, 2, H, W)
    if Ppad != P:
        xp = jnp.concatenate(
            [xp, jnp.zeros((Ppad - P, 2, H, W), x.dtype)], axis=0)
    xp = xp.reshape(nb, pb, 2, H, W)
    xp = jnp.transpose(xp, (0, 2, 3, 1, 4)).reshape(nb, 2, H, pb * W)

    need = _two_stage_need(pb, H, W, upH, upW)
    y = pl.pallas_call(
        _two_stage_kernel,
        out_shape=jax.ShapeDtypeStruct((nb, 2, upH, pb * upW), jnp.float32),
        grid=(nb,),
        in_specs=[
            pl.BlockSpec((1, 2, H, pb * W), lambda b: (b, 0, 0, 0)),
            pl.BlockSpec((3, upH, H), lambda b: (0, 0, 0),
                         pipeline_mode=pl.Buffered(1)),
            pl.BlockSpec((3, pb * W, pb * upW), lambda b: (0, 0, 0),
                         pipeline_mode=pl.Buffered(1)),
        ],
        out_specs=pl.BlockSpec((1, 2, upH, pb * upW), lambda b: (b, 0, 0, 0)),
        compiler_params=_compiler_params(cap, need),
    )(xp, ah_pack, awt_pack)

    y = y.reshape(nb, 2, upH, pb, upW)
    y = jnp.transpose(y, (0, 3, 1, 2, 4)).reshape(Ppad, 2, upH, upW)[:P]
    return y.reshape(1, C, upH, upW)


# ------------------------------- public wrapper -------------------------------

def fft_interpolate(x, up_size, *, channels_per_block=None, force_two_stage=False):
    """x: (1, C, H, W) float32 NCHW, C even.  Returns (1, C, upH, upW)."""
    B, C, H, W = x.shape
    assert B == 1 and C % 2 == 0
    upH, upW = up_size
    assert upH >= H and upW >= W
    cap, budget = _vmem_caps()
    HW, upHW = H * W, upH * upW
    P = C // 2

    op_bytes = 4 * 2 * HW * upHW           # packed kron operator (Br, Bi), f32
    use_fused = (not force_two_stage and channels_per_block is None
                 and op_bytes <= (4 << 20)
                 and _fused_need(min(P, 8), HW, upHW) <= budget)
    if use_fused:
        return _fft_interpolate_fused(x, up_size, cap, budget)
    return _fft_interpolate_two_stage(x, up_size, cap, budget, channels_per_block)


# ------------------------------- reference (numpy FFT) ------------------------

def _reference(x_np, up_size):
    _, C, H, W = x_np.shape
    upH, upW = up_size
    P = C // 2
    xp = x_np.astype(np.float64).reshape(P, 2, H, W)
    z = xp[:, 0] + 1j * xp[:, 1]
    s = np.fft.fftshift(
        np.fft.fft2(np.fft.ifftshift(z, axes=(-2, -1)), norm='ortho'),
        axes=(-2, -1))
    ph, pw = upH - H, upW - W
    sp = np.pad(s, ((0, 0), (ph // 2, ph // 2 + ph % 2),
                    (pw // 2, pw // 2 + pw % 2)))
    y = np.fft.fftshift(
        np.fft.ifft2(np.fft.ifftshift(sp, axes=(-2, -1)), norm='ortho'),
        axes=(-2, -1))
    return np.stack([y.real, y.imag], axis=1).reshape(1, C, upH, upW)


# ------------------------------------ main ------------------------------------

if __name__ == "__main__":
    key = jax.random.PRNGKey(0)
    B, C, H, W = 1, 8, 16, 16            # 4 complex (real, imag) channel pairs
    up_size = (27, 32)                   # asymmetric floor/ceil zero-padding
    x = jax.random.normal(key, (B, C, H, W), dtype=jnp.float32)

    y_ref = _reference(np.asarray(x), up_size)

    # Fused single-matmul path (auto-selected for small operators).
    y = jax.block_until_ready(fft_interpolate(x, up_size))
    assert y.shape == (B, C, up_size[0], up_size[1])
    np.testing.assert_allclose(np.asarray(y), y_ref, atol=3e-4, rtol=2e-3)

    # Two-stage slab path (used for large images); force a 2-step grid here to
    # exercise channel batching, the pipeline and the Buffered(1) constants.
    y2 = jax.block_until_ready(
        fft_interpolate(x, up_size, channels_per_block=2, force_two_stage=True))
    np.testing.assert_allclose(np.asarray(y2), y_ref, atol=3e-4, rtol=2e-3)

    print("KERNEL_OK")
</pallas_src>

<mosaic_0001>
module attributes {stable_mosaic.version = 11 : i64} {
  func.func @_fused_kernel(%arg0: i32, %arg1: memref<8x256xf32, #tpu.memory_space<vmem>>, %arg2: memref<2x256x864xf32, #tpu.memory_space<vmem>>, %arg3: memref<8x8xf32, #tpu.memory_space<vmem>>, %arg4: memref<8x864xf32, #tpu.memory_space<vmem>>) attributes {dimension_semantics = [#tpu.dimension_semantics<parallel>], iteration_bounds = array<i64: 1>, scalar_prefetch = 0 : i64, scratch_operands = 0 : i64, tpu.core_type = #tpu.core_type<tc>, window_params = [{transform_indices = @transform_0, window_bounds = array<i64: 8, 256>}, {pipeline_mode = #tpu.pipeline_mode<synchronous>, transform_indices = @transform_1, window_bounds = array<i64: 2, 256, 864>}, {pipeline_mode = #tpu.pipeline_mode<synchronous>, transform_indices = @transform_2, window_bounds = array<i64: 8, 8>}, {transform_indices = @transform_3, window_bounds = array<i64: 8, 864>}]} {
    %c0 = arith.constant 0 : index
    %c0_0 = arith.constant 0 : index
    %0 = vector.load %arg1[%c0, %c0_0] : memref<8x256xf32, #tpu.memory_space<vmem>>, vector<8x256xf32>
    %c0_1 = arith.constant 0 : index
    %c0_2 = arith.constant 0 : index
    %c0_3 = arith.constant 0 : index
    %1 = vector.load %arg2[%c0_1, %c0_2, %c0_3] : memref<2x256x864xf32, #tpu.memory_space<vmem>>, vector<1x256x864xf32>
    %2 = vector.shape_cast %1 : vector<1x256x864xf32> to vector<256x864xf32>
    %cst = arith.constant dense<0.000000e+00> : vector<8x864xf32>
    %3 = tpu.matmul %0, %2, %cst {dimension_numbers = #tpu.dot_dimension_numbers<[1], [0], [0], [1], [0, 0, 1, 1], [], []>, precision = #tpu.contract_precision<fp32>} : vector<8x256xf32>, vector<256x864xf32>, vector<8x864xf32> -> vector<8x864xf32>
    %c1 = arith.constant 1 : index
    %c0_4 = arith.constant 0 : index
    %c0_5 = arith.constant 0 : index
    %4 = vector.load %arg2[%c1, %c0_4, %c0_5] : memref<2x256x864xf32, #tpu.memory_space<vmem>>, vector<1x256x864xf32>
    %5 = vector.shape_cast %4 : vector<1x256x864xf32> to vector<256x864xf32>
    %cst_6 = arith.constant dense<0.000000e+00> : vector<8x864xf32>
    %6 = tpu.matmul %0, %5, %cst_6 {dimension_numbers = #tpu.dot_dimension_numbers<[1], [0], [0], [1], [0, 0, 1, 1], [], []>, precision = #tpu.contract_precision<fp32>} : vector<8x256xf32>, vector<256x864xf32>, vector<8x864xf32> -> vector<8x864xf32>
    %c0_7 = arith.constant 0 : index
    %c0_8 = arith.constant 0 : index
    %7 = vector.load %arg3[%c0_7, %c0_8] : memref<8x8xf32, #tpu.memory_space<vmem>>, vector<8x8xf32>
    %cst_9 = arith.constant dense<0.000000e+00> : vector<8x864xf32>
    %8 = tpu.matmul %7, %6, %cst_9 {dimension_numbers = #tpu.dot_dimension_numbers<[1], [0], [0], [1], [0, 0, 1, 1], [], []>, precision = #tpu.contract_precision<fp32>} : vector<8x8xf32>, vector<8x864xf32>, vector<8x864xf32> -> vector<8x864xf32>
    %9 = arith.addf %3, %8 : vector<8x864xf32>
    %c0_10 = arith.constant 0 : index
    %c0_11 = arith.constant 0 : index
    %10 = vector.load %arg4[%c0_10, %c0_11] : memref<8x864xf32, #tpu.memory_space<vmem>>, vector<8x864xf32>
    tpu.vector_store %arg4[%c0_10, %c0_11], %9 {strides = array<i32>} : memref<8x864xf32, #tpu.memory_space<vmem>>, vector<8x864xf32>,
    return
  }
  func.func @transform_0(%arg0: i32) -> (i32, i32) {
    %c0_i32 = arith.constant 0 : i32
    %c0_i32_0 = arith.constant 0 : i32
    return %arg0, %c0_i32 : i32, i32
  }
  func.func @transform_1(%arg0: i32) -> (i32, i32, i32) {
    %c0_i32 = arith.constant 0 : i32
    %c0_i32_0 = arith.constant 0 : i32
    %c0_i32_1 = arith.constant 0 : i32
    %c0_i32_2 = arith.constant 0 : i32
    return %c0_i32, %c0_i32_0, %c0_i32_1 : i32, i32, i32
  }
  func.func @transform_2(%arg0: i32) -> (i32, i32) {
    %c0_i32 = arith.constant 0 : i32
    %c0_i32_0 = arith.constant 0 : i32
    %c0_i32_1 = arith.constant 0 : i32
    return %c0_i32, %c0_i32_0 : i32, i32
  }
  func.func @transform_3(%arg0: i32) -> (i32, i32) {
    %c0_i32 = arith.constant 0 : i32
    %c0_i32_0 = arith.constant 0 : i32
    return %arg0, %c0_i32 : i32, i32
  }
}

</mosaic_0001>

<llo_original>
// kernel: tpu_custom_call.1
$region0: #{tpu_custom_call.1}
  #allocation0 [shape = 'u32[]', space=smem, size = 0x4, offset = 0x4, fixed_abs, tag = 'smem constant byte address 0x4 - core index']
  #allocation1 [shape = 'u32[72,128]{1,0:T(1,128)}', space=vmem, size = 0x9000, scoped, tag = 'internal scratch']
  %s0 = inlined_call_operand.vmem [shape: f32[8,256], index: 0, kind: input, shape index: {}]
  %s1 = inlined_call_operand.vmem [shape: f32[2,256,864], index: 1, kind: input, shape index: {}]
  %s2 = inlined_call_operand.vmem [shape: f32[8,8], index: 2, kind: input, shape index: {}]
  %s3 = inlined_call_operand.hbm [shape: f32[8,864], index: 3, kind: output, shape index: {}]
  %s4 = sld [smem:[#allocation0]]
  $region22: #{tpu_custom_call.1} parent=0
    _
  %s6 = ssub.s32 1, %s4
  %s7 = scalar_select 0, %s6, %s4
  $region1: #{tpu_custom_call.1} parent=0
    #allocation2 [shape = 'u8[28672]{0}', space=vmem, size = 0x7000, scoped, tag = 'output window, operand 0, single buffered']
    #allocation3 [shape = 's32[1]{0}', space=sflag, size = 0x4, scoped, tag = 'scoped memory for tpu_custom_call.1']
    %8 = vsyncpa [#allocation3], 0
    // Predicated region
    $region2: #{tpu_custom_call.1} parent=1 // pred_check
      _
    $region3: #{tpu_custom_call.1} parent=1 // pred_check_branch
      %10 = sbr.rel (0) target = $region5
    $region4: #{tpu_custom_call.1} parent=1 // pred_region
      _
    $region5: #{tpu_custom_call.1} parent=1 // pred_fallthru
      _
    // Predicated region
    $region6: #{tpu_custom_call.1} parent=1 // pred_check
      _
    $region7: #{tpu_custom_call.1} parent=1 // pred_check_branch
      %12 = sbr.rel (0) target = $region9
    $region8: #{tpu_custom_call.1} parent=1 // pred_region
      _
    $region9: #{tpu_custom_call.1} parent=1 // pred_fallthru
      _
    // Predicated region
    $region10: #{tpu_custom_call.1} parent=1 // pred_check
      _
    $region11: #{tpu_custom_call.1} parent=1 // pred_check_branch
      %14 = sbr.rel (0) target = $region13
    $region12: #{tpu_custom_call.1} parent=1 // pred_region
      _
    $region13: #{tpu_custom_call.1} parent=1 // pred_fallthru
      _
    %v15 = vld [vmem:[%s0] sm:$0xff]
    %v16 = vld [vmem:[%s0 + $0x8] sm:$0xff]
    %v17 = vld [vmem:[%s1] sm:$0xff]
    %v18 = vld [vmem:[%s1 + $0x8] sm:$0xff]
    %v19 = vld [vmem:[%s1 + $0x10] sm:$0xff]
    %v20 = vld [vmem:[%s1 + $0x18] sm:$0xff]
    %v21 = vld [vmem:[%s1 + $0x20] sm:$0xff]
    %v22 = vld [vmem:[%s1 + $0x28] sm:$0xff]
    %v23 = vld [vmem:[%s1 + $0x30] sm:$0xff]
    %v24 = vld [vmem:[%s1 + $0x38] sm:$0xff]
    %v25 = vld [vmem:[%s1 + $0x40] sm:$0xff]
    %v26 = vld [vmem:[%s1 + $0x48] sm:$0xff]
    %v27 = vld [vmem:[%s1 + $0x50] sm:$0xff]
    %v28 = vld [vmem:[%s1 + $0x58] sm:$0xff]
    %v29 = vld [vmem:[%s1 + $0x60] sm:$0xff]
    %v30 = vld [vmem:[%s1 + $0x68] sm:$0xff]
    %v31 = vld [vmem:[%s1 + $0x70] sm:$0xff]
    %v32 = vld [vmem:[%s1 + $0x78] sm:$0xff]
    %v33 = vld [vmem:[%s1 + $0x80] sm:$0xff]
    %v34 = vld [vmem:[%s1 + $0x88] sm:$0xff]
    %v35 = vld [vmem:[%s1 + $0x90] sm:$0xff]
    %v36 = vld [vmem:[%s1 + $0x98] sm:$0xff]
    %v37 = vld [vmem:[%s1 + $0xa0] sm:$0xff]
    %v38 = vld [vmem:[%s1 + $0xa8] sm:$0xff]
    %v39 = vld [vmem:[%s1 + $0xb0] sm:$0xff]
    %v40 = vld [vmem:[%s1 + $0xb8] sm:$0xff]
    %v41 = vld [vmem:[%s1 + $0xc0] sm:$0xff]
    %v42 = vld [vmem:[%s1 + $0xc8] sm:$0xff]
    %v43 = vld [vmem:[%s1 + $0xd0] sm:$0xff]
    %v44 = vld [vmem:[%s1 + $0xd8] sm:$0xff]
    %v45 = vld [vmem:[%s1 + $0xe0] sm:$0xff]
    %v46 = vld [vmem:[%s1 + $0xe8] sm:$0xff]
    %v47 = vld [vmem:[%s1 + $0xf0] sm:$0xff]
    %v48 = vld [vmem:[%s1 + $0xf8] sm:$0xff]
    %v49 = vld [vmem:[%s1 + $0x100] sm:$0xff]
    %v50 = vld [vmem:[%s1 + $0x108] sm:$0xff]
    %v51 = vld [vmem:[%s1 + $0x110] sm:$0xff]
    %v52 = vld [vmem:[%s1 + $0x118] sm:$0xff]
    %v53 = vld [vmem:[%s1 + $0x120] sm:$0xff]
    %v54 = vld [vmem:[%s1 + $0x128] sm:$0xff]
    %v55 = vld [vmem:[%s1 + $0x130] sm:$0xff]
    %v56 = vld [vmem:[%s1 + $0x138] sm:$0xff]
    %v57 = vld [vmem:[%s1 + $0x140] sm:$0xff]
    %v58 = vld [vmem:[%s1 + $0x148] sm:$0xff]
    %v59 = vld [vmem:[%s1 + $0x150] sm:$0xff]
    %v60 = vld [vmem:[%s1 + $0x158] sm:$0xff]
    %v61 = vld [vmem:[%s1 + $0x160] sm:$0xff]
    %v62 = vld [vmem:[%s1 + $0x168] sm:$0xff]
    %v63 = vld [vmem:[%s1 + $0x170] sm:$0xff]
    %v64 = vld [vmem:[%s1 + $0x178] sm:$0xff]
    %v65 = vld [vmem:[%s1 + $0x180] sm:$0xff]
    %v66 = vld [vmem:[%s1 + $0x188] sm:$0xff]
    %v67 = vld [vmem:[%s1 + $0x190] sm:$0xff]
    %v68 = vld [vmem:[%s1 + $0x198] sm:$0xff]
    %v69 = vld [vmem:[%s1 + $0x1a0] sm:$0xff]
    %v70 = vld [vmem:[%s1 + $0x1a8] sm:$0xff]
    %v71 = vld [vmem:[%s1 + $0x1b0] sm:$0xff]
    %v72 = vld [vmem:[%s1 + $0x1b8] sm:$0xff]
    %v73 = vld [vmem:[%s1 + $0x1c0] sm:$0xff]
    %v74 = vld [vmem:[%s1 + $0x1c8] sm:$0xff]
    %v75 = vld [vmem:[%s1 + $0x1d0] sm:$0xff]
    %v76 = vld [vmem:[%s1 + $0x1d8] sm:$0xff]
    %v77 = vld [vmem:[%s1 + $0x1e0] sm:$0xff]
    %v78 = vld [vmem:[%s1 + $0x1e8] sm:$0xff]
    %v79 = vld [vmem:[%s1 + $0x1f0] sm:$0xff]
    %v80 = vld [vmem:[%s1 + $0x1f8] sm:$0xff]
    %v81 = vld [vmem:[%s1 + $0x200] sm:$0xff]
    %v82 = vld [vmem:[%s1 + $0x208] sm:$0xff]
    %v83 = vld [vmem:[%s1 + $0x210] sm:$0xff]
    %v84 = vld [vmem:[%s1 + $0x218] sm:$0xff]
    %v85 = vld [vmem:[%s1 + $0x220] sm:$0xff]
    %v86 = vld [vmem:[%s1 + $0x228] sm:$0xff]
    %v87 = vld [vmem:[%s1 + $0x230] sm:$0xff]
    %v88 = vld [vmem:[%s1 + $0x238] sm:$0xff]
    %v89 = vld [vmem:[%s1 + $0x240] sm:$0xff]
    %v90 = vld [vmem:[%s1 + $0x248] sm:$0xff]
    %v91 = vld [vmem:[%s1 + $0x250] sm:$0xff]
    %v92 = vld [vmem:[%s1 + $0x258] sm:$0xff]
    %v93 = vld [vmem:[%s1 + $0x260] sm:$0xff]
    %v94 = vld [vmem:[%s1 + $0x268] sm:$0xff]
    %v95 = vld [vmem:[%s1 + $0x270] sm:$0xff]
    %v96 = vld [vmem:[%s1 + $0x278] sm:$0xff]
    %v97 = vld [vmem:[%s1 + $0x280] sm:$0xff]
    %v98 = vld [vmem:[%s1 + $0x288] sm:$0xff]
    %v99 = vld [vmem:[%s1 + $0x290] sm:$0xff]
    %v100 = vld [vmem:[%s1 + $0x298] sm:$0xff]
    %v101 = vld [vmem:[%s1 + $0x2a0] sm:$0xff]
    %v102 = vld [vmem:[%s1 + $0x2a8] sm:$0xff]
    %v103 = vld [vmem:[%s1 + $0x2b0] sm:$0xff]
    %v104 = vld [vmem:[%s1 + $0x2b8] sm:$0xff]
    %v105 = vld [vmem:[%s1 + $0x2c0] sm:$0xff]
    %v106 = vld [vmem:[%s1 + $0x2c8] sm:$0xff]
    %v107 = vld [vmem:[%s1 + $0x2d0] sm:$0xff]
    %v108 = vld [vmem:[%s1 + $0x2d8] sm:$0xff]
    %v109 = vld [vmem:[%s1 + $0x2e0] sm:$0xff]
    %v110 = vld [vmem:[%s1 + $0x2e8] sm:$0xff]
    %v111 = vld [vmem:[%s1 + $0x2f0] sm:$0xff]
    %v112 = vld [vmem:[%s1 + $0x2f8] sm:$0xff]
    %v113 = vld [vmem:[%s1 + $0x300] sm:$0xff]
    %v114 = vld [vmem:[%s1 + $0x308] sm:$0xff]
    %v115 = vld [vmem:[%s1 + $0x310] sm:$0xff]
    %v116 = vld [vmem:[%s1 + $0x318] sm:$0xff]
    %v117 = vld [vmem:[%s1 + $0x320] sm:$0xff]
    %v118 = vld [vmem:[%s1 + $0x328] sm:$0xff]
    %v119 = vld [vmem:[%s1 + $0x330] sm:$0xff]
    %v120 = vld [vmem:[%s1 + $0x338] sm:$0xff]
    %v121 = vld [vmem:[%s1 + $0x340] sm:$0xff]
    %v122 = vld [vmem:[%s1 + $0x348] sm:$0xff]
    %v123 = vld [vmem:[%s1 + $0x350] sm:$0xff]
    %v124 = vld [vmem:[%s1 + $0x358] sm:$0xff]
    %v125 = vld [vmem:[%s1 + $0x360] sm:$0xff]
    %v126 = vld [vmem:[%s1 + $0x368] sm:$0xff]
    %v127 = vld [vmem:[%s1 + $0x370] sm:$0xff]
    %v128 = vld [vmem:[%s1 + $0x378] sm:$0xff]
    %v129 = vld [vmem:[%s1 + $0x380] sm:$0xff]
    %v130 = vld [vmem:[%s1 + $0x388] sm:$0xff]
    %v131 = vld [vmem:[%s1 + $0x390] sm:$0xff]
    %v132 = vld [vmem:[%s1 + $0x398] sm:$0xff]
    %v133 = vld [vmem:[%s1 + $0x3a0] sm:$0xff]
    %v134 = vld [vmem:[%s1 + $0x3a8] sm:$0xff]
    %v135 = vld [vmem:[%s1 + $0x3b0] sm:$0xff]
    %v136 = vld [vmem:[%s1 + $0x3b8] sm:$0xff]
    %v137 = vld [vmem:[%s1 + $0x3c0] sm:$0xff]
    %v138 = vld [vmem:[%s1 + $0x3c8] sm:$0xff]
    %v139 = vld [vmem:[%s1 + $0x3d0] sm:$0xff]
    %v140 = vld [vmem:[%s1 + $0x3d8] sm:$0xff]
    %v141 = vld [vmem:[%s1 + $0x3e0] sm:$0xff]
    %v142 = vld [vmem:[%s1 + $0x3e8] sm:$0xff]
    %v143 = vld [vmem:[%s1 + $0x3f0] sm:$0xff]
    %v144 = vld [vmem:[%s1 + $0x3f8] sm:$0xff]
    %v145 = vld [vmem:[%s1 + $0x400] sm:$0xff]
    %v146 = vld [vmem:[%s1 + $0x408] sm:$0xff]
    %v147 = vld [vmem:[%s1 + $0x410] sm:$0xff]
    %v148 = vld [vmem:[%s1 + $0x418] sm:$0xff]
    %v149 = vld [vmem:[%s1 + $0x420] sm:$0xff]
    %v150 = vld [vmem:[%s1 + $0x428] sm:$0xff]
    %v151 = vld [vmem:[%s1 + $0x430] sm:$0xff]
    %v152 = vld [vmem:[%s1 + $0x438] sm:$0xff]
    %v153 = vld [vmem:[%s1 + $0x440] sm:$0xff]
    %v154 = vld [vmem:[%s1 + $0x448] sm:$0xff]
    %v155 = vld [vmem:[%s1 + $0x450] sm:$0xff]
    %v156 = vld [vmem:[%s1 + $0x458] sm:$0xff]
    %v157 = vld [vmem:[%s1 + $0x460] sm:$0xff]
    %v158 = vld [vmem:[%s1 + $0x468] sm:$0xff]
    %v159 = vld [vmem:[%s1 + $0x470] sm:$0xff]
    %v160 = vld [vmem:[%s1 + $0x478] sm:$0xff]
    %v161 = vld [vmem:[%s1 + $0x480] sm:$0xff]
    %v162 = vld [vmem:[%s1 + $0x488] sm:$0xff]
    %v163 = vld [vmem:[%s1 + $0x490] sm:$0xff]
    %v164 = vld [vmem:[%s1 + $0x498] sm:$0xff]
    %v165 = vld [vmem:[%s1 + $0x4a0] sm:$0xff]
    %v166 = vld [vmem:[%s1 + $0x4a8] sm:$0xff]
    %v167 = vld [vmem:[%s1 + $0x4b0] sm:$0xff]
    %v168 = vld [vmem:[%s1 + $0x4b8] sm:$0xff]
    %v169 = vld [vmem:[%s1 + $0x4c0] sm:$0xff]
    %v170 = vld [vmem:[%s1 + $0x4c8] sm:$0xff]
    %v171 = vld [vmem:[%s1 + $0x4d0] sm:$0xff]
    %v172 = vld [vmem:[%s1 + $0x4d8] sm:$0xff]
    %v173 = vld [vmem:[%s1 + $0x4e0] sm:$0xff]
    %v174 = vld [vmem:[%s1 + $0x4e8] sm:$0xff]
    %v175 = vld [vmem:[%s1 + $0x4f0] sm:$0xff]
    %v176 = vld [vmem:[%s1 + $0x4f8] sm:$0xff]
    %v177 = vld [vmem:[%s1 + $0x500] sm:$0xff]
    %v178 = vld [vmem:[%s1 + $0x508] sm:$0xff]
    %v179 = vld [vmem:[%s1 + $0x510] sm:$0xff]
    %v180 = vld [vmem:[%s1 + $0x518] sm:$0xff]
    %v181 = vld [vmem:[%s1 + $0x520] sm:$0xff]
    %v182 = vld [vmem:[%s1 + $0x528] sm:$0xff]
    %v183 = vld [vmem:[%s1 + $0x530] sm:$0xff]
    %v184 = vld [vmem:[%s1 + $0x538] sm:$0xff]
    %v185 = vld [vmem:[%s1 + $0x540] sm:$0xff]
    %v186 = vld [vmem:[%s1 + $0x548] sm:$0xff]
    %v187 = vld [vmem:[%s1 + $0x550] sm:$0xff]
    %v188 = vld [vmem:[%s1 + $0x558] sm:$0xff]
    %v189 = vld [vmem:[%s1 + $0x560] sm:$0xff]
    %v190 = vld [vmem:[%s1 + $0x568] sm:$0xff]
    %v191 = vld [vmem:[%s1 + $0x570] sm:$0xff]
    %v192 = vld [vmem:[%s1 + $0x578] sm:$0xff]
    %v193 = vld [vmem:[%s1 + $0x580] sm:$0xff]
    %v194 = vld [vmem:[%s1 + $0x588] sm:$0xff]
    %v195 = vld [vmem:[%s1 + $0x590] sm:$0xff]
    %v196 = vld [vmem:[%s1 + $0x598] sm:$0xff]
    %v197 = vld [vmem:[%s1 + $0x5a0] sm:$0xff]
    %v198 = vld [vmem:[%s1 + $0x5a8] sm:$0xff]
    %v199 = vld [vmem:[%s1 + $0x5b0] sm:$0xff]
    %v200 = vld [vmem:[%s1 + $0x5b8] sm:$0xff]
    %v201 = vld [vmem:[%s1 + $0x5c0] sm:$0xff]
    %v202 = vld [vmem:[%s1 + $0x5c8] sm:$0xff]
    %v203 = vld [vmem:[%s1 + $0x5d0] sm:$0xff]
    %v204 = vld [vmem:[%s1 + $0x5d8] sm:$0xff]
    %v205 = vld [vmem:[%s1 + $0x5e0] sm:$0xff]
    %v206 = vld [vmem:[%s1 + $0x5e8] sm:$0xff]
    %v207 = vld [vmem:[%s1 + $0x5f0] sm:$0xff]
    %v208 = vld [vmem:[%s1 + $0x5f8] sm:$0xff]
    %v209 = vld [vmem:[%s1 + $0x600] sm:$0xff]
    %v210 = vld [vmem:[%s1 + $0x608] sm:$0xff]
    %v211 = vld [vmem:[%s1 + $0x610] sm:$0xff]
    %v212 = vld [vmem:[%s1 + $0x618] sm:$0xff]
    %v213 = vld [vmem:[%s1 + $0x620] sm:$0xff]
    %v214 = vld [vmem:[%s1 + $0x628] sm:$0xff]
    %v215 = vld [vmem:[%s1 + $0x630] sm:$0xff]
    %v216 = vld [vmem:[%s1 + $0x638] sm:$0xff]
    %v217 = vld [vmem:[%s1 + $0x640] sm:$0xff]
    %v218 = vld [vmem:[%s1 + $0x648] sm:$0xff]
    %v219 = vld [vmem:[%s1 + $0x650] sm:$0xff]
    %v220 = vld [vmem:[%s1 + $0x658] sm:$0xff]
    %v221 = vld [vmem:[%s1 + $0x660] sm:$0xff]
    %v222 = vld [vmem:[%s1 + $0x668] sm:$0xff]
    %v223 = vld [vmem:[%s1 + $0x670] sm:$0xff]
    %v224 = vld [vmem:[%s1 + $0x678] sm:$0xff]
    %v225 = vld [vmem:[%s1 + $0x680] sm:$0xff]
    %v226 = vld [vmem:[%s1 + $0x688] sm:$0xff]
    %v227 = vld [vmem:[%s1 + $0x690] sm:$0xff]
    %v228 = vld [vmem:[%s1 + $0x698] sm:$0xff]
    %v229 = vld [vmem:[%s1 + $0x6a0] sm:$0xff]
    %v230 = vld [vmem:[%s1 + $0x6a8] sm:$0xff]
    %v231 = vld [vmem:[%s1 + $0x6b0] sm:$0xff]
    %v232 = vld [vmem:[%s1 + $0x6b8] sm:$0xff]
    %v233 = vld [vmem:[%s1 + $0x6c0] sm:$0xff]
    %v234 = vld [vmem:[%s1 + $0x6c8] sm:$0xff]
    %v235 = vld [vmem:[%s1 + $0x6d0] sm:$0xff]
    %v236 = vld [vmem:[%s1 + $0x6d8] sm:$0xff]
    %v237 = vld [vmem:[%s1 + $0x6e0] sm:$0xff]
    %v238 = vld [vmem:[%s1 + $0x6e8] sm:$0xff]
    %v239 = vld [vmem:[%s1 + $0x6f0] sm:$0xff]
    %v240 = vld [vmem:[%s1 + $0x6f8] sm:$0xff]
    %s241 = scalar_lea.vmem %s1, 1792
    %v242 = vld [vmem:[%s241] sm:$0xff]
    %v243 = vld [vmem:[%s241 + $0x8] sm:$0xff]
    %v244 = vld [vmem:[%s241 + $0x10] sm:$0xff]
    %v245 = vld [vmem:[%s241 + $0x18] sm:$0xff]
    %v246 = vld [vmem:[%s241 + $0x20] sm:$0xff]
    %v247 = vld [vmem:[%s241 + $0x28] sm:$0xff]
    %v248 = vld [vmem:[%s241 + $0x30] sm:$0xff]
    %v249 = vld [vmem:[%s241 + $0x38] sm:$0xff]
    %v250 = vld [vmem:[%s241 + $0x40] sm:$0xff]
    %v251 = vld [vmem:[%s241 + $0x48] sm:$0xff]
    %v252 = vld [vmem:[%s241 + $0x50] sm:$0xff]
    %v253 = vld [vmem:[%s241 + $0x58] sm:$0xff]
    %v254 = vld [vmem:[%s241 + $0x60] sm:$0xff]
    %v255 = vld [vmem:[%s241 + $0x68] sm:$0xff]
    %v256 = vld [vmem:[%s241 + $0x70] sm:$0xff]
    %v257 = vld [vmem:[%s241 + $0x78] sm:$0xff]
    %v258 = vld [vmem:[%s241 + $0x80] sm:$0xff]
    %v259 = vld [vmem:[%s241 + $0x88] sm:$0xff]
    %v260 = vld [vmem:[%s241 + $0x90] sm:$0xff]
    %v261 = vld [vmem:[%s241 + $0x98] sm:$0xff]
    %v262 = vld [vmem:[%s241 + $0xa0] sm:$0xff]
    %v263 = vld [vmem:[%s241 + $0xa8] sm:$0xff]
    %v264 = vld [vmem:[%s241 + $0xb0] sm:$0xff]
    %v265 = vld [vmem:[%s241 + $0xb8] sm:$0xff]
    %v266 = vld [vmem:[%s241 + $0xc0] sm:$0xff]
    %v267 = vld [vmem:[%s241 + $0xc8] sm:$0xff]
    %v268 = vld [vmem:[%s241 + $0xd0] sm:$0xff]
    %v269 = vld [vmem:[%s241 + $0xd8] sm:$0xff]
    %v270 = vld [vmem:[%s241 + $0xe0] sm:$0xff]
    %v271 = vld [vmem:[%s241 + $0xe8] sm:$0xff]
    %v272 = vld [vmem:[%s241 + $0xf0] sm:$0xff]
    %v273 = vld [vmem:[%s241 + $0xf8] sm:$0xff]
    %v274 = vld [vmem:[%s241 + $0x100] sm:$0xff]
    %v275 = vld [vmem:[%s241 + $0x108] sm:$0xff]
    %v276 = vld [vmem:[%s241 + $0x110] sm:$0xff]
    %v277 = vld [vmem:[%s241 + $0x118] sm:$0xff]
    %v278 = vld [vmem:[%s241 + $0x120] sm:$0xff]
    %v279 = vld [vmem:[%s241 + $0x128] sm:$0xff]
    %v280 = vld [vmem:[%s241 + $0x130] sm:$0xff]
    %v281 = vld [vmem:[%s241 + $0x138] sm:$0xff]
    %v282 = vld [vmem:[%s241 + $0x140] sm:$0xff]
    %v283 = vld [vmem:[%s241 + $0x148] sm:$0xff]
    %v284 = vld [vmem:[%s241 + $0x150] sm:$0xff]
    %v285 = vld [vmem:[%s241 + $0x158] sm:$0xff]
    %v286 = vld [vmem:[%s241 + $0x160] sm:$0xff]
    %v287 = vld [vmem:[%s241 + $0x168] sm:$0xff]
    %v288 = vld [vmem:[%s241 + $0x170] sm:$0xff]
    %v289 = vld [vmem:[%s241 + $0x178] sm:$0xff]
    %v290 = vld [vmem:[%s241 + $0x180] sm:$0xff]
    %v291 = vld [vmem:[%s241 + $0x188] sm:$0xff]
    %v292 = vld [vmem:[%s241 + $0x190] sm:$0xff]
    %v293 = vld [vmem:[%s241 + $0x198] sm:$0xff]
    %v294 = vld [vmem:[%s241 + $0x1a0] sm:$0xff]
    %v295 = vld [vmem:[%s241 + $0x1a8] sm:$0xff]
    %v296 = vld [vmem:[%s241 + $0x1b0] sm:$0xff]
    %v297 = vld [vmem:[%s241 + $0x1b8] sm:$0xff]
    %v298 = vld [vmem:[%s241 + $0x1c0] sm:$0xff]
    %v299 = vld [vmem:[%s241 + $0x1c8] sm:$0xff]
    %v300 = vld [vmem:[%s241 + $0x1d0] sm:$0xff]
    %v301 = vld [vmem:[%s241 + $0x1d8] sm:$0xff]
    %v302 = vld [vmem:[%s241 + $0x1e0] sm:$0xff]
    %v303 = vld [vmem:[%s241 + $0x1e8] sm:$0xff]
    %v304 = vld [vmem:[%s241 + $0x1f0] sm:$0xff]
    %v305 = vld [vmem:[%s241 + $0x1f8] sm:$0xff]
    %v306 = vld [vmem:[%s241 + $0x200] sm:$0xff]
    %v307 = vld [vmem:[%s241 + $0x208] sm:$0xff]
    %v308 = vld [vmem:[%s241 + $0x210] sm:$0xff]
    %v309 = vld [vmem:[%s241 + $0x218] sm:$0xff]
    %v310 = vld [vmem:[%s241 + $0x220] sm:$0xff]
    %v311 = vld [vmem:[%s241 + $0x228] sm:$0xff]
    %v312 = vld [vmem:[%s241 + $0x230] sm:$0xff]
    %v313 = vld [vmem:[%s241 + $0x238] sm:$0xff]
    %v314 = vld [vmem:[%s241 + $0x240] sm:$0xff]
    %v315 = vld [vmem:[%s241 + $0x248] sm:$0xff]
    %v316 = vld [vmem:[%s241 + $0x250] sm:$0xff]
    %v317 = vld [vmem:[%s241 + $0x258] sm:$0xff]
    %v318 = vld [vmem:[%s241 + $0x260] sm:$0xff]
    %v319 = vld [vmem:[%s241 + $0x268] sm:$0xff]
    %v320 = vld [vmem:[%s241 + $0x270] sm:$0xff]
    %v321 = vld [vmem:[%s241 + $0x278] sm:$0xff]
    %v322 = vld [vmem:[%s241 + $0x280] sm:$0xff]
    %v323 = vld [vmem:[%s241 + $0x288] sm:$0xff]
    %v324 = vld [vmem:[%s241 + $0x290] sm:$0xff]
    %v325 = vld [vmem:[%s241 + $0x298] sm:$0xff]
    %v326 = vld [vmem:[%s241 + $0x2a0] sm:$0xff]
    %v327 = vld [vmem:[%s241 + $0x2a8] sm:$0xff]
    %v328 = vld [vmem:[%s241 + $0x2b0] sm:$0xff]
    %v329 = vld [vmem:[%s241 + $0x2b8] sm:$0xff]
    %v330 = vld [vmem:[%s241 + $0x2c0] sm:$0xff]
    %v331 = vld [vmem:[%s241 + $0x2c8] sm:$0xff]
    %v332 = vld [vmem:[%s241 + $0x2d0] sm:$0xff]
    %v333 = vld [vmem:[%s241 + $0x2d8] sm:$0xff]
    %v334 = vld [vmem:[%s241 + $0x2e0] sm:$0xff]
    %v335 = vld [vmem:[%s241 + $0x2e8] sm:$0xff]
    %v336 = vld [vmem:[%s241 + $0x2f0] sm:$0xff]
    %v337 = vld [vmem:[%s241 + $0x2f8] sm:$0xff]
    %v338 = vld [vmem:[%s241 + $0x300] sm:$0xff]
    %v339 = vld [vmem:[%s241 + $0x308] sm:$0xff]
    %v340 = vld [vmem:[%s241 + $0x310] sm:$0xff]
    %v341 = vld [vmem:[%s241 + $0x318] sm:$0xff]
    %v342 = vld [vmem:[%s241 + $0x320] sm:$0xff]
    %v343 = vld [vmem:[%s241 + $0x328] sm:$0xff]
    %v344 = vld [vmem:[%s241 + $0x330] sm:$0xff]
    %v345 = vld [vmem:[%s241 + $0x338] sm:$0xff]
    %v346 = vld [vmem:[%s241 + $0x340] sm:$0xff]
    %v347 = vld [vmem:[%s241 + $0x348] sm:$0xff]
    %v348 = vld [vmem:[%s241 + $0x350] sm:$0xff]
    %v349 = vld [vmem:[%s241 + $0x358] sm:$0xff]
    %v350 = vld [vmem:[%s241 + $0x360] sm:$0xff]
    %v351 = vld [vmem:[%s241 + $0x368] sm:$0xff]
    %v352 = vld [vmem:[%s241 + $0x370] sm:$0xff]
    %v353 = vld [vmem:[%s241 + $0x378] sm:$0xff]
    %v354 = vld [vmem:[%s241 + $0x380] sm:$0xff]
    %v355 = vld [vmem:[%s241 + $0x388] sm:$0xff]
    %v356 = vld [vmem:[%s241 + $0x390] sm:$0xff]
    %v357 = vld [vmem:[%s241 + $0x398] sm:$0xff]
    %v358 = vld [vmem:[%s241 + $0x3a0] sm:$0xff]
    %v359 = vld [vmem:[%s241 + $0x3a8] sm:$0xff]
    %v360 = vld [vmem:[%s241 + $0x3b0] sm:$0xff]
    %v361 = vld [vmem:[%s241 + $0x3b8] sm:$0xff]
    %v362 = vld [vmem:[%s241 + $0x3c0] sm:$0xff]
    %v363 = vld [vmem:[%s241 + $0x3c8] sm:$0xff]
    %v364 = vld [vmem:[%s241 + $0x3d0] sm:$0xff]
    %v365 = vld [vmem:[%s241 + $0x3d8] sm:$0xff]
    %v366 = vld [vmem:[%s241 + $0x3e0] sm:$0xff]
    %v367 = vld [vmem:[%s241 + $0x3e8] sm:$0xff]
    %v368 = vld [vmem:[%s241 + $0x3f0] sm:$0xff]
    %v369 = vld [vmem:[%s241 + $0x3f8] sm:$0xff]
    %v370 = vld [vmem:[%s241 + $0x400] sm:$0xff]
    %v371 = vld [vmem:[%s241 + $0x408] sm:$0xff]
    %v372 = vld [vmem:[%s241 + $0x410] sm:$0xff]
    %v373 = vld [vmem:[%s241 + $0x418] sm:$0xff]
    %v374 = vld [vmem:[%s241 + $0x420] sm:$0xff]
    %v375 = vld [vmem:[%s241 + $0x428] sm:$0xff]
    %v376 = vld [vmem:[%s241 + $0x430] sm:$0xff]
    %v377 = vld [vmem:[%s241 + $0x438] sm:$0xff]
    %v378 = vld [vmem:[%s241 + $0x440] sm:$0xff]
    %v379 = vld [vmem:[%s241 + $0x448] sm:$0xff]
    %v380 = vld [vmem:[%s241 + $0x450] sm:$0xff]
    %v381 = vld [vmem:[%s241 + $0x458] sm:$0xff]
    %v382 = vld [vmem:[%s241 + $0x460] sm:$0xff]
    %v383 = vld [vmem:[%s241 + $0x468] sm:$0xff]
    %v384 = vld [vmem:[%s241 + $0x470] sm:$0xff]
    %v385 = vld [vmem:[%s241 + $0x478] sm:$0xff]
    %v386 = vld [vmem:[%s241 + $0x480] sm:$0xff]
    %v387 = vld [vmem:[%s241 + $0x488] sm:$0xff]
    %v388 = vld [vmem:[%s241 + $0x490] sm:$0xff]
    %v389 = vld [vmem:[%s241 + $0x498] sm:$0xff]
    %v390 = vld [vmem:[%s241 + $0x4a0] sm:$0xff]
    %v391 = vld [vmem:[%s241 + $0x4a8] sm:$0xff]
    %v392 = vld [vmem:[%s241 + $0x4b0] sm:$0xff]
    %v393 = vld [vmem:[%s241 + $0x4b8] sm:$0xff]
    %v394 = vld [vmem:[%s241 + $0x4c0] sm:$0xff]
    %v395 = vld [vmem:[%s241 + $0x4c8] sm:$0xff]
    %v396 = vld [vmem:[%s241 + $0x4d0] sm:$0xff]
    %v397 = vld [vmem:[%s241 + $0x4d8] sm:$0xff]
    %v398 = vld [vmem:[%s241 + $0x4e0] sm:$0xff]
    %v399 = vld [vmem:[%s241 + $0x4e8] sm:$0xff]
    %v400 = vld [vmem:[%s241 + $0x4f0] sm:$0xff]
    %v401 = vld [vmem:[%s241 + $0x4f8] sm:$0xff]
    %v402 = vld [vmem:[%s241 + $0x500] sm:$0xff]
    %v403 = vld [vmem:[%s241 + $0x508] sm:$0xff]
    %v404 = vld [vmem:[%s241 + $0x510] sm:$0xff]
    %v405 = vld [vmem:[%s241 + $0x518] sm:$0xff]
    %v406 = vld [vmem:[%s241 + $0x520] sm:$0xff]
    %v407 = vld [vmem:[%s241 + $0x528] sm:$0xff]
    %v408 = vld [vmem:[%s241 + $0x530] sm:$0xff]
    %v409 = vld [vmem:[%s241 + $0x538] sm:$0xff]
    %v410 = vld [vmem:[%s241 + $0x540] sm:$0xff]
    %v411 = vld [vmem:[%s241 + $0x548] sm:$0xff]
    %v412 = vld [vmem:[%s241 + $0x550] sm:$0xff]
    %v413 = vld [vmem:[%s241 + $0x558] sm:$0xff]
    %v414 = vld [vmem:[%s241 + $0x560] sm:$0xff]
    %v415 = vld [vmem:[%s241 + $0x568] sm:$0xff]
    %v416 = vld [vmem:[%s241 + $0x570] sm:$0xff]
    %v417 = vld [vmem:[%s241 + $0x578] sm:$0xff]
    %v418 = vld [vmem:[%s241 + $0x580] sm:$0xff]
    %v419 = vld [vmem:[%s241 + $0x588] sm:$0xff]
    %v420 = vld [vmem:[%s241 + $0x590] sm:$0xff]
    %v421 = vld [vmem:[%s241 + $0x598] sm:$0xff]
    %v422 = vld [vmem:[%s241 + $0x5a0] sm:$0xff]
    %v423 = vld [vmem:[%s241 + $0x5a8] sm:$0xff]
    %v424 = vld [vmem:[%s241 + $0x5b0] sm:$0xff]
    %v425 = vld [vmem:[%s241 + $0x5b8] sm:$0xff]
    %v426 = vld [vmem:[%s241 + $0x5c0] sm:$0xff]
    %v427 = vld [vmem:[%s241 + $0x5c8] sm:$0xff]
    %v428 = vld [vmem:[%s241 + $0x5d0] sm:$0xff]
    %v429 = vld [vmem:[%s241 + $0x5d8] sm:$0xff]
    %v430 = vld [vmem:[%s241 + $0x5e0] sm:$0xff]
    %v431 = vld [vmem:[%s241 + $0x5e8] sm:$0xff]
    %v432 = vld [vmem:[%s241 + $0x5f0] sm:$0xff]
    %v433 = vld [vmem:[%s241 + $0x5f8] sm:$0xff]
    %v434 = vld [vmem:[%s241 + $0x600] sm:$0xff]
    %v435 = vld [vmem:[%s241 + $0x608] sm:$0xff]
    %v436 = vld [vmem:[%s241 + $0x610] sm:$0xff]
    %v437 = vld [vmem:[%s241 + $0x618] sm:$0xff]
    %v438 = vld [vmem:[%s241 + $0x620] sm:$0xff]
    %v439 = vld [vmem:[%s241 + $0x628] sm:$0xff]
    %v440 = vld [vmem:[%s241 + $0x630] sm:$0xff]
    %v441 = vld [vmem:[%s241 + $0x638] sm:$0xff]
    %v442 = vld [vmem:[%s241 + $0x640] sm:$0xff]
    %v443 = vld [vmem:[%s241 + $0x648] sm:$0xff]
    %v444 = vld [vmem:[%s241 + $0x650] sm:$0xff]
    %v445 = vld [vmem:[%s241 + $0x658] sm:$0xff]
    %v446 = vld [vmem:[%s241 + $0x660] sm:$0xff]
    %v447 = vld [vmem:[%s241 + $0x668] sm:$0xff]
    %v448 = vld [vmem:[%s241 + $0x670] sm:$0xff]
    %v449 = vld [vmem:[%s241 + $0x678] sm:$0xff]
    %v450 = vld [vmem:[%s241 + $0x680] sm:$0xff]
    %v451 = vld [vmem:[%s241 + $0x688] sm:$0xff]
    %v452 = vld [vmem:[%s241 + $0x690] sm:$0xff]
    %v453 = vld [vmem:[%s241 + $0x698] sm:$0xff]
    %v454 = vld [vmem:[%s241 + $0x6a0] sm:$0xff]
    %v455 = vld [vmem:[%s241 + $0x6a8] sm:$0xff]
    %v456 = vld [vmem:[%s241 + $0x6b0] sm:$0xff]
    %v457 = vld [vmem:[%s241 + $0x6b8] sm:$0xff]
    %v458 = vld [vmem:[%s241 + $0x6c0] sm:$0xff]
    %v459 = vld [vmem:[%s241 + $0x6c8] sm:$0xff]
    %v460 = vld [vmem:[%s241 + $0x6d0] sm:$0xff]
    %v461 = vld [vmem:[%s241 + $0x6d8] sm:$0xff]
    %v462 = vld [vmem:[%s241 + $0x6e0] sm:$0xff]
    %v463 = vld [vmem:[%s241 + $0x6e8] sm:$0xff]
    %v464 = vld [vmem:[%s241 + $0x6f0] sm:$0xff]
    %v465 = vld [vmem:[%s241 + $0x6f8] sm:$0xff]
    %v466 = vand.u32 %v347, 4294901760
    %467 = vmatpush.msra.mxu0 %v466
    %v468 = vand.u32 %v340, 4294901760
    %469 = vmatpush.msra.mxu0 %v468
    %v470 = vand.u32 %v333, 4294901760
    %471 = vmatpush.msra.mxu0 %v470
    %v472 = vand.u32 %v326, 4294901760
    %473 = vmatpush.msra.mxu0 %v472
    %v474 = vand.u32 %v319, 4294901760
    %475 = vmatpush.msra.mxu0 %v474
    %v476 = vand.u32 %v312, 4294901760
    %477 = vmatpush.msra.mxu0 %v476
    %v478 = vand.u32 %v305, 4294901760
    %479 = vmatpush.msra.mxu0 %v478
    %v480 = vand.u32 %v298, 4294901760
    %481 = vmatpush.msra.mxu0 %v480
    %v482 = vand.u32 %v291, 4294901760
    %483 = vmatpush.msra.mxu0 %v482
    %v484 = vand.u32 %v284, 4294901760
    %485 = vmatpush.msra.mxu0 %v484
    %v486 = vand.u32 %v277, 4294901760
    %487 = vmatpush.msra.mxu0 %v486
    %v488 = vand.u32 %v270, 4294901760
    %489 = vmatpush.msra.mxu0 %v488
    %v490 = vand.u32 %v263, 4294901760
    %491 = vmatpush.msra.mxu0 %v490
    %v492 = vand.u32 %v256, 4294901760
    %493 = vmatpush.msra.mxu0 %v492
    %v494 = vand.u32 %v249, 4294901760
    %495 = vmatpush.msra.mxu0 %v494
    %v496 = vand.u32 %v242, 4294901760
    %497 = vmatpush.msra.mxu0 %v496
    %v498 = vand.u32 %v15, 4294901760
    %v499 = vsub.f32 %v15, %v498
    %v500 = vand.u32 %v499, 4294901760
    %v501 = vsub.f32 %v499, %v500
    %v502 = vand.u32 %v501, 4294901760
    %503 = vmatmul.f32.gmra.mxu0 %v502
    %v504 = vpop.f32.mrf.mxu0
    %v505 = vadd.f32 0.0, %v504
    %506 = vdwg.mxu0
    %v507 = vand.u32 %v347, 4294901760
    %v508 = vsub.f32 %v347, %v507
    %v509 = vand.u32 %v508, 4294901760
    %v510 = vsub.f32 %v508, %v509
    %v511 = vand.u32 %v510, 4294901760
    %512 = vmatpush.msra.mxu0 %v511
    %v513 = vand.u32 %v340, 4294901760
    %v514 = vsub.f32 %v340, %v513
    %v515 = vand.u32 %v514, 4294901760
    %v516 = vsub.f32 %v514, %v515
    %v517 = vand.u32 %v516, 4294901760
    %518 = vmatpush.msra.mxu0 %v517
    %v519 = vand.u32 %v333, 4294901760
    %v520 = vsub.f32 %v333, %v519
    %v521 = vand.u32 %v520, 4294901760
    %v522 = vsub.f32 %v520, %v521
    %v523 = vand.u32 %v522, 4294901760
    %524 = vmatpush.msra.mxu0 %v523
    %v525 = vand.u32 %v326, 4294901760
    %v526 = vsub.f32 %v326, %v525
    %v527 = vand.u32 %v526, 4294901760
    %v528 = vsub.f32 %v526, %v527
    %v529 = vand.u32 %v528, 4294901760
    %530 = vmatpush.msra.mxu0 %v529
    %v531 = vand.u32 %v319, 4294901760
    %v532 = vsub.f32 %v319, %v531
    %v533 = vand.u32 %v532, 4294901760
    %v534 = vsub.f32 %v532, %v533
    %v535 = vand.u32 %v534, 4294901760
    %536 = vmatpush.msra.mxu0 %v535
    %v537 = vand.u32 %v312, 4294901760
    %v538 = vsub.f32 %v312, %v537
    %v539 = vand.u32 %v538, 4294901760
    %v540 = vsub.f32 %v538, %v539
    %v541 = vand.u32 %v540, 4294901760
    %542 = vmatpush.msra.mxu0 %v541
    %v543 = vand.u32 %v305, 4294901760
    %v544 = vsub.f32 %v305, %v543
    %v545 = vand.u32 %v544, 4294901760
    %v546 = vsub.f32 %v544, %v545
    %v547 = vand.u32 %v546, 4294901760
    %548 = vmatpush.msra.mxu0 %v547
    %v549 = vand.u32 %v298, 4294901760
    %v550 = vsub.f32 %v298, %v549
    %v551 = vand.u32 %v550, 4294901760
    %v552 = vsub.f32 %v550, %v551
    %v553 = vand.u32 %v552, 4294901760
    %554 = vmatpush.msra.mxu0 %v553
    %v555 = vand.u32 %v291, 4294901760
    %v556 = vsub.f32 %v291, %v555
    %v557 = vand.u32 %v556, 4294901760
    %v558 = vsub.f32 %v556, %v557
    %v559 = vand.u32 %v558, 4294901760
    %560 = vmatpush.msra.mxu0 %v559
    %v561 = vand.u32 %v284, 4294901760
    %v562 = vsub.f32 %v284, %v561
    %v563 = vand.u32 %v562, 4294901760
    %v564 = vsub.f32 %v562, %v563
    %v565 = vand.u32 %v564, 4294901760
    %566 = vmatpush.msra.mxu0 %v565
    %v567 = vand.u32 %v277, 4294901760
    %v568 = vsub.f32 %v277, %v567
    %v569 = vand.u32 %v568, 4294901760
    %v570 = vsub.f32 %v568, %v569
    %v571 = vand.u32 %v570, 4294901760
    %572 = vmatpush.msra.mxu0 %v571
    %v573 = vand.u32 %v270, 4294901760
    %v574 = vsub.f32 %v270, %v573
    %v575 = vand.u32 %v574, 4294901760
    %v576 = vsub.f32 %v574, %v575
    %v577 = vand.u32 %v576, 4294901760
    %578 = vmatpush.msra.mxu0 %v577
    %v579 = vand.u32 %v263, 4294901760
    %v580 = vsub.f32 %v263, %v579
    %v581 = vand.u32 %v580, 4294901760
    %v582 = vsub.f32 %v580, %v581
    %v583 = vand.u32 %v582, 4294901760
    %584 = vmatpush.msra.mxu0 %v583
    %v585 = vand.u32 %v256, 4294901760
    %v586 = vsub.f32 %v256, %v585
    %v587 = vand.u32 %v586, 4294901760
    %v588 = vsub.f32 %v586, %v587
    %v589 = vand.u32 %v588, 4294901760
    %590 = vmatpush.msra.mxu0 %v589
    %v591 = vand.u32 %v249, 4294901760
    %v592 = vsub.f32 %v249, %v591
    %v593 = vand.u32 %v592, 4294901760
    %v594 = vsub.f32 %v592, %v593
    %v595 = vand.u32 %v594, 4294901760
    %596 = vmatpush.msra.mxu0 %v595
    %v597 = vand.u32 %v242, 4294901760
    %v598 = vsub.f32 %v242, %v597
    %v599 = vand.u32 %v598, 4294901760
    %v600 = vsub.f32 %v598, %v599
    %v601 = vand.u32 %v600, 4294901760
    %602 = vmatpush.msra.mxu0 %v601
    %v603 = vand.u32 %v15, 4294901760
    %604 = vmatmul.f32.gmra.mxu0 %v603
    %v605 = vpop.f32.mrf.mxu0
    %v606 = vadd.f32 %v505, %v605
    %607 = vdwg.mxu0
    %v608 = vand.u32 %v347, 4294901760
    %v609 = vsub.f32 %v347, %v608
    %610 = vmatpush.msra.mxu0 %v609
    %v611 = vand.u32 %v340, 4294901760
    %v612 = vsub.f32 %v340, %v611
    %613 = vmatpush.msra.mxu0 %v612
    %v614 = vand.u32 %v333, 4294901760
    %v615 = vsub.f32 %v333, %v614
    %616 = vmatpush.msra.mxu0 %v615
    %v617 = vand.u32 %v326, 4294901760
    %v618 = vsub.f32 %v326, %v617
    %619 = vmatpush.msra.mxu0 %v618
    %v620 = vand.u32 %v319, 4294901760
    %v621 = vsub.f32 %v319, %v620
    %622 = vmatpush.msra.mxu0 %v621
    %v623 = vand.u32 %v312, 4294901760
    %v624 = vsub.f32 %v312, %v623
    %625 = vmatpush.msra.mxu0 %v624
    %v626 = vand.u32 %v305, 4294901760
    %v627 = vsub.f32 %v305, %v626
    %628 = vmatpush.msra.mxu0 %v627
    %v629 = vand.u32 %v298, 4294901760
    %v630 = vsub.f32 %v298, %v629
    %631 = vmatpush.msra.mxu0 %v630
    %v632 = vand.u32 %v291, 4294901760
    %v633 = vsub.f32 %v291, %v632
    %634 = vmatpush.msra.mxu0 %v633
    %v635 = vand.u32 %v284, 4294901760
    %v636 = vsub.f32 %v284, %v635
    %637 = vmatpush.msra.mxu0 %v636
    %v638 = vand.u32 %v277, 4294901760
    %v639 = vsub.f32 %v277, %v638
    %640 = vmatpush.msra.mxu0 %v639
    %v641 = vand.u32 %v270, 4294901760
    %v642 = vsub.f32 %v270, %v641
    %643 = vmatpush.msra.mxu0 %v642
    %v644 = vand.u32 %v263, 4294901760
    %v645 = vsub.f32 %v263, %v644
    %646 = vmatpush.msra.mxu0 %v645
    %v647 = vand.u32 %v256, 4294901760
    %v648 = vsub.f32 %v256, %v647
    %649 = vmatpush.msra.mxu0 %v648
    %v650 = vand.u32 %v249, 4294901760
    %v651 = vsub.f32 %v249, %v650
    %652 = vmatpush.msra.mxu0 %v651
    %v653 = vand.u32 %v242, 4294901760
    %v654 = vsub.f32 %v242, %v653
    %655 = vmatpush.msra.mxu0 %v654
    %v656 = vand.u32 %v15, 4294901760
    %v657 = vsub.f32 %v15, %v656
    %658 = vmatmul.f32.gmra.mxu0 %v657
    %v659 = vpop.f32.mrf.mxu0
    %v660 = vadd.f32 %v606, %v659
    %661 = vdwg.mxu0
    %v662 = vand.u32 %v347, 4294901760
    %663 = vmatpush.msra.mxu0 %v662
    %v664 = vand.u32 %v340, 4294901760
    %665 = vmatpush.msra.mxu0 %v664
    %v666 = vand.u32 %v333, 4294901760
    %667 = vmatpush.msra.mxu0 %v666
    %v668 = vand.u32 %v326, 4294901760
    %669 = vmatpush.msra.mxu0 %v668
    %v670 = vand.u32 %v319, 4294901760
    %671 = vmatpush.msra.mxu0 %v670
    %v672 = vand.u32 %v312, 4294901760
    %673 = vmatpush.msra.mxu0 %v672
    %v674 = vand.u32 %v305, 4294901760
    %675 = vmatpush.msra.mxu0 %v674
    %v676 = vand.u32 %v298, 4294901760
    %677 = vmatpush.msra.mxu0 %v676
    %v678 = vand.u32 %v291, 4294901760
    %679 = vmatpush.msra.mxu0 %v678
    %v680 = vand.u32 %v284, 4294901760
    %681 = vmatpush.msra.mxu0 %v680
    %v682 = vand.u32 %v277, 4294901760
    %683 = vmatpush.msra.mxu0 %v682
    %v684 = vand.u32 %v270, 4294901760
    %685 = vmatpush.msra.mxu0 %v684
    %v686 = vand.u32 %v263, 4294901760
    %687 = vmatpush.msra.mxu0 %v686
    %v688 = vand.u32 %v256, 4294901760
    %689 = vmatpush.msra.mxu0 %v688
    %v690 = vand.u32 %v249, 4294901760
    %691 = vmatpush.msra.mxu0 %v690
    %v692 = vand.u32 %v242, 4294901760
    %693 = vmatpush.msra.mxu0 %v692
    %v694 = vand.u32 %v15, 4294901760
    %v695 = vsub.f32 %v15, %v694
    %v696 = vand.u32 %v695, 4294901760
    %697 = vmatmul.f32.gmra.mxu0 %v696
    %v698 = vpop.f32.mrf.mxu0
    %v699 = vadd.f32 %v660, %v698
    %700 = vdwg.mxu0
    %v701 = vand.u32 %v347, 4294901760
    %v702 = vsub.f32 %v347, %v701
    %v703 = vand.u32 %v702, 4294901760
    %704 = vmatpush.msra.mxu0 %v703
    %v705 = vand.u32 %v340, 4294901760
    %v706 = vsub.f32 %v340, %v705
    %v707 = vand.u32 %v706, 4294901760
    %708 = vmatpush.msra.mxu0 %v707
    %v709 = vand.u32 %v333, 4294901760
    %v710 = vsub.f32 %v333, %v709
    %v711 = vand.u32 %v710, 4294901760
    %712 = vmatpush.msra.mxu0 %v711
    %v713 = vand.u32 %v326, 4294901760
    %v714 = vsub.f32 %v326, %v713
    %v715 = vand.u32 %v714, 4294901760
    %716 = vmatpush.msra.mxu0 %v715
    %v717 = vand.u32 %v319, 4294901760
    %v718 = vsub.f32 %v319, %v717
    %v719 = vand.u32 %v718, 4294901760
    %720 = vmatpush.msra.mxu0 %v719
    %v721 = vand.u32 %v312, 4294901760
    %v722 = vsub.f32 %v312, %v721
    %v723 = vand.u32 %v722, 4294901760
    %724 = vmatpush.msra.mxu0 %v723
    %v725 = vand.u32 %v305, 4294901760
    %v726 = vsub.f32 %v305, %v725
    %v727 = vand.u32 %v726, 4294901760
    %728 = vmatpush.msra.mxu0 %v727
    %v729 = vand.u32 %v298, 4294901760
    %v730 = vsub.f32 %v298, %v729
    %v731 = vand.u32 %v730, 4294901760
    %732 = vmatpush.msra.mxu0 %v731
    %v733 = vand.u32 %v291, 4294901760
    %v734 = vsub.f32 %v291, %v733
    %v735 = vand.u32 %v734, 4294901760
    %736 = vmatpush.msra.mxu0 %v735
    %v737 = vand.u32 %v284, 4294901760
    %v738 = vsub.f32 %v284, %v737
    %v739 = vand.u32 %v738, 4294901760
    %740 = vmatpush.msra.mxu0 %v739
    %v741 = vand.u32 %v277, 4294901760
    %v742 = vsub.f32 %v277, %v741
    %v743 = vand.u32 %v742, 4294901760
    %744 = vmatpush.msra.mxu0 %v743
    %v745 = vand.u32 %v270, 4294901760
    %v746 = vsub.f32 %v270, %v745
    %v747 = vand.u32 %v746, 4294901760
    %748 = vmatpush.msra.mxu0 %v747
    %v749 = vand.u32 %v263, 4294901760
    %v750 = vsub.f32 %v263, %v749
    %v751 = vand.u32 %v750, 4294901760
    %752 = vmatpush.msra.mxu0 %v751
    %v753 = vand.u32 %v256, 4294901760
    %v754 = vsub.f32 %v256, %v753
    %v755 = vand.u32 %v754, 4294901760
    %756 = vmatpush.msra.mxu0 %v755
    %v757 = vand.u32 %v249, 4294901760
    %v758 = vsub.f32 %v249, %v757
    %v759 = vand.u32 %v758, 4294901760
    %760 = vmatpush.msra.mxu0 %v759
    %v761 = vand.u32 %v242, 4294901760
    %v762 = vsub.f32 %v242, %v761
    %v763 = vand.u32 %v762, 4294901760
    %764 = vmatpush.msra.mxu0 %v763
    %v765 = vand.u32 %v15, 4294901760
    %766 = vmatmul.f32.gmra.mxu0 %v765
    %v767 = vpop.f32.mrf.mxu0
    %v768 = vadd.f32 %v699, %v767
    %769 = vdwg.mxu0
    %v770 = vand.u32 %v347, 4294901760
    %771 = vmatpush.msra.mxu0 %v770
    %v772 = vand.u32 %v340, 4294901760
    %773 = vmatpush.msra.mxu0 %v772
    %v774 = vand.u32 %v333, 4294901760
    %775 = vmatpush.msra.mxu0 %v774
    %v776 = vand.u32 %v326, 4294901760
    %777 = vmatpush.msra.mxu0 %v776
    %v778 = vand.u32 %v319, 4294901760
    %779 = vmatpush.msra.mxu0 %v778
    %v780 = vand.u32 %v312, 4294901760
    %781 = vmatpush.msra.mxu0 %v780
    %v782 = vand.u32 %v305, 4294901760
    %783 = vmatpush.msra.mxu0 %v782
    %v784 = vand.u32 %v298, 4294901760
    %785 = vmatpush.msra.mxu0 %v784
    %v786 = vand.u32 %v291, 4294901760
    %787 = vmatpush.msra.mxu0 %v786
    %v788 = vand.u32 %v284, 4294901760
    %789 = vmatpush.msra.mxu0 %v788
    %v790 = vand.u32 %v277, 4294901760
    %791 = vmatpush.msra.mxu0 %v790
    %v792 = vand.u32 %v270, 4294901760
    %793 = vmatpush.msra.mxu0 %v792
    %v794 = vand.u32 %v263, 4294901760
    %795 = vmatpush.msra.mxu0 %v794
    %v796 = vand.u32 %v256, 4294901760
    %797 = vmatpush.msra.mxu0 %v796
    %v798 = vand.u32 %v249, 4294901760
    %799 = vmatpush.msra.mxu0 %v798
    %v800 = vand.u32 %v242, 4294901760
    %801 = vmatpush.msra.mxu0 %v800
    %v802 = vand.u32 %v15, 4294901760
    %803 = vmatmul.f32.gmra.mxu0 %v802
    %v804 = vpop.f32.mrf.mxu0
    %v805 = vadd.f32 %v768, %v804
    %806 = vdwg.mxu0
    %v807 = vand.u32 %v459, 4294901760
    %808 = vmatpush.msra.mxu0 %v807
    %v809 = vand.u32 %v452, 4294901760
    %810 = vmatpush.msra.mxu0 %v809
    %v811 = vand.u32 %v445, 4294901760
    %812 = vmatpush.msra.mxu0 %v811
    %v813 = vand.u32 %v438, 4294901760
    %814 = vmatpush.msra.mxu0 %v813
    %v815 = vand.u32 %v431, 4294901760
    %816 = vmatpush.msra.mxu0 %v815
    %v817 = vand.u32 %v424, 4294901760
    %818 = vmatpush.msra.mxu0 %v817
    %v819 = vand.u32 %v417, 4294901760
    %820 = vmatpush.msra.mxu0 %v819
    %v821 = vand.u32 %v410, 4294901760
    %822 = vmatpush.msra.mxu0 %v821
    %v823 = vand.u32 %v403, 4294901760
    %824 = vmatpush.msra.mxu0 %v823
    %v825 = vand.u32 %v396, 4294901760
    %826 = vmatpush.msra.mxu0 %v825
    %v827 = vand.u32 %v389, 4294901760
    %828 = vmatpush.msra.mxu0 %v827
    %v829 = vand.u32 %v382, 4294901760
    %830 = vmatpush.msra.mxu0 %v829
    %v831 = vand.u32 %v375, 4294901760
    %832 = vmatpush.msra.mxu0 %v831
    %v833 = vand.u32 %v368, 4294901760
    %834 = vmatpush.msra.mxu0 %v833
    %v835 = vand.u32 %v361, 4294901760
    %836 = vmatpush.msra.mxu0 %v835
    %v837 = vand.u32 %v354, 4294901760
    %838 = vmatpush.msra.mxu0 %v837
    %v839 = vand.u32 %v16, 4294901760
    %v840 = vsub.f32 %v16, %v839
    %v841 = vand.u32 %v840, 4294901760
    %v842 = vsub.f32 %v840, %v841
    %v843 = vand.u32 %v842, 4294901760
    %844 = vmatmul.f32.gmra.mxu0 %v843
    %v845 = vpop.f32.mrf.mxu0
    %v846 = vadd.f32 %v805, %v845
    %847 = vdwg.mxu0
    %v848 = vand.u32 %v459, 4294901760
    %v849 = vsub.f32 %v459, %v848
    %v850 = vand.u32 %v849, 4294901760
    %v851 = vsub.f32 %v849, %v850
    %v852 = vand.u32 %v851, 4294901760
    %853 = vmatpush.msra.mxu0 %v852
    %v854 = vand.u32 %v452, 4294901760
    %v855 = vsub.f32 %v452, %v854
    %v856 = vand.u32 %v855, 4294901760
    %v857 = vsub.f32 %v855, %v856
    %v858 = vand.u32 %v857, 4294901760
    %859 = vmatpush.msra.mxu0 %v858
    %v860 = vand.u32 %v445, 4294901760
    %v861 = vsub.f32 %v445, %v860
    %v862 = vand.u32 %v861, 4294901760
    %v863 = vsub.f32 %v861, %v862
    %v864 = vand.u32 %v863, 4294901760
    %865 = vmatpush.msra.mxu0 %v864
    %v866 = vand.u32 %v438, 4294901760
    %v867 = vsub.f32 %v438, %v866
    %v868 = vand.u32 %v867, 4294901760
    %v869 = vsub.f32 %v867, %v868
    %v870 = vand.u32 %v869, 4294901760
    %871 = vmatpush.msra.mxu0 %v870
    %v872 = vand.u32 %v431, 4294901760
    %v873 = vsub.f32 %v431, %v872
    %v874 = vand.u32 %v873, 4294901760
    %v875 = vsub.f32 %v873, %v874
    %v876 = vand.u32 %v875, 4294901760
    %877 = vmatpush.msra.mxu0 %v876
    %v878 = vand.u32 %v424, 4294901760
    %v879 = vsub.f32 %v424, %v878
    %v880 = vand.u32 %v879, 4294901760
    %v881 = vsub.f32 %v879, %v880
    %v882 = vand.u32 %v881, 4294901760
    %883 = vmatpush.msra.mxu0 %v882
    %v884 = vand.u32 %v417, 4294901760
    %v885 = vsub.f32 %v417, %v884
    %v886 = vand.u32 %v885, 4294901760
    %v887 = vsub.f32 %v885, %v886
    %v888 = vand.u32 %v887, 4294901760
    %889 = vmatpush.msra.mxu0 %v888
    %v890 = vand.u32 %v410, 4294901760
    %v891 = vsub.f32 %v410, %v890
    %v892 = vand.u32 %v891, 4294901760
    %v893 = vsub.f32 %v891, %v892
    %v894 = vand.u32 %v893, 4294901760
    %895 = vmatpush.msra.mxu0 %v894
    %v896 = vand.u32 %v403, 4294901760
    %v897 = vsub.f32 %v403, %v896
    %v898 = vand.u32 %v897, 4294901760
    %v899 = vsub.f32 %v897, %v898
    %v900 = vand.u32 %v899, 4294901760
    %901 = vmatpush.msra.mxu0 %v900
    %v902 = vand.u32 %v396, 4294901760
    %v903 = vsub.f32 %v396, %v902
    %v904 = vand.u32 %v903, 4294901760
    %v905 = vsub.f32 %v903, %v904
    %v906 = vand.u32 %v905, 4294901760
    %907 = vmatpush.msra.mxu0 %v906
    %v908 = vand.u32 %v389, 4294901760
    %v909 = vsub.f32 %v389, %v908
    %v910 = vand.u32 %v909, 4294901760
    %v911 = vsub.f32 %v909, %v910
    %v912 = vand.u32 %v911, 4294901760
    %913 = vmatpush.msra.mxu0 %v912
    %v914 = vand.u32 %v382, 4294901760
    %v915 = vsub.f32 %v382, %v914
    %v916 = vand.u32 %v915, 4294901760
    %v917 = vsub.f32 %v915, %v916
    %v918 = vand.u32 %v917, 4294901760
    %919 = vmatpush.msra.mxu0 %v918
    %v920 = vand.u32 %v375, 4294901760
    %v921 = vsub.f32 %v375, %v920
    %v922 = vand.u32 %v921, 4294901760
    %v923 = vsub.f32 %v921, %v922
    %v924 = vand.u32 %v923, 4294901760
    %925 = vmatpush.msra.mxu0 %v924
    %v926 = vand.u32 %v368, 4294901760
    %v927 = vsub.f32 %v368, %v926
    %v928 = vand.u32 %v927, 4294901760
    %v929 = vsub.f32 %v927, %v928
    %v930 = vand.u32 %v929, 4294901760
    %931 = vmatpush.msra.mxu0 %v930
    %v932 = vand.u32 %v361, 4294901760
    %v933 = vsub.f32 %v361, %v932
    %v934 = vand.u32 %v933, 4294901760
    %v935 = vsub.f32 %v933, %v934
    %v936 = vand.u32 %v935, 4294901760
    %937 = vmatpush.msra.mxu0 %v936
    %v938 = vand.u32 %v354, 4294901760
    %v939 = vsub.f32 %v354, %v938
    %v940 = vand.u32 %v939, 4294901760
    %v941 = vsub.f32 %v939, %v940
    %v942 = vand.u32 %v941, 4294901760
    %943 = vmatpush.msra.mxu0 %v942
    %v944 = vand.u32 %v16, 4294901760
    %945 = vmatmul.f32.gmra.mxu0 %v944
    %v946 = vpop.f32.mrf.mxu0
    %v947 = vadd.f32 %v846, %v946
    %948 = vdwg.mxu0
    %v949 = vand.u32 %v459, 4294901760
    %v950 = vsub.f32 %v459, %v949
    %951 = vmatpush.msra.mxu0 %v950
    %v952 = vand.u32 %v452, 4294901760
    %v953 = vsub.f32 %v452, %v952
    %954 = vmatpush.msra.mxu0 %v953
    %v955 = vand.u32 %v445, 4294901760
    %v956 = vsub.f32 %v445, %v955
    %957 = vmatpush.msra.mxu0 %v956
    %v958 = vand.u32 %v438, 4294901760
    %v959 = vsub.f32 %v438, %v958
    %960 = vmatpush.msra.mxu0 %v959
    %v961 = vand.u32 %v431, 4294901760
    %v962 = vsub.f32 %v431, %v961
    %963 = vmatpush.msra.mxu0 %v962
    %v964 = vand.u32 %v424, 4294901760
    %v965 = vsub.f32 %v424, %v964
    %966 = vmatpush.msra.mxu0 %v965
    %v967 = vand.u32 %v417, 4294901760
    %v968 = vsub.f32 %v417, %v967
    %969 = vmatpush.msra.mxu0 %v968
    %v970 = vand.u32 %v410, 4294901760
    %v971 = vsub.f32 %v410, %v970
    %972 = vmatpush.msra.mxu0 %v971
    %v973 = vand.u32 %v403, 4294901760
    %v974 = vsub.f32 %v403, %v973
    %975 = vmatpush.msra.mxu0 %v974
    %v976 = vand.u32 %v396, 4294901760
    %v977 = vsub.f32 %v396, %v976
    %978 = vmatpush.msra.mxu0 %v977
    %v979 = vand.u32 %v389, 4294901760
    %v980 = vsub.f32 %v389, %v979
    %981 = vmatpush.msra.mxu0 %v980
    %v982 = vand.u32 %v382, 4294901760
    %v983 = vsub.f32 %v382, %v982
    %984 = vmatpush.msra.mxu0 %v983
    %v985 = vand.u32 %v375, 4294901760
    %v986 = vsub.f32 %v375, %v985
    %987 = vmatpush.msra.mxu0 %v986
    %v988 = vand.u32 %v368, 4294901760
    %v989 = vsub.f32 %v368, %v988
    %990 = vmatpush.msra.mxu0 %v989
    %v991 = vand.u32 %v361, 4294901760
    %v992 = vsub.f32 %v361, %v991
    %993 = vmatpush.msra.mxu0 %v992
    %v994 = vand.u32 %v354, 4294901760
    %v995 = vsub.f32 %v354, %v994
    %996 = vmatpush.msra.mxu0 %v995
    %v997 = vand.u32 %v16, 4294901760
    %v998 = vsub.f32 %v16, %v997
    %999 = vmatmul.f32.gmra.mxu0 %v998
    %v1000 = vpop.f32.mrf.mxu0
    %v1001 = vadd.f32 %v947, %v1000
    %1002 = vdwg.mxu0
    %v1003 = vand.u32 %v459, 4294901760
    %1004 = vmatpush.msra.mxu0 %v1003
    %v1005 = vand.u32 %v452, 4294901760
    %1006 = vmatpush.msra.mxu0 %v1005
    %v1007 = vand.u32 %v445, 4294901760
    %1008 = vmatpush.msra.mxu0 %v1007
    %v1009 = vand.u32 %v438, 4294901760
    %1010 = vmatpush.msra.mxu0 %v1009
    %v1011 = vand.u32 %v431, 4294901760
    %1012 = vmatpush.msra.mxu0 %v1011
    %v1013 = vand.u32 %v424, 4294901760
    %1014 = vmatpush.msra.mxu0 %v1013
    %v1015 = vand.u32 %v417, 4294901760
    %1016 = vmatpush.msra.mxu0 %v1015
    %v1017 = vand.u32 %v410, 4294901760
    %1018 = vmatpush.msra.mxu0 %v1017
    %v1019 = vand.u32 %v403, 4294901760
    %1020 = vmatpush.msra.mxu0 %v1019
    %v1021 = vand.u32 %v396, 4294901760
    %1022 = vmatpush.msra.mxu0 %v1021
    %v1023 = vand.u32 %v389, 4294901760
    %1024 = vmatpush.msra.mxu0 %v1023
    %v1025 = vand.u32 %v382, 4294901760
    %1026 = vmatpush.msra.mxu0 %v1025
    %v1027 = vand.u32 %v375, 4294901760
    %1028 = vmatpush.msra.mxu0 %v1027
    %v1029 = vand.u32 %v368, 4294901760
    %1030 = vmatpush.msra.mxu0 %v1029
    %v1031 = vand.u32 %v361, 4294901760
    %1032 = vmatpush.msra.mxu0 %v1031
    %v1033 = vand.u32 %v354, 4294901760
    %1034 = vmatpush.msra.mxu0 %v1033
    %v1035 = vand.u32 %v16, 4294901760
    %v1036 = vsub.f32 %v16, %v1035
    %v1037 = vand.u32 %v1036, 4294901760
    %1038 = vmatmul.f32.gmra.mxu0 %v1037
    %v1039 = vpop.f32.mrf.mxu0
    %v1040 = vadd.f32 %v1001, %v1039
    %1041 = vdwg.mxu0
    %v1042 = vand.u32 %v459, 4294901760
    %v1043 = vsub.f32 %v459, %v1042
    %v1044 = vand.u32 %v1043, 4294901760
    %1045 = vmatpush.msra.mxu0 %v1044
    %v1046 = vand.u32 %v452, 4294901760
    %v1047 = vsub.f32 %v452, %v1046
    %v1048 = vand.u32 %v1047, 4294901760
    %1049 = vmatpush.msra.mxu0 %v1048
    %v1050 = vand.u32 %v445, 4294901760
    %v1051 = vsub.f32 %v445, %v1050
    %v1052 = vand.u32 %v1051, 4294901760
    %1053 = vmatpush.msra.mxu0 %v1052
    %v1054 = vand.u32 %v438, 4294901760
    %v1055 = vsub.f32 %v438, %v1054
    %v1056 = vand.u32 %v1055, 4294901760
    %1057 = vmatpush.msra.mxu0 %v1056
    %v1058 = vand.u32 %v431, 4294901760
    %v1059 = vsub.f32 %v431, %v1058
    %v1060 = vand.u32 %v1059, 4294901760
    %1061 = vmatpush.msra.mxu0 %v1060
    %v1062 = vand.u32 %v424, 4294901760
    %v1063 = vsub.f32 %v424, %v1062
    %v1064 = vand.u32 %v1063, 4294901760
    %1065 = vmatpush.msra.mxu0 %v1064
    %v1066 = vand.u32 %v417, 4294901760
    %v1067 = vsub.f32 %v417, %v1066
    %v1068 = vand.u32 %v1067, 4294901760
    %1069 = vmatpush.msra.mxu0 %v1068
    %v1070 = vand.u32 %v410, 4294901760
    %v1071 = vsub.f32 %v410, %v1070
    %v1072 = vand.u32 %v1071, 4294901760
    %1073 = vmatpush.msra.mxu0 %v1072
    %v1074 = vand.u32 %v403, 4294901760
    %v1075 = vsub.f32 %v403, %v1074
    %v1076 = vand.u32 %v1075, 4294901760
    %1077 = vmatpush.msra.mxu0 %v1076
    %v1078 = vand.u32 %v396, 4294901760
    %v1079 = vsub.f32 %v396, %v1078
    %v1080 = vand.u32 %v1079, 4294901760
    %1081 = vmatpush.msra.mxu0 %v1080
    %v1082 = vand.u32 %v389, 4294901760
    %v1083 = vsub.f32 %v389, %v1082
    %v1084 = vand.u32 %v1083, 4294901760
    %1085 = vmatpush.msra.mxu0 %v1084
    %v1086 = vand.u32 %v382, 4294901760
    %v1087 = vsub.f32 %v382, %v1086
    %v1088 = vand.u32 %v1087, 4294901760
    %1089 = vmatpush.msra.mxu0 %v1088
    %v1090 = vand.u32 %v375, 4294901760
    %v1091 = vsub.f32 %v375, %v1090
    %v1092 = vand.u32 %v1091, 4294901760
    %1093 = vmatpush.msra.mxu0 %v1092
    %v1094 = vand.u32 %v368, 4294901760
    %v1095 = vsub.f32 %v368, %v1094
    %v1096 = vand.u32 %v1095, 4294901760
    %1097 = vmatpush.msra.mxu0 %v1096
    %v1098 = vand.u32 %v361, 4294901760
    %v1099 = vsub.f32 %v361, %v1098
    %v1100 = vand.u32 %v1099, 4294901760
    %1101 = vmatpush.msra.mxu0 %v1100
    %v1102 = vand.u32 %v354, 4294901760
    %v1103 = vsub.f32 %v354, %v1102
    %v1104 = vand.u32 %v1103, 4294901760
    %1105 = vmatpush.msra.mxu0 %v1104
    %v1106 = vand.u32 %v16, 4294901760
    %1107 = vmatmul.f32.gmra.mxu0 %v1106
    %v1108 = vpop.f32.mrf.mxu0
    %v1109 = vadd.f32 %v1040, %v1108
    %1110 = vdwg.mxu0
    %v1111 = vand.u32 %v459, 4294901760
    %1112 = vmatpush.msra.mxu0 %v1111
    %v1113 = vand.u32 %v452, 4294901760
    %1114 = vmatpush.msra.mxu0 %v1113
    %v1115 = vand.u32 %v445, 4294901760
    %1116 = vmatpush.msra.mxu0 %v1115
    %v1117 = vand.u32 %v438, 4294901760
    %1118 = vmatpush.msra.mxu0 %v1117
    %v1119 = vand.u32 %v431, 4294901760
    %1120 = vmatpush.msra.mxu0 %v1119
    %v1121 = vand.u32 %v424, 4294901760
    %1122 = vmatpush.msra.mxu0 %v1121
    %v1123 = vand.u32 %v417, 4294901760
    %1124 = vmatpush.msra.mxu0 %v1123
    %v1125 = vand.u32 %v410, 4294901760
    %1126 = vmatpush.msra.mxu0 %v1125
    %v1127 = vand.u32 %v403, 4294901760
    %1128 = vmatpush.msra.mxu0 %v1127
    %v1129 = vand.u32 %v396, 4294901760
    %1130 = vmatpush.msra.mxu0 %v1129
    %v1131 = vand.u32 %v389, 4294901760
    %1132 = vmatpush.msra.mxu0 %v1131
    %v1133 = vand.u32 %v382, 4294901760
    %1134 = vmatpush.msra.mxu0 %v1133
    %v1135 = vand.u32 %v375, 4294901760
    %1136 = vmatpush.msra.mxu0 %v1135
    %v1137 = vand.u32 %v368, 4294901760
    %1138 = vmatpush.msra.mxu0 %v1137
    %v1139 = vand.u32 %v361, 4294901760
    %1140 = vmatpush.msra.mxu0 %v1139
    %v1141 = vand.u32 %v354, 4294901760
    %1142 = vmatpush.msra.mxu0 %v1141
    %v1143 = vand.u32 %v16, 4294901760
    %1144 = vmatmul.f32.gmra.mxu0 %v1143
    %v1145 = vpop.f32.mrf.mxu0
    %v1146 = vadd.f32 %v1109, %v1145
    %1147 = vdwg.mxu0
    %v1148 = vand.u32 %v348, 4294901760
    %1149 = vmatpush.msra.mxu0 %v1148
    %v1150 = vand.u32 %v341, 4294901760
    %1151 = vmatpush.msra.mxu0 %v1150
    %v1152 = vand.u32 %v334, 4294901760
    %1153 = vmatpush.msra.mxu0 %v1152
    %v1154 = vand.u32 %v327, 4294901760
    %1155 = vmatpush.msra.mxu0 %v1154
    %v1156 = vand.u32 %v320, 4294901760
    %1157 = vmatpush.msra.mxu0 %v1156
    %v1158 = vand.u32 %v313, 4294901760
    %1159 = vmatpush.msra.mxu0 %v1158
    %v1160 = vand.u32 %v306, 4294901760
    %1161 = vmatpush.msra.mxu0 %v1160
    %v1162 = vand.u32 %v299, 4294901760
    %1163 = vmatpush.msra.mxu0 %v1162
    %v1164 = vand.u32 %v292, 4294901760
    %1165 = vmatpush.msra.mxu0 %v1164
    %v1166 = vand.u32 %v285, 4294901760
    %1167 = vmatpush.msra.mxu0 %v1166
    %v1168 = vand.u32 %v278, 4294901760
    %1169 = vmatpush.msra.mxu0 %v1168
    %v1170 = vand.u32 %v271, 4294901760
    %1171 = vmatpush.msra.mxu0 %v1170
    %v1172 = vand.u32 %v264, 4294901760
    %1173 = vmatpush.msra.mxu0 %v1172
    %v1174 = vand.u32 %v257, 4294901760
    %1175 = vmatpush.msra.mxu0 %v1174
    %v1176 = vand.u32 %v250, 4294901760
    %1177 = vmatpush.msra.mxu0 %v1176
    %v1178 = vand.u32 %v243, 4294901760
    %1179 = vmatpush.msra.mxu0 %v1178
    %v1180 = vand.u32 %v15, 4294901760
    %v1181 = vsub.f32 %v15, %v1180
    %v1182 = vand.u32 %v1181, 4294901760
    %v1183 = vsub.f32 %v1181, %v1182
    %v1184 = vand.u32 %v1183, 4294901760
    %1185 = vmatmul.f32.gmra.mxu0 %v1184
    %v1186 = vpop.f32.mrf.mxu0
    %v1187 = vadd.f32 0.0, %v1186
    %1188 = vdwg.mxu0
    %v1189 = vand.u32 %v348, 4294901760
    %v1190 = vsub.f32 %v348, %v1189
    %v1191 = vand.u32 %v1190, 4294901760
    %v1192 = vsub.f32 %v1190, %v1191
    %v1193 = vand.u32 %v1192, 4294901760
    %1194 = vmatpush.msra.mxu0 %v1193
    %v1195 = vand.u32 %v341, 4294901760
    %v1196 = vsub.f32 %v341, %v1195
    %v1197 = vand.u32 %v1196, 4294901760
    %v1198 = vsub.f32 %v1196, %v1197
    %v1199 = vand.u32 %v1198, 4294901760
    %1200 = vmatpush.msra.mxu0 %v1199
    %v1201 = vand.u32 %v334, 4294901760
    %v1202 = vsub.f32 %v334, %v1201
    %v1203 = vand.u32 %v1202, 4294901760
    %v1204 = vsub.f32 %v1202, %v1203
    %v1205 = vand.u32 %v1204, 4294901760
    %1206 = vmatpush.msra.mxu0 %v1205
    %v1207 = vand.u32 %v327, 4294901760
    %v1208 = vsub.f32 %v327, %v1207
    %v1209 = vand.u32 %v1208, 4294901760
    %v1210 = vsub.f32 %v1208, %v1209
    %v1211 = vand.u32 %v1210, 4294901760
    %1212 = vmatpush.msra.mxu0 %v1211
    %v1213 = vand.u32 %v320, 4294901760
    %v1214 = vsub.f32 %v320, %v1213
    %v1215 = vand.u32 %v1214, 4294901760
    %v1216 = vsub.f32 %v1214, %v1215
    %v1217 = vand.u32 %v1216, 4294901760
    %1218 = vmatpush.msra.mxu0 %v1217
    %v1219 = vand.u32 %v313, 4294901760
    %v1220 = vsub.f32 %v313, %v1219
    %v1221 = vand.u32 %v1220, 4294901760
    %v1222 = vsub.f32 %v1220, %v1221
    %v1223 = vand.u32 %v1222, 4294901760
    %1224 = vmatpush.msra.mxu0 %v1223
    %v1225 = vand.u32 %v306, 4294901760
    %v1226 = vsub.f32 %v306, %v1225
    %v1227 = vand.u32 %v1226, 4294901760
    %v1228 = vsub.f32 %v1226, %v1227
    %v1229 = vand.u32 %v1228, 4294901760
    %1230 = vmatpush.msra.mxu0 %v1229
    %v1231 = vand.u32 %v299, 4294901760
    %v1232 = vsub.f32 %v299, %v1231
    %v1233 = vand.u32 %v1232, 4294901760
    %v1234 = vsub.f32 %v1232, %v1233
    %v1235 = vand.u32 %v1234, 4294901760
    %1236 = vmatpush.msra.mxu0 %v1235
    %v1237 = vand.u32 %v292, 4294901760
    %v1238 = vsub.f32 %v292, %v1237
    %v1239 = vand.u32 %v1238, 4294901760
    %v1240 = vsub.f32 %v1238, %v1239
    %v1241 = vand.u32 %v1240, 4294901760
    %1242 = vmatpush.msra.mxu0 %v1241
    %v1243 = vand.u32 %v285, 4294901760
    %v1244 = vsub.f32 %v285, %v1243
    %v1245 = vand.u32 %v1244, 4294901760
    %v1246 = vsub.f32 %v1244, %v1245
    %v1247 = vand.u32 %v1246, 4294901760
    %1248 = vmatpush.msra.mxu0 %v1247
    %v1249 = vand.u32 %v278, 4294901760
    %v1250 = vsub.f32 %v278, %v1249
    %v1251 = vand.u32 %v1250, 4294901760
    %v1252 = vsub.f32 %v1250, %v1251
    %v1253 = vand.u32 %v1252, 4294901760
    %1254 = vmatpush.msra.mxu0 %v1253
    %v1255 = vand.u32 %v271, 4294901760
    %v1256 = vsub.f32 %v271, %v1255
    %v1257 = vand.u32 %v1256, 4294901760
    %v1258 = vsub.f32 %v1256, %v1257
    %v1259 = vand.u32 %v1258, 4294901760
    %1260 = vmatpush.msra.mxu0 %v1259
    %v1261 = vand.u32 %v264, 4294901760
    %v1262 = vsub.f32 %v264, %v1261
    %v1263 = vand.u32 %v1262, 4294901760
    %v1264 = vsub.f32 %v1262, %v1263
    %v1265 = vand.u32 %v1264, 4294901760
    %1266 = vmatpush.msra.mxu0 %v1265
    %v1267 = vand.u32 %v257, 4294901760
    %v1268 = vsub.f32 %v257, %v1267
    %v1269 = vand.u32 %v1268, 4294901760
    %v1270 = vsub.f32 %v1268, %v1269
    %v1271 = vand.u32 %v1270, 4294901760
    %1272 = vmatpush.msra.mxu0 %v1271
    %v1273 = vand.u32 %v250, 4294901760
    %v1274 = vsub.f32 %v250, %v1273
    %v1275 = vand.u32 %v1274, 4294901760
    %v1276 = vsub.f32 %v1274, %v1275
    %v1277 = vand.u32 %v1276, 4294901760
    %1278 = vmatpush.msra.mxu0 %v1277
    %v1279 = vand.u32 %v243, 4294901760
    %v1280 = vsub.f32 %v243, %v1279
    %v1281 = vand.u32 %v1280, 4294901760
    %v1282 = vsub.f32 %v1280, %v1281
    %v1283 = vand.u32 %v1282, 4294901760
    %1284 = vmatpush.msra.mxu0 %v1283
    %v1285 = vand.u32 %v15, 4294901760
    %1286 = vmatmul.f32.gmra.mxu0 %v1285
    %v1287 = vpop.f32.mrf.mxu0
    %v1288 = vadd.f32 %v1187, %v1287
    %1289 = vdwg.mxu0
    %v1290 = vand.u32 %v348, 4294901760
    %v1291 = vsub.f32 %v348, %v1290
    %1292 = vmatpush.msra.mxu0 %v1291
    %v1293 = vand.u32 %v341, 4294901760
    %v1294 = vsub.f32 %v341, %v1293
    %1295 = vmatpush.msra.mxu0 %v1294
    %v1296 = vand.u32 %v334, 4294901760
    %v1297 = vsub.f32 %v334, %v1296
    %1298 = vmatpush.msra.mxu0 %v1297
    %v1299 = vand.u32 %v327, 4294901760
    %v1300 = vsub.f32 %v327, %v1299
    %1301 = vmatpush.msra.mxu0 %v1300
    %v1302 = vand.u32 %v320, 4294901760
    %v1303 = vsub.f32 %v320, %v1302
    %1304 = vmatpush.msra.mxu0 %v1303
    %v1305 = vand.u32 %v313, 4294901760
    %v1306 = vsub.f32 %v313, %v1305
    %1307 = vmatpush.msra.mxu0 %v1306
    %v1308 = vand.u32 %v306, 4294901760
    %v1309 = vsub.f32 %v306, %v1308
    %1310 = vmatpush.msra.mxu0 %v1309
    %v1311 = vand.u32 %v299, 4294901760
    %v1312 = vsub.f32 %v299, %v1311
    %1313 = vmatpush.msra.mxu0 %v1312
    %v1314 = vand.u32 %v292, 4294901760
    %v1315 = vsub.f32 %v292, %v1314
    %1316 = vmatpush.msra.mxu0 %v1315
    %v1317 = vand.u32 %v285, 4294901760
    %v1318 = vsub.f32 %v285, %v1317
    %1319 = vmatpush.msra.mxu0 %v1318
    %v1320 = vand.u32 %v278, 4294901760
    %v1321 = vsub.f32 %v278, %v1320
    %1322 = vmatpush.msra.mxu0 %v1321
    %v1323 = vand.u32 %v271, 4294901760
    %v1324 = vsub.f32 %v271, %v1323
    %1325 = vmatpush.msra.mxu0 %v1324
    %v1326 = vand.u32 %v264, 4294901760
    %v1327 = vsub.f32 %v264, %v1326
    %1328 = vmatpush.msra.mxu0 %v1327
    %v1329 = vand.u32 %v257, 4294901760
    %v1330 = vsub.f32 %v257, %v1329
    %1331 = vmatpush.msra.mxu0 %v1330
    %v1332 = vand.u32 %v250, 4294901760
    %v1333 = vsub.f32 %v250, %v1332
    %1334 = vmatpush.msra.mxu0 %v1333
    %v1335 = vand.u32 %v243, 4294901760
    %v1336 = vsub.f32 %v243, %v1335
    %1337 = vmatpush.msra.mxu0 %v1336
    %v1338 = vand.u32 %v15, 4294901760
    %v1339 = vsub.f32 %v15, %v1338
    %1340 = vmatmul.f32.gmra.mxu0 %v1339
    %v1341 = vpop.f32.mrf.mxu0
    %v1342 = vadd.f32 %v1288, %v1341
    %1343 = vdwg.mxu0
    %v1344 = vand.u32 %v348, 4294901760
    %1345 = vmatpush.msra.mxu0 %v1344
    %v1346 = vand.u32 %v341, 4294901760
    %1347 = vmatpush.msra.mxu0 %v1346
    %v1348 = vand.u32 %v334, 4294901760
    %1349 = vmatpush.msra.mxu0 %v1348
    %v1350 = vand.u32 %v327, 4294901760
    %1351 = vmatpush.msra.mxu0 %v1350
    %v1352 = vand.u32 %v320, 4294901760
    %1353 = vmatpush.msra.mxu0 %v1352
    %v1354 = vand.u32 %v313, 4294901760
    %1355 = vmatpush.msra.mxu0 %v1354
    %v1356 = vand.u32 %v306, 4294901760
    %1357 = vmatpush.msra.mxu0 %v1356
    %v1358 = vand.u32 %v299, 4294901760
    %1359 = vmatpush.msra.mxu0 %v1358
    %v1360 = vand.u32 %v292, 4294901760
    %1361 = vmatpush.msra.mxu0 %v1360
    %v1362 = vand.u32 %v285, 4294901760
    %1363 = vmatpush.msra.mxu0 %v1362
    %v1364 = vand.u32 %v278, 4294901760
    %1365 = vmatpush.msra.mxu0 %v1364
    %v1366 = vand.u32 %v271, 4294901760
    %1367 = vmatpush.msra.mxu0 %v1366
    %v1368 = vand.u32 %v264, 4294901760
    %1369 = vmatpush.msra.mxu0 %v1368
    %v1370 = vand.u32 %v257, 4294901760
    %1371 = vmatpush.msra.mxu0 %v1370
    %v1372 = vand.u32 %v250, 4294901760
    %1373 = vmatpush.msra.mxu0 %v1372
    %v1374 = vand.u32 %v243, 4294901760
    %1375 = vmatpush.msra.mxu0 %v1374
    %v1376 = vand.u32 %v15, 4294901760
    %v1377 = vsub.f32 %v15, %v1376
    %v1378 = vand.u32 %v1377, 4294901760
    %1379 = vmatmul.f32.gmra.mxu0 %v1378
    %v1380 = vpop.f32.mrf.mxu0
    %v1381 = vadd.f32 %v1342, %v1380
    %1382 = vdwg.mxu0
    %v1383 = vand.u32 %v348, 4294901760
    %v1384 = vsub.f32 %v348, %v1383
    %v1385 = vand.u32 %v1384, 4294901760
    %1386 = vmatpush.msra.mxu0 %v1385
    %v1387 = vand.u32 %v341, 4294901760
    %v1388 = vsub.f32 %v341, %v1387
    %v1389 = vand.u32 %v1388, 4294901760
    %1390 = vmatpush.msra.mxu0 %v1389
    %v1391 = vand.u32 %v334, 4294901760
    %v1392 = vsub.f32 %v334, %v1391
    %v1393 = vand.u32 %v1392, 4294901760
    %1394 = vmatpush.msra.mxu0 %v1393
    %v1395 = vand.u32 %v327, 4294901760
    %v1396 = vsub.f32 %v327, %v1395
    %v1397 = vand.u32 %v1396, 4294901760
    %1398 = vmatpush.msra.mxu0 %v1397
    %v1399 = vand.u32 %v320, 4294901760
    %v1400 = vsub.f32 %v320, %v1399
    %v1401 = vand.u32 %v1400, 4294901760
    %1402 = vmatpush.msra.mxu0 %v1401
    %v1403 = vand.u32 %v313, 4294901760
    %v1404 = vsub.f32 %v313, %v1403
    %v1405 = vand.u32 %v1404, 4294901760
    %1406 = vmatpush.msra.mxu0 %v1405
    %v1407 = vand.u32 %v306, 4294901760
    %v1408 = vsub.f32 %v306, %v1407
    %v1409 = vand.u32 %v1408, 4294901760
    %1410 = vmatpush.msra.mxu0 %v1409
    %v1411 = vand.u32 %v299, 4294901760
    %v1412 = vsub.f32 %v299, %v1411
    %v1413 = vand.u32 %v1412, 4294901760
    %1414 = vmatpush.msra.mxu0 %v1413
    %v1415 = vand.u32 %v292, 4294901760
    %v1416 = vsub.f32 %v292, %v1415
    %v1417 = vand.u32 %v1416, 4294901760
    %1418 = vmatpush.msra.mxu0 %v1417
    %v1419 = vand.u32 %v285, 4294901760
    %v1420 = vsub.f32 %v285, %v1419
    %v1421 = vand.u32 %v1420, 4294901760
    %1422 = vmatpush.msra.mxu0 %v1421
    %v1423 = vand.u32 %v278, 4294901760
    %v1424 = vsub.f32 %v278, %v1423
    %v1425 = vand.u32 %v1424, 4294901760
    %1426 = vmatpush.msra.mxu0 %v1425
    %v1427 = vand.u32 %v271, 4294901760
    %v1428 = vsub.f32 %v271, %v1427
    %v1429 = vand.u32 %v1428, 4294901760
    %1430 = vmatpush.msra.mxu0 %v1429
    %v1431 = vand.u32 %v264, 4294901760
    %v1432 = vsub.f32 %v264, %v1431
    %v1433 = vand.u32 %v1432, 4294901760
    %1434 = vmatpush.msra.mxu0 %v1433
    %v1435 = vand.u32 %v257, 4294901760
    %v1436 = vsub.f32 %v257, %v1435
    %v1437 = vand.u32 %v1436, 4294901760
    %1438 = vmatpush.msra.mxu0 %v1437
    %v1439 = vand.u32 %v250, 4294901760
    %v1440 = vsub.f32 %v250, %v1439
    %v1441 = vand.u32 %v1440, 4294901760
    %1442 = vmatpush.msra.mxu0 %v1441
    %v1443 = vand.u32 %v243, 4294901760
    %v1444 = vsub.f32 %v243, %v1443
    %v1445 = vand.u32 %v1444, 4294901760
    %1446 = vmatpush.msra.mxu0 %v1445
    %v1447 = vand.u32 %v15, 4294901760
    %1448 = vmatmul.f32.gmra.mxu0 %v1447
    %v1449 = vpop.f32.mrf.mxu0
    %v1450 = vadd.f32 %v1381, %v1449
    %1451 = vdwg.mxu0
    %v1452 = vand.u32 %v348, 4294901760
    %1453 = vmatpush.msra.mxu0 %v1452
    %v1454 = vand.u32 %v341, 4294901760
    %1455 = vmatpush.msra.mxu0 %v1454
    %v1456 = vand.u32 %v334, 4294901760
    %1457 = vmatpush.msra.mxu0 %v1456
    %v1458 = vand.u32 %v327, 4294901760
    %1459 = vmatpush.msra.mxu0 %v1458
    %v1460 = vand.u32 %v320, 4294901760
    %1461 = vmatpush.msra.mxu0 %v1460
    %v1462 = vand.u32 %v313, 4294901760
    %1463 = vmatpush.msra.mxu0 %v1462
    %v1464 = vand.u32 %v306, 4294901760
    %1465 = vmatpush.msra.mxu0 %v1464
    %v1466 = vand.u32 %v299, 4294901760
    %1467 = vmatpush.msra.mxu0 %v1466
    %v1468 = vand.u32 %v292, 4294901760
    %1469 = vmatpush.msra.mxu0 %v1468
    %v1470 = vand.u32 %v285, 4294901760
    %1471 = vmatpush.msra.mxu0 %v1470
    %v1472 = vand.u32 %v278, 4294901760
    %1473 = vmatpush.msra.mxu0 %v1472
    %v1474 = vand.u32 %v271, 4294901760
    %1475 = vmatpush.msra.mxu0 %v1474
    %v1476 = vand.u32 %v264, 4294901760
    %1477 = vmatpush.msra.mxu0 %v1476
    %v1478 = vand.u32 %v257, 4294901760
    %1479 = vmatpush.msra.mxu0 %v1478
    %v1480 = vand.u32 %v250, 4294901760
    %1481 = vmatpush.msra.mxu0 %v1480
    %v1482 = vand.u32 %v243, 4294901760
    %1483 = vmatpush.msra.mxu0 %v1482
    %v1484 = vand.u32 %v15, 4294901760
    %1485 = vmatmul.f32.gmra.mxu0 %v1484
    %v1486 = vpop.f32.mrf.mxu0
    %v1487 = vadd.f32 %v1450, %v1486
    %1488 = vdwg.mxu0
    %v1489 = vand.u32 %v460, 4294901760
    %1490 = vmatpush.msra.mxu0 %v1489
    %v1491 = vand.u32 %v453, 4294901760
    %1492 = vmatpush.msra.mxu0 %v1491
    %v1493 = vand.u32 %v446, 4294901760
    %1494 = vmatpush.msra.mxu0 %v1493
    %v1495 = vand.u32 %v439, 4294901760
    %1496 = vmatpush.msra.mxu0 %v1495
    %v1497 = vand.u32 %v432, 4294901760
    %1498 = vmatpush.msra.mxu0 %v1497
    %v1499 = vand.u32 %v425, 4294901760
    %1500 = vmatpush.msra.mxu0 %v1499
    %v1501 = vand.u32 %v418, 4294901760
    %1502 = vmatpush.msra.mxu0 %v1501
    %v1503 = vand.u32 %v411, 4294901760
    %1504 = vmatpush.msra.mxu0 %v1503
    %v1505 = vand.u32 %v404, 4294901760
    %1506 = vmatpush.msra.mxu0 %v1505
    %v1507 = vand.u32 %v397, 4294901760
    %1508 = vmatpush.msra.mxu0 %v1507
    %v1509 = vand.u32 %v390, 4294901760
    %1510 = vmatpush.msra.mxu0 %v1509
    %v1511 = vand.u32 %v383, 4294901760
    %1512 = vmatpush.msra.mxu0 %v1511
    %v1513 = vand.u32 %v376, 4294901760
    %1514 = vmatpush.msra.mxu0 %v1513
    %v1515 = vand.u32 %v369, 4294901760
    %1516 = vmatpush.msra.mxu0 %v1515
    %v1517 = vand.u32 %v362, 4294901760
    %1518 = vmatpush.msra.mxu0 %v1517
    %v1519 = vand.u32 %v355, 4294901760
    %1520 = vmatpush.msra.mxu0 %v1519
    %v1521 = vand.u32 %v16, 4294901760
    %v1522 = vsub.f32 %v16, %v1521
    %v1523 = vand.u32 %v1522, 4294901760
    %v1524 = vsub.f32 %v1522, %v1523
    %v1525 = vand.u32 %v1524, 4294901760
    %1526 = vmatmul.f32.gmra.mxu0 %v1525
    %v1527 = vpop.f32.mrf.mxu0
    %v1528 = vadd.f32 %v1487, %v1527
    %1529 = vdwg.mxu0
    %v1530 = vand.u32 %v460, 4294901760
    %v1531 = vsub.f32 %v460, %v1530
    %v1532 = vand.u32 %v1531, 4294901760
    %v1533 = vsub.f32 %v1531, %v1532
    %v1534 = vand.u32 %v1533, 4294901760
    %1535 = vmatpush.msra.mxu0 %v1534
    %v1536 = vand.u32 %v453, 4294901760
    %v1537 = vsub.f32 %v453, %v1536
    %v1538 = vand.u32 %v1537, 4294901760
    %v1539 = vsub.f32 %v1537, %v1538
    %v1540 = vand.u32 %v1539, 4294901760
    %1541 = vmatpush.msra.mxu0 %v1540
    %v1542 = vand.u32 %v446, 4294901760
    %v1543 = vsub.f32 %v446, %v1542
    %v1544 = vand.u32 %v1543, 4294901760
    %v1545 = vsub.f32 %v1543, %v1544
    %v1546 = vand.u32 %v1545, 4294901760
    %1547 = vmatpush.msra.mxu0 %v1546
    %v1548 = vand.u32 %v439, 4294901760
    %v1549 = vsub.f32 %v439, %v1548
    %v1550 = vand.u32 %v1549, 4294901760
    %v1551 = vsub.f32 %v1549, %v1550
    %v1552 = vand.u32 %v1551, 4294901760
    %1553 = vmatpush.msra.mxu0 %v1552
    %v1554 = vand.u32 %v432, 4294901760
    %v1555 = vsub.f32 %v432, %v1554
    %v1556 = vand.u32 %v1555, 4294901760
    %v1557 = vsub.f32 %v1555, %v1556
    %v1558 = vand.u32 %v1557, 4294901760
    %1559 = vmatpush.msra.mxu0 %v1558
    %v1560 = vand.u32 %v425, 4294901760
    %v1561 = vsub.f32 %v425, %v1560
    %v1562 = vand.u32 %v1561, 4294901760
    %v1563 = vsub.f32 %v1561, %v1562
    %v1564 = vand.u32 %v1563, 4294901760
    %1565 = vmatpush.msra.mxu0 %v1564
    %v1566 = vand.u32 %v418, 4294901760
    %v1567 = vsub.f32 %v418, %v1566
    %v1568 = vand.u32 %v1567, 4294901760
    %v1569 = vsub.f32 %v1567, %v1568
    %v1570 = vand.u32 %v1569, 4294901760
    %1571 = vmatpush.msra.mxu0 %v1570
    %v1572 = vand.u32 %v411, 4294901760
    %v1573 = vsub.f32 %v411, %v1572
    %v1574 = vand.u32 %v1573, 4294901760
    %v1575 = vsub.f32 %v1573, %v1574
    %v1576 = vand.u32 %v1575, 4294901760
    %1577 = vmatpush.msra.mxu0 %v1576
    %v1578 = vand.u32 %v404, 4294901760
    %v1579 = vsub.f32 %v404, %v1578
    %v1580 = vand.u32 %v1579, 4294901760
    %v1581 = vsub.f32 %v1579, %v1580
    %v1582 = vand.u32 %v1581, 4294901760
    %1583 = vmatpush.msra.mxu0 %v1582
    %v1584 = vand.u32 %v397, 4294901760
    %v1585 = vsub.f32 %v397, %v1584
    %v1586 = vand.u32 %v1585, 4294901760
    %v1587 = vsub.f32 %v1585, %v1586
    %v1588 = vand.u32 %v1587, 4294901760
    %1589 = vmatpush.msra.mxu0 %v1588
    %v1590 = vand.u32 %v390, 4294901760
    %v1591 = vsub.f32 %v390, %v1590
    %v1592 = vand.u32 %v1591, 4294901760
    %v1593 = vsub.f32 %v1591, %v1592
    %v1594 = vand.u32 %v1593, 4294901760
    %1595 = vmatpush.msra.mxu0 %v1594
    %v1596 = vand.u32 %v383, 4294901760
    %v1597 = vsub.f32 %v383, %v1596
    %v1598 = vand.u32 %v1597, 4294901760
    %v1599 = vsub.f32 %v1597, %v1598
    %v1600 = vand.u32 %v1599, 4294901760
    %1601 = vmatpush.msra.mxu0 %v1600
    %v1602 = vand.u32 %v376, 4294901760
    %v1603 = vsub.f32 %v376, %v1602
    %v1604 = vand.u32 %v1603, 4294901760
    %v1605 = vsub.f32 %v1603, %v1604
    %v1606 = vand.u32 %v1605, 4294901760
    %1607 = vmatpush.msra.mxu0 %v1606
    %v1608 = vand.u32 %v369, 4294901760
    %v1609 = vsub.f32 %v369, %v1608
    %v1610 = vand.u32 %v1609, 4294901760
    %v1611 = vsub.f32 %v1609, %v1610
    %v1612 = vand.u32 %v1611, 4294901760
    %1613 = vmatpush.msra.mxu0 %v1612
    %v1614 = vand.u32 %v362, 4294901760
    %v1615 = vsub.f32 %v362, %v1614
    %v1616 = vand.u32 %v1615, 4294901760
    %v1617 = vsub.f32 %v1615, %v1616
    %v1618 = vand.u32 %v1617, 4294901760
    %1619 = vmatpush.msra.mxu0 %v1618
    %v1620 = vand.u32 %v355, 4294901760
    %v1621 = vsub.f32 %v355, %v1620
    %v1622 = vand.u32 %v1621, 4294901760
    %v1623 = vsub.f32 %v1621, %v1622
    %v1624 = vand.u32 %v1623, 4294901760
    %1625 = vmatpush.msra.mxu0 %v1624
    %v1626 = vand.u32 %v16, 4294901760
    %1627 = vmatmul.f32.gmra.mxu0 %v1626
    %v1628 = vpop.f32.mrf.mxu0
    %v1629 = vadd.f32 %v1528, %v1628
    %1630 = vdwg.mxu0
    %v1631 = vand.u32 %v460, 4294901760
    %v1632 = vsub.f32 %v460, %v1631
    %1633 = vmatpush.msra.mxu0 %v1632
    %v1634 = vand.u32 %v453, 4294901760
    %v1635 = vsub.f32 %v453, %v1634
    %1636 = vmatpush.msra.mxu0 %v1635
    %v1637 = vand.u32 %v446, 4294901760
    %v1638 = vsub.f32 %v446, %v1637
    %1639 = vmatpush.msra.mxu0 %v1638
    %v1640 = vand.u32 %v439, 4294901760
    %v1641 = vsub.f32 %v439, %v1640
    %1642 = vmatpush.msra.mxu0 %v1641
    %v1643 = vand.u32 %v432, 4294901760
    %v1644 = vsub.f32 %v432, %v1643
    %1645 = vmatpush.msra.mxu0 %v1644
    %v1646 = vand.u32 %v425, 4294901760
    %v1647 = vsub.f32 %v425, %v1646
    %1648 = vmatpush.msra.mxu0 %v1647
    %v1649 = vand.u32 %v418, 4294901760
    %v1650 = vsub.f32 %v418, %v1649
    %1651 = vmatpush.msra.mxu0 %v1650
    %v1652 = vand.u32 %v411, 4294901760
    %v1653 = vsub.f32 %v411, %v1652
    %1654 = vmatpush.msra.mxu0 %v1653
    %v1655 = vand.u32 %v404, 4294901760
    %v1656 = vsub.f32 %v404, %v1655
    %1657 = vmatpush.msra.mxu0 %v1656
    %v1658 = vand.u32 %v397, 4294901760
    %v1659 = vsub.f32 %v397, %v1658
    %1660 = vmatpush.msra.mxu0 %v1659
    %v1661 = vand.u32 %v390, 4294901760
    %v1662 = vsub.f32 %v390, %v1661
    %1663 = vmatpush.msra.mxu0 %v1662
    %v1664 = vand.u32 %v383, 4294901760
    %v1665 = vsub.f32 %v383, %v1664
    %1666 = vmatpush.msra.mxu0 %v1665
    %v1667 = vand.u32 %v376, 4294901760
    %v1668 = vsub.f32 %v376, %v1667
    %1669 = vmatpush.msra.mxu0 %v1668
    %v1670 = vand.u32 %v369, 4294901760
    %v1671 = vsub.f32 %v369, %v1670
    %1672 = vmatpush.msra.mxu0 %v1671
    %v1673 = vand.u32 %v362, 4294901760
    %v1674 = vsub.f32 %v362, %v1673
    %1675 = vmatpush.msra.mxu0 %v1674
    %v1676 = vand.u32 %v355, 4294901760
    %v1677 = vsub.f32 %v355, %v1676
    %1678 = vmatpush.msra.mxu0 %v1677
    %v1679 = vand.u32 %v16, 4294901760
    %v1680 = vsub.f32 %v16, %v1679
    %1681 = vmatmul.f32.gmra.mxu0 %v1680
    %v1682 = vpop.f32.mrf.mxu0
    %v1683 = vadd.f32 %v1629, %v1682
    %1684 = vdwg.mxu0
    %v1685 = vand.u32 %v460, 4294901760
    %1686 = vmatpush.msra.mxu0 %v1685
    %v1687 = vand.u32 %v453, 4294901760
    %1688 = vmatpush.msra.mxu0 %v1687
    %v1689 = vand.u32 %v446, 4294901760
    %1690 = vmatpush.msra.mxu0 %v1689
    %v1691 = vand.u32 %v439, 4294901760
    %1692 = vmatpush.msra.mxu0 %v1691
    %v1693 = vand.u32 %v432, 4294901760
    %1694 = vmatpush.msra.mxu0 %v1693
    %v1695 = vand.u32 %v425, 4294901760
    %1696 = vmatpush.msra.mxu0 %v1695
    %v1697 = vand.u32 %v418, 4294901760
    %1698 = vmatpush.msra.mxu0 %v1697
    %v1699 = vand.u32 %v411, 4294901760
    %1700 = vmatpush.msra.mxu0 %v1699
    %v1701 = vand.u32 %v404, 4294901760
    %1702 = vmatpush.msra.mxu0 %v1701
    %v1703 = vand.u32 %v397, 4294901760
    %1704 = vmatpush.msra.mxu0 %v1703
    %v1705 = vand.u32 %v390, 4294901760
    %1706 = vmatpush.msra.mxu0 %v1705
    %v1707 = vand.u32 %v383, 4294901760
    %1708 = vmatpush.msra.mxu0 %v1707
    %v1709 = vand.u32 %v376, 4294901760
    %1710 = vmatpush.msra.mxu0 %v1709
    %v1711 = vand.u32 %v369, 4294901760
    %1712 = vmatpush.msra.mxu0 %v1711
    %v1713 = vand.u32 %v362, 4294901760
    %1714 = vmatpush.msra.mxu0 %v1713
    %v1715 = vand.u32 %v355, 4294901760
    %1716 = vmatpush.msra.mxu0 %v1715
    %v1717 = vand.u32 %v16, 4294901760
    %v1718 = vsub.f32 %v16, %v1717
    %v1719 = vand.u32 %v1718, 4294901760
    %1720 = vmatmul.f32.gmra.mxu0 %v1719
    %v1721 = vpop.f32.mrf.mxu0
    %v1722 = vadd.f32 %v1683, %v1721
    %1723 = vdwg.mxu0
    %v1724 = vand.u32 %v460, 4294901760
    %v1725 = vsub.f32 %v460, %v1724
    %v1726 = vand.u32 %v1725, 4294901760
    %1727 = vmatpush.msra.mxu0 %v1726
    %v1728 = vand.u32 %v453, 4294901760
    %v1729 = vsub.f32 %v453, %v1728
    %v1730 = vand.u32 %v1729, 4294901760
    %1731 = vmatpush.msra.mxu0 %v1730
    %v1732 = vand.u32 %v446, 4294901760
    %v1733 = vsub.f32 %v446, %v1732
    %v1734 = vand.u32 %v1733, 4294901760
    %1735 = vmatpush.msra.mxu0 %v1734
    %v1736 = vand.u32 %v439, 4294901760
    %v1737 = vsub.f32 %v439, %v1736
    %v1738 = vand.u32 %v1737, 4294901760
    %1739 = vmatpush.msra.mxu0 %v1738
    %v1740 = vand.u32 %v432, 4294901760
    %v1741 = vsub.f32 %v432, %v1740
    %v1742 = vand.u32 %v1741, 4294901760
    %1743 = vmatpush.msra.mxu0 %v1742
    %v1744 = vand.u32 %v425, 4294901760
    %v1745 = vsub.f32 %v425, %v1744
    %v1746 = vand.u32 %v1745, 4294901760
    %1747 = vmatpush.msra.mxu0 %v1746
    %v1748 = vand.u32 %v418, 4294901760
    %v1749 = vsub.f32 %v418, %v1748
    %v1750 = vand.u32 %v1749, 4294901760
    %1751 = vmatpush.msra.mxu0 %v1750
    %v1752 = vand.u32 %v411, 4294901760
    %v1753 = vsub.f32 %v411, %v1752
    %v1754 = vand.u32 %v1753, 4294901760
    %1755 = vmatpush.msra.mxu0 %v1754
    %v1756 = vand.u32 %v404, 4294901760
    %v1757 = vsub.f32 %v404, %v1756
    %v1758 = vand.u32 %v1757, 4294901760
    %1759 = vmatpush.msra.mxu0 %v1758
    %v1760 = vand.u32 %v397, 4294901760
    %v1761 = vsub.f32 %v397, %v1760
    %v1762 = vand.u32 %v1761, 4294901760
    %1763 = vmatpush.msra.mxu0 %v1762
    %v1764 = vand.u32 %v390, 4294901760
    %v1765 = vsub.f32 %v390, %v1764
    %v1766 = vand.u32 %v1765, 4294901760
    %1767 = vmatpush.msra.mxu0 %v1766
    %v1768 = vand.u32 %v383, 4294901760
    %v1769 = vsub.f32 %v383, %v1768
    %v1770 = vand.u32 %v1769, 4294901760
    %1771 = vmatpush.msra.mxu0 %v1770
    %v1772 = vand.u32 %v376, 4294901760
    %v1773 = vsub.f32 %v376, %v1772
    %v1774 = vand.u32 %v1773, 4294901760
    %1775 = vmatpush.msra.mxu0 %v1774
    %v1776 = vand.u32 %v369, 4294901760
    %v1777 = vsub.f32 %v369, %v1776
    %v1778 = vand.u32 %v1777, 4294901760
    %1779 = vmatpush.msra.mxu0 %v1778
    %v1780 = vand.u32 %v362, 4294901760
    %v1781 = vsub.f32 %v362, %v1780
    %v1782 = vand.u32 %v1781, 4294901760
    %1783 = vmatpush.msra.mxu0 %v1782
    %v1784 = vand.u32 %v355, 4294901760
    %v1785 = vsub.f32 %v355, %v1784
    %v1786 = vand.u32 %v1785, 4294901760
    %1787 = vmatpush.msra.mxu0 %v1786
    %v1788 = vand.u32 %v16, 4294901760
    %1789 = vmatmul.f32.gmra.mxu0 %v1788
    %v1790 = vpop.f32.mrf.mxu0
    %v1791 = vadd.f32 %v1722, %v1790
    %1792 = vdwg.mxu0
    %v1793 = vand.u32 %v460, 4294901760
    %1794 = vmatpush.msra.mxu0 %v1793
    %v1795 = vand.u32 %v453, 4294901760
    %1796 = vmatpush.msra.mxu0 %v1795
    %v1797 = vand.u32 %v446, 4294901760
    %1798 = vmatpush.msra.mxu0 %v1797
    %v1799 = vand.u32 %v439, 4294901760
    %1800 = vmatpush.msra.mxu0 %v1799
    %v1801 = vand.u32 %v432, 4294901760
    %1802 = vmatpush.msra.mxu0 %v1801
    %v1803 = vand.u32 %v425, 4294901760
    %1804 = vmatpush.msra.mxu0 %v1803
    %v1805 = vand.u32 %v418, 4294901760
    %1806 = vmatpush.msra.mxu0 %v1805
    %v1807 = vand.u32 %v411, 4294901760
    %1808 = vmatpush.msra.mxu0 %v1807
    %v1809 = vand.u32 %v404, 4294901760
    %1810 = vmatpush.msra.mxu0 %v1809
    %v1811 = vand.u32 %v397, 4294901760
    %1812 = vmatpush.msra.mxu0 %v1811
    %v1813 = vand.u32 %v390, 4294901760
    %1814 = vmatpush.msra.mxu0 %v1813
    %v1815 = vand.u32 %v383, 4294901760
    %1816 = vmatpush.msra.mxu0 %v1815
    %v1817 = vand.u32 %v376, 4294901760
    %1818 = vmatpush.msra.mxu0 %v1817
    %v1819 = vand.u32 %v369, 4294901760
    %1820 = vmatpush.msra.mxu0 %v1819
    %v1821 = vand.u32 %v362, 4294901760
    %1822 = vmatpush.msra.mxu0 %v1821
    %v1823 = vand.u32 %v355, 4294901760
    %1824 = vmatpush.msra.mxu0 %v1823
    %v1825 = vand.u32 %v16, 4294901760
    %1826 = vmatmul.f32.gmra.mxu0 %v1825
    %v1827 = vpop.f32.mrf.mxu0
    %v1828 = vadd.f32 %v1791, %v1827
    %1829 = vdwg.mxu0
    %v1830 = vand.u32 %v349, 4294901760
    %1831 = vmatpush.msra.mxu0 %v1830
    %v1832 = vand.u32 %v342, 4294901760
    %1833 = vmatpush.msra.mxu0 %v1832
    %v1834 = vand.u32 %v335, 4294901760
    %1835 = vmatpush.msra.mxu0 %v1834
    %v1836 = vand.u32 %v328, 4294901760
    %1837 = vmatpush.msra.mxu0 %v1836
    %v1838 = vand.u32 %v321, 4294901760
    %1839 = vmatpush.msra.mxu0 %v1838
    %v1840 = vand.u32 %v314, 4294901760
    %1841 = vmatpush.msra.mxu0 %v1840
    %v1842 = vand.u32 %v307, 4294901760
    %1843 = vmatpush.msra.mxu0 %v1842
    %v1844 = vand.u32 %v300, 4294901760
    %1845 = vmatpush.msra.mxu0 %v1844
    %v1846 = vand.u32 %v293, 4294901760
    %1847 = vmatpush.msra.mxu0 %v1846
    %v1848 = vand.u32 %v286, 4294901760
    %1849 = vmatpush.msra.mxu0 %v1848
    %v1850 = vand.u32 %v279, 4294901760
    %1851 = vmatpush.msra.mxu0 %v1850
    %v1852 = vand.u32 %v272, 4294901760
    %1853 = vmatpush.msra.mxu0 %v1852
    %v1854 = vand.u32 %v265, 4294901760
    %1855 = vmatpush.msra.mxu0 %v1854
    %v1856 = vand.u32 %v258, 4294901760
    %1857 = vmatpush.msra.mxu0 %v1856
    %v1858 = vand.u32 %v251, 4294901760
    %1859 = vmatpush.msra.mxu0 %v1858
    %v1860 = vand.u32 %v244, 4294901760
    %1861 = vmatpush.msra.mxu0 %v1860
    %v1862 = vand.u32 %v15, 4294901760
    %v1863 = vsub.f32 %v15, %v1862
    %v1864 = vand.u32 %v1863, 4294901760
    %v1865 = vsub.f32 %v1863, %v1864
    %v1866 = vand.u32 %v1865, 4294901760
    %1867 = vmatmul.f32.gmra.mxu0 %v1866
    %v1868 = vpop.f32.mrf.mxu0
    %v1869 = vadd.f32 0.0, %v1868
    %1870 = vdwg.mxu0
    %v1871 = vand.u32 %v349, 4294901760
    %v1872 = vsub.f32 %v349, %v1871
    %v1873 = vand.u32 %v1872, 4294901760
    %v1874 = vsub.f32 %v1872, %v1873
    %v1875 = vand.u32 %v1874, 4294901760
    %1876 = vmatpush.msra.mxu0 %v1875
    %v1877 = vand.u32 %v342, 4294901760
    %v1878 = vsub.f32 %v342, %v1877
    %v1879 = vand.u32 %v1878, 4294901760
    %v1880 = vsub.f32 %v1878, %v1879
    %v1881 = vand.u32 %v1880, 4294901760
    %1882 = vmatpush.msra.mxu0 %v1881
    %v1883 = vand.u32 %v335, 4294901760
    %v1884 = vsub.f32 %v335, %v1883
    %v1885 = vand.u32 %v1884, 4294901760
    %v1886 = vsub.f32 %v1884, %v1885
    %v1887 = vand.u32 %v1886, 4294901760
    %1888 = vmatpush.msra.mxu0 %v1887
    %v1889 = vand.u32 %v328, 4294901760
    %v1890 = vsub.f32 %v328, %v1889
    %v1891 = vand.u32 %v1890, 4294901760
    %v1892 = vsub.f32 %v1890, %v1891
    %v1893 = vand.u32 %v1892, 4294901760
    %1894 = vmatpush.msra.mxu0 %v1893
    %v1895 = vand.u32 %v321, 4294901760
    %v1896 = vsub.f32 %v321, %v1895
    %v1897 = vand.u32 %v1896, 4294901760
    %v1898 = vsub.f32 %v1896, %v1897
    %v1899 = vand.u32 %v1898, 4294901760
    %1900 = vmatpush.msra.mxu0 %v1899
    %v1901 = vand.u32 %v314, 4294901760
    %v1902 = vsub.f32 %v314, %v1901
    %v1903 = vand.u32 %v1902, 4294901760
    %v1904 = vsub.f32 %v1902, %v1903
    %v1905 = vand.u32 %v1904, 4294901760
    %1906 = vmatpush.msra.mxu0 %v1905
    %v1907 = vand.u32 %v307, 4294901760
    %v1908 = vsub.f32 %v307, %v1907
    %v1909 = vand.u32 %v1908, 4294901760
    %v1910 = vsub.f32 %v1908, %v1909
    %v1911 = vand.u32 %v1910, 4294901760
    %1912 = vmatpush.msra.mxu0 %v1911
    %v1913 = vand.u32 %v300, 4294901760
    %v1914 = vsub.f32 %v300, %v1913
    %v1915 = vand.u32 %v1914, 4294901760
    %v1916 = vsub.f32 %v1914, %v1915
    %v1917 = vand.u32 %v1916, 4294901760
    %1918 = vmatpush.msra.mxu0 %v1917
    %v1919 = vand.u32 %v293, 4294901760
    %v1920 = vsub.f32 %v293, %v1919
    %v1921 = vand.u32 %v1920, 4294901760
    %v1922 = vsub.f32 %v1920, %v1921
    %v1923 = vand.u32 %v1922, 4294901760
    %1924 = vmatpush.msra.mxu0 %v1923
    %v1925 = vand.u32 %v286, 4294901760
    %v1926 = vsub.f32 %v286, %v1925
    %v1927 = vand.u32 %v1926, 4294901760
    %v1928 = vsub.f32 %v1926, %v1927
    %v1929 = vand.u32 %v1928, 4294901760
    %1930 = vmatpush.msra.mxu0 %v1929
    %v1931 = vand.u32 %v279, 4294901760
    %v1932 = vsub.f32 %v279, %v1931
    %v1933 = vand.u32 %v1932, 4294901760
    %v1934 = vsub.f32 %v1932, %v1933
    %v1935 = vand.u32 %v1934, 4294901760
    %1936 = vmatpush.msra.mxu0 %v1935
    %v1937 = vand.u32 %v272, 4294901760
    %v1938 = vsub.f32 %v272, %v1937
    %v1939 = vand.u32 %v1938, 4294901760
    %v1940 = vsub.f32 %v1938, %v1939
    %v1941 = vand.u32 %v1940, 4294901760
    %1942 = vmatpush.msra.mxu0 %v1941
    %v1943 = vand.u32 %v265, 4294901760
    %v1944 = vsub.f32 %v265, %v1943
    %v1945 = vand.u32 %v1944, 4294901760
    %v1946 = vsub.f32 %v1944, %v1945
    %v1947 = vand.u32 %v1946, 4294901760
    %1948 = vmatpush.msra.mxu0 %v1947
    %v1949 = vand.u32 %v258, 4294901760
    %v1950 = vsub.f32 %v258, %v1949
    %v1951 = vand.u32 %v1950, 4294901760
    %v1952 = vsub.f32 %v1950, %v1951
    %v1953 = vand.u32 %v1952, 4294901760
    %1954 = vmatpush.msra.mxu0 %v1953
    %v1955 = vand.u32 %v251, 4294901760
    %v1956 = vsub.f32 %v251, %v1955
    %v1957 = vand.u32 %v1956, 4294901760
    %v1958 = vsub.f32 %v1956, %v1957
    %v1959 = vand.u32 %v1958, 4294901760
    %1960 = vmatpush.msra.mxu0 %v1959
    %v1961 = vand.u32 %v244, 4294901760
    %v1962 = vsub.f32 %v244, %v1961
    %v1963 = vand.u32 %v1962, 4294901760
    %v1964 = vsub.f32 %v1962, %v1963
    %v1965 = vand.u32 %v1964, 4294901760
    %1966 = vmatpush.msra.mxu0 %v1965
    %v1967 = vand.u32 %v15, 4294901760
    %1968 = vmatmul.f32.gmra.mxu0 %v1967
    %v1969 = vpop.f32.mrf.mxu0
    %v1970 = vadd.f32 %v1869, %v1969
    %1971 = vdwg.mxu0
    %v1972 = vand.u32 %v349, 4294901760
    %v1973 = vsub.f32 %v349, %v1972
    %1974 = vmatpush.msra.mxu0 %v1973
    %v1975 = vand.u32 %v342, 4294901760
    %v1976 = vsub.f32 %v342, %v1975
    %1977 = vmatpush.msra.mxu0 %v1976
    %v1978 = vand.u32 %v335, 4294901760
    %v1979 = vsub.f32 %v335, %v1978
    %1980 = vmatpush.msra.mxu0 %v1979
    %v1981 = vand.u32 %v328, 4294901760
    %v1982 = vsub.f32 %v328, %v1981
    %1983 = vmatpush.msra.mxu0 %v1982
    %v1984 = vand.u32 %v321, 4294901760
    %v1985 = vsub.f32 %v321, %v1984
    %1986 = vmatpush.msra.mxu0 %v1985
    %v1987 = vand.u32 %v314, 4294901760
    %v1988 = vsub.f32 %v314, %v1987
    %1989 = vmatpush.msra.mxu0 %v1988
    %v1990 = vand.u32 %v307, 4294901760
    %v1991 = vsub.f32 %v307, %v1990
    %1992 = vmatpush.msra.mxu0 %v1991
    %v1993 = vand.u32 %v300, 4294901760
    %v1994 = vsub.f32 %v300, %v1993
    %1995 = vmatpush.msra.mxu0 %v1994
    %v1996 = vand.u32 %v293, 4294901760
    %v1997 = vsub.f32 %v293, %v1996
    %1998 = vmatpush.msra.mxu0 %v1997
    %v1999 = vand.u32 %v286, 4294901760
    %v2000 = vsub.f32 %v286, %v1999
    %2001 = vmatpush.msra.mxu0 %v2000
    %v2002 = vand.u32 %v279, 4294901760
    %v2003 = vsub.f32 %v279, %v2002
    %2004 = vmatpush.msra.mxu0 %v2003
    %v2005 = vand.u32 %v272, 4294901760
    %v2006 = vsub.f32 %v272, %v2005
    %2007 = vmatpush.msra.mxu0 %v2006
    %v2008 = vand.u32 %v265, 4294901760
    %v2009 = vsub.f32 %v265, %v2008
    %2010 = vmatpush.msra.mxu0 %v2009
    %v2011 = vand.u32 %v258, 4294901760
    %v2012 = vsub.f32 %v258, %v2011
    %2013 = vmatpush.msra.mxu0 %v2012
    %v2014 = vand.u32 %v251, 4294901760
    %v2015 = vsub.f32 %v251, %v2014
    %2016 = vmatpush.msra.mxu0 %v2015
    %v2017 = vand.u32 %v244, 4294901760
    %v2018 = vsub.f32 %v244, %v2017
    %2019 = vmatpush.msra.mxu0 %v2018
    %v2020 = vand.u32 %v15, 4294901760
    %v2021 = vsub.f32 %v15, %v2020
    %2022 = vmatmul.f32.gmra.mxu0 %v2021
    %v2023 = vpop.f32.mrf.mxu0
    %v2024 = vadd.f32 %v1970, %v2023
    %2025 = vdwg.mxu0
    %v2026 = vand.u32 %v349, 4294901760
    %2027 = vmatpush.msra.mxu0 %v2026
    %v2028 = vand.u32 %v342, 4294901760
    %2029 = vmatpush.msra.mxu0 %v2028
    %v2030 = vand.u32 %v335, 4294901760
    %2031 = vmatpush.msra.mxu0 %v2030
    %v2032 = vand.u32 %v328, 4294901760
    %2033 = vmatpush.msra.mxu0 %v2032
    %v2034 = vand.u32 %v321, 4294901760
    %2035 = vmatpush.msra.mxu0 %v2034
    %v2036 = vand.u32 %v314, 4294901760
    %2037 = vmatpush.msra.mxu0 %v2036
    %v2038 = vand.u32 %v307, 4294901760
    %2039 = vmatpush.msra.mxu0 %v2038
    %v2040 = vand.u32 %v300, 4294901760
    %2041 = vmatpush.msra.mxu0 %v2040
    %v2042 = vand.u32 %v293, 4294901760
    %2043 = vmatpush.msra.mxu0 %v2042
    %v2044 = vand.u32 %v286, 4294901760
    %2045 = vmatpush.msra.mxu0 %v2044
    %v2046 = vand.u32 %v279, 4294901760
    %2047 = vmatpush.msra.mxu0 %v2046
    %v2048 = vand.u32 %v272, 4294901760
    %2049 = vmatpush.msra.mxu0 %v2048
    %v2050 = vand.u32 %v265, 4294901760
    %2051 = vmatpush.msra.mxu0 %v2050
    %v2052 = vand.u32 %v258, 4294901760
    %2053 = vmatpush.msra.mxu0 %v2052
    %v2054 = vand.u32 %v251, 4294901760
    %2055 = vmatpush.msra.mxu0 %v2054
    %v2056 = vand.u32 %v244, 4294901760
    %2057 = vmatpush.msra.mxu0 %v2056
    %v2058 = vand.u32 %v15, 4294901760
    %v2059 = vsub.f32 %v15, %v2058
    %v2060 = vand.u32 %v2059, 4294901760
    %2061 = vmatmul.f32.gmra.mxu0 %v2060
    %v2062 = vpop.f32.mrf.mxu0
    %v2063 = vadd.f32 %v2024, %v2062
    %2064 = vdwg.mxu0
    %v2065 = vand.u32 %v349, 4294901760
    %v2066 = vsub.f32 %v349, %v2065
    %v2067 = vand.u32 %v2066, 4294901760
    %2068 = vmatpush.msra.mxu0 %v2067
    %v2069 = vand.u32 %v342, 4294901760
    %v2070 = vsub.f32 %v342, %v2069
    %v2071 = vand.u32 %v2070, 4294901760
    %2072 = vmatpush.msra.mxu0 %v2071
    %v2073 = vand.u32 %v335, 4294901760
    %v2074 = vsub.f32 %v335, %v2073
    %v2075 = vand.u32 %v2074, 4294901760
    %2076 = vmatpush.msra.mxu0 %v2075
    %v2077 = vand.u32 %v328, 4294901760
    %v2078 = vsub.f32 %v328, %v2077
    %v2079 = vand.u32 %v2078, 4294901760
    %2080 = vmatpush.msra.mxu0 %v2079
    %v2081 = vand.u32 %v321, 4294901760
    %v2082 = vsub.f32 %v321, %v2081
    %v2083 = vand.u32 %v2082, 4294901760
    %2084 = vmatpush.msra.mxu0 %v2083
    %v2085 = vand.u32 %v314, 4294901760
    %v2086 = vsub.f32 %v314, %v2085
    %v2087 = vand.u32 %v2086, 4294901760
    %2088 = vmatpush.msra.mxu0 %v2087
    %v2089 = vand.u32 %v307, 4294901760
    %v2090 = vsub.f32 %v307, %v2089
    %v2091 = vand.u32 %v2090, 4294901760
    %2092 = vmatpush.msra.mxu0 %v2091
    %v2093 = vand.u32 %v300, 4294901760
    %v2094 = vsub.f32 %v300, %v2093
    %v2095 = vand.u32 %v2094, 4294901760
    %2096 = vmatpush.msra.mxu0 %v2095
    %v2097 = vand.u32 %v293, 4294901760
    %v2098 = vsub.f32 %v293, %v2097
    %v2099 = vand.u32 %v2098, 4294901760
    %2100 = vmatpush.msra.mxu0 %v2099
    %v2101 = vand.u32 %v286, 4294901760
    %v2102 = vsub.f32 %v286, %v2101
    %v2103 = vand.u32 %v2102, 4294901760
    %2104 = vmatpush.msra.mxu0 %v2103
    %v2105 = vand.u32 %v279, 4294901760
    %v2106 = vsub.f32 %v279, %v2105
    %v2107 = vand.u32 %v2106, 4294901760
    %2108 = vmatpush.msra.mxu0 %v2107
    %v2109 = vand.u32 %v272, 4294901760
    %v2110 = vsub.f32 %v272, %v2109
    %v2111 = vand.u32 %v2110, 4294901760
    %2112 = vmatpush.msra.mxu0 %v2111
    %v2113 = vand.u32 %v265, 4294901760
    %v2114 = vsub.f32 %v265, %v2113
    %v2115 = vand.u32 %v2114, 4294901760
    %2116 = vmatpush.msra.mxu0 %v2115
    %v2117 = vand.u32 %v258, 4294901760
    %v2118 = vsub.f32 %v258, %v2117
    %v2119 = vand.u32 %v2118, 4294901760
    %2120 = vmatpush.msra.mxu0 %v2119
    %v2121 = vand.u32 %v251, 4294901760
    %v2122 = vsub.f32 %v251, %v2121
    %v2123 = vand.u32 %v2122, 4294901760
    %2124 = vmatpush.msra.mxu0 %v2123
    %v2125 = vand.u32 %v244, 4294901760
    %v2126 = vsub.f32 %v244, %v2125
    %v2127 = vand.u32 %v2126, 4294901760
    %2128 = vmatpush.msra.mxu0 %v2127
    %v2129 = vand.u32 %v15, 4294901760
    %2130 = vmatmul.f32.gmra.mxu0 %v2129
    %v2131 = vpop.f32.mrf.mxu0
    %v2132 = vadd.f32 %v2063, %v2131
    %2133 = vdwg.mxu0
    %v2134 = vand.u32 %v349, 4294901760
    %2135 = vmatpush.msra.mxu0 %v2134
    %v2136 = vand.u32 %v342, 4294901760
    %2137 = vmatpush.msra.mxu0 %v2136
    %v2138 = vand.u32 %v335, 4294901760
    %2139 = vmatpush.msra.mxu0 %v2138
    %v2140 = vand.u32 %v328, 4294901760
    %2141 = vmatpush.msra.mxu0 %v2140
    %v2142 = vand.u32 %v321, 4294901760
    %2143 = vmatpush.msra.mxu0 %v2142
    %v2144 = vand.u32 %v314, 4294901760
    %2145 = vmatpush.msra.mxu0 %v2144
    %v2146 = vand.u32 %v307, 4294901760
    %2147 = vmatpush.msra.mxu0 %v2146
    %v2148 = vand.u32 %v300, 4294901760
    %2149 = vmatpush.msra.mxu0 %v2148
    %v2150 = vand.u32 %v293, 4294901760
    %2151 = vmatpush.msra.mxu0 %v2150
    %v2152 = vand.u32 %v286, 4294901760
    %2153 = vmatpush.msra.mxu0 %v2152
    %v2154 = vand.u32 %v279, 4294901760
    %2155 = vmatpush.msra.mxu0 %v2154
    %v2156 = vand.u32 %v272, 4294901760
    %2157 = vmatpush.msra.mxu0 %v2156
    %v2158 = vand.u32 %v265, 4294901760
    %2159 = vmatpush.msra.mxu0 %v2158
    %v2160 = vand.u32 %v258, 4294901760
    %2161 = vmatpush.msra.mxu0 %v2160
    %v2162 = vand.u32 %v251, 4294901760
    %2163 = vmatpush.msra.mxu0 %v2162
    %v2164 = vand.u32 %v244, 4294901760
    %2165 = vmatpush.msra.mxu0 %v2164
    %v2166 = vand.u32 %v15, 4294901760
    %2167 = vmatmul.f32.gmra.mxu0 %v2166
    %v2168 = vpop.f32.mrf.mxu0
    %v2169 = vadd.f32 %v2132, %v2168
    %2170 = vdwg.mxu0
    %v2171 = vand.u32 %v461, 4294901760
    %2172 = vmatpush.msra.mxu0 %v2171
    %v2173 = vand.u32 %v454, 4294901760
    %2174 = vmatpush.msra.mxu0 %v2173
    %v2175 = vand.u32 %v447, 4294901760
    %2176 = vmatpush.msra.mxu0 %v2175
    %v2177 = vand.u32 %v440, 4294901760
    %2178 = vmatpush.msra.mxu0 %v2177
    %v2179 = vand.u32 %v433, 4294901760
    %2180 = vmatpush.msra.mxu0 %v2179
    %v2181 = vand.u32 %v426, 4294901760
    %2182 = vmatpush.msra.mxu0 %v2181
    %v2183 = vand.u32 %v419, 4294901760
    %2184 = vmatpush.msra.mxu0 %v2183
    %v2185 = vand.u32 %v412, 4294901760
    %2186 = vmatpush.msra.mxu0 %v2185
    %v2187 = vand.u32 %v405, 4294901760
    %2188 = vmatpush.msra.mxu0 %v2187
    %v2189 = vand.u32 %v398, 4294901760
    %2190 = vmatpush.msra.mxu0 %v2189
    %v2191 = vand.u32 %v391, 4294901760
    %2192 = vmatpush.msra.mxu0 %v2191
    %v2193 = vand.u32 %v384, 4294901760
    %2194 = vmatpush.msra.mxu0 %v2193
    %v2195 = vand.u32 %v377, 4294901760
    %2196 = vmatpush.msra.mxu0 %v2195
    %v2197 = vand.u32 %v370, 4294901760
    %2198 = vmatpush.msra.mxu0 %v2197
    %v2199 = vand.u32 %v363, 4294901760
    %2200 = vmatpush.msra.mxu0 %v2199
    %v2201 = vand.u32 %v356, 4294901760
    %2202 = vmatpush.msra.mxu0 %v2201
    %v2203 = vand.u32 %v16, 4294901760
    %v2204 = vsub.f32 %v16, %v2203
    %v2205 = vand.u32 %v2204, 4294901760
    %v2206 = vsub.f32 %v2204, %v2205
    %v2207 = vand.u32 %v2206, 4294901760
    %2208 = vmatmul.f32.gmra.mxu0 %v2207
    %v2209 = vpop.f32.mrf.mxu0
    %v2210 = vadd.f32 %v2169, %v2209
    %2211 = vdwg.mxu0
    %v2212 = vand.u32 %v461, 4294901760
    %v2213 = vsub.f32 %v461, %v2212
    %v2214 = vand.u32 %v2213, 4294901760
    %v2215 = vsub.f32 %v2213, %v2214
    %v2216 = vand.u32 %v2215, 4294901760
    %2217 = vmatpush.msra.mxu0 %v2216
    %v2218 = vand.u32 %v454, 4294901760
    %v2219 = vsub.f32 %v454, %v2218
    %v2220 = vand.u32 %v2219, 4294901760
    %v2221 = vsub.f32 %v2219, %v2220
    %v2222 = vand.u32 %v2221, 4294901760
    %2223 = vmatpush.msra.mxu0 %v2222
    %v2224 = vand.u32 %v447, 4294901760
    %v2225 = vsub.f32 %v447, %v2224
    %v2226 = vand.u32 %v2225, 4294901760
    %v2227 = vsub.f32 %v2225, %v2226
    %v2228 = vand.u32 %v2227, 4294901760
    %2229 = vmatpush.msra.mxu0 %v2228
    %v2230 = vand.u32 %v440, 4294901760
    %v2231 = vsub.f32 %v440, %v2230
    %v2232 = vand.u32 %v2231, 4294901760
    %v2233 = vsub.f32 %v2231, %v2232
    %v2234 = vand.u32 %v2233, 4294901760
    %2235 = vmatpush.msra.mxu0 %v2234
    %v2236 = vand.u32 %v433, 4294901760
    %v2237 = vsub.f32 %v433, %v2236
    %v2238 = vand.u32 %v2237, 4294901760
    %v2239 = vsub.f32 %v2237, %v2238
    %v2240 = vand.u32 %v2239, 4294901760
    %2241 = vmatpush.msra.mxu0 %v2240
    %v2242 = vand.u32 %v426, 4294901760
    %v2243 = vsub.f32 %v426, %v2242
    %v2244 = vand.u32 %v2243, 4294901760
    %v2245 = vsub.f32 %v2243, %v2244
    %v2246 = vand.u32 %v2245, 4294901760
    %2247 = vmatpush.msra.mxu0 %v2246
    %v2248 = vand.u32 %v419, 4294901760
    %v2249 = vsub.f32 %v419, %v2248
    %v2250 = vand.u32 %v2249, 4294901760
    %v2251 = vsub.f32 %v2249, %v2250
    %v2252 = vand.u32 %v2251, 4294901760
    %2253 = vmatpush.msra.mxu0 %v2252
    %v2254 = vand.u32 %v412, 4294901760
    %v2255 = vsub.f32 %v412, %v2254
    %v2256 = vand.u32 %v2255, 4294901760
    %v2257 = vsub.f32 %v2255, %v2256
    %v2258 = vand.u32 %v2257, 4294901760
    %2259 = vmatpush.msra.mxu0 %v2258
    %v2260 = vand.u32 %v405, 4294901760
    %v2261 = vsub.f32 %v405, %v2260
    %v2262 = vand.u32 %v2261, 4294901760
    %v2263 = vsub.f32 %v2261, %v2262
    %v2264 = vand.u32 %v2263, 4294901760
    %2265 = vmatpush.msra.mxu0 %v2264
    %v2266 = vand.u32 %v398, 4294901760
    %v2267 = vsub.f32 %v398, %v2266
    %v2268 = vand.u32 %v2267, 4294901760
    %v2269 = vsub.f32 %v2267, %v2268
    %v2270 = vand.u32 %v2269, 4294901760
    %2271 = vmatpush.msra.mxu0 %v2270
    %v2272 = vand.u32 %v391, 4294901760
    %v2273 = vsub.f32 %v391, %v2272
    %v2274 = vand.u32 %v2273, 4294901760
    %v2275 = vsub.f32 %v2273, %v2274
    %v2276 = vand.u32 %v2275, 4294901760
    %2277 = vmatpush.msra.mxu0 %v2276
    %v2278 = vand.u32 %v384, 4294901760
    %v2279 = vsub.f32 %v384, %v2278
    %v2280 = vand.u32 %v2279, 4294901760
    %v2281 = vsub.f32 %v2279, %v2280
    %v2282 = vand.u32 %v2281, 4294901760
    %2283 = vmatpush.msra.mxu0 %v2282
    %v2284 = vand.u32 %v377, 4294901760
    %v2285 = vsub.f32 %v377, %v2284
    %v2286 = vand.u32 %v2285, 4294901760
    %v2287 = vsub.f32 %v2285, %v2286
    %v2288 = vand.u32 %v2287, 4294901760
    %2289 = vmatpush.msra.mxu0 %v2288
    %v2290 = vand.u32 %v370, 4294901760
    %v2291 = vsub.f32 %v370, %v2290
    %v2292 = vand.u32 %v2291, 4294901760
    %v2293 = vsub.f32 %v2291, %v2292
    %v2294 = vand.u32 %v2293, 4294901760
    %2295 = vmatpush.msra.mxu0 %v2294
    %v2296 = vand.u32 %v363, 4294901760
    %v2297 = vsub.f32 %v363, %v2296
    %v2298 = vand.u32 %v2297, 4294901760
    %v2299 = vsub.f32 %v2297, %v2298
    %v2300 = vand.u32 %v2299, 4294901760
    %2301 = vmatpush.msra.mxu0 %v2300
    %v2302 = vand.u32 %v356, 4294901760
    %v2303 = vsub.f32 %v356, %v2302
    %v2304 = vand.u32 %v2303, 4294901760
    %v2305 = vsub.f32 %v2303, %v2304
    %v2306 = vand.u32 %v2305, 4294901760
    %2307 = vmatpush.msra.mxu0 %v2306
    %v2308 = vand.u32 %v16, 4294901760
    %2309 = vmatmul.f32.gmra.mxu0 %v2308
    %v2310 = vpop.f32.mrf.mxu0
    %v2311 = vadd.f32 %v2210, %v2310
    %2312 = vdwg.mxu0
    %v2313 = vand.u32 %v461, 4294901760
    %v2314 = vsub.f32 %v461, %v2313
    %2315 = vmatpush.msra.mxu0 %v2314
    %v2316 = vand.u32 %v454, 4294901760
    %v2317 = vsub.f32 %v454, %v2316
    %2318 = vmatpush.msra.mxu0 %v2317
    %v2319 = vand.u32 %v447, 4294901760
    %v2320 = vsub.f32 %v447, %v2319
    %2321 = vmatpush.msra.mxu0 %v2320
    %v2322 = vand.u32 %v440, 4294901760
    %v2323 = vsub.f32 %v440, %v2322
    %2324 = vmatpush.msra.mxu0 %v2323
    %v2325 = vand.u32 %v433, 4294901760
    %v2326 = vsub.f32 %v433, %v2325
    %2327 = vmatpush.msra.mxu0 %v2326
    %v2328 = vand.u32 %v426, 4294901760
    %v2329 = vsub.f32 %v426, %v2328
    %2330 = vmatpush.msra.mxu0 %v2329
    %v2331 = vand.u32 %v419, 4294901760
    %v2332 = vsub.f32 %v419, %v2331
    %2333 = vmatpush.msra.mxu0 %v2332
    %v2334 = vand.u32 %v412, 4294901760
    %v2335 = vsub.f32 %v412, %v2334
    %2336 = vmatpush.msra.mxu0 %v2335
    %v2337 = vand.u32 %v405, 4294901760
    %v2338 = vsub.f32 %v405, %v2337
    %2339 = vmatpush.msra.mxu0 %v2338
    %v2340 = vand.u32 %v398, 4294901760
    %v2341 = vsub.f32 %v398, %v2340
    %2342 = vmatpush.msra.mxu0 %v2341
    %v2343 = vand.u32 %v391, 4294901760
    %v2344 = vsub.f32 %v391, %v2343
    %2345 = vmatpush.msra.mxu0 %v2344
    %v2346 = vand.u32 %v384, 4294901760
    %v2347 = vsub.f32 %v384, %v2346
    %2348 = vmatpush.msra.mxu0 %v2347
    %v2349 = vand.u32 %v377, 4294901760
    %v2350 = vsub.f32 %v377, %v2349
    %2351 = vmatpush.msra.mxu0 %v2350
    %v2352 = vand.u32 %v370, 4294901760
    %v2353 = vsub.f32 %v370, %v2352
    %2354 = vmatpush.msra.mxu0 %v2353
    %v2355 = vand.u32 %v363, 4294901760
    %v2356 = vsub.f32 %v363, %v2355
    %2357 = vmatpush.msra.mxu0 %v2356
    %v2358 = vand.u32 %v356, 4294901760
    %v2359 = vsub.f32 %v356, %v2358
    %2360 = vmatpush.msra.mxu0 %v2359
    %v2361 = vand.u32 %v16, 4294901760
    %v2362 = vsub.f32 %v16, %v2361
    %2363 = vmatmul.f32.gmra.mxu0 %v2362
    %v2364 = vpop.f32.mrf.mxu0
    %v2365 = vadd.f32 %v2311, %v2364
    %2366 = vdwg.mxu0
    %v2367 = vand.u32 %v461, 4294901760
    %2368 = vmatpush.msra.mxu0 %v2367
    %v2369 = vand.u32 %v454, 4294901760
    %2370 = vmatpush.msra.mxu0 %v2369
    %v2371 = vand.u32 %v447, 4294901760
    %2372 = vmatpush.msra.mxu0 %v2371
    %v2373 = vand.u32 %v440, 4294901760
    %2374 = vmatpush.msra.mxu0 %v2373
    %v2375 = vand.u32 %v433, 4294901760
    %2376 = vmatpush.msra.mxu0 %v2375
    %v2377 = vand.u32 %v426, 4294901760
    %2378 = vmatpush.msra.mxu0 %v2377
    %v2379 = vand.u32 %v419, 4294901760
    %2380 = vmatpush.msra.mxu0 %v2379
    %v2381 = vand.u32 %v412, 4294901760
    %2382 = vmatpush.msra.mxu0 %v2381
    %v2383 = vand.u32 %v405, 4294901760
    %2384 = vmatpush.msra.mxu0 %v2383
    %v2385 = vand.u32 %v398, 4294901760
    %2386 = vmatpush.msra.mxu0 %v2385
    %v2387 = vand.u32 %v391, 4294901760
    %2388 = vmatpush.msra.mxu0 %v2387
    %v2389 = vand.u32 %v384, 4294901760
    %2390 = vmatpush.msra.mxu0 %v2389
    %v2391 = vand.u32 %v377, 4294901760
    %2392 = vmatpush.msra.mxu0 %v2391
    %v2393 = vand.u32 %v370, 4294901760
    %2394 = vmatpush.msra.mxu0 %v2393
    %v2395 = vand.u32 %v363, 4294901760
    %2396 = vmatpush.msra.mxu0 %v2395
    %v2397 = vand.u32 %v356, 4294901760
    %2398 = vmatpush.msra.mxu0 %v2397
    %v2399 = vand.u32 %v16, 4294901760
    %v2400 = vsub.f32 %v16, %v2399
    %v2401 = vand.u32 %v2400, 4294901760
    %2402 = vmatmul.f32.gmra.mxu0 %v2401
    %v2403 = vpop.f32.mrf.mxu0
    %v2404 = vadd.f32 %v2365, %v2403
    %2405 = vdwg.mxu0
    %v2406 = vand.u32 %v461, 4294901760
    %v2407 = vsub.f32 %v461, %v2406
    %v2408 = vand.u32 %v2407, 4294901760
    %2409 = vmatpush.msra.mxu0 %v2408
    %v2410 = vand.u32 %v454, 4294901760
    %v2411 = vsub.f32 %v454, %v2410
    %v2412 = vand.u32 %v2411, 4294901760
    %2413 = vmatpush.msra.mxu0 %v2412
    %v2414 = vand.u32 %v447, 4294901760
    %v2415 = vsub.f32 %v447, %v2414
    %v2416 = vand.u32 %v2415, 4294901760
    %2417 = vmatpush.msra.mxu0 %v2416
    %v2418 = vand.u32 %v440, 4294901760
    %v2419 = vsub.f32 %v440, %v2418
    %v2420 = vand.u32 %v2419, 4294901760
    %2421 = vmatpush.msra.mxu0 %v2420
    %v2422 = vand.u32 %v433, 4294901760
    %v2423 = vsub.f32 %v433, %v2422
    %v2424 = vand.u32 %v2423, 4294901760
    %2425 = vmatpush.msra.mxu0 %v2424
    %v2426 = vand.u32 %v426, 4294901760
    %v2427 = vsub.f32 %v426, %v2426
    %v2428 = vand.u32 %v2427, 4294901760
    %2429 = vmatpush.msra.mxu0 %v2428
    %v2430 = vand.u32 %v419, 4294901760
    %v2431 = vsub.f32 %v419, %v2430
    %v2432 = vand.u32 %v2431, 4294901760
    %2433 = vmatpush.msra.mxu0 %v2432
    %v2434 = vand.u32 %v412, 4294901760
    %v2435 = vsub.f32 %v412, %v2434
    %v2436 = vand.u32 %v2435, 4294901760
    %2437 = vmatpush.msra.mxu0 %v2436
    %v2438 = vand.u32 %v405, 4294901760
    %v2439 = vsub.f32 %v405, %v2438
    %v2440 = vand.u32 %v2439, 4294901760
    %2441 = vmatpush.msra.mxu0 %v2440
    %v2442 = vand.u32 %v398, 4294901760
    %v2443 = vsub.f32 %v398, %v2442
    %v2444 = vand.u32 %v2443, 4294901760
    %2445 = vmatpush.msra.mxu0 %v2444
    %v2446 = vand.u32 %v391, 4294901760
    %v2447 = vsub.f32 %v391, %v2446
    %v2448 = vand.u32 %v2447, 4294901760
    %2449 = vmatpush.msra.mxu0 %v2448
    %v2450 = vand.u32 %v384, 4294901760
    %v2451 = vsub.f32 %v384, %v2450
    %v2452 = vand.u32 %v2451, 4294901760
    %2453 = vmatpush.msra.mxu0 %v2452
    %v2454 = vand.u32 %v377, 4294901760
    %v2455 = vsub.f32 %v377, %v2454
    %v2456 = vand.u32 %v2455, 4294901760
    %2457 = vmatpush.msra.mxu0 %v2456
    %v2458 = vand.u32 %v370, 4294901760
    %v2459 = vsub.f32 %v370, %v2458
    %v2460 = vand.u32 %v2459, 4294901760
    %2461 = vmatpush.msra.mxu0 %v2460
    %v2462 = vand.u32 %v363, 4294901760
    %v2463 = vsub.f32 %v363, %v2462
    %v2464 = vand.u32 %v2463, 4294901760
    %2465 = vmatpush.msra.mxu0 %v2464
    %v2466 = vand.u32 %v356, 4294901760
    %v2467 = vsub.f32 %v356, %v2466
    %v2468 = vand.u32 %v2467, 4294901760
    %2469 = vmatpush.msra.mxu0 %v2468
    %v2470 = vand.u32 %v16, 4294901760
    %2471 = vmatmul.f32.gmra.mxu0 %v2470
    %v2472 = vpop.f32.mrf.mxu0
    %v2473 = vadd.f32 %v2404, %v2472
    %2474 = vdwg.mxu0
    %v2475 = vand.u32 %v461, 4294901760
    %2476 = vmatpush.msra.mxu0 %v2475
    %v2477 = vand.u32 %v454, 4294901760
    %2478 = vmatpush.msra.mxu0 %v2477
    %v2479 = vand.u32 %v447, 4294901760
    %2480 = vmatpush.msra.mxu0 %v2479
    %v2481 = vand.u32 %v440, 4294901760
    %2482 = vmatpush.msra.mxu0 %v2481
    %v2483 = vand.u32 %v433, 4294901760
    %2484 = vmatpush.msra.mxu0 %v2483
    %v2485 = vand.u32 %v426, 4294901760
    %2486 = vmatpush.msra.mxu0 %v2485
    %v2487 = vand.u32 %v419, 4294901760
    %2488 = vmatpush.msra.mxu0 %v2487
    %v2489 = vand.u32 %v412, 4294901760
    %2490 = vmatpush.msra.mxu0 %v2489
    %v2491 = vand.u32 %v405, 4294901760
    %2492 = vmatpush.msra.mxu0 %v2491
    %v2493 = vand.u32 %v398, 4294901760
    %2494 = vmatpush.msra.mxu0 %v2493
    %v2495 = vand.u32 %v391, 4294901760
    %2496 = vmatpush.msra.mxu0 %v2495
    %v2497 = vand.u32 %v384, 4294901760
    %2498 = vmatpush.msra.mxu0 %v2497
    %v2499 = vand.u32 %v377, 4294901760
    %2500 = vmatpush.msra.mxu0 %v2499
    %v2501 = vand.u32 %v370, 4294901760
    %2502 = vmatpush.msra.mxu0 %v2501
    %v2503 = vand.u32 %v363, 4294901760
    %2504 = vmatpush.msra.mxu0 %v2503
    %v2505 = vand.u32 %v356, 4294901760
    %2506 = vmatpush.msra.mxu0 %v2505
    %v2507 = vand.u32 %v16, 4294901760
    %2508 = vmatmul.f32.gmra.mxu0 %v2507
    %v2509 = vpop.f32.mrf.mxu0
    %v2510 = vadd.f32 %v2473, %v2509
    %2511 = vdwg.mxu0
    %v2512 = vand.u32 %v350, 4294901760
    %2513 = vmatpush.msra.mxu0 %v2512
    %v2514 = vand.u32 %v343, 4294901760
    %2515 = vmatpush.msra.mxu0 %v2514
    %v2516 = vand.u32 %v336, 4294901760
    %2517 = vmatpush.msra.mxu0 %v2516
    %v2518 = vand.u32 %v329, 4294901760
    %2519 = vmatpush.msra.mxu0 %v2518
    %v2520 = vand.u32 %v322, 4294901760
    %2521 = vmatpush.msra.mxu0 %v2520
    %v2522 = vand.u32 %v315, 4294901760
    %2523 = vmatpush.msra.mxu0 %v2522
    %v2524 = vand.u32 %v308, 4294901760
    %2525 = vmatpush.msra.mxu0 %v2524
    %v2526 = vand.u32 %v301, 4294901760
    %2527 = vmatpush.msra.mxu0 %v2526
    %v2528 = vand.u32 %v294, 4294901760
    %2529 = vmatpush.msra.mxu0 %v2528
    %v2530 = vand.u32 %v287, 4294901760
    %2531 = vmatpush.msra.mxu0 %v2530
    %v2532 = vand.u32 %v280, 4294901760
    %2533 = vmatpush.msra.mxu0 %v2532
    %v2534 = vand.u32 %v273, 4294901760
    %2535 = vmatpush.msra.mxu0 %v2534
    %v2536 = vand.u32 %v266, 4294901760
    %2537 = vmatpush.msra.mxu0 %v2536
    %v2538 = vand.u32 %v259, 4294901760
    %2539 = vmatpush.msra.mxu0 %v2538
    %v2540 = vand.u32 %v252, 4294901760
    %2541 = vmatpush.msra.mxu0 %v2540
    %v2542 = vand.u32 %v245, 4294901760
    %2543 = vmatpush.msra.mxu0 %v2542
    %v2544 = vand.u32 %v15, 4294901760
    %v2545 = vsub.f32 %v15, %v2544
    %v2546 = vand.u32 %v2545, 4294901760
    %v2547 = vsub.f32 %v2545, %v2546
    %v2548 = vand.u32 %v2547, 4294901760
    %2549 = vmatmul.f32.gmra.mxu0 %v2548
    %v2550 = vpop.f32.mrf.mxu0
    %v2551 = vadd.f32 0.0, %v2550
    %2552 = vdwg.mxu0
    %v2553 = vand.u32 %v350, 4294901760
    %v2554 = vsub.f32 %v350, %v2553
    %v2555 = vand.u32 %v2554, 4294901760
    %v2556 = vsub.f32 %v2554, %v2555
    %v2557 = vand.u32 %v2556, 4294901760
    %2558 = vmatpush.msra.mxu0 %v2557
    %v2559 = vand.u32 %v343, 4294901760
    %v2560 = vsub.f32 %v343, %v2559
    %v2561 = vand.u32 %v2560, 4294901760
    %v2562 = vsub.f32 %v2560, %v2561
    %v2563 = vand.u32 %v2562, 4294901760
    %2564 = vmatpush.msra.mxu0 %v2563
    %v2565 = vand.u32 %v336, 4294901760
    %v2566 = vsub.f32 %v336, %v2565
    %v2567 = vand.u32 %v2566, 4294901760
    %v2568 = vsub.f32 %v2566, %v2567
    %v2569 = vand.u32 %v2568, 4294901760
    %2570 = vmatpush.msra.mxu0 %v2569
    %v2571 = vand.u32 %v329, 4294901760
    %v2572 = vsub.f32 %v329, %v2571
    %v2573 = vand.u32 %v2572, 4294901760
    %v2574 = vsub.f32 %v2572, %v2573
    %v2575 = vand.u32 %v2574, 4294901760
    %2576 = vmatpush.msra.mxu0 %v2575
    %v2577 = vand.u32 %v322, 4294901760
    %v2578 = vsub.f32 %v322, %v2577
    %v2579 = vand.u32 %v2578, 4294901760
    %v2580 = vsub.f32 %v2578, %v2579
    %v2581 = vand.u32 %v2580, 4294901760
    %2582 = vmatpush.msra.mxu0 %v2581
    %v2583 = vand.u32 %v315, 4294901760
    %v2584 = vsub.f32 %v315, %v2583
    %v2585 = vand.u32 %v2584, 4294901760
    %v2586 = vsub.f32 %v2584, %v2585
    %v2587 = vand.u32 %v2586, 4294901760
    %2588 = vmatpush.msra.mxu0 %v2587
    %v2589 = vand.u32 %v308, 4294901760
    %v2590 = vsub.f32 %v308, %v2589
    %v2591 = vand.u32 %v2590, 4294901760
    %v2592 = vsub.f32 %v2590, %v2591
    %v2593 = vand.u32 %v2592, 4294901760
    %2594 = vmatpush.msra.mxu0 %v2593
    %v2595 = vand.u32 %v301, 4294901760
    %v2596 = vsub.f32 %v301, %v2595
    %v2597 = vand.u32 %v2596, 4294901760
    %v2598 = vsub.f32 %v2596, %v2597
    %v2599 = vand.u32 %v2598, 4294901760
    %2600 = vmatpush.msra.mxu0 %v2599
    %v2601 = vand.u32 %v294, 4294901760
    %v2602 = vsub.f32 %v294, %v2601
    %v2603 = vand.u32 %v2602, 4294901760
    %v2604 = vsub.f32 %v2602, %v2603
    %v2605 = vand.u32 %v2604, 4294901760
    %2606 = vmatpush.msra.mxu0 %v2605
    %v2607 = vand.u32 %v287, 4294901760
    %v2608 = vsub.f32 %v287, %v2607
    %v2609 = vand.u32 %v2608, 4294901760
    %v2610 = vsub.f32 %v2608, %v2609
    %v2611 = vand.u32 %v2610, 4294901760
    %2612 = vmatpush.msra.mxu0 %v2611
    %v2613 = vand.u32 %v280, 4294901760
    %v2614 = vsub.f32 %v280, %v2613
    %v2615 = vand.u32 %v2614, 4294901760
    %v2616 = vsub.f32 %v2614, %v2615
    %v2617 = vand.u32 %v2616, 4294901760
    %2618 = vmatpush.msra.mxu0 %v2617
    %v2619 = vand.u32 %v273, 4294901760
    %v2620 = vsub.f32 %v273, %v2619
    %v2621 = vand.u32 %v2620, 4294901760
    %v2622 = vsub.f32 %v2620, %v2621
    %v2623 = vand.u32 %v2622, 4294901760
    %2624 = vmatpush.msra.mxu0 %v2623
    %v2625 = vand.u32 %v266, 4294901760
    %v2626 = vsub.f32 %v266, %v2625
    %v2627 = vand.u32 %v2626, 4294901760
    %v2628 = vsub.f32 %v2626, %v2627
    %v2629 = vand.u32 %v2628, 4294901760
    %2630 = vmatpush.msra.mxu0 %v2629
    %v2631 = vand.u32 %v259, 4294901760
    %v2632 = vsub.f32 %v259, %v2631
    %v2633 = vand.u32 %v2632, 4294901760
    %v2634 = vsub.f32 %v2632, %v2633
    %v2635 = vand.u32 %v2634, 4294901760
    %2636 = vmatpush.msra.mxu0 %v2635
    %v2637 = vand.u32 %v252, 4294901760
    %v2638 = vsub.f32 %v252, %v2637
    %v2639 = vand.u32 %v2638, 4294901760
    %v2640 = vsub.f32 %v2638, %v2639
    %v2641 = vand.u32 %v2640, 4294901760
    %2642 = vmatpush.msra.mxu0 %v2641
    %v2643 = vand.u32 %v245, 4294901760
    %v2644 = vsub.f32 %v245, %v2643
    %v2645 = vand.u32 %v2644, 4294901760
    %v2646 = vsub.f32 %v2644, %v2645
    %v2647 = vand.u32 %v2646, 4294901760
    %2648 = vmatpush.msra.mxu0 %v2647
    %v2649 = vand.u32 %v15, 4294901760
    %2650 = vmatmul.f32.gmra.mxu0 %v2649
    %v2651 = vpop.f32.mrf.mxu0
    %v2652 = vadd.f32 %v2551, %v2651
    %2653 = vdwg.mxu0
    %v2654 = vand.u32 %v350, 4294901760
    %v2655 = vsub.f32 %v350, %v2654
    %2656 = vmatpush.msra.mxu0 %v2655
    %v2657 = vand.u32 %v343, 4294901760
    %v2658 = vsub.f32 %v343, %v2657
    %2659 = vmatpush.msra.mxu0 %v2658
    %v2660 = vand.u32 %v336, 4294901760
    %v2661 = vsub.f32 %v336, %v2660
    %2662 = vmatpush.msra.mxu0 %v2661
    %v2663 = vand.u32 %v329, 4294901760
    %v2664 = vsub.f32 %v329, %v2663
    %2665 = vmatpush.msra.mxu0 %v2664
    %v2666 = vand.u32 %v322, 4294901760
    %v2667 = vsub.f32 %v322, %v2666
    %2668 = vmatpush.msra.mxu0 %v2667
    %v2669 = vand.u32 %v315, 4294901760
    %v2670 = vsub.f32 %v315, %v2669
    %2671 = vmatpush.msra.mxu0 %v2670
    %v2672 = vand.u32 %v308, 4294901760
    %v2673 = vsub.f32 %v308, %v2672
    %2674 = vmatpush.msra.mxu0 %v2673
    %v2675 = vand.u32 %v301, 4294901760
    %v2676 = vsub.f32 %v301, %v2675
    %2677 = vmatpush.msra.mxu0 %v2676
    %v2678 = vand.u32 %v294, 4294901760
    %v2679 = vsub.f32 %v294, %v2678
    %2680 = vmatpush.msra.mxu0 %v2679
    %v2681 = vand.u32 %v287, 4294901760
    %v2682 = vsub.f32 %v287, %v2681
    %2683 = vmatpush.msra.mxu0 %v2682
    %v2684 = vand.u32 %v280, 4294901760
    %v2685 = vsub.f32 %v280, %v2684
    %2686 = vmatpush.msra.mxu0 %v2685
    %v2687 = vand.u32 %v273, 4294901760
    %v2688 = vsub.f32 %v273, %v2687
    %2689 = vmatpush.msra.mxu0 %v2688
    %v2690 = vand.u32 %v266, 4294901760
    %v2691 = vsub.f32 %v266, %v2690
    %2692 = vmatpush.msra.mxu0 %v2691
    %v2693 = vand.u32 %v259, 4294901760
    %v2694 = vsub.f32 %v259, %v2693
    %2695 = vmatpush.msra.mxu0 %v2694
    %v2696 = vand.u32 %v252, 4294901760
    %v2697 = vsub.f32 %v252, %v2696
    %2698 = vmatpush.msra.mxu0 %v2697
    %v2699 = vand.u32 %v245, 4294901760
    %v2700 = vsub.f32 %v245, %v2699
    %2701 = vmatpush.msra.mxu0 %v2700
    %v2702 = vand.u32 %v15, 4294901760
    %v2703 = vsub.f32 %v15, %v2702
    %2704 = vmatmul.f32.gmra.mxu0 %v2703
    %v2705 = vpop.f32.mrf.mxu0
    %v2706 = vadd.f32 %v2652, %v2705
    %2707 = vdwg.mxu0
    %v2708 = vand.u32 %v350, 4294901760
    %2709 = vmatpush.msra.mxu0 %v2708
    %v2710 = vand.u32 %v343, 4294901760
    %2711 = vmatpush.msra.mxu0 %v2710
    %v2712 = vand.u32 %v336, 4294901760
    %2713 = vmatpush.msra.mxu0 %v2712
    %v2714 = vand.u32 %v329, 4294901760
    %2715 = vmatpush.msra.mxu0 %v2714
    %v2716 = vand.u32 %v322, 4294901760
    %2717 = vmatpush.msra.mxu0 %v2716
    %v2718 = vand.u32 %v315, 4294901760
    %2719 = vmatpush.msra.mxu0 %v2718
    %v2720 = vand.u32 %v308, 4294901760
    %2721 = vmatpush.msra.mxu0 %v2720
    %v2722 = vand.u32 %v301, 4294901760
    %2723 = vmatpush.msra.mxu0 %v2722
    %v2724 = vand.u32 %v294, 4294901760
    %2725 = vmatpush.msra.mxu0 %v2724
    %v2726 = vand.u32 %v287, 4294901760
    %2727 = vmatpush.msra.mxu0 %v2726
    %v2728 = vand.u32 %v280, 4294901760
    %2729 = vmatpush.msra.mxu0 %v2728
    %v2730 = vand.u32 %v273, 4294901760
    %2731 = vmatpush.msra.mxu0 %v2730
    %v2732 = vand.u32 %v266, 4294901760
    %2733 = vmatpush.msra.mxu0 %v2732
    %v2734 = vand.u32 %v259, 4294901760
    %2735 = vmatpush.msra.mxu0 %v2734
    %v2736 = vand.u32 %v252, 4294901760
    %2737 = vmatpush.msra.mxu0 %v2736
    %v2738 = vand.u32 %v245, 4294901760
    %2739 = vmatpush.msra.mxu0 %v2738
    %v2740 = vand.u32 %v15, 4294901760
    %v2741 = vsub.f32 %v15, %v2740
    %v2742 = vand.u32 %v2741, 4294901760
    %2743 = vmatmul.f32.gmra.mxu0 %v2742
    %v2744 = vpop.f32.mrf.mxu0
    %v2745 = vadd.f32 %v2706, %v2744
    %2746 = vdwg.mxu0
    %v2747 = vand.u32 %v350, 4294901760
    %v2748 = vsub.f32 %v350, %v2747
    %v2749 = vand.u32 %v2748, 4294901760
    %2750 = vmatpush.msra.mxu0 %v2749
    %v2751 = vand.u32 %v343, 4294901760
    %v2752 = vsub.f32 %v343, %v2751
    %v2753 = vand.u32 %v2752, 4294901760
    %2754 = vmatpush.msra.mxu0 %v2753
    %v2755 = vand.u32 %v336, 4294901760
    %v2756 = vsub.f32 %v336, %v2755
    %v2757 = vand.u32 %v2756, 4294901760
    %2758 = vmatpush.msra.mxu0 %v2757
    %v2759 = vand.u32 %v329, 4294901760
    %v2760 = vsub.f32 %v329, %v2759
    %v2761 = vand.u32 %v2760, 4294901760
    %2762 = vmatpush.msra.mxu0 %v2761
    %v2763 = vand.u32 %v322, 4294901760
    %v2764 = vsub.f32 %v322, %v2763
    %v2765 = vand.u32 %v2764, 4294901760
    %2766 = vmatpush.msra.mxu0 %v2765
    %v2767 = vand.u32 %v315, 4294901760
    %v2768 = vsub.f32 %v315, %v2767
    %v2769 = vand.u32 %v2768, 4294901760
    %2770 = vmatpush.msra.mxu0 %v2769
    %v2771 = vand.u32 %v308, 4294901760
    %v2772 = vsub.f32 %v308, %v2771
    %v2773 = vand.u32 %v2772, 4294901760
    %2774 = vmatpush.msra.mxu0 %v2773
    %v2775 = vand.u32 %v301, 4294901760
    %v2776 = vsub.f32 %v301, %v2775
    %v2777 = vand.u32 %v2776, 4294901760
    %2778 = vmatpush.msra.mxu0 %v2777
    %v2779 = vand.u32 %v294, 4294901760
    %v2780 = vsub.f32 %v294, %v2779
    %v2781 = vand.u32 %v2780, 4294901760
    %2782 = vmatpush.msra.mxu0 %v2781
    %v2783 = vand.u32 %v287, 4294901760
    %v2784 = vsub.f32 %v287, %v2783
    %v2785 = vand.u32 %v2784, 4294901760
    %2786 = vmatpush.msra.mxu0 %v2785
    %v2787 = vand.u32 %v280, 4294901760
    %v2788 = vsub.f32 %v280, %v2787
    %v2789 = vand.u32 %v2788, 4294901760
    %2790 = vmatpush.msra.mxu0 %v2789
    %v2791 = vand.u32 %v273, 4294901760
    %v2792 = vsub.f32 %v273, %v2791
    %v2793 = vand.u32 %v2792, 4294901760
    %2794 = vmatpush.msra.mxu0 %v2793
    %v2795 = vand.u32 %v266, 4294901760
    %v2796 = vsub.f32 %v266, %v2795
    %v2797 = vand.u32 %v2796, 4294901760
    %2798 = vmatpush.msra.mxu0 %v2797
    %v2799 = vand.u32 %v259, 4294901760
    %v2800 = vsub.f32 %v259, %v2799
    %v2801 = vand.u32 %v2800, 4294901760
    %2802 = vmatpush.msra.mxu0 %v2801
    %v2803 = vand.u32 %v252, 4294901760
    %v2804 = vsub.f32 %v252, %v2803
    %v2805 = vand.u32 %v2804, 4294901760
    %2806 = vmatpush.msra.mxu0 %v2805
    %v2807 = vand.u32 %v245, 4294901760
    %v2808 = vsub.f32 %v245, %v2807
    %v2809 = vand.u32 %v2808, 4294901760
    %2810 = vmatpush.msra.mxu0 %v2809
    %v2811 = vand.u32 %v15, 4294901760
    %2812 = vmatmul.f32.gmra.mxu0 %v2811
    %v2813 = vpop.f32.mrf.mxu0
    %v2814 = vadd.f32 %v2745, %v2813
    %2815 = vdwg.mxu0
    %v2816 = vand.u32 %v350, 4294901760
    %2817 = vmatpush.msra.mxu0 %v2816
    %v2818 = vand.u32 %v343, 4294901760
    %2819 = vmatpush.msra.mxu0 %v2818
    %v2820 = vand.u32 %v336, 4294901760
    %2821 = vmatpush.msra.mxu0 %v2820
    %v2822 = vand.u32 %v329, 4294901760
    %2823 = vmatpush.msra.mxu0 %v2822
    %v2824 = vand.u32 %v322, 4294901760
    %2825 = vmatpush.msra.mxu0 %v2824
    %v2826 = vand.u32 %v315, 4294901760
    %2827 = vmatpush.msra.mxu0 %v2826
    %v2828 = vand.u32 %v308, 4294901760
    %2829 = vmatpush.msra.mxu0 %v2828
    %v2830 = vand.u32 %v301, 4294901760
    %2831 = vmatpush.msra.mxu0 %v2830
    %v2832 = vand.u32 %v294, 4294901760
    %2833 = vmatpush.msra.mxu0 %v2832
    %v2834 = vand.u32 %v287, 4294901760
    %2835 = vmatpush.msra.mxu0 %v2834
    %v2836 = vand.u32 %v280, 4294901760
    %2837 = vmatpush.msra.mxu0 %v2836
    %v2838 = vand.u32 %v273, 4294901760
    %2839 = vmatpush.msra.mxu0 %v2838
    %v2840 = vand.u32 %v266, 4294901760
    %2841 = vmatpush.msra.mxu0 %v2840
    %v2842 = vand.u32 %v259, 4294901760
    %2843 = vmatpush.msra.mxu0 %v2842
    %v2844 = vand.u32 %v252, 4294901760
    %2845 = vmatpush.msra.mxu0 %v2844
    %v2846 = vand.u32 %v245, 4294901760
    %2847 = vmatpush.msra.mxu0 %v2846
    %v2848 = vand.u32 %v15, 4294901760
    %2849 = vmatmul.f32.gmra.mxu0 %v2848
    %v2850 = vpop.f32.mrf.mxu0
    %v2851 = vadd.f32 %v2814, %v2850
    %2852 = vdwg.mxu0
    %v2853 = vand.u32 %v462, 4294901760
    %2854 = vmatpush.msra.mxu0 %v2853
    %v2855 = vand.u32 %v455, 4294901760
    %2856 = vmatpush.msra.mxu0 %v2855
    %v2857 = vand.u32 %v448, 4294901760
    %2858 = vmatpush.msra.mxu0 %v2857
    %v2859 = vand.u32 %v441, 4294901760
    %2860 = vmatpush.msra.mxu0 %v2859
    %v2861 = vand.u32 %v434, 4294901760
    %2862 = vmatpush.msra.mxu0 %v2861
    %v2863 = vand.u32 %v427, 4294901760
    %2864 = vmatpush.msra.mxu0 %v2863
    %v2865 = vand.u32 %v420, 4294901760
    %2866 = vmatpush.msra.mxu0 %v2865
    %v2867 = vand.u32 %v413, 4294901760
    %2868 = vmatpush.msra.mxu0 %v2867
    %v2869 = vand.u32 %v406, 4294901760
    %2870 = vmatpush.msra.mxu0 %v2869
    %v2871 = vand.u32 %v399, 4294901760
    %2872 = vmatpush.msra.mxu0 %v2871
    %v2873 = vand.u32 %v392, 4294901760
    %2874 = vmatpush.msra.mxu0 %v2873
    %v2875 = vand.u32 %v385, 4294901760
    %2876 = vmatpush.msra.mxu0 %v2875
    %v2877 = vand.u32 %v378, 4294901760
    %2878 = vmatpush.msra.mxu0 %v2877
    %v2879 = vand.u32 %v371, 4294901760
    %2880 = vmatpush.msra.mxu0 %v2879
    %v2881 = vand.u32 %v364, 4294901760
    %2882 = vmatpush.msra.mxu0 %v2881
    %v2883 = vand.u32 %v357, 4294901760
    %2884 = vmatpush.msra.mxu0 %v2883
    %v2885 = vand.u32 %v16, 4294901760
    %v2886 = vsub.f32 %v16, %v2885
    %v2887 = vand.u32 %v2886, 4294901760
    %v2888 = vsub.f32 %v2886, %v2887
    %v2889 = vand.u32 %v2888, 4294901760
    %2890 = vmatmul.f32.gmra.mxu0 %v2889
    %v2891 = vpop.f32.mrf.mxu0
    %v2892 = vadd.f32 %v2851, %v2891
    %2893 = vdwg.mxu0
    %v2894 = vand.u32 %v462, 4294901760
    %v2895 = vsub.f32 %v462, %v2894
    %v2896 = vand.u32 %v2895, 4294901760
    %v2897 = vsub.f32 %v2895, %v2896
    %v2898 = vand.u32 %v2897, 4294901760
    %2899 = vmatpush.msra.mxu0 %v2898
    %v2900 = vand.u32 %v455, 4294901760
    %v2901 = vsub.f32 %v455, %v2900
    %v2902 = vand.u32 %v2901, 4294901760
    %v2903 = vsub.f32 %v2901, %v2902
    %v2904 = vand.u32 %v2903, 4294901760
    %2905 = vmatpush.msra.mxu0 %v2904
    %v2906 = vand.u32 %v448, 4294901760
    %v2907 = vsub.f32 %v448, %v2906
    %v2908 = vand.u32 %v2907, 4294901760
    %v2909 = vsub.f32 %v2907, %v2908
    %v2910 = vand.u32 %v2909, 4294901760
    %2911 = vmatpush.msra.mxu0 %v2910
    %v2912 = vand.u32 %v441, 4294901760
    %v2913 = vsub.f32 %v441, %v2912
    %v2914 = vand.u32 %v2913, 4294901760
    %v2915 = vsub.f32 %v2913, %v2914
    %v2916 = vand.u32 %v2915, 4294901760
    %2917 = vmatpush.msra.mxu0 %v2916
    %v2918 = vand.u32 %v434, 4294901760
    %v2919 = vsub.f32 %v434, %v2918
    %v2920 = vand.u32 %v2919, 4294901760
    %v2921 = vsub.f32 %v2919, %v2920
    %v2922 = vand.u32 %v2921, 4294901760
    %2923 = vmatpush.msra.mxu0 %v2922
    %v2924 = vand.u32 %v427, 4294901760
    %v2925 = vsub.f32 %v427, %v2924
    %v2926 = vand.u32 %v2925, 4294901760
    %v2927 = vsub.f32 %v2925, %v2926
    %v2928 = vand.u32 %v2927, 4294901760
    %2929 = vmatpush.msra.mxu0 %v2928
    %v2930 = vand.u32 %v420, 4294901760
    %v2931 = vsub.f32 %v420, %v2930
    %v2932 = vand.u32 %v2931, 4294901760
    %v2933 = vsub.f32 %v2931, %v2932
    %v2934 = vand.u32 %v2933, 4294901760
    %2935 = vmatpush.msra.mxu0 %v2934
    %v2936 = vand.u32 %v413, 4294901760
    %v2937 = vsub.f32 %v413, %v2936
    %v2938 = vand.u32 %v2937, 4294901760
    %v2939 = vsub.f32 %v2937, %v2938
    %v2940 = vand.u32 %v2939, 4294901760
    %2941 = vmatpush.msra.mxu0 %v2940
    %v2942 = vand.u32 %v406, 4294901760
    %v2943 = vsub.f32 %v406, %v2942
    %v2944 = vand.u32 %v2943, 4294901760
    %v2945 = vsub.f32 %v2943, %v2944
    %v2946 = vand.u32 %v2945, 4294901760
    %2947 = vmatpush.msra.mxu0 %v2946
    %v2948 = vand.u32 %v399, 4294901760
    %v2949 = vsub.f32 %v399, %v2948
    %v2950 = vand.u32 %v2949, 4294901760
    %v2951 = vsub.f32 %v2949, %v2950
    %v2952 = vand.u32 %v2951, 4294901760
    %2953 = vmatpush.msra.mxu0 %v2952
    %v2954 = vand.u32 %v392, 4294901760
    %v2955 = vsub.f32 %v392, %v2954
    %v2956 = vand.u32 %v2955, 4294901760
    %v2957 = vsub.f32 %v2955, %v2956
    %v2958 = vand.u32 %v2957, 4294901760
    %2959 = vmatpush.msra.mxu0 %v2958
    %v2960 = vand.u32 %v385, 4294901760
    %v2961 = vsub.f32 %v385, %v2960
    %v2962 = vand.u32 %v2961, 4294901760
    %v2963 = vsub.f32 %v2961, %v2962
    %v2964 = vand.u32 %v2963, 4294901760
    %2965 = vmatpush.msra.mxu0 %v2964
    %v2966 = vand.u32 %v378, 4294901760
    %v2967 = vsub.f32 %v378, %v2966
    %v2968 = vand.u32 %v2967, 4294901760
    %v2969 = vsub.f32 %v2967, %v2968
    %v2970 = vand.u32 %v2969, 4294901760
    %2971 = vmatpush.msra.mxu0 %v2970
    %v2972 = vand.u32 %v371, 4294901760
    %v2973 = vsub.f32 %v371, %v2972
    %v2974 = vand.u32 %v2973, 4294901760
    %v2975 = vsub.f32 %v2973, %v2974
    %v2976 = vand.u32 %v2975, 4294901760
    %2977 = vmatpush.msra.mxu0 %v2976
    %v2978 = vand.u32 %v364, 4294901760
    %v2979 = vsub.f32 %v364, %v2978
    %v2980 = vand.u32 %v2979, 4294901760
    %v2981 = vsub.f32 %v2979, %v2980
    %v2982 = vand.u32 %v2981, 4294901760
    %2983 = vmatpush.msra.mxu0 %v2982
    %v2984 = vand.u32 %v357, 4294901760
    %v2985 = vsub.f32 %v357, %v2984
    %v2986 = vand.u32 %v2985, 4294901760
    %v2987 = vsub.f32 %v2985, %v2986
    %v2988 = vand.u32 %v2987, 4294901760
    %2989 = vmatpush.msra.mxu0 %v2988
    %v2990 = vand.u32 %v16, 4294901760
    %2991 = vmatmul.f32.gmra.mxu0 %v2990
    %v2992 = vpop.f32.mrf.mxu0
    %v2993 = vadd.f32 %v2892, %v2992
    %2994 = vdwg.mxu0
    %v2995 = vand.u32 %v462, 4294901760
    %v2996 = vsub.f32 %v462, %v2995
    %2997 = vmatpush.msra.mxu0 %v2996
    %v2998 = vand.u32 %v455, 4294901760
    %v2999 = vsub.f32 %v455, %v2998
    %3000 = vmatpush.msra.mxu0 %v2999
    %v3001 = vand.u32 %v448, 4294901760
    %v3002 = vsub.f32 %v448, %v3001
    %3003 = vmatpush.msra.mxu0 %v3002
    %v3004 = vand.u32 %v441, 4294901760
    %v3005 = vsub.f32 %v441, %v3004
    %3006 = vmatpush.msra.mxu0 %v3005
    %v3007 = vand.u32 %v434, 4294901760
    %v3008 = vsub.f32 %v434, %v3007
    %3009 = vmatpush.msra.mxu0 %v3008
    %v3010 = vand.u32 %v427, 4294901760
    %v3011 = vsub.f32 %v427, %v3010
    %3012 = vmatpush.msra.mxu0 %v3011
    %v3013 = vand.u32 %v420, 4294901760
    %v3014 = vsub.f32 %v420, %v3013
    %3015 = vmatpush.msra.mxu0 %v3014
    %v3016 = vand.u32 %v413, 4294901760
    %v3017 = vsub.f32 %v413, %v3016
    %3018 = vmatpush.msra.mxu0 %v3017
    %v3019 = vand.u32 %v406, 4294901760
    %v3020 = vsub.f32 %v406, %v3019
    %3021 = vmatpush.msra.mxu0 %v3020
    %v3022 = vand.u32 %v399, 4294901760
    %v3023 = vsub.f32 %v399, %v3022
    %3024 = vmatpush.msra.mxu0 %v3023
    %v3025 = vand.u32 %v392, 4294901760
    %v3026 = vsub.f32 %v392, %v3025
    %3027 = vmatpush.msra.mxu0 %v3026
    %v3028 = vand.u32 %v385, 4294901760
    %v3029 = vsub.f32 %v385, %v3028
    %3030 = vmatpush.msra.mxu0 %v3029
    %v3031 = vand.u32 %v378, 4294901760
    %v3032 = vsub.f32 %v378, %v3031
    %3033 = vmatpush.msra.mxu0 %v3032
    %v3034 = vand.u32 %v371, 4294901760
    %v3035 = vsub.f32 %v371, %v3034
    %3036 = vmatpush.msra.mxu0 %v3035
    %v3037 = vand.u32 %v364, 4294901760
    %v3038 = vsub.f32 %v364, %v3037
    %3039 = vmatpush.msra.mxu0 %v3038
    %v3040 = vand.u32 %v357, 4294901760
    %v3041 = vsub.f32 %v357, %v3040
    %3042 = vmatpush.msra.mxu0 %v3041
    %v3043 = vand.u32 %v16, 4294901760
    %v3044 = vsub.f32 %v16, %v3043
    %3045 = vmatmul.f32.gmra.mxu0 %v3044
    %v3046 = vpop.f32.mrf.mxu0
    %v3047 = vadd.f32 %v2993, %v3046
    %3048 = vdwg.mxu0
    %v3049 = vand.u32 %v462, 4294901760
    %3050 = vmatpush.msra.mxu0 %v3049
    %v3051 = vand.u32 %v455, 4294901760
    %3052 = vmatpush.msra.mxu0 %v3051
    %v3053 = vand.u32 %v448, 4294901760
    %3054 = vmatpush.msra.mxu0 %v3053
    %v3055 = vand.u32 %v441, 4294901760
    %3056 = vmatpush.msra.mxu0 %v3055
    %v3057 = vand.u32 %v434, 4294901760
    %3058 = vmatpush.msra.mxu0 %v3057
    %v3059 = vand.u32 %v427, 4294901760
    %3060 = vmatpush.msra.mxu0 %v3059
    %v3061 = vand.u32 %v420, 4294901760
    %3062 = vmatpush.msra.mxu0 %v3061
    %v3063 = vand.u32 %v413, 4294901760
    %3064 = vmatpush.msra.mxu0 %v3063
    %v3065 = vand.u32 %v406, 4294901760
    %3066 = vmatpush.msra.mxu0 %v3065
    %v3067 = vand.u32 %v399, 4294901760
    %3068 = vmatpush.msra.mxu0 %v3067
    %v3069 = vand.u32 %v392, 4294901760
    %3070 = vmatpush.msra.mxu0 %v3069
    %v3071 = vand.u32 %v385, 4294901760
    %3072 = vmatpush.msra.mxu0 %v3071
    %v3073 = vand.u32 %v378, 4294901760
    %3074 = vmatpush.msra.mxu0 %v3073
    %v3075 = vand.u32 %v371, 4294901760
    %3076 = vmatpush.msra.mxu0 %v3075
    %v3077 = vand.u32 %v364, 4294901760
    %3078 = vmatpush.msra.mxu0 %v3077
    %v3079 = vand.u32 %v357, 4294901760
    %3080 = vmatpush.msra.mxu0 %v3079
    %v3081 = vand.u32 %v16, 4294901760
    %v3082 = vsub.f32 %v16, %v3081
    %v3083 = vand.u32 %v3082, 4294901760
    %3084 = vmatmul.f32.gmra.mxu0 %v3083
    %v3085 = vpop.f32.mrf.mxu0
    %v3086 = vadd.f32 %v3047, %v3085
    %3087 = vdwg.mxu0
    %v3088 = vand.u32 %v462, 4294901760
    %v3089 = vsub.f32 %v462, %v3088
    %v3090 = vand.u32 %v3089, 4294901760
    %3091 = vmatpush.msra.mxu0 %v3090
    %v3092 = vand.u32 %v455, 4294901760
    %v3093 = vsub.f32 %v455, %v3092
    %v3094 = vand.u32 %v3093, 4294901760
    %3095 = vmatpush.msra.mxu0 %v3094
    %v3096 = vand.u32 %v448, 4294901760
    %v3097 = vsub.f32 %v448, %v3096
    %v3098 = vand.u32 %v3097, 4294901760
    %3099 = vmatpush.msra.mxu0 %v3098
    %v3100 = vand.u32 %v441, 4294901760
    %v3101 = vsub.f32 %v441, %v3100
    %v3102 = vand.u32 %v3101, 4294901760
    %3103 = vmatpush.msra.mxu0 %v3102
    %v3104 = vand.u32 %v434, 4294901760
    %v3105 = vsub.f32 %v434, %v3104
    %v3106 = vand.u32 %v3105, 4294901760
    %3107 = vmatpush.msra.mxu0 %v3106
    %v3108 = vand.u32 %v427, 4294901760
    %v3109 = vsub.f32 %v427, %v3108
    %v3110 = vand.u32 %v3109, 4294901760
    %3111 = vmatpush.msra.mxu0 %v3110
    %v3112 = vand.u32 %v420, 4294901760
    %v3113 = vsub.f32 %v420, %v3112
    %v3114 = vand.u32 %v3113, 4294901760
    %3115 = vmatpush.msra.mxu0 %v3114
    %v3116 = vand.u32 %v413, 4294901760
    %v3117 = vsub.f32 %v413, %v3116
    %v3118 = vand.u32 %v3117, 4294901760
    %3119 = vmatpush.msra.mxu0 %v3118
    %v3120 = vand.u32 %v406, 4294901760
    %v3121 = vsub.f32 %v406, %v3120
    %v3122 = vand.u32 %v3121, 4294901760
    %3123 = vmatpush.msra.mxu0 %v3122
    %v3124 = vand.u32 %v399, 4294901760
    %v3125 = vsub.f32 %v399, %v3124
    %v3126 = vand.u32 %v3125, 4294901760
    %3127 = vmatpush.msra.mxu0 %v3126
    %v3128 = vand.u32 %v392, 4294901760
    %v3129 = vsub.f32 %v392, %v3128
    %v3130 = vand.u32 %v3129, 4294901760
    %3131 = vmatpush.msra.mxu0 %v3130
    %v3132 = vand.u32 %v385, 4294901760
    %v3133 = vsub.f32 %v385, %v3132
    %v3134 = vand.u32 %v3133, 4294901760
    %3135 = vmatpush.msra.mxu0 %v3134
    %v3136 = vand.u32 %v378, 4294901760
    %v3137 = vsub.f32 %v378, %v3136
    %v3138 = vand.u32 %v3137, 4294901760
    %3139 = vmatpush.msra.mxu0 %v3138
    %v3140 = vand.u32 %v371, 4294901760
    %v3141 = vsub.f32 %v371, %v3140
    %v3142 = vand.u32 %v3141, 4294901760
    %3143 = vmatpush.msra.mxu0 %v3142
    %v3144 = vand.u32 %v364, 4294901760
    %v3145 = vsub.f32 %v364, %v3144
    %v3146 = vand.u32 %v3145, 4294901760
    %3147 = vmatpush.msra.mxu0 %v3146
    %v3148 = vand.u32 %v357, 4294901760
    %v3149 = vsub.f32 %v357, %v3148
    %v3150 = vand.u32 %v3149, 4294901760
    %3151 = vmatpush.msra.mxu0 %v3150
    %v3152 = vand.u32 %v16, 4294901760
    %3153 = vmatmul.f32.gmra.mxu0 %v3152
    %v3154 = vpop.f32.mrf.mxu0
    %v3155 = vadd.f32 %v3086, %v3154
    %3156 = vdwg.mxu0
    %v3157 = vand.u32 %v462, 4294901760
    %3158 = vmatpush.msra.mxu0 %v3157
    %v3159 = vand.u32 %v455, 4294901760
    %3160 = vmatpush.msra.mxu0 %v3159
    %v3161 = vand.u32 %v448, 4294901760
    %3162 = vmatpush.msra.mxu0 %v3161
    %v3163 = vand.u32 %v441, 4294901760
    %3164 = vmatpush.msra.mxu0 %v3163
    %v3165 = vand.u32 %v434, 4294901760
    %3166 = vmatpush.msra.mxu0 %v3165
    %v3167 = vand.u32 %v427, 4294901760
    %3168 = vmatpush.msra.mxu0 %v3167
    %v3169 = vand.u32 %v420, 4294901760
    %3170 = vmatpush.msra.mxu0 %v3169
    %v3171 = vand.u32 %v413, 4294901760
    %3172 = vmatpush.msra.mxu0 %v3171
    %v3173 = vand.u32 %v406, 4294901760
    %3174 = vmatpush.msra.mxu0 %v3173
    %v3175 = vand.u32 %v399, 4294901760
    %3176 = vmatpush.msra.mxu0 %v3175
    %v3177 = vand.u32 %v392, 4294901760
    %3178 = vmatpush.msra.mxu0 %v3177
    %v3179 = vand.u32 %v385, 4294901760
    %3180 = vmatpush.msra.mxu0 %v3179
    %v3181 = vand.u32 %v378, 4294901760
    %3182 = vmatpush.msra.mxu0 %v3181
    %v3183 = vand.u32 %v371, 4294901760
    %3184 = vmatpush.msra.mxu0 %v3183
    %v3185 = vand.u32 %v364, 4294901760
    %3186 = vmatpush.msra.mxu0 %v3185
    %v3187 = vand.u32 %v357, 4294901760
    %3188 = vmatpush.msra.mxu0 %v3187
    %v3189 = vand.u32 %v16, 4294901760
    %3190 = vmatmul.f32.gmra.mxu0 %v3189
    %v3191 = vpop.f32.mrf.mxu0
    %v3192 = vadd.f32 %v3155, %v3191
    %3193 = vdwg.mxu0
    %v3194 = vand.u32 %v351, 4294901760
    %3195 = vmatpush.msra.mxu0 %v3194
    %v3196 = vand.u32 %v344, 4294901760
    %3197 = vmatpush.msra.mxu0 %v3196
    %v3198 = vand.u32 %v337, 4294901760
    %3199 = vmatpush.msra.mxu0 %v3198
    %v3200 = vand.u32 %v330, 4294901760
    %3201 = vmatpush.msra.mxu0 %v3200
    %v3202 = vand.u32 %v323, 4294901760
    %3203 = vmatpush.msra.mxu0 %v3202
    %v3204 = vand.u32 %v316, 4294901760
    %3205 = vmatpush.msra.mxu0 %v3204
    %v3206 = vand.u32 %v309, 4294901760
    %3207 = vmatpush.msra.mxu0 %v3206
    %v3208 = vand.u32 %v302, 4294901760
    %3209 = vmatpush.msra.mxu0 %v3208
    %v3210 = vand.u32 %v295, 4294901760
    %3211 = vmatpush.msra.mxu0 %v3210
    %v3212 = vand.u32 %v288, 4294901760
    %3213 = vmatpush.msra.mxu0 %v3212
    %v3214 = vand.u32 %v281, 4294901760
    %3215 = vmatpush.msra.mxu0 %v3214
    %v3216 = vand.u32 %v274, 4294901760
    %3217 = vmatpush.msra.mxu0 %v3216
    %v3218 = vand.u32 %v267, 4294901760
    %3219 = vmatpush.msra.mxu0 %v3218
    %v3220 = vand.u32 %v260, 4294901760
    %3221 = vmatpush.msra.mxu0 %v3220
    %v3222 = vand.u32 %v253, 4294901760
    %3223 = vmatpush.msra.mxu0 %v3222
    %v3224 = vand.u32 %v246, 4294901760
    %3225 = vmatpush.msra.mxu0 %v3224
    %v3226 = vand.u32 %v15, 4294901760
    %v3227 = vsub.f32 %v15, %v3226
    %v3228 = vand.u32 %v3227, 4294901760
    %v3229 = vsub.f32 %v3227, %v3228
    %v3230 = vand.u32 %v3229, 4294901760
    %3231 = vmatmul.f32.gmra.mxu0 %v3230
    %v3232 = vpop.f32.mrf.mxu0
    %v3233 = vadd.f32 0.0, %v3232
    %3234 = vdwg.mxu0
    %v3235 = vand.u32 %v351, 4294901760
    %v3236 = vsub.f32 %v351, %v3235
    %v3237 = vand.u32 %v3236, 4294901760
    %v3238 = vsub.f32 %v3236, %v3237
    %v3239 = vand.u32 %v3238, 4294901760
    %3240 = vmatpush.msra.mxu0 %v3239
    %v3241 = vand.u32 %v344, 4294901760
    %v3242 = vsub.f32 %v344, %v3241
    %v3243 = vand.u32 %v3242, 4294901760
    %v3244 = vsub.f32 %v3242, %v3243
    %v3245 = vand.u32 %v3244, 4294901760
    %3246 = vmatpush.msra.mxu0 %v3245
    %v3247 = vand.u32 %v337, 4294901760
    %v3248 = vsub.f32 %v337, %v3247
    %v3249 = vand.u32 %v3248, 4294901760
    %v3250 = vsub.f32 %v3248, %v3249
    %v3251 = vand.u32 %v3250, 4294901760
    %3252 = vmatpush.msra.mxu0 %v3251
    %v3253 = vand.u32 %v330, 4294901760
    %v3254 = vsub.f32 %v330, %v3253
    %v3255 = vand.u32 %v3254, 4294901760
    %v3256 = vsub.f32 %v3254, %v3255
    %v3257 = vand.u32 %v3256, 4294901760
    %3258 = vmatpush.msra.mxu0 %v3257
    %v3259 = vand.u32 %v323, 4294901760
    %v3260 = vsub.f32 %v323, %v3259
    %v3261 = vand.u32 %v3260, 4294901760
    %v3262 = vsub.f32 %v3260, %v3261
    %v3263 = vand.u32 %v3262, 4294901760
    %3264 = vmatpush.msra.mxu0 %v3263
    %v3265 = vand.u32 %v316, 4294901760
    %v3266 = vsub.f32 %v316, %v3265
    %v3267 = vand.u32 %v3266, 4294901760
    %v3268 = vsub.f32 %v3266, %v3267
    %v3269 = vand.u32 %v3268, 4294901760
    %3270 = vmatpush.msra.mxu0 %v3269
    %v3271 = vand.u32 %v309, 4294901760
    %v3272 = vsub.f32 %v309, %v3271
    %v3273 = vand.u32 %v3272, 4294901760
    %v3274 = vsub.f32 %v3272, %v3273
    %v3275 = vand.u32 %v3274, 4294901760
    %3276 = vmatpush.msra.mxu0 %v3275
    %v3277 = vand.u32 %v302, 4294901760
    %v3278 = vsub.f32 %v302, %v3277
    %v3279 = vand.u32 %v3278, 4294901760
    %v3280 = vsub.f32 %v3278, %v3279
    %v3281 = vand.u32 %v3280, 4294901760
    %3282 = vmatpush.msra.mxu0 %v3281
    %v3283 = vand.u32 %v295, 4294901760
    %v3284 = vsub.f32 %v295, %v3283
    %v3285 = vand.u32 %v3284, 4294901760
    %v3286 = vsub.f32 %v3284, %v3285
    %v3287 = vand.u32 %v3286, 4294901760
    %3288 = vmatpush.msra.mxu0 %v3287
    %v3289 = vand.u32 %v288, 4294901760
    %v3290 = vsub.f32 %v288, %v3289
    %v3291 = vand.u32 %v3290, 4294901760
    %v3292 = vsub.f32 %v3290, %v3291
    %v3293 = vand.u32 %v3292, 4294901760
    %3294 = vmatpush.msra.mxu0 %v3293
    %v3295 = vand.u32 %v281, 4294901760
    %v3296 = vsub.f32 %v281, %v3295
    %v3297 = vand.u32 %v3296, 4294901760
    %v3298 = vsub.f32 %v3296, %v3297
    %v3299 = vand.u32 %v3298, 4294901760
    %3300 = vmatpush.msra.mxu0 %v3299
    %v3301 = vand.u32 %v274, 4294901760
    %v3302 = vsub.f32 %v274, %v3301
    %v3303 = vand.u32 %v3302, 4294901760
    %v3304 = vsub.f32 %v3302, %v3303
    %v3305 = vand.u32 %v3304, 4294901760
    %3306 = vmatpush.msra.mxu0 %v3305
    %v3307 = vand.u32 %v267, 4294901760
    %v3308 = vsub.f32 %v267, %v3307
    %v3309 = vand.u32 %v3308, 4294901760
    %v3310 = vsub.f32 %v3308, %v3309
    %v3311 = vand.u32 %v3310, 4294901760
    %3312 = vmatpush.msra.mxu0 %v3311
    %v3313 = vand.u32 %v260, 4294901760
    %v3314 = vsub.f32 %v260, %v3313
    %v3315 = vand.u32 %v3314, 4294901760
    %v3316 = vsub.f32 %v3314, %v3315
    %v3317 = vand.u32 %v3316, 4294901760
    %3318 = vmatpush.msra.mxu0 %v3317
    %v3319 = vand.u32 %v253, 4294901760
    %v3320 = vsub.f32 %v253, %v3319
    %v3321 = vand.u32 %v3320, 4294901760
    %v3322 = vsub.f32 %v3320, %v3321
    %v3323 = vand.u32 %v3322, 4294901760
    %3324 = vmatpush.msra.mxu0 %v3323
    %v3325 = vand.u32 %v246, 4294901760
    %v3326 = vsub.f32 %v246, %v3325
    %v3327 = vand.u32 %v3326, 4294901760
    %v3328 = vsub.f32 %v3326, %v3327
    %v3329 = vand.u32 %v3328, 4294901760
    %3330 = vmatpush.msra.mxu0 %v3329
    %v3331 = vand.u32 %v15, 4294901760
    %3332 = vmatmul.f32.gmra.mxu0 %v3331
    %v3333 = vpop.f32.mrf.mxu0
    %v3334 = vadd.f32 %v3233, %v3333
    %3335 = vdwg.mxu0
    %v3336 = vand.u32 %v351, 4294901760
    %v3337 = vsub.f32 %v351, %v3336
    %3338 = vmatpush.msra.mxu0 %v3337
    %v3339 = vand.u32 %v344, 4294901760
    %v3340 = vsub.f32 %v344, %v3339
    %3341 = vmatpush.msra.mxu0 %v3340
    %v3342 = vand.u32 %v337, 4294901760
    %v3343 = vsub.f32 %v337, %v3342
    %3344 = vmatpush.msra.mxu0 %v3343
    %v3345 = vand.u32 %v330, 4294901760
    %v3346 = vsub.f32 %v330, %v3345
    %3347 = vmatpush.msra.mxu0 %v3346
    %v3348 = vand.u32 %v323, 4294901760
    %v3349 = vsub.f32 %v323, %v3348
    %3350 = vmatpush.msra.mxu0 %v3349
    %v3351 = vand.u32 %v316, 4294901760
    %v3352 = vsub.f32 %v316, %v3351
    %3353 = vmatpush.msra.mxu0 %v3352
    %v3354 = vand.u32 %v309, 4294901760
    %v3355 = vsub.f32 %v309, %v3354
    %3356 = vmatpush.msra.mxu0 %v3355
    %v3357 = vand.u32 %v302, 4294901760
    %v3358 = vsub.f32 %v302, %v3357
    %3359 = vmatpush.msra.mxu0 %v3358
    %v3360 = vand.u32 %v295, 4294901760
    %v3361 = vsub.f32 %v295, %v3360
    %3362 = vmatpush.msra.mxu0 %v3361
    %v3363 = vand.u32 %v288, 4294901760
    %v3364 = vsub.f32 %v288, %v3363
    %3365 = vmatpush.msra.mxu0 %v3364
    %v3366 = vand.u32 %v281, 4294901760
    %v3367 = vsub.f32 %v281, %v3366
    %3368 = vmatpush.msra.mxu0 %v3367
    %v3369 = vand.u32 %v274, 4294901760
    %v3370 = vsub.f32 %v274, %v3369
    %3371 = vmatpush.msra.mxu0 %v3370
    %v3372 = vand.u32 %v267, 4294901760
    %v3373 = vsub.f32 %v267, %v3372
    %3374 = vmatpush.msra.mxu0 %v3373
    %v3375 = vand.u32 %v260, 4294901760
    %v3376 = vsub.f32 %v260, %v3375
    %3377 = vmatpush.msra.mxu0 %v3376
    %v3378 = vand.u32 %v253, 4294901760
    %v3379 = vsub.f32 %v253, %v3378
    %3380 = vmatpush.msra.mxu0 %v3379
    %v3381 = vand.u32 %v246, 4294901760
    %v3382 = vsub.f32 %v246, %v3381
    %3383 = vmatpush.msra.mxu0 %v3382
    %v3384 = vand.u32 %v15, 4294901760
    %v3385 = vsub.f32 %v15, %v3384
    %3386 = vmatmul.f32.gmra.mxu0 %v3385
    %v3387 = vpop.f32.mrf.mxu0
    %v3388 = vadd.f32 %v3334, %v3387
    %3389 = vdwg.mxu0
    %v3390 = vand.u32 %v351, 4294901760
    %3391 = vmatpush.msra.mxu0 %v3390
    %v3392 = vand.u32 %v344, 4294901760
    %3393 = vmatpush.msra.mxu0 %v3392
    %v3394 = vand.u32 %v337, 4294901760
    %3395 = vmatpush.msra.mxu0 %v3394
    %v3396 = vand.u32 %v330, 4294901760
    %3397 = vmatpush.msra.mxu0 %v3396
    %v3398 = vand.u32 %v323, 4294901760
    %3399 = vmatpush.msra.mxu0 %v3398
    %v3400 = vand.u32 %v316, 4294901760
    %3401 = vmatpush.msra.mxu0 %v3400
    %v3402 = vand.u32 %v309, 4294901760
    %3403 = vmatpush.msra.mxu0 %v3402
    %v3404 = vand.u32 %v302, 4294901760
    %3405 = vmatpush.msra.mxu0 %v3404
    %v3406 = vand.u32 %v295, 4294901760
    %3407 = vmatpush.msra.mxu0 %v3406
    %v3408 = vand.u32 %v288, 4294901760
    %3409 = vmatpush.msra.mxu0 %v3408
    %v3410 = vand.u32 %v281, 4294901760
    %3411 = vmatpush.msra.mxu0 %v3410
    %v3412 = vand.u32 %v274, 4294901760
    %3413 = vmatpush.msra.mxu0 %v3412
    %v3414 = vand.u32 %v267, 4294901760
    %3415 = vmatpush.msra.mxu0 %v3414
    %v3416 = vand.u32 %v260, 4294901760
    %3417 = vmatpush.msra.mxu0 %v3416
    %v3418 = vand.u32 %v253, 4294901760
    %3419 = vmatpush.msra.mxu0 %v3418
    %v3420 = vand.u32 %v246, 4294901760
    %3421 = vmatpush.msra.mxu0 %v3420
    %v3422 = vand.u32 %v15, 4294901760
    %v3423 = vsub.f32 %v15, %v3422
    %v3424 = vand.u32 %v3423, 4294901760
    %3425 = vmatmul.f32.gmra.mxu0 %v3424
    %v3426 = vpop.f32.mrf.mxu0
    %v3427 = vadd.f32 %v3388, %v3426
    %3428 = vdwg.mxu0
    %v3429 = vand.u32 %v351, 4294901760
    %v3430 = vsub.f32 %v351, %v3429
    %v3431 = vand.u32 %v3430, 4294901760
    %3432 = vmatpush.msra.mxu0 %v3431
    %v3433 = vand.u32 %v344, 4294901760
    %v3434 = vsub.f32 %v344, %v3433
    %v3435 = vand.u32 %v3434, 4294901760
    %3436 = vmatpush.msra.mxu0 %v3435
    %v3437 = vand.u32 %v337, 4294901760
    %v3438 = vsub.f32 %v337, %v3437
    %v3439 = vand.u32 %v3438, 4294901760
    %3440 = vmatpush.msra.mxu0 %v3439
    %v3441 = vand.u32 %v330, 4294901760
    %v3442 = vsub.f32 %v330, %v3441
    %v3443 = vand.u32 %v3442, 4294901760
    %3444 = vmatpush.msra.mxu0 %v3443
    %v3445 = vand.u32 %v323, 4294901760
    %v3446 = vsub.f32 %v323, %v3445
    %v3447 = vand.u32 %v3446, 4294901760
    %3448 = vmatpush.msra.mxu0 %v3447
    %v3449 = vand.u32 %v316, 4294901760
    %v3450 = vsub.f32 %v316, %v3449
    %v3451 = vand.u32 %v3450, 4294901760
    %3452 = vmatpush.msra.mxu0 %v3451
    %v3453 = vand.u32 %v309, 4294901760
    %v3454 = vsub.f32 %v309, %v3453
    %v3455 = vand.u32 %v3454, 4294901760
    %3456 = vmatpush.msra.mxu0 %v3455
    %v3457 = vand.u32 %v302, 4294901760
    %v3458 = vsub.f32 %v302, %v3457
    %v3459 = vand.u32 %v3458, 4294901760
    %3460 = vmatpush.msra.mxu0 %v3459
    %v3461 = vand.u32 %v295, 4294901760
    %v3462 = vsub.f32 %v295, %v3461
    %v3463 = vand.u32 %v3462, 4294901760
    %3464 = vmatpush.msra.mxu0 %v3463
    %v3465 = vand.u32 %v288, 4294901760
    %v3466 = vsub.f32 %v288, %v3465
    %v3467 = vand.u32 %v3466, 4294901760
    %3468 = vmatpush.msra.mxu0 %v3467
    %v3469 = vand.u32 %v281, 4294901760
    %v3470 = vsub.f32 %v281, %v3469
    %v3471 = vand.u32 %v3470, 4294901760
    %3472 = vmatpush.msra.mxu0 %v3471
    %v3473 = vand.u32 %v274, 4294901760
    %v3474 = vsub.f32 %v274, %v3473
    %v3475 = vand.u32 %v3474, 4294901760
    %3476 = vmatpush.msra.mxu0 %v3475
    %v3477 = vand.u32 %v267, 4294901760
    %v3478 = vsub.f32 %v267, %v3477
    %v3479 = vand.u32 %v3478, 4294901760
    %3480 = vmatpush.msra.mxu0 %v3479
    %v3481 = vand.u32 %v260, 4294901760
    %v3482 = vsub.f32 %v260, %v3481
    %v3483 = vand.u32 %v3482, 4294901760
    %3484 = vmatpush.msra.mxu0 %v3483
    %v3485 = vand.u32 %v253, 4294901760
    %v3486 = vsub.f32 %v253, %v3485
    %v3487 = vand.u32 %v3486, 4294901760
    %3488 = vmatpush.msra.mxu0 %v3487
    %v3489 = vand.u32 %v246, 4294901760
    %v3490 = vsub.f32 %v246, %v3489
    %v3491 = vand.u32 %v3490, 4294901760
    %3492 = vmatpush.msra.mxu0 %v3491
    %v3493 = vand.u32 %v15, 4294901760
    %3494 = vmatmul.f32.gmra.mxu0 %v3493
    %v3495 = vpop.f32.mrf.mxu0
    %v3496 = vadd.f32 %v3427, %v3495
    %3497 = vdwg.mxu0
    %v3498 = vand.u32 %v351, 4294901760
    %3499 = vmatpush.msra.mxu0 %v3498
    %v3500 = vand.u32 %v344, 4294901760
    %3501 = vmatpush.msra.mxu0 %v3500
    %v3502 = vand.u32 %v337, 4294901760
    %3503 = vmatpush.msra.mxu0 %v3502
    %v3504 = vand.u32 %v330, 4294901760
    %3505 = vmatpush.msra.mxu0 %v3504
    %v3506 = vand.u32 %v323, 4294901760
    %3507 = vmatpush.msra.mxu0 %v3506
    %v3508 = vand.u32 %v316, 4294901760
    %3509 = vmatpush.msra.mxu0 %v3508
    %v3510 = vand.u32 %v309, 4294901760
    %3511 = vmatpush.msra.mxu0 %v3510
    %v3512 = vand.u32 %v302, 4294901760
    %3513 = vmatpush.msra.mxu0 %v3512
    %v3514 = vand.u32 %v295, 4294901760
    %3515 = vmatpush.msra.mxu0 %v3514
    %v3516 = vand.u32 %v288, 4294901760
    %3517 = vmatpush.msra.mxu0 %v3516
    %v3518 = vand.u32 %v281, 4294901760
    %3519 = vmatpush.msra.mxu0 %v3518
    %v3520 = vand.u32 %v274, 4294901760
    %3521 = vmatpush.msra.mxu0 %v3520
    %v3522 = vand.u32 %v267, 4294901760
    %3523 = vmatpush.msra.mxu0 %v3522
    %v3524 = vand.u32 %v260, 4294901760
    %3525 = vmatpush.msra.mxu0 %v3524
    %v3526 = vand.u32 %v253, 4294901760
    %3527 = vmatpush.msra.mxu0 %v3526
    %v3528 = vand.u32 %v246, 4294901760
    %3529 = vmatpush.msra.mxu0 %v3528
    %v3530 = vand.u32 %v15, 4294901760
    %3531 = vmatmul.f32.gmra.mxu0 %v3530
    %v3532 = vpop.f32.mrf.mxu0
    %v3533 = vadd.f32 %v3496, %v3532
    %3534 = vdwg.mxu0
    %v3535 = vand.u32 %v463, 4294901760
    %3536 = vmatpush.msra.mxu0 %v3535
    %v3537 = vand.u32 %v456, 4294901760
    %3538 = vmatpush.msra.mxu0 %v3537
    %v3539 = vand.u32 %v449, 4294901760
    %3540 = vmatpush.msra.mxu0 %v3539
    %v3541 = vand.u32 %v442, 4294901760
    %3542 = vmatpush.msra.mxu0 %v3541
    %v3543 = vand.u32 %v435, 4294901760
    %3544 = vmatpush.msra.mxu0 %v3543
    %v3545 = vand.u32 %v428, 4294901760
    %3546 = vmatpush.msra.mxu0 %v3545
    %v3547 = vand.u32 %v421, 4294901760
    %3548 = vmatpush.msra.mxu0 %v3547
    %v3549 = vand.u32 %v414, 4294901760
    %3550 = vmatpush.msra.mxu0 %v3549
    %v3551 = vand.u32 %v407, 4294901760
    %3552 = vmatpush.msra.mxu0 %v3551
    %v3553 = vand.u32 %v400, 4294901760
    %3554 = vmatpush.msra.mxu0 %v3553
    %v3555 = vand.u32 %v393, 4294901760
    %3556 = vmatpush.msra.mxu0 %v3555
    %v3557 = vand.u32 %v386, 4294901760
    %3558 = vmatpush.msra.mxu0 %v3557
    %v3559 = vand.u32 %v379, 4294901760
    %3560 = vmatpush.msra.mxu0 %v3559
    %v3561 = vand.u32 %v372, 4294901760
    %3562 = vmatpush.msra.mxu0 %v3561
    %v3563 = vand.u32 %v365, 4294901760
    %3564 = vmatpush.msra.mxu0 %v3563
    %v3565 = vand.u32 %v358, 4294901760
    %3566 = vmatpush.msra.mxu0 %v3565
    %v3567 = vand.u32 %v16, 4294901760
    %v3568 = vsub.f32 %v16, %v3567
    %v3569 = vand.u32 %v3568, 4294901760
    %v3570 = vsub.f32 %v3568, %v3569
    %v3571 = vand.u32 %v3570, 4294901760
    %3572 = vmatmul.f32.gmra.mxu0 %v3571
    %v3573 = vpop.f32.mrf.mxu0
    %v3574 = vadd.f32 %v3533, %v3573
    %3575 = vdwg.mxu0
    %v3576 = vand.u32 %v463, 4294901760
    %v3577 = vsub.f32 %v463, %v3576
    %v3578 = vand.u32 %v3577, 4294901760
    %v3579 = vsub.f32 %v3577, %v3578
    %v3580 = vand.u32 %v3579, 4294901760
    %3581 = vmatpush.msra.mxu0 %v3580
    %v3582 = vand.u32 %v456, 4294901760
    %v3583 = vsub.f32 %v456, %v3582
    %v3584 = vand.u32 %v3583, 4294901760
    %v3585 = vsub.f32 %v3583, %v3584
    %v3586 = vand.u32 %v3585, 4294901760
    %3587 = vmatpush.msra.mxu0 %v3586
    %v3588 = vand.u32 %v449, 4294901760
    %v3589 = vsub.f32 %v449, %v3588
    %v3590 = vand.u32 %v3589, 4294901760
    %v3591 = vsub.f32 %v3589, %v3590
    %v3592 = vand.u32 %v3591, 4294901760
    %3593 = vmatpush.msra.mxu0 %v3592
    %v3594 = vand.u32 %v442, 4294901760
    %v3595 = vsub.f32 %v442, %v3594
    %v3596 = vand.u32 %v3595, 4294901760
    %v3597 = vsub.f32 %v3595, %v3596
    %v3598 = vand.u32 %v3597, 4294901760
    %3599 = vmatpush.msra.mxu0 %v3598
    %v3600 = vand.u32 %v435, 4294901760
    %v3601 = vsub.f32 %v435, %v3600
    %v3602 = vand.u32 %v3601, 4294901760
    %v3603 = vsub.f32 %v3601, %v3602
    %v3604 = vand.u32 %v3603, 4294901760
    %3605 = vmatpush.msra.mxu0 %v3604
    %v3606 = vand.u32 %v428, 4294901760
    %v3607 = vsub.f32 %v428, %v3606
    %v3608 = vand.u32 %v3607, 4294901760
    %v3609 = vsub.f32 %v3607, %v3608
    %v3610 = vand.u32 %v3609, 4294901760
    %3611 = vmatpush.msra.mxu0 %v3610
    %v3612 = vand.u32 %v421, 4294901760
    %v3613 = vsub.f32 %v421, %v3612
    %v3614 = vand.u32 %v3613, 4294901760
    %v3615 = vsub.f32 %v3613, %v3614
    %v3616 = vand.u32 %v3615, 4294901760
    %3617 = vmatpush.msra.mxu0 %v3616
    %v3618 = vand.u32 %v414, 4294901760
    %v3619 = vsub.f32 %v414, %v3618
    %v3620 = vand.u32 %v3619, 4294901760
    %v3621 = vsub.f32 %v3619, %v3620
    %v3622 = vand.u32 %v3621, 4294901760
    %3623 = vmatpush.msra.mxu0 %v3622
    %v3624 = vand.u32 %v407, 4294901760
    %v3625 = vsub.f32 %v407, %v3624
    %v3626 = vand.u32 %v3625, 4294901760
    %v3627 = vsub.f32 %v3625, %v3626
    %v3628 = vand.u32 %v3627, 4294901760
    %3629 = vmatpush.msra.mxu0 %v3628
    %v3630 = vand.u32 %v400, 4294901760
    %v3631 = vsub.f32 %v400, %v3630
    %v3632 = vand.u32 %v3631, 4294901760
    %v3633 = vsub.f32 %v3631, %v3632
    %v3634 = vand.u32 %v3633, 4294901760
    %3635 = vmatpush.msra.mxu0 %v3634
    %v3636 = vand.u32 %v393, 4294901760
    %v3637 = vsub.f32 %v393, %v3636
    %v3638 = vand.u32 %v3637, 4294901760
    %v3639 = vsub.f32 %v3637, %v3638
    %v3640 = vand.u32 %v3639, 4294901760
    %3641 = vmatpush.msra.mxu0 %v3640
    %v3642 = vand.u32 %v386, 4294901760
    %v3643 = vsub.f32 %v386, %v3642
    %v3644 = vand.u32 %v3643, 4294901760
    %v3645 = vsub.f32 %v3643, %v3644
    %v3646 = vand.u32 %v3645, 4294901760
    %3647 = vmatpush.msra.mxu0 %v3646
    %v3648 = vand.u32 %v379, 4294901760
    %v3649 = vsub.f32 %v379, %v3648
    %v3650 = vand.u32 %v3649, 4294901760
    %v3651 = vsub.f32 %v3649, %v3650
    %v3652 = vand.u32 %v3651, 4294901760
    %3653 = vmatpush.msra.mxu0 %v3652
    %v3654 = vand.u32 %v372, 4294901760
    %v3655 = vsub.f32 %v372, %v3654
    %v3656 = vand.u32 %v3655, 4294901760
    %v3657 = vsub.f32 %v3655, %v3656
    %v3658 = vand.u32 %v3657, 4294901760
    %3659 = vmatpush.msra.mxu0 %v3658
    %v3660 = vand.u32 %v365, 4294901760
    %v3661 = vsub.f32 %v365, %v3660
    %v3662 = vand.u32 %v3661, 4294901760
    %v3663 = vsub.f32 %v3661, %v3662
    %v3664 = vand.u32 %v3663, 4294901760
    %3665 = vmatpush.msra.mxu0 %v3664
    %v3666 = vand.u32 %v358, 4294901760
    %v3667 = vsub.f32 %v358, %v3666
    %v3668 = vand.u32 %v3667, 4294901760
    %v3669 = vsub.f32 %v3667, %v3668
    %v3670 = vand.u32 %v3669, 4294901760
    %3671 = vmatpush.msra.mxu0 %v3670
    %v3672 = vand.u32 %v16, 4294901760
    %3673 = vmatmul.f32.gmra.mxu0 %v3672
    %v3674 = vpop.f32.mrf.mxu0
    %v3675 = vadd.f32 %v3574, %v3674
    %3676 = vdwg.mxu0
    %v3677 = vand.u32 %v463, 4294901760
    %v3678 = vsub.f32 %v463, %v3677
    %3679 = vmatpush.msra.mxu0 %v3678
    %v3680 = vand.u32 %v456, 4294901760
    %v3681 = vsub.f32 %v456, %v3680
    %3682 = vmatpush.msra.mxu0 %v3681
    %v3683 = vand.u32 %v449, 4294901760
    %v3684 = vsub.f32 %v449, %v3683
    %3685 = vmatpush.msra.mxu0 %v3684
    %v3686 = vand.u32 %v442, 4294901760
    %v3687 = vsub.f32 %v442, %v3686
    %3688 = vmatpush.msra.mxu0 %v3687
    %v3689 = vand.u32 %v435, 4294901760
    %v3690 = vsub.f32 %v435, %v3689
    %3691 = vmatpush.msra.mxu0 %v3690
    %v3692 = vand.u32 %v428, 4294901760
    %v3693 = vsub.f32 %v428, %v3692
    %3694 = vmatpush.msra.mxu0 %v3693
    %v3695 = vand.u32 %v421, 4294901760
    %v3696 = vsub.f32 %v421, %v3695
    %3697 = vmatpush.msra.mxu0 %v3696
    %v3698 = vand.u32 %v414, 4294901760
    %v3699 = vsub.f32 %v414, %v3698
    %3700 = vmatpush.msra.mxu0 %v3699
    %v3701 = vand.u32 %v407, 4294901760
    %v3702 = vsub.f32 %v407, %v3701
    %3703 = vmatpush.msra.mxu0 %v3702
    %v3704 = vand.u32 %v400, 4294901760
    %v3705 = vsub.f32 %v400, %v3704
    %3706 = vmatpush.msra.mxu0 %v3705
    %v3707 = vand.u32 %v393, 4294901760
    %v3708 = vsub.f32 %v393, %v3707
    %3709 = vmatpush.msra.mxu0 %v3708
    %v3710 = vand.u32 %v386, 4294901760
    %v3711 = vsub.f32 %v386, %v3710
    %3712 = vmatpush.msra.mxu0 %v3711
    %v3713 = vand.u32 %v379, 4294901760
    %v3714 = vsub.f32 %v379, %v3713
    %3715 = vmatpush.msra.mxu0 %v3714
    %v3716 = vand.u32 %v372, 4294901760
    %v3717 = vsub.f32 %v372, %v3716
    %3718 = vmatpush.msra.mxu0 %v3717
    %v3719 = vand.u32 %v365, 4294901760
    %v3720 = vsub.f32 %v365, %v3719
    %3721 = vmatpush.msra.mxu0 %v3720
    %v3722 = vand.u32 %v358, 4294901760
    %v3723 = vsub.f32 %v358, %v3722
    %3724 = vmatpush.msra.mxu0 %v3723
    %v3725 = vand.u32 %v16, 4294901760
    %v3726 = vsub.f32 %v16, %v3725
    %3727 = vmatmul.f32.gmra.mxu0 %v3726
    %v3728 = vpop.f32.mrf.mxu0
    %v3729 = vadd.f32 %v3675, %v3728
    %3730 = vdwg.mxu0
    %v3731 = vand.u32 %v463, 4294901760
    %3732 = vmatpush.msra.mxu0 %v3731
    %v3733 = vand.u32 %v456, 4294901760
    %3734 = vmatpush.msra.mxu0 %v3733
    %v3735 = vand.u32 %v449, 4294901760
    %3736 = vmatpush.msra.mxu0 %v3735
    %v3737 = vand.u32 %v442, 4294901760
    %3738 = vmatpush.msra.mxu0 %v3737
    %v3739 = vand.u32 %v435, 4294901760
    %3740 = vmatpush.msra.mxu0 %v3739
    %v3741 = vand.u32 %v428, 4294901760
    %3742 = vmatpush.msra.mxu0 %v3741
    %v3743 = vand.u32 %v421, 4294901760
    %3744 = vmatpush.msra.mxu0 %v3743
    %v3745 = vand.u32 %v414, 4294901760
    %3746 = vmatpush.msra.mxu0 %v3745
    %v3747 = vand.u32 %v407, 4294901760
    %3748 = vmatpush.msra.mxu0 %v3747
    %v3749 = vand.u32 %v400, 4294901760
    %3750 = vmatpush.msra.mxu0 %v3749
    %v3751 = vand.u32 %v393, 4294901760
    %3752 = vmatpush.msra.mxu0 %v3751
    %v3753 = vand.u32 %v386, 4294901760
    %3754 = vmatpush.msra.mxu0 %v3753
    %v3755 = vand.u32 %v379, 4294901760
    %3756 = vmatpush.msra.mxu0 %v3755
    %v3757 = vand.u32 %v372, 4294901760
    %3758 = vmatpush.msra.mxu0 %v3757
    %v3759 = vand.u32 %v365, 4294901760
    %3760 = vmatpush.msra.mxu0 %v3759
    %v3761 = vand.u32 %v358, 4294901760
    %3762 = vmatpush.msra.mxu0 %v3761
    %v3763 = vand.u32 %v16, 4294901760
    %v3764 = vsub.f32 %v16, %v3763
    %v3765 = vand.u32 %v3764, 4294901760
    %3766 = vmatmul.f32.gmra.mxu0 %v3765
    %v3767 = vpop.f32.mrf.mxu0
    %v3768 = vadd.f32 %v3729, %v3767
    %3769 = vdwg.mxu0
    %v3770 = vand.u32 %v463, 4294901760
    %v3771 = vsub.f32 %v463, %v3770
    %v3772 = vand.u32 %v3771, 4294901760
    %3773 = vmatpush.msra.mxu0 %v3772
    %v3774 = vand.u32 %v456, 4294901760
    %v3775 = vsub.f32 %v456, %v3774
    %v3776 = vand.u32 %v3775, 4294901760
    %3777 = vmatpush.msra.mxu0 %v3776
    %v3778 = vand.u32 %v449, 4294901760
    %v3779 = vsub.f32 %v449, %v3778
    %v3780 = vand.u32 %v3779, 4294901760
    %3781 = vmatpush.msra.mxu0 %v3780
    %v3782 = vand.u32 %v442, 4294901760
    %v3783 = vsub.f32 %v442, %v3782
    %v3784 = vand.u32 %v3783, 4294901760
    %3785 = vmatpush.msra.mxu0 %v3784
    %v3786 = vand.u32 %v435, 4294901760
    %v3787 = vsub.f32 %v435, %v3786
    %v3788 = vand.u32 %v3787, 4294901760
    %3789 = vmatpush.msra.mxu0 %v3788
    %v3790 = vand.u32 %v428, 4294901760
    %v3791 = vsub.f32 %v428, %v3790
    %v3792 = vand.u32 %v3791, 4294901760
    %3793 = vmatpush.msra.mxu0 %v3792
    %v3794 = vand.u32 %v421, 4294901760
    %v3795 = vsub.f32 %v421, %v3794
    %v3796 = vand.u32 %v3795, 4294901760
    %3797 = vmatpush.msra.mxu0 %v3796
    %v3798 = vand.u32 %v414, 4294901760
    %v3799 = vsub.f32 %v414, %v3798
    %v3800 = vand.u32 %v3799, 4294901760
    %3801 = vmatpush.msra.mxu0 %v3800
    %v3802 = vand.u32 %v407, 4294901760
    %v3803 = vsub.f32 %v407, %v3802
    %v3804 = vand.u32 %v3803, 4294901760
    %3805 = vmatpush.msra.mxu0 %v3804
    %v3806 = vand.u32 %v400, 4294901760
    %v3807 = vsub.f32 %v400, %v3806
    %v3808 = vand.u32 %v3807, 4294901760
    %3809 = vmatpush.msra.mxu0 %v3808
    %v3810 = vand.u32 %v393, 4294901760
    %v3811 = vsub.f32 %v393, %v3810
    %v3812 = vand.u32 %v3811, 4294901760
    %3813 = vmatpush.msra.mxu0 %v3812
    %v3814 = vand.u32 %v386, 4294901760
    %v3815 = vsub.f32 %v386, %v3814
    %v3816 = vand.u32 %v3815, 4294901760
    %3817 = vmatpush.msra.mxu0 %v3816
    %v3818 = vand.u32 %v379, 4294901760
    %v3819 = vsub.f32 %v379, %v3818
    %v3820 = vand.u32 %v3819, 4294901760
    %3821 = vmatpush.msra.mxu0 %v3820
    %v3822 = vand.u32 %v372, 4294901760
    %v3823 = vsub.f32 %v372, %v3822
    %v3824 = vand.u32 %v3823, 4294901760
    %3825 = vmatpush.msra.mxu0 %v3824
    %v3826 = vand.u32 %v365, 4294901760
    %v3827 = vsub.f32 %v365, %v3826
    %v3828 = vand.u32 %v3827, 4294901760
    %3829 = vmatpush.msra.mxu0 %v3828
    %v3830 = vand.u32 %v358, 4294901760
    %v3831 = vsub.f32 %v358, %v3830
    %v3832 = vand.u32 %v3831, 4294901760
    %3833 = vmatpush.msra.mxu0 %v3832
    %v3834 = vand.u32 %v16, 4294901760
    %3835 = vmatmul.f32.gmra.mxu0 %v3834
    %v3836 = vpop.f32.mrf.mxu0
    %v3837 = vadd.f32 %v3768, %v3836
    %3838 = vdwg.mxu0
    %v3839 = vand.u32 %v463, 4294901760
    %3840 = vmatpush.msra.mxu0 %v3839
    %v3841 = vand.u32 %v456, 4294901760
    %3842 = vmatpush.msra.mxu0 %v3841
    %v3843 = vand.u32 %v449, 4294901760
    %3844 = vmatpush.msra.mxu0 %v3843
    %v3845 = vand.u32 %v442, 4294901760
    %3846 = vmatpush.msra.mxu0 %v3845
    %v3847 = vand.u32 %v435, 4294901760
    %3848 = vmatpush.msra.mxu0 %v3847
    %v3849 = vand.u32 %v428, 4294901760
    %3850 = vmatpush.msra.mxu0 %v3849
    %v3851 = vand.u32 %v421, 4294901760
    %3852 = vmatpush.msra.mxu0 %v3851
    %v3853 = vand.u32 %v414, 4294901760
    %3854 = vmatpush.msra.mxu0 %v3853
    %v3855 = vand.u32 %v407, 4294901760
    %3856 = vmatpush.msra.mxu0 %v3855
    %v3857 = vand.u32 %v400, 4294901760
    %3858 = vmatpush.msra.mxu0 %v3857
    %v3859 = vand.u32 %v393, 4294901760
    %3860 = vmatpush.msra.mxu0 %v3859
    %v3861 = vand.u32 %v386, 4294901760
    %3862 = vmatpush.msra.mxu0 %v3861
    %v3863 = vand.u32 %v379, 4294901760
    %3864 = vmatpush.msra.mxu0 %v3863
    %v3865 = vand.u32 %v372, 4294901760
    %3866 = vmatpush.msra.mxu0 %v3865
    %v3867 = vand.u32 %v365, 4294901760
    %3868 = vmatpush.msra.mxu0 %v3867
    %v3869 = vand.u32 %v358, 4294901760
    %3870 = vmatpush.msra.mxu0 %v3869
    %v3871 = vand.u32 %v16, 4294901760
    %3872 = vmatmul.f32.gmra.mxu0 %v3871
    %v3873 = vpop.f32.mrf.mxu0
    %v3874 = vadd.f32 %v3837, %v3873
    %3875 = vdwg.mxu0
    %v3876 = vand.u32 %v352, 4294901760
    %3877 = vmatpush.msra.mxu0 %v3876
    %v3878 = vand.u32 %v345, 4294901760
    %3879 = vmatpush.msra.mxu0 %v3878
    %v3880 = vand.u32 %v338, 4294901760
    %3881 = vmatpush.msra.mxu0 %v3880
    %v3882 = vand.u32 %v331, 4294901760
    %3883 = vmatpush.msra.mxu0 %v3882
    %v3884 = vand.u32 %v324, 4294901760
    %3885 = vmatpush.msra.mxu0 %v3884
    %v3886 = vand.u32 %v317, 4294901760
    %3887 = vmatpush.msra.mxu0 %v3886
    %v3888 = vand.u32 %v310, 4294901760
    %3889 = vmatpush.msra.mxu0 %v3888
    %v3890 = vand.u32 %v303, 4294901760
    %3891 = vmatpush.msra.mxu0 %v3890
    %v3892 = vand.u32 %v296, 4294901760
    %3893 = vmatpush.msra.mxu0 %v3892
    %v3894 = vand.u32 %v289, 4294901760
    %3895 = vmatpush.msra.mxu0 %v3894
    %v3896 = vand.u32 %v282, 4294901760
    %3897 = vmatpush.msra.mxu0 %v3896
    %v3898 = vand.u32 %v275, 4294901760
    %3899 = vmatpush.msra.mxu0 %v3898
    %v3900 = vand.u32 %v268, 4294901760
    %3901 = vmatpush.msra.mxu0 %v3900
    %v3902 = vand.u32 %v261, 4294901760
    %3903 = vmatpush.msra.mxu0 %v3902
    %v3904 = vand.u32 %v254, 4294901760
    %3905 = vmatpush.msra.mxu0 %v3904
    %v3906 = vand.u32 %v247, 4294901760
    %3907 = vmatpush.msra.mxu0 %v3906
    %v3908 = vand.u32 %v15, 4294901760
    %v3909 = vsub.f32 %v15, %v3908
    %v3910 = vand.u32 %v3909, 4294901760
    %v3911 = vsub.f32 %v3909, %v3910
    %v3912 = vand.u32 %v3911, 4294901760
    %3913 = vmatmul.f32.gmra.mxu0 %v3912
    %v3914 = vpop.f32.mrf.mxu0
    %v3915 = vadd.f32 0.0, %v3914
    %3916 = vdwg.mxu0
    %v3917 = vand.u32 %v352, 4294901760
    %v3918 = vsub.f32 %v352, %v3917
    %v3919 = vand.u32 %v3918, 4294901760
    %v3920 = vsub.f32 %v3918, %v3919
    %v3921 = vand.u32 %v3920, 4294901760
    %3922 = vmatpush.msra.mxu0 %v3921
    %v3923 = vand.u32 %v345, 4294901760
    %v3924 = vsub.f32 %v345, %v3923
    %v3925 = vand.u32 %v3924, 4294901760
    %v3926 = vsub.f32 %v3924, %v3925
    %v3927 = vand.u32 %v3926, 4294901760
    %3928 = vmatpush.msra.mxu0 %v3927
    %v3929 = vand.u32 %v338, 4294901760
    %v3930 = vsub.f32 %v338, %v3929
    %v3931 = vand.u32 %v3930, 4294901760
    %v3932 = vsub.f32 %v3930, %v3931
    %v3933 = vand.u32 %v3932, 4294901760
    %3934 = vmatpush.msra.mxu0 %v3933
    %v3935 = vand.u32 %v331, 4294901760
    %v3936 = vsub.f32 %v331, %v3935
    %v3937 = vand.u32 %v3936, 4294901760
    %v3938 = vsub.f32 %v3936, %v3937
    %v3939 = vand.u32 %v3938, 4294901760
    %3940 = vmatpush.msra.mxu0 %v3939
    %v3941 = vand.u32 %v324, 4294901760
    %v3942 = vsub.f32 %v324, %v3941
    %v3943 = vand.u32 %v3942, 4294901760
    %v3944 = vsub.f32 %v3942, %v3943
    %v3945 = vand.u32 %v3944, 4294901760
    %3946 = vmatpush.msra.mxu0 %v3945
    %v3947 = vand.u32 %v317, 4294901760
    %v3948 = vsub.f32 %v317, %v3947
    %v3949 = vand.u32 %v3948, 4294901760
    %v3950 = vsub.f32 %v3948, %v3949
    %v3951 = vand.u32 %v3950, 4294901760
    %3952 = vmatpush.msra.mxu0 %v3951
    %v3953 = vand.u32 %v310, 4294901760
    %v3954 = vsub.f32 %v310, %v3953
    %v3955 = vand.u32 %v3954, 4294901760
    %v3956 = vsub.f32 %v3954, %v3955
    %v3957 = vand.u32 %v3956, 4294901760
    %3958 = vmatpush.msra.mxu0 %v3957
    %v3959 = vand.u32 %v303, 4294901760
    %v3960 = vsub.f32 %v303, %v3959
    %v3961 = vand.u32 %v3960, 4294901760
    %v3962 = vsub.f32 %v3960, %v3961
    %v3963 = vand.u32 %v3962, 4294901760
    %3964 = vmatpush.msra.mxu0 %v3963
    %v3965 = vand.u32 %v296, 4294901760
    %v3966 = vsub.f32 %v296, %v3965
    %v3967 = vand.u32 %v3966, 4294901760
    %v3968 = vsub.f32 %v3966, %v3967
    %v3969 = vand.u32 %v3968, 4294901760
    %3970 = vmatpush.msra.mxu0 %v3969
    %v3971 = vand.u32 %v289, 4294901760
    %v3972 = vsub.f32 %v289, %v3971
    %v3973 = vand.u32 %v3972, 4294901760
    %v3974 = vsub.f32 %v3972, %v3973
    %v3975 = vand.u32 %v3974, 4294901760
    %3976 = vmatpush.msra.mxu0 %v3975
    %v3977 = vand.u32 %v282, 4294901760
    %v3978 = vsub.f32 %v282, %v3977
    %v3979 = vand.u32 %v3978, 4294901760
    %v3980 = vsub.f32 %v3978, %v3979
    %v3981 = vand.u32 %v3980, 4294901760
    %3982 = vmatpush.msra.mxu0 %v3981
    %v3983 = vand.u32 %v275, 4294901760
    %v3984 = vsub.f32 %v275, %v3983
    %v3985 = vand.u32 %v3984, 4294901760
    %v3986 = vsub.f32 %v3984, %v3985
    %v3987 = vand.u32 %v3986, 4294901760
    %3988 = vmatpush.msra.mxu0 %v3987
    %v3989 = vand.u32 %v268, 4294901760
    %v3990 = vsub.f32 %v268, %v3989
    %v3991 = vand.u32 %v3990, 4294901760
    %v3992 = vsub.f32 %v3990, %v3991
    %v3993 = vand.u32 %v3992, 4294901760
    %3994 = vmatpush.msra.mxu0 %v3993
    %v3995 = vand.u32 %v261, 4294901760
    %v3996 = vsub.f32 %v261, %v3995
    %v3997 = vand.u32 %v3996, 4294901760
    %v3998 = vsub.f32 %v3996, %v3997
    %v3999 = vand.u32 %v3998, 4294901760
    %4000 = vmatpush.msra.mxu0 %v3999
    %v4001 = vand.u32 %v254, 4294901760
    %v4002 = vsub.f32 %v254, %v4001
    %v4003 = vand.u32 %v4002, 4294901760
    %v4004 = vsub.f32 %v4002, %v4003
    %v4005 = vand.u32 %v4004, 4294901760
    %4006 = vmatpush.msra.mxu0 %v4005
    %v4007 = vand.u32 %v247, 4294901760
    %v4008 = vsub.f32 %v247, %v4007
    %v4009 = vand.u32 %v4008, 4294901760
    %v4010 = vsub.f32 %v4008, %v4009
    %v4011 = vand.u32 %v4010, 4294901760
    %4012 = vmatpush.msra.mxu0 %v4011
    %v4013 = vand.u32 %v15, 4294901760
    %4014 = vmatmul.f32.gmra.mxu0 %v4013
    %v4015 = vpop.f32.mrf.mxu0
    %v4016 = vadd.f32 %v3915, %v4015
    %4017 = vdwg.mxu0
    %v4018 = vand.u32 %v352, 4294901760
    %v4019 = vsub.f32 %v352, %v4018
    %4020 = vmatpush.msra.mxu0 %v4019
    %v4021 = vand.u32 %v345, 4294901760
    %v4022 = vsub.f32 %v345, %v4021
    %4023 = vmatpush.msra.mxu0 %v4022
    %v4024 = vand.u32 %v338, 4294901760
    %v4025 = vsub.f32 %v338, %v4024
    %4026 = vmatpush.msra.mxu0 %v4025
    %v4027 = vand.u32 %v331, 4294901760
    %v4028 = vsub.f32 %v331, %v4027
    %4029 = vmatpush.msra.mxu0 %v4028
    %v4030 = vand.u32 %v324, 4294901760
    %v4031 = vsub.f32 %v324, %v4030
    %4032 = vmatpush.msra.mxu0 %v4031
    %v4033 = vand.u32 %v317, 4294901760
    %v4034 = vsub.f32 %v317, %v4033
    %4035 = vmatpush.msra.mxu0 %v4034
    %v4036 = vand.u32 %v310, 4294901760
    %v4037 = vsub.f32 %v310, %v4036
    %4038 = vmatpush.msra.mxu0 %v4037
    %v4039 = vand.u32 %v303, 4294901760
    %v4040 = vsub.f32 %v303, %v4039
    %4041 = vmatpush.msra.mxu0 %v4040
    %v4042 = vand.u32 %v296, 4294901760
    %v4043 = vsub.f32 %v296, %v4042
    %4044 = vmatpush.msra.mxu0 %v4043
    %v4045 = vand.u32 %v289, 4294901760
    %v4046 = vsub.f32 %v289, %v4045
    %4047 = vmatpush.msra.mxu0 %v4046
    %v4048 = vand.u32 %v282, 4294901760
    %v4049 = vsub.f32 %v282, %v4048
    %4050 = vmatpush.msra.mxu0 %v4049
    %v4051 = vand.u32 %v275, 4294901760
    %v4052 = vsub.f32 %v275, %v4051
    %4053 = vmatpush.msra.mxu0 %v4052
    %v4054 = vand.u32 %v268, 4294901760
    %v4055 = vsub.f32 %v268, %v4054
    %4056 = vmatpush.msra.mxu0 %v4055
    %v4057 = vand.u32 %v261, 4294901760
    %v4058 = vsub.f32 %v261, %v4057
    %4059 = vmatpush.msra.mxu0 %v4058
    %v4060 = vand.u32 %v254, 4294901760
    %v4061 = vsub.f32 %v254, %v4060
    %4062 = vmatpush.msra.mxu0 %v4061
    %v4063 = vand.u32 %v247, 4294901760
    %v4064 = vsub.f32 %v247, %v4063
    %4065 = vmatpush.msra.mxu0 %v4064
    %v4066 = vand.u32 %v15, 4294901760
    %v4067 = vsub.f32 %v15, %v4066
    %4068 = vmatmul.f32.gmra.mxu0 %v4067
    %v4069 = vpop.f32.mrf.mxu0
    %v4070 = vadd.f32 %v4016, %v4069
    %4071 = vdwg.mxu0
    %v4072 = vand.u32 %v352, 4294901760
    %4073 = vmatpush.msra.mxu0 %v4072
    %v4074 = vand.u32 %v345, 4294901760
    %4075 = vmatpush.msra.mxu0 %v4074
    %v4076 = vand.u32 %v338, 4294901760
    %4077 = vmatpush.msra.mxu0 %v4076
    %v4078 = vand.u32 %v331, 4294901760
    %4079 = vmatpush.msra.mxu0 %v4078
    %v4080 = vand.u32 %v324, 4294901760
    %4081 = vmatpush.msra.mxu0 %v4080
    %v4082 = vand.u32 %v317, 4294901760
    %4083 = vmatpush.msra.mxu0 %v4082
    %v4084 = vand.u32 %v310, 4294901760
    %4085 = vmatpush.msra.mxu0 %v4084
    %v4086 = vand.u32 %v303, 4294901760
    %4087 = vmatpush.msra.mxu0 %v4086
    %v4088 = vand.u32 %v296, 4294901760
    %4089 = vmatpush.msra.mxu0 %v4088
    %v4090 = vand.u32 %v289, 4294901760
    %4091 = vmatpush.msra.mxu0 %v4090
    %v4092 = vand.u32 %v282, 4294901760
    %4093 = vmatpush.msra.mxu0 %v4092
    %v4094 = vand.u32 %v275, 4294901760
    %4095 = vmatpush.msra.mxu0 %v4094
    %v4096 = vand.u32 %v268, 4294901760
    %4097 = vmatpush.msra.mxu0 %v4096
    %v4098 = vand.u32 %v261, 4294901760
    %4099 = vmatpush.msra.mxu0 %v4098
    %v4100 = vand.u32 %v254, 4294901760
    %4101 = vmatpush.msra.mxu0 %v4100
    %v4102 = vand.u32 %v247, 4294901760
    %4103 = vmatpush.msra.mxu0 %v4102
    %v4104 = vand.u32 %v15, 4294901760
    %v4105 = vsub.f32 %v15, %v4104
    %v4106 = vand.u32 %v4105, 4294901760
    %4107 = vmatmul.f32.gmra.mxu0 %v4106
    %v4108 = vpop.f32.mrf.mxu0
    %v4109 = vadd.f32 %v4070, %v4108
    %4110 = vdwg.mxu0
    %v4111 = vand.u32 %v352, 4294901760
    %v4112 = vsub.f32 %v352, %v4111
    %v4113 = vand.u32 %v4112, 4294901760
    %4114 = vmatpush.msra.mxu0 %v4113
    %v4115 = vand.u32 %v345, 4294901760
    %v4116 = vsub.f32 %v345, %v4115
    %v4117 = vand.u32 %v4116, 4294901760
    %4118 = vmatpush.msra.mxu0 %v4117
    %v4119 = vand.u32 %v338, 4294901760
    %v4120 = vsub.f32 %v338, %v4119
    %v4121 = vand.u32 %v4120, 4294901760
    %4122 = vmatpush.msra.mxu0 %v4121
    %v4123 = vand.u32 %v331, 4294901760
    %v4124 = vsub.f32 %v331, %v4123
    %v4125 = vand.u32 %v4124, 4294901760
    %4126 = vmatpush.msra.mxu0 %v4125
    %v4127 = vand.u32 %v324, 4294901760
    %v4128 = vsub.f32 %v324, %v4127
    %v4129 = vand.u32 %v4128, 4294901760
    %4130 = vmatpush.msra.mxu0 %v4129
    %v4131 = vand.u32 %v317, 4294901760
    %v4132 = vsub.f32 %v317, %v4131
    %v4133 = vand.u32 %v4132, 4294901760
    %4134 = vmatpush.msra.mxu0 %v4133
    %v4135 = vand.u32 %v310, 4294901760
    %v4136 = vsub.f32 %v310, %v4135
    %v4137 = vand.u32 %v4136, 4294901760
    %4138 = vmatpush.msra.mxu0 %v4137
    %v4139 = vand.u32 %v303, 4294901760
    %v4140 = vsub.f32 %v303, %v4139
    %v4141 = vand.u32 %v4140, 4294901760
    %4142 = vmatpush.msra.mxu0 %v4141
    %v4143 = vand.u32 %v296, 4294901760
    %v4144 = vsub.f32 %v296, %v4143
    %v4145 = vand.u32 %v4144, 4294901760
    %4146 = vmatpush.msra.mxu0 %v4145
    %v4147 = vand.u32 %v289, 4294901760
    %v4148 = vsub.f32 %v289, %v4147
    %v4149 = vand.u32 %v4148, 4294901760
    %4150 = vmatpush.msra.mxu0 %v4149
    %v4151 = vand.u32 %v282, 4294901760
    %v4152 = vsub.f32 %v282, %v4151
    %v4153 = vand.u32 %v4152, 4294901760
    %4154 = vmatpush.msra.mxu0 %v4153
    %v4155 = vand.u32 %v275, 4294901760
    %v4156 = vsub.f32 %v275, %v4155
    %v4157 = vand.u32 %v4156, 4294901760
    %4158 = vmatpush.msra.mxu0 %v4157
    %v4159 = vand.u32 %v268, 4294901760
    %v4160 = vsub.f32 %v268, %v4159
    %v4161 = vand.u32 %v4160, 4294901760
    %4162 = vmatpush.msra.mxu0 %v4161
    %v4163 = vand.u32 %v261, 4294901760
    %v4164 = vsub.f32 %v261, %v4163
    %v4165 = vand.u32 %v4164, 4294901760
    %4166 = vmatpush.msra.mxu0 %v4165
    %v4167 = vand.u32 %v254, 4294901760
    %v4168 = vsub.f32 %v254, %v4167
    %v4169 = vand.u32 %v4168, 4294901760
    %4170 = vmatpush.msra.mxu0 %v4169
    %v4171 = vand.u32 %v247, 4294901760
    %v4172 = vsub.f32 %v247, %v4171
    %v4173 = vand.u32 %v4172, 4294901760
    %4174 = vmatpush.msra.mxu0 %v4173
    %v4175 = vand.u32 %v15, 4294901760
    %4176 = vmatmul.f32.gmra.mxu0 %v4175
    %v4177 = vpop.f32.mrf.mxu0
    %v4178 = vadd.f32 %v4109, %v4177
    %4179 = vdwg.mxu0
    %v4180 = vand.u32 %v352, 4294901760
    %4181 = vmatpush.msra.mxu0 %v4180
    %v4182 = vand.u32 %v345, 4294901760
    %4183 = vmatpush.msra.mxu0 %v4182
    %v4184 = vand.u32 %v338, 4294901760
    %4185 = vmatpush.msra.mxu0 %v4184
    %v4186 = vand.u32 %v331, 4294901760
    %4187 = vmatpush.msra.mxu0 %v4186
    %v4188 = vand.u32 %v324, 4294901760
    %4189 = vmatpush.msra.mxu0 %v4188
    %v4190 = vand.u32 %v317, 4294901760
    %4191 = vmatpush.msra.mxu0 %v4190
    %v4192 = vand.u32 %v310, 4294901760
    %4193 = vmatpush.msra.mxu0 %v4192
    %v4194 = vand.u32 %v303, 4294901760
    %4195 = vmatpush.msra.mxu0 %v4194
    %v4196 = vand.u32 %v296, 4294901760
    %4197 = vmatpush.msra.mxu0 %v4196
    %v4198 = vand.u32 %v289, 4294901760
    %4199 = vmatpush.msra.mxu0 %v4198
    %v4200 = vand.u32 %v282, 4294901760
    %4201 = vmatpush.msra.mxu0 %v4200
    %v4202 = vand.u32 %v275, 4294901760
    %4203 = vmatpush.msra.mxu0 %v4202
    %v4204 = vand.u32 %v268, 4294901760
    %4205 = vmatpush.msra.mxu0 %v4204
    %v4206 = vand.u32 %v261, 4294901760
    %4207 = vmatpush.msra.mxu0 %v4206
    %v4208 = vand.u32 %v254, 4294901760
    %4209 = vmatpush.msra.mxu0 %v4208
    %v4210 = vand.u32 %v247, 4294901760
    %4211 = vmatpush.msra.mxu0 %v4210
    %v4212 = vand.u32 %v15, 4294901760
    %4213 = vmatmul.f32.gmra.mxu0 %v4212
    %v4214 = vpop.f32.mrf.mxu0
    %v4215 = vadd.f32 %v4178, %v4214
    %4216 = vdwg.mxu0
    %v4217 = vand.u32 %v464, 4294901760
    %4218 = vmatpush.msra.mxu0 %v4217
    %v4219 = vand.u32 %v457, 4294901760
    %4220 = vmatpush.msra.mxu0 %v4219
    %v4221 = vand.u32 %v450, 4294901760
    %4222 = vmatpush.msra.mxu0 %v4221
    %v4223 = vand.u32 %v443, 4294901760
    %4224 = vmatpush.msra.mxu0 %v4223
    %v4225 = vand.u32 %v436, 4294901760
    %4226 = vmatpush.msra.mxu0 %v4225
    %v4227 = vand.u32 %v429, 4294901760
    %4228 = vmatpush.msra.mxu0 %v4227
    %v4229 = vand.u32 %v422, 4294901760
    %4230 = vmatpush.msra.mxu0 %v4229
    %v4231 = vand.u32 %v415, 4294901760
    %4232 = vmatpush.msra.mxu0 %v4231
    %v4233 = vand.u32 %v408, 4294901760
    %4234 = vmatpush.msra.mxu0 %v4233
    %v4235 = vand.u32 %v401, 4294901760
    %4236 = vmatpush.msra.mxu0 %v4235
    %v4237 = vand.u32 %v394, 4294901760
    %4238 = vmatpush.msra.mxu0 %v4237
    %v4239 = vand.u32 %v387, 4294901760
    %4240 = vmatpush.msra.mxu0 %v4239
    %v4241 = vand.u32 %v380, 4294901760
    %4242 = vmatpush.msra.mxu0 %v4241
    %v4243 = vand.u32 %v373, 4294901760
    %4244 = vmatpush.msra.mxu0 %v4243
    %v4245 = vand.u32 %v366, 4294901760
    %4246 = vmatpush.msra.mxu0 %v4245
    %v4247 = vand.u32 %v359, 4294901760
    %4248 = vmatpush.msra.mxu0 %v4247
    %v4249 = vand.u32 %v16, 4294901760
    %v4250 = vsub.f32 %v16, %v4249
    %v4251 = vand.u32 %v4250, 4294901760
    %v4252 = vsub.f32 %v4250, %v4251
    %v4253 = vand.u32 %v4252, 4294901760
    %4254 = vmatmul.f32.gmra.mxu0 %v4253
    %v4255 = vpop.f32.mrf.mxu0
    %v4256 = vadd.f32 %v4215, %v4255
    %4257 = vdwg.mxu0
    %v4258 = vand.u32 %v464, 4294901760
    %v4259 = vsub.f32 %v464, %v4258
    %v4260 = vand.u32 %v4259, 4294901760
    %v4261 = vsub.f32 %v4259, %v4260
    %v4262 = vand.u32 %v4261, 4294901760
    %4263 = vmatpush.msra.mxu0 %v4262
    %v4264 = vand.u32 %v457, 4294901760
    %v4265 = vsub.f32 %v457, %v4264
    %v4266 = vand.u32 %v4265, 4294901760
    %v4267 = vsub.f32 %v4265, %v4266
    %v4268 = vand.u32 %v4267, 4294901760
    %4269 = vmatpush.msra.mxu0 %v4268
    %v4270 = vand.u32 %v450, 4294901760
    %v4271 = vsub.f32 %v450, %v4270
    %v4272 = vand.u32 %v4271, 4294901760
    %v4273 = vsub.f32 %v4271, %v4272
    %v4274 = vand.u32 %v4273, 4294901760
    %4275 = vmatpush.msra.mxu0 %v4274
    %v4276 = vand.u32 %v443, 4294901760
    %v4277 = vsub.f32 %v443, %v4276
    %v4278 = vand.u32 %v4277, 4294901760
    %v4279 = vsub.f32 %v4277, %v4278
    %v4280 = vand.u32 %v4279, 4294901760
    %4281 = vmatpush.msra.mxu0 %v4280
    %v4282 = vand.u32 %v436, 4294901760
    %v4283 = vsub.f32 %v436, %v4282
    %v4284 = vand.u32 %v4283, 4294901760
    %v4285 = vsub.f32 %v4283, %v4284
    %v4286 = vand.u32 %v4285, 4294901760
    %4287 = vmatpush.msra.mxu0 %v4286
    %v4288 = vand.u32 %v429, 4294901760
    %v4289 = vsub.f32 %v429, %v4288
    %v4290 = vand.u32 %v4289, 4294901760
    %v4291 = vsub.f32 %v4289, %v4290
    %v4292 = vand.u32 %v4291, 4294901760
    %4293 = vmatpush.msra.mxu0 %v4292
    %v4294 = vand.u32 %v422, 4294901760
    %v4295 = vsub.f32 %v422, %v4294
    %v4296 = vand.u32 %v4295, 4294901760
    %v4297 = vsub.f32 %v4295, %v4296
    %v4298 = vand.u32 %v4297, 4294901760
    %4299 = vmatpush.msra.mxu0 %v4298
    %v4300 = vand.u32 %v415, 4294901760
    %v4301 = vsub.f32 %v415, %v4300
    %v4302 = vand.u32 %v4301, 4294901760
    %v4303 = vsub.f32 %v4301, %v4302
    %v4304 = vand.u32 %v4303, 4294901760
    %4305 = vmatpush.msra.mxu0 %v4304
    %v4306 = vand.u32 %v408, 4294901760
    %v4307 = vsub.f32 %v408, %v4306
    %v4308 = vand.u32 %v4307, 4294901760
    %v4309 = vsub.f32 %v4307, %v4308
    %v4310 = vand.u32 %v4309, 4294901760
    %4311 = vmatpush.msra.mxu0 %v4310
    %v4312 = vand.u32 %v401, 4294901760
    %v4313 = vsub.f32 %v401, %v4312
    %v4314 = vand.u32 %v4313, 4294901760
    %v4315 = vsub.f32 %v4313, %v4314
    %v4316 = vand.u32 %v4315, 4294901760
    %4317 = vmatpush.msra.mxu0 %v4316
    %v4318 = vand.u32 %v394, 4294901760
    %v4319 = vsub.f32 %v394, %v4318
    %v4320 = vand.u32 %v4319, 4294901760
    %v4321 = vsub.f32 %v4319, %v4320
    %v4322 = vand.u32 %v4321, 4294901760
    %4323 = vmatpush.msra.mxu0 %v4322
    %v4324 = vand.u32 %v387, 4294901760
    %v4325 = vsub.f32 %v387, %v4324
    %v4326 = vand.u32 %v4325, 4294901760
    %v4327 = vsub.f32 %v4325, %v4326
    %v4328 = vand.u32 %v4327, 4294901760
    %4329 = vmatpush.msra.mxu0 %v4328
    %v4330 = vand.u32 %v380, 4294901760
    %v4331 = vsub.f32 %v380, %v4330
    %v4332 = vand.u32 %v4331, 4294901760
    %v4333 = vsub.f32 %v4331, %v4332
    %v4334 = vand.u32 %v4333, 4294901760
    %4335 = vmatpush.msra.mxu0 %v4334
    %v4336 = vand.u32 %v373, 4294901760
    %v4337 = vsub.f32 %v373, %v4336
    %v4338 = vand.u32 %v4337, 4294901760
    %v4339 = vsub.f32 %v4337, %v4338
    %v4340 = vand.u32 %v4339, 4294901760
    %4341 = vmatpush.msra.mxu0 %v4340
    %v4342 = vand.u32 %v366, 4294901760
    %v4343 = vsub.f32 %v366, %v4342
    %v4344 = vand.u32 %v4343, 4294901760
    %v4345 = vsub.f32 %v4343, %v4344
    %v4346 = vand.u32 %v4345, 4294901760
    %4347 = vmatpush.msra.mxu0 %v4346
    %v4348 = vand.u32 %v359, 4294901760
    %v4349 = vsub.f32 %v359, %v4348
    %v4350 = vand.u32 %v4349, 4294901760
    %v4351 = vsub.f32 %v4349, %v4350
    %v4352 = vand.u32 %v4351, 4294901760
    %4353 = vmatpush.msra.mxu0 %v4352
    %v4354 = vand.u32 %v16, 4294901760
    %4355 = vmatmul.f32.gmra.mxu0 %v4354
    %v4356 = vpop.f32.mrf.mxu0
    %v4357 = vadd.f32 %v4256, %v4356
    %4358 = vdwg.mxu0
    %v4359 = vand.u32 %v464, 4294901760
    %v4360 = vsub.f32 %v464, %v4359
    %4361 = vmatpush.msra.mxu0 %v4360
    %v4362 = vand.u32 %v457, 4294901760
    %v4363 = vsub.f32 %v457, %v4362
    %4364 = vmatpush.msra.mxu0 %v4363
    %v4365 = vand.u32 %v450, 4294901760
    %v4366 = vsub.f32 %v450, %v4365
    %4367 = vmatpush.msra.mxu0 %v4366
    %v4368 = vand.u32 %v443, 4294901760
    %v4369 = vsub.f32 %v443, %v4368
    %4370 = vmatpush.msra.mxu0 %v4369
    %v4371 = vand.u32 %v436, 4294901760
    %v4372 = vsub.f32 %v436, %v4371
    %4373 = vmatpush.msra.mxu0 %v4372
    %v4374 = vand.u32 %v429, 4294901760
    %v4375 = vsub.f32 %v429, %v4374
    %4376 = vmatpush.msra.mxu0 %v4375
    %v4377 = vand.u32 %v422, 4294901760
    %v4378 = vsub.f32 %v422, %v4377
    %4379 = vmatpush.msra.mxu0 %v4378
    %v4380 = vand.u32 %v415, 4294901760
    %v4381 = vsub.f32 %v415, %v4380
    %4382 = vmatpush.msra.mxu0 %v4381
    %v4383 = vand.u32 %v408, 4294901760
    %v4384 = vsub.f32 %v408, %v4383
    %4385 = vmatpush.msra.mxu0 %v4384
    %v4386 = vand.u32 %v401, 4294901760
    %v4387 = vsub.f32 %v401, %v4386
    %4388 = vmatpush.msra.mxu0 %v4387
    %v4389 = vand.u32 %v394, 4294901760
    %v4390 = vsub.f32 %v394, %v4389
    %4391 = vmatpush.msra.mxu0 %v4390
    %v4392 = vand.u32 %v387, 4294901760
    %v4393 = vsub.f32 %v387, %v4392
    %4394 = vmatpush.msra.mxu0 %v4393
    %v4395 = vand.u32 %v380, 4294901760
    %v4396 = vsub.f32 %v380, %v4395
    %4397 = vmatpush.msra.mxu0 %v4396
    %v4398 = vand.u32 %v373, 4294901760
    %v4399 = vsub.f32 %v373, %v4398
    %4400 = vmatpush.msra.mxu0 %v4399
    %v4401 = vand.u32 %v366, 4294901760
    %v4402 = vsub.f32 %v366, %v4401
    %4403 = vmatpush.msra.mxu0 %v4402
    %v4404 = vand.u32 %v359, 4294901760
    %v4405 = vsub.f32 %v359, %v4404
    %4406 = vmatpush.msra.mxu0 %v4405
    %v4407 = vand.u32 %v16, 4294901760
    %v4408 = vsub.f32 %v16, %v4407
    %4409 = vmatmul.f32.gmra.mxu0 %v4408
    %v4410 = vpop.f32.mrf.mxu0
    %v4411 = vadd.f32 %v4357, %v4410
    %4412 = vdwg.mxu0
    %v4413 = vand.u32 %v464, 4294901760
    %4414 = vmatpush.msra.mxu0 %v4413
    %v4415 = vand.u32 %v457, 4294901760
    %4416 = vmatpush.msra.mxu0 %v4415
    %v4417 = vand.u32 %v450, 4294901760
    %4418 = vmatpush.msra.mxu0 %v4417
    %v4419 = vand.u32 %v443, 4294901760
    %4420 = vmatpush.msra.mxu0 %v4419
    %v4421 = vand.u32 %v436, 4294901760
    %4422 = vmatpush.msra.mxu0 %v4421
    %v4423 = vand.u32 %v429, 4294901760
    %4424 = vmatpush.msra.mxu0 %v4423
    %v4425 = vand.u32 %v422, 4294901760
    %4426 = vmatpush.msra.mxu0 %v4425
    %v4427 = vand.u32 %v415, 4294901760
    %4428 = vmatpush.msra.mxu0 %v4427
    %v4429 = vand.u32 %v408, 4294901760
    %4430 = vmatpush.msra.mxu0 %v4429
    %v4431 = vand.u32 %v401, 4294901760
    %4432 = vmatpush.msra.mxu0 %v4431
    %v4433 = vand.u32 %v394, 4294901760
    %4434 = vmatpush.msra.mxu0 %v4433
    %v4435 = vand.u32 %v387, 4294901760
    %4436 = vmatpush.msra.mxu0 %v4435
    %v4437 = vand.u32 %v380, 4294901760
    %4438 = vmatpush.msra.mxu0 %v4437
    %v4439 = vand.u32 %v373, 4294901760
    %4440 = vmatpush.msra.mxu0 %v4439
    %v4441 = vand.u32 %v366, 4294901760
    %4442 = vmatpush.msra.mxu0 %v4441
    %v4443 = vand.u32 %v359, 4294901760
    %4444 = vmatpush.msra.mxu0 %v4443
    %v4445 = vand.u32 %v16, 4294901760
    %v4446 = vsub.f32 %v16, %v4445
    %v4447 = vand.u32 %v4446, 4294901760
    %4448 = vmatmul.f32.gmra.mxu0 %v4447
    %v4449 = vpop.f32.mrf.mxu0
    %v4450 = vadd.f32 %v4411, %v4449
    %4451 = vdwg.mxu0
    %v4452 = vand.u32 %v464, 4294901760
    %v4453 = vsub.f32 %v464, %v4452
    %v4454 = vand.u32 %v4453, 4294901760
    %4455 = vmatpush.msra.mxu0 %v4454
    %v4456 = vand.u32 %v457, 4294901760
    %v4457 = vsub.f32 %v457, %v4456
    %v4458 = vand.u32 %v4457, 4294901760
    %4459 = vmatpush.msra.mxu0 %v4458
    %v4460 = vand.u32 %v450, 4294901760
    %v4461 = vsub.f32 %v450, %v4460
    %v4462 = vand.u32 %v4461, 4294901760
    %4463 = vmatpush.msra.mxu0 %v4462
    %v4464 = vand.u32 %v443, 4294901760
    %v4465 = vsub.f32 %v443, %v4464
    %v4466 = vand.u32 %v4465, 4294901760
    %4467 = vmatpush.msra.mxu0 %v4466
    %v4468 = vand.u32 %v436, 4294901760
    %v4469 = vsub.f32 %v436, %v4468
    %v4470 = vand.u32 %v4469, 4294901760
    %4471 = vmatpush.msra.mxu0 %v4470
    %v4472 = vand.u32 %v429, 4294901760
    %v4473 = vsub.f32 %v429, %v4472
    %v4474 = vand.u32 %v4473, 4294901760
    %4475 = vmatpush.msra.mxu0 %v4474
    %v4476 = vand.u32 %v422, 4294901760
    %v4477 = vsub.f32 %v422, %v4476
    %v4478 = vand.u32 %v4477, 4294901760
    %4479 = vmatpush.msra.mxu0 %v4478
    %v4480 = vand.u32 %v415, 4294901760
    %v4481 = vsub.f32 %v415, %v4480
    %v4482 = vand.u32 %v4481, 4294901760
    %4483 = vmatpush.msra.mxu0 %v4482
    %v4484 = vand.u32 %v408, 4294901760
    %v4485 = vsub.f32 %v408, %v4484
    %v4486 = vand.u32 %v4485, 4294901760
    %4487 = vmatpush.msra.mxu0 %v4486
    %v4488 = vand.u32 %v401, 4294901760
    %v4489 = vsub.f32 %v401, %v4488
    %v4490 = vand.u32 %v4489, 4294901760
    %4491 = vmatpush.msra.mxu0 %v4490
    %v4492 = vand.u32 %v394, 4294901760
    %v4493 = vsub.f32 %v394, %v4492
    %v4494 = vand.u32 %v4493, 4294901760
    %4495 = vmatpush.msra.mxu0 %v4494
    %v4496 = vand.u32 %v387, 4294901760
    %v4497 = vsub.f32 %v387, %v4496
    %v4498 = vand.u32 %v4497, 4294901760
    %4499 = vmatpush.msra.mxu0 %v4498
    %v4500 = vand.u32 %v380, 4294901760
    %v4501 = vsub.f32 %v380, %v4500
    %v4502 = vand.u32 %v4501, 4294901760
    %4503 = vmatpush.msra.mxu0 %v4502
    %v4504 = vand.u32 %v373, 4294901760
    %v4505 = vsub.f32 %v373, %v4504
    %v4506 = vand.u32 %v4505, 4294901760
    %4507 = vmatpush.msra.mxu0 %v4506
    %v4508 = vand.u32 %v366, 4294901760
    %v4509 = vsub.f32 %v366, %v4508
    %v4510 = vand.u32 %v4509, 4294901760
    %4511 = vmatpush.msra.mxu0 %v4510
    %v4512 = vand.u32 %v359, 4294901760
    %v4513 = vsub.f32 %v359, %v4512
    %v4514 = vand.u32 %v4513, 4294901760
    %4515 = vmatpush.msra.mxu0 %v4514
    %v4516 = vand.u32 %v16, 4294901760
    %4517 = vmatmul.f32.gmra.mxu0 %v4516
    %v4518 = vpop.f32.mrf.mxu0
    %v4519 = vadd.f32 %v4450, %v4518
    %4520 = vdwg.mxu0
    %v4521 = vand.u32 %v464, 4294901760
    %4522 = vmatpush.msra.mxu0 %v4521
    %v4523 = vand.u32 %v457, 4294901760
    %4524 = vmatpush.msra.mxu0 %v4523
    %v4525 = vand.u32 %v450, 4294901760
    %4526 = vmatpush.msra.mxu0 %v4525
    %v4527 = vand.u32 %v443, 4294901760
    %4528 = vmatpush.msra.mxu0 %v4527
    %v4529 = vand.u32 %v436, 4294901760
    %4530 = vmatpush.msra.mxu0 %v4529
    %v4531 = vand.u32 %v429, 4294901760
    %4532 = vmatpush.msra.mxu0 %v4531
    %v4533 = vand.u32 %v422, 4294901760
    %4534 = vmatpush.msra.mxu0 %v4533
    %v4535 = vand.u32 %v415, 4294901760
    %4536 = vmatpush.msra.mxu0 %v4535
    %v4537 = vand.u32 %v408, 4294901760
    %4538 = vmatpush.msra.mxu0 %v4537
    %v4539 = vand.u32 %v401, 4294901760
    %4540 = vmatpush.msra.mxu0 %v4539
    %v4541 = vand.u32 %v394, 4294901760
    %4542 = vmatpush.msra.mxu0 %v4541
    %v4543 = vand.u32 %v387, 4294901760
    %4544 = vmatpush.msra.mxu0 %v4543
    %v4545 = vand.u32 %v380, 4294901760
    %4546 = vmatpush.msra.mxu0 %v4545
    %v4547 = vand.u32 %v373, 4294901760
    %4548 = vmatpush.msra.mxu0 %v4547
    %v4549 = vand.u32 %v366, 4294901760
    %4550 = vmatpush.msra.mxu0 %v4549
    %v4551 = vand.u32 %v359, 4294901760
    %4552 = vmatpush.msra.mxu0 %v4551
    %v4553 = vand.u32 %v16, 4294901760
    %4554 = vmatmul.f32.gmra.mxu0 %v4553
    %v4555 = vpop.f32.mrf.mxu0
    %v4556 = vadd.f32 %v4519, %v4555
    %4557 = vdwg.mxu0
    %v4558 = vand.u32 %v353, 4294901760
    %4559 = vmatpush.msra.mxu0 %v4558
    %v4560 = vand.u32 %v346, 4294901760
    %4561 = vmatpush.msra.mxu0 %v4560
    %v4562 = vand.u32 %v339, 4294901760
    %4563 = vmatpush.msra.mxu0 %v4562
    %v4564 = vand.u32 %v332, 4294901760
    %4565 = vmatpush.msra.mxu0 %v4564
    %v4566 = vand.u32 %v325, 4294901760
    %4567 = vmatpush.msra.mxu0 %v4566
    %v4568 = vand.u32 %v318, 4294901760
    %4569 = vmatpush.msra.mxu0 %v4568
    %v4570 = vand.u32 %v311, 4294901760
    %4571 = vmatpush.msra.mxu0 %v4570
    %v4572 = vand.u32 %v304, 4294901760
    %4573 = vmatpush.msra.mxu0 %v4572
    %v4574 = vand.u32 %v297, 4294901760
    %4575 = vmatpush.msra.mxu0 %v4574
    %v4576 = vand.u32 %v290, 4294901760
    %4577 = vmatpush.msra.mxu0 %v4576
    %v4578 = vand.u32 %v283, 4294901760
    %4579 = vmatpush.msra.mxu0 %v4578
    %v4580 = vand.u32 %v276, 4294901760
    %4581 = vmatpush.msra.mxu0 %v4580
    %v4582 = vand.u32 %v269, 4294901760
    %4583 = vmatpush.msra.mxu0 %v4582
    %v4584 = vand.u32 %v262, 4294901760
    %4585 = vmatpush.msra.mxu0 %v4584
    %v4586 = vand.u32 %v255, 4294901760
    %4587 = vmatpush.msra.mxu0 %v4586
    %v4588 = vand.u32 %v248, 4294901760
    %4589 = vmatpush.msra.mxu0 %v4588
    %v4590 = vand.u32 %v15, 4294901760
    %v4591 = vsub.f32 %v15, %v4590
    %v4592 = vand.u32 %v4591, 4294901760
    %v4593 = vsub.f32 %v4591, %v4592
    %v4594 = vand.u32 %v4593, 4294901760
    %4595 = vmatmul.f32.gmra.mxu0 %v4594
    %v4596 = vpop.f32.mrf.mxu0
    %v4597 = vadd.f32 0.0, %v4596
    %4598 = vdwg.mxu0
    %v4599 = vand.u32 %v353, 4294901760
    %v4600 = vsub.f32 %v353, %v4599
    %v4601 = vand.u32 %v4600, 4294901760
    %v4602 = vsub.f32 %v4600, %v4601
    %v4603 = vand.u32 %v4602, 4294901760
    %4604 = vmatpush.msra.mxu0 %v4603
    %v4605 = vand.u32 %v346, 4294901760
    %v4606 = vsub.f32 %v346, %v4605
    %v4607 = vand.u32 %v4606, 4294901760
    %v4608 = vsub.f32 %v4606, %v4607
    %v4609 = vand.u32 %v4608, 4294901760
    %4610 = vmatpush.msra.mxu0 %v4609
    %v4611 = vand.u32 %v339, 4294901760
    %v4612 = vsub.f32 %v339, %v4611
    %v4613 = vand.u32 %v4612, 4294901760
    %v4614 = vsub.f32 %v4612, %v4613
    %v4615 = vand.u32 %v4614, 4294901760
    %4616 = vmatpush.msra.mxu0 %v4615
    %v4617 = vand.u32 %v332, 4294901760
    %v4618 = vsub.f32 %v332, %v4617
    %v4619 = vand.u32 %v4618, 4294901760
    %v4620 = vsub.f32 %v4618, %v4619
    %v4621 = vand.u32 %v4620, 4294901760
    %4622 = vmatpush.msra.mxu0 %v4621
    %v4623 = vand.u32 %v325, 4294901760
    %v4624 = vsub.f32 %v325, %v4623
    %v4625 = vand.u32 %v4624, 4294901760
    %v4626 = vsub.f32 %v4624, %v4625
    %v4627 = vand.u32 %v4626, 4294901760
    %4628 = vmatpush.msra.mxu0 %v4627
    %v4629 = vand.u32 %v318, 4294901760
    %v4630 = vsub.f32 %v318, %v4629
    %v4631 = vand.u32 %v4630, 4294901760
    %v4632 = vsub.f32 %v4630, %v4631
    %v4633 = vand.u32 %v4632, 4294901760
    %4634 = vmatpush.msra.mxu0 %v4633
    %v4635 = vand.u32 %v311, 4294901760
    %v4636 = vsub.f32 %v311, %v4635
    %v4637 = vand.u32 %v4636, 4294901760
    %v4638 = vsub.f32 %v4636, %v4637
    %v4639 = vand.u32 %v4638, 4294901760
    %4640 = vmatpush.msra.mxu0 %v4639
    %v4641 = vand.u32 %v304, 4294901760
    %v4642 = vsub.f32 %v304, %v4641
    %v4643 = vand.u32 %v4642, 4294901760
    %v4644 = vsub.f32 %v4642, %v4643
    %v4645 = vand.u32 %v4644, 4294901760
    %4646 = vmatpush.msra.mxu0 %v4645
    %v4647 = vand.u32 %v297, 4294901760
    %v4648 = vsub.f32 %v297, %v4647
    %v4649 = vand.u32 %v4648, 4294901760
    %v4650 = vsub.f32 %v4648, %v4649
    %v4651 = vand.u32 %v4650, 4294901760
    %4652 = vmatpush.msra.mxu0 %v4651
    %v4653 = vand.u32 %v290, 4294901760
    %v4654 = vsub.f32 %v290, %v4653
    %v4655 = vand.u32 %v4654, 4294901760
    %v4656 = vsub.f32 %v4654, %v4655
    %v4657 = vand.u32 %v4656, 4294901760
    %4658 = vmatpush.msra.mxu0 %v4657
    %v4659 = vand.u32 %v283, 4294901760
    %v4660 = vsub.f32 %v283, %v4659
    %v4661 = vand.u32 %v4660, 4294901760
    %v4662 = vsub.f32 %v4660, %v4661
    %v4663 = vand.u32 %v4662, 4294901760
    %4664 = vmatpush.msra.mxu0 %v4663
    %v4665 = vand.u32 %v276, 4294901760
    %v4666 = vsub.f32 %v276, %v4665
    %v4667 = vand.u32 %v4666, 4294901760
    %v4668 = vsub.f32 %v4666, %v4667
    %v4669 = vand.u32 %v4668, 4294901760
    %4670 = vmatpush.msra.mxu0 %v4669
    %v4671 = vand.u32 %v269, 4294901760
    %v4672 = vsub.f32 %v269, %v4671
    %v4673 = vand.u32 %v4672, 4294901760
    %v4674 = vsub.f32 %v4672, %v4673
    %v4675 = vand.u32 %v4674, 4294901760
    %4676 = vmatpush.msra.mxu0 %v4675
    %v4677 = vand.u32 %v262, 4294901760
    %v4678 = vsub.f32 %v262, %v4677
    %v4679 = vand.u32 %v4678, 4294901760
    %v4680 = vsub.f32 %v4678, %v4679
    %v4681 = vand.u32 %v4680, 4294901760
    %4682 = vmatpush.msra.mxu0 %v4681
    %v4683 = vand.u32 %v255, 4294901760
    %v4684 = vsub.f32 %v255, %v4683
    %v4685 = vand.u32 %v4684, 4294901760
    %v4686 = vsub.f32 %v4684, %v4685
    %v4687 = vand.u32 %v4686, 4294901760
    %4688 = vmatpush.msra.mxu0 %v4687
    %v4689 = vand.u32 %v248, 4294901760
    %v4690 = vsub.f32 %v248, %v4689
    %v4691 = vand.u32 %v4690, 4294901760
    %v4692 = vsub.f32 %v4690, %v4691
    %v4693 = vand.u32 %v4692, 4294901760
    %4694 = vmatpush.msra.mxu0 %v4693
    %v4695 = vand.u32 %v15, 4294901760
    %4696 = vmatmul.f32.gmra.mxu0 %v4695
    %v4697 = vpop.f32.mrf.mxu0
    %v4698 = vadd.f32 %v4597, %v4697
    %4699 = vdwg.mxu0
    %v4700 = vand.u32 %v353, 4294901760
    %v4701 = vsub.f32 %v353, %v4700
    %4702 = vmatpush.msra.mxu0 %v4701
    %v4703 = vand.u32 %v346, 4294901760
    %v4704 = vsub.f32 %v346, %v4703
    %4705 = vmatpush.msra.mxu0 %v4704
    %v4706 = vand.u32 %v339, 4294901760
    %v4707 = vsub.f32 %v339, %v4706
    %4708 = vmatpush.msra.mxu0 %v4707
    %v4709 = vand.u32 %v332, 4294901760
    %v4710 = vsub.f32 %v332, %v4709
    %4711 = vmatpush.msra.mxu0 %v4710
    %v4712 = vand.u32 %v325, 4294901760
    %v4713 = vsub.f32 %v325, %v4712
    %4714 = vmatpush.msra.mxu0 %v4713
    %v4715 = vand.u32 %v318, 4294901760
    %v4716 = vsub.f32 %v318, %v4715
    %4717 = vmatpush.msra.mxu0 %v4716
    %v4718 = vand.u32 %v311, 4294901760
    %v4719 = vsub.f32 %v311, %v4718
    %4720 = vmatpush.msra.mxu0 %v4719
    %v4721 = vand.u32 %v304, 4294901760
    %v4722 = vsub.f32 %v304, %v4721
    %4723 = vmatpush.msra.mxu0 %v4722
    %v4724 = vand.u32 %v297, 4294901760
    %v4725 = vsub.f32 %v297, %v4724
    %4726 = vmatpush.msra.mxu0 %v4725
    %v4727 = vand.u32 %v290, 4294901760
    %v4728 = vsub.f32 %v290, %v4727
    %4729 = vmatpush.msra.mxu0 %v4728
    %v4730 = vand.u32 %v283, 4294901760
    %v4731 = vsub.f32 %v283, %v4730
    %4732 = vmatpush.msra.mxu0 %v4731
    %v4733 = vand.u32 %v276, 4294901760
    %v4734 = vsub.f32 %v276, %v4733
    %4735 = vmatpush.msra.mxu0 %v4734
    %v4736 = vand.u32 %v269, 4294901760
    %v4737 = vsub.f32 %v269, %v4736
    %4738 = vmatpush.msra.mxu0 %v4737
    %v4739 = vand.u32 %v262, 4294901760
    %v4740 = vsub.f32 %v262, %v4739
    %4741 = vmatpush.msra.mxu0 %v4740
    %v4742 = vand.u32 %v255, 4294901760
    %v4743 = vsub.f32 %v255, %v4742
    %4744 = vmatpush.msra.mxu0 %v4743
    %v4745 = vand.u32 %v248, 4294901760
    %v4746 = vsub.f32 %v248, %v4745
    %4747 = vmatpush.msra.mxu0 %v4746
    %v4748 = vand.u32 %v15, 4294901760
    %v4749 = vsub.f32 %v15, %v4748
    %4750 = vmatmul.f32.gmra.mxu0 %v4749
    %v4751 = vpop.f32.mrf.mxu0
    %v4752 = vadd.f32 %v4698, %v4751
    %4753 = vdwg.mxu0
    %v4754 = vand.u32 %v353, 4294901760
    %4755 = vmatpush.msra.mxu0 %v4754
    %v4756 = vand.u32 %v346, 4294901760
    %4757 = vmatpush.msra.mxu0 %v4756
    %v4758 = vand.u32 %v339, 4294901760
    %4759 = vmatpush.msra.mxu0 %v4758
    %v4760 = vand.u32 %v332, 4294901760
    %4761 = vmatpush.msra.mxu0 %v4760
    %v4762 = vand.u32 %v325, 4294901760
    %4763 = vmatpush.msra.mxu0 %v4762
    %v4764 = vand.u32 %v318, 4294901760
    %4765 = vmatpush.msra.mxu0 %v4764
    %v4766 = vand.u32 %v311, 4294901760
    %4767 = vmatpush.msra.mxu0 %v4766
    %v4768 = vand.u32 %v304, 4294901760
    %4769 = vmatpush.msra.mxu0 %v4768
    %v4770 = vand.u32 %v297, 4294901760
    %4771 = vmatpush.msra.mxu0 %v4770
    %v4772 = vand.u32 %v290, 4294901760
    %4773 = vmatpush.msra.mxu0 %v4772
    %v4774 = vand.u32 %v283, 4294901760
    %4775 = vmatpush.msra.mxu0 %v4774
    %v4776 = vand.u32 %v276, 4294901760
    %4777 = vmatpush.msra.mxu0 %v4776
    %v4778 = vand.u32 %v269, 4294901760
    %4779 = vmatpush.msra.mxu0 %v4778
    %v4780 = vand.u32 %v262, 4294901760
    %4781 = vmatpush.msra.mxu0 %v4780
    %v4782 = vand.u32 %v255, 4294901760
    %4783 = vmatpush.msra.mxu0 %v4782
    %v4784 = vand.u32 %v248, 4294901760
    %4785 = vmatpush.msra.mxu0 %v4784
    %v4786 = vand.u32 %v15, 4294901760
    %v4787 = vsub.f32 %v15, %v4786
    %v4788 = vand.u32 %v4787, 4294901760
    %4789 = vmatmul.f32.gmra.mxu0 %v4788
    %v4790 = vpop.f32.mrf.mxu0
    %v4791 = vadd.f32 %v4752, %v4790
    %4792 = vdwg.mxu0
    %v4793 = vand.u32 %v353, 4294901760
    %v4794 = vsub.f32 %v353, %v4793
    %v4795 = vand.u32 %v4794, 4294901760
    %4796 = vmatpush.msra.mxu0 %v4795
    %v4797 = vand.u32 %v346, 4294901760
    %v4798 = vsub.f32 %v346, %v4797
    %v4799 = vand.u32 %v4798, 4294901760
    %4800 = vmatpush.msra.mxu0 %v4799
    %v4801 = vand.u32 %v339, 4294901760
    %v4802 = vsub.f32 %v339, %v4801
    %v4803 = vand.u32 %v4802, 4294901760
    %4804 = vmatpush.msra.mxu0 %v4803
    %v4805 = vand.u32 %v332, 4294901760
    %v4806 = vsub.f32 %v332, %v4805
    %v4807 = vand.u32 %v4806, 4294901760
    %4808 = vmatpush.msra.mxu0 %v4807
    %v4809 = vand.u32 %v325, 4294901760
    %v4810 = vsub.f32 %v325, %v4809
    %v4811 = vand.u32 %v4810, 4294901760
    %4812 = vmatpush.msra.mxu0 %v4811
    %v4813 = vand.u32 %v318, 4294901760
    %v4814 = vsub.f32 %v318, %v4813
    %v4815 = vand.u32 %v4814, 4294901760
    %4816 = vmatpush.msra.mxu0 %v4815
    %v4817 = vand.u32 %v311, 4294901760
    %v4818 = vsub.f32 %v311, %v4817
    %v4819 = vand.u32 %v4818, 4294901760
    %4820 = vmatpush.msra.mxu0 %v4819
    %v4821 = vand.u32 %v304, 4294901760
    %v4822 = vsub.f32 %v304, %v4821
    %v4823 = vand.u32 %v4822, 4294901760
    %4824 = vmatpush.msra.mxu0 %v4823
    %v4825 = vand.u32 %v297, 4294901760
    %v4826 = vsub.f32 %v297, %v4825
    %v4827 = vand.u32 %v4826, 4294901760
    %4828 = vmatpush.msra.mxu0 %v4827
    %v4829 = vand.u32 %v290, 4294901760
    %v4830 = vsub.f32 %v290, %v4829
    %v4831 = vand.u32 %v4830, 4294901760
    %4832 = vmatpush.msra.mxu0 %v4831
    %v4833 = vand.u32 %v283, 4294901760
    %v4834 = vsub.f32 %v283, %v4833
    %v4835 = vand.u32 %v4834, 4294901760
    %4836 = vmatpush.msra.mxu0 %v4835
    %v4837 = vand.u32 %v276, 4294901760
    %v4838 = vsub.f32 %v276, %v4837
    %v4839 = vand.u32 %v4838, 4294901760
    %4840 = vmatpush.msra.mxu0 %v4839
    %v4841 = vand.u32 %v269, 4294901760
    %v4842 = vsub.f32 %v269, %v4841
    %v4843 = vand.u32 %v4842, 4294901760
    %4844 = vmatpush.msra.mxu0 %v4843
    %v4845 = vand.u32 %v262, 4294901760
    %v4846 = vsub.f32 %v262, %v4845
    %v4847 = vand.u32 %v4846, 4294901760
    %4848 = vmatpush.msra.mxu0 %v4847
    %v4849 = vand.u32 %v255, 4294901760
    %v4850 = vsub.f32 %v255, %v4849
    %v4851 = vand.u32 %v4850, 4294901760
    %4852 = vmatpush.msra.mxu0 %v4851
    %v4853 = vand.u32 %v248, 4294901760
    %v4854 = vsub.f32 %v248, %v4853
    %v4855 = vand.u32 %v4854, 4294901760
    %4856 = vmatpush.msra.mxu0 %v4855
    %v4857 = vand.u32 %v15, 4294901760
    %4858 = vmatmul.f32.gmra.mxu0 %v4857
    %v4859 = vpop.f32.mrf.mxu0
    %v4860 = vadd.f32 %v4791, %v4859
    %4861 = vdwg.mxu0
    %v4862 = vand.u32 %v353, 4294901760
    %4863 = vmatpush.msra.mxu0 %v4862
    %v4864 = vand.u32 %v346, 4294901760
    %4865 = vmatpush.msra.mxu0 %v4864
    %v4866 = vand.u32 %v339, 4294901760
    %4867 = vmatpush.msra.mxu0 %v4866
    %v4868 = vand.u32 %v332, 4294901760
    %4869 = vmatpush.msra.mxu0 %v4868
    %v4870 = vand.u32 %v325, 4294901760
    %4871 = vmatpush.msra.mxu0 %v4870
    %v4872 = vand.u32 %v318, 4294901760
    %4873 = vmatpush.msra.mxu0 %v4872
    %v4874 = vand.u32 %v311, 4294901760
    %4875 = vmatpush.msra.mxu0 %v4874
    %v4876 = vand.u32 %v304, 4294901760
    %4877 = vmatpush.msra.mxu0 %v4876
    %v4878 = vand.u32 %v297, 4294901760
    %4879 = vmatpush.msra.mxu0 %v4878
    %v4880 = vand.u32 %v290, 4294901760
    %4881 = vmatpush.msra.mxu0 %v4880
    %v4882 = vand.u32 %v283, 4294901760
    %4883 = vmatpush.msra.mxu0 %v4882
    %v4884 = vand.u32 %v276, 4294901760
    %4885 = vmatpush.msra.mxu0 %v4884
    %v4886 = vand.u32 %v269, 4294901760
    %4887 = vmatpush.msra.mxu0 %v4886
    %v4888 = vand.u32 %v262, 4294901760
    %4889 = vmatpush.msra.mxu0 %v4888
    %v4890 = vand.u32 %v255, 4294901760
    %4891 = vmatpush.msra.mxu0 %v4890
    %v4892 = vand.u32 %v248, 4294901760
    %4893 = vmatpush.msra.mxu0 %v4892
    %v4894 = vand.u32 %v15, 4294901760
    %4895 = vmatmul.f32.gmra.mxu0 %v4894
    %v4896 = vpop.f32.mrf.mxu0
    %v4897 = vadd.f32 %v4860, %v4896
    %4898 = vdwg.mxu0
    %v4899 = vand.u32 %v465, 4294901760
    %4900 = vmatpush.msra.mxu0 %v4899
    %v4901 = vand.u32 %v458, 4294901760
    %4902 = vmatpush.msra.mxu0 %v4901
    %v4903 = vand.u32 %v451, 4294901760
    %4904 = vmatpush.msra.mxu0 %v4903
    %v4905 = vand.u32 %v444, 4294901760
    %4906 = vmatpush.msra.mxu0 %v4905
    %v4907 = vand.u32 %v437, 4294901760
    %4908 = vmatpush.msra.mxu0 %v4907
    %v4909 = vand.u32 %v430, 4294901760
    %4910 = vmatpush.msra.mxu0 %v4909
    %v4911 = vand.u32 %v423, 4294901760
    %4912 = vmatpush.msra.mxu0 %v4911
    %v4913 = vand.u32 %v416, 4294901760
    %4914 = vmatpush.msra.mxu0 %v4913
    %v4915 = vand.u32 %v409, 4294901760
    %4916 = vmatpush.msra.mxu0 %v4915
    %v4917 = vand.u32 %v402, 4294901760
    %4918 = vmatpush.msra.mxu0 %v4917
    %v4919 = vand.u32 %v395, 4294901760
    %4920 = vmatpush.msra.mxu0 %v4919
    %v4921 = vand.u32 %v388, 4294901760
    %4922 = vmatpush.msra.mxu0 %v4921
    %v4923 = vand.u32 %v381, 4294901760
    %4924 = vmatpush.msra.mxu0 %v4923
    %v4925 = vand.u32 %v374, 4294901760
    %4926 = vmatpush.msra.mxu0 %v4925
    %v4927 = vand.u32 %v367, 4294901760
    %4928 = vmatpush.msra.mxu0 %v4927
    %v4929 = vand.u32 %v360, 4294901760
    %4930 = vmatpush.msra.mxu0 %v4929
    %v4931 = vand.u32 %v16, 4294901760
    %v4932 = vsub.f32 %v16, %v4931
    %v4933 = vand.u32 %v4932, 4294901760
    %v4934 = vsub.f32 %v4932, %v4933
    %v4935 = vand.u32 %v4934, 4294901760
    %4936 = vmatmul.f32.gmra.mxu0 %v4935
    %v4937 = vpop.f32.mrf.mxu0
    %v4938 = vadd.f32 %v4897, %v4937
    %4939 = vdwg.mxu0
    %v4940 = vand.u32 %v465, 4294901760
    %v4941 = vsub.f32 %v465, %v4940
    %v4942 = vand.u32 %v4941, 4294901760
    %v4943 = vsub.f32 %v4941, %v4942
    %v4944 = vand.u32 %v4943, 4294901760
    %4945 = vmatpush.msra.mxu0 %v4944
    %v4946 = vand.u32 %v458, 4294901760
    %v4947 = vsub.f32 %v458, %v4946
    %v4948 = vand.u32 %v4947, 4294901760
    %v4949 = vsub.f32 %v4947, %v4948
    %v4950 = vand.u32 %v4949, 4294901760
    %4951 = vmatpush.msra.mxu0 %v4950
    %v4952 = vand.u32 %v451, 4294901760
    %v4953 = vsub.f32 %v451, %v4952
    %v4954 = vand.u32 %v4953, 4294901760
    %v4955 = vsub.f32 %v4953, %v4954
    %v4956 = vand.u32 %v4955, 4294901760
    %4957 = vmatpush.msra.mxu0 %v4956
    %v4958 = vand.u32 %v444, 4294901760
    %v4959 = vsub.f32 %v444, %v4958
    %v4960 = vand.u32 %v4959, 4294901760
    %v4961 = vsub.f32 %v4959, %v4960
    %v4962 = vand.u32 %v4961, 4294901760
    %4963 = vmatpush.msra.mxu0 %v4962
    %v4964 = vand.u32 %v437, 4294901760
    %v4965 = vsub.f32 %v437, %v4964
    %v4966 = vand.u32 %v4965, 4294901760
    %v4967 = vsub.f32 %v4965, %v4966
    %v4968 = vand.u32 %v4967, 4294901760
    %4969 = vmatpush.msra.mxu0 %v4968
    %v4970 = vand.u32 %v430, 4294901760
    %v4971 = vsub.f32 %v430, %v4970
    %v4972 = vand.u32 %v4971, 4294901760
    %v4973 = vsub.f32 %v4971, %v4972
    %v4974 = vand.u32 %v4973, 4294901760
    %4975 = vmatpush.msra.mxu0 %v4974
    %v4976 = vand.u32 %v423, 4294901760
    %v4977 = vsub.f32 %v423, %v4976
    %v4978 = vand.u32 %v4977, 4294901760
    %v4979 = vsub.f32 %v4977, %v4978
    %v4980 = vand.u32 %v4979, 4294901760
    %4981 = vmatpush.msra.mxu0 %v4980
    %v4982 = vand.u32 %v416, 4294901760
    %v4983 = vsub.f32 %v416, %v4982
    %v4984 = vand.u32 %v4983, 4294901760
    %v4985 = vsub.f32 %v4983, %v4984
    %v4986 = vand.u32 %v4985, 4294901760
    %4987 = vmatpush.msra.mxu0 %v4986
    %v4988 = vand.u32 %v409, 4294901760
    %v4989 = vsub.f32 %v409, %v4988
    %v4990 = vand.u32 %v4989, 4294901760
    %v4991 = vsub.f32 %v4989, %v4990
    %v4992 = vand.u32 %v4991, 4294901760
    %4993 = vmatpush.msra.mxu0 %v4992
    %v4994 = vand.u32 %v402, 4294901760
    %v4995 = vsub.f32 %v402, %v4994
    %v4996 = vand.u32 %v4995, 4294901760
    %v4997 = vsub.f32 %v4995, %v4996
    %v4998 = vand.u32 %v4997, 4294901760
    %4999 = vmatpush.msra.mxu0 %v4998
    %v5000 = vand.u32 %v395, 4294901760
    %v5001 = vsub.f32 %v395, %v5000
    %v5002 = vand.u32 %v5001, 4294901760
    %v5003 = vsub.f32 %v5001, %v5002
    %v5004 = vand.u32 %v5003, 4294901760
    %5005 = vmatpush.msra.mxu0 %v5004
    %v5006 = vand.u32 %v388, 4294901760
    %v5007 = vsub.f32 %v388, %v5006
    %v5008 = vand.u32 %v5007, 4294901760
    %v5009 = vsub.f32 %v5007, %v5008
    %v5010 = vand.u32 %v5009, 4294901760
    %5011 = vmatpush.msra.mxu0 %v5010
    %v5012 = vand.u32 %v381, 4294901760
    %v5013 = vsub.f32 %v381, %v5012
    %v5014 = vand.u32 %v5013, 4294901760
    %v5015 = vsub.f32 %v5013, %v5014
    %v5016 = vand.u32 %v5015, 4294901760
    %5017 = vmatpush.msra.mxu0 %v5016
    %v5018 = vand.u32 %v374, 4294901760
    %v5019 = vsub.f32 %v374, %v5018
    %v5020 = vand.u32 %v5019, 4294901760
    %v5021 = vsub.f32 %v5019, %v5020
    %v5022 = vand.u32 %v5021, 4294901760
    %5023 = vmatpush.msra.mxu0 %v5022
    %v5024 = vand.u32 %v367, 4294901760
    %v5025 = vsub.f32 %v367, %v5024
    %v5026 = vand.u32 %v5025, 4294901760
    %v5027 = vsub.f32 %v5025, %v5026
    %v5028 = vand.u32 %v5027, 4294901760
    %5029 = vmatpush.msra.mxu0 %v5028
    %v5030 = vand.u32 %v360, 4294901760
    %v5031 = vsub.f32 %v360, %v5030
    %v5032 = vand.u32 %v5031, 4294901760
    %v5033 = vsub.f32 %v5031, %v5032
    %v5034 = vand.u32 %v5033, 4294901760
    %5035 = vmatpush.msra.mxu0 %v5034
    %v5036 = vand.u32 %v16, 4294901760
    %5037 = vmatmul.f32.gmra.mxu0 %v5036
    %v5038 = vpop.f32.mrf.mxu0
    %v5039 = vadd.f32 %v4938, %v5038
    %5040 = vdwg.mxu0
    %v5041 = vand.u32 %v465, 4294901760
    %v5042 = vsub.f32 %v465, %v5041
    %5043 = vmatpush.msra.mxu0 %v5042
    %v5044 = vand.u32 %v458, 4294901760
    %v5045 = vsub.f32 %v458, %v5044
    %5046 = vmatpush.msra.mxu0 %v5045
    %v5047 = vand.u32 %v451, 4294901760
    %v5048 = vsub.f32 %v451, %v5047
    %5049 = vmatpush.msra.mxu0 %v5048
    %v5050 = vand.u32 %v444, 4294901760
    %v5051 = vsub.f32 %v444, %v5050
    %5052 = vmatpush.msra.mxu0 %v5051
    %v5053 = vand.u32 %v437, 4294901760
    %v5054 = vsub.f32 %v437, %v5053
    %5055 = vmatpush.msra.mxu0 %v5054
    %v5056 = vand.u32 %v430, 4294901760
    %v5057 = vsub.f32 %v430, %v5056
    %5058 = vmatpush.msra.mxu0 %v5057
    %v5059 = vand.u32 %v423, 4294901760
    %v5060 = vsub.f32 %v423, %v5059
    %5061 = vmatpush.msra.mxu0 %v5060
    %v5062 = vand.u32 %v416, 4294901760
    %v5063 = vsub.f32 %v416, %v5062
    %5064 = vmatpush.msra.mxu0 %v5063
    %v5065 = vand.u32 %v409, 4294901760
    %v5066 = vsub.f32 %v409, %v5065
    %5067 = vmatpush.msra.mxu0 %v5066
    %v5068 = vand.u32 %v402, 4294901760
    %v5069 = vsub.f32 %v402, %v5068
    %5070 = vmatpush.msra.mxu0 %v5069
    %v5071 = vand.u32 %v395, 4294901760
    %v5072 = vsub.f32 %v395, %v5071
    %5073 = vmatpush.msra.mxu0 %v5072
    %v5074 = vand.u32 %v388, 4294901760
    %v5075 = vsub.f32 %v388, %v5074
    %5076 = vmatpush.msra.mxu0 %v5075
    %v5077 = vand.u32 %v381, 4294901760
    %v5078 = vsub.f32 %v381, %v5077
    %5079 = vmatpush.msra.mxu0 %v5078
    %v5080 = vand.u32 %v374, 4294901760
    %v5081 = vsub.f32 %v374, %v5080
    %5082 = vmatpush.msra.mxu0 %v5081
    %v5083 = vand.u32 %v367, 4294901760
    %v5084 = vsub.f32 %v367, %v5083
    %5085 = vmatpush.msra.mxu0 %v5084
    %v5086 = vand.u32 %v360, 4294901760
    %v5087 = vsub.f32 %v360, %v5086
    %5088 = vmatpush.msra.mxu0 %v5087
    %v5089 = vand.u32 %v16, 4294901760
    %v5090 = vsub.f32 %v16, %v5089
    %5091 = vmatmul.f32.gmra.mxu0 %v5090
    %v5092 = vpop.f32.mrf.mxu0
    %v5093 = vadd.f32 %v5039, %v5092
    %5094 = vdwg.mxu0
    %v5095 = vand.u32 %v465, 4294901760
    %5096 = vmatpush.msra.mxu0 %v5095
    %v5097 = vand.u32 %v458, 4294901760
    %5098 = vmatpush.msra.mxu0 %v5097
    %v5099 = vand.u32 %v451, 4294901760
    %5100 = vmatpush.msra.mxu0 %v5099
    %v5101 = vand.u32 %v444, 4294901760
    %5102 = vmatpush.msra.mxu0 %v5101
    %v5103 = vand.u32 %v437, 4294901760
    %5104 = vmatpush.msra.mxu0 %v5103
    %v5105 = vand.u32 %v430, 4294901760
    %5106 = vmatpush.msra.mxu0 %v5105
    %v5107 = vand.u32 %v423, 4294901760
    %5108 = vmatpush.msra.mxu0 %v5107
    %v5109 = vand.u32 %v416, 4294901760
    %5110 = vmatpush.msra.mxu0 %v5109
    %v5111 = vand.u32 %v409, 4294901760
    %5112 = vmatpush.msra.mxu0 %v5111
    %v5113 = vand.u32 %v402, 4294901760
    %5114 = vmatpush.msra.mxu0 %v5113
    %v5115 = vand.u32 %v395, 4294901760
    %5116 = vmatpush.msra.mxu0 %v5115
    %v5117 = vand.u32 %v388, 4294901760
    %5118 = vmatpush.msra.mxu0 %v5117
    %v5119 = vand.u32 %v381, 4294901760
    %5120 = vmatpush.msra.mxu0 %v5119
    %v5121 = vand.u32 %v374, 4294901760
    %5122 = vmatpush.msra.mxu0 %v5121
    %v5123 = vand.u32 %v367, 4294901760
    %5124 = vmatpush.msra.mxu0 %v5123
    %v5125 = vand.u32 %v360, 4294901760
    %5126 = vmatpush.msra.mxu0 %v5125
    %v5127 = vand.u32 %v16, 4294901760
    %v5128 = vsub.f32 %v16, %v5127
    %v5129 = vand.u32 %v5128, 4294901760
    %5130 = vmatmul.f32.gmra.mxu0 %v5129
    %v5131 = vpop.f32.mrf.mxu0
    %v5132 = vadd.f32 %v5093, %v5131
    %5133 = vdwg.mxu0
    %v5134 = vand.u32 %v465, 4294901760
    %v5135 = vsub.f32 %v465, %v5134
    %v5136 = vand.u32 %v5135, 4294901760
    %5137 = vmatpush.msra.mxu0 %v5136
    %v5138 = vand.u32 %v458, 4294901760
    %v5139 = vsub.f32 %v458, %v5138
    %v5140 = vand.u32 %v5139, 4294901760
    %5141 = vmatpush.msra.mxu0 %v5140
    %v5142 = vand.u32 %v451, 4294901760
    %v5143 = vsub.f32 %v451, %v5142
    %v5144 = vand.u32 %v5143, 4294901760
    %5145 = vmatpush.msra.mxu0 %v5144
    %v5146 = vand.u32 %v444, 4294901760
    %v5147 = vsub.f32 %v444, %v5146
    %v5148 = vand.u32 %v5147, 4294901760
    %5149 = vmatpush.msra.mxu0 %v5148
    %v5150 = vand.u32 %v437, 4294901760
    %v5151 = vsub.f32 %v437, %v5150
    %v5152 = vand.u32 %v5151, 4294901760
    %5153 = vmatpush.msra.mxu0 %v5152
    %v5154 = vand.u32 %v430, 4294901760
    %v5155 = vsub.f32 %v430, %v5154
    %v5156 = vand.u32 %v5155, 4294901760
    %5157 = vmatpush.msra.mxu0 %v5156
    %v5158 = vand.u32 %v423, 4294901760
    %v5159 = vsub.f32 %v423, %v5158
    %v5160 = vand.u32 %v5159, 4294901760
    %5161 = vmatpush.msra.mxu0 %v5160
    %v5162 = vand.u32 %v416, 4294901760
    %v5163 = vsub.f32 %v416, %v5162
    %v5164 = vand.u32 %v5163, 4294901760
    %5165 = vmatpush.msra.mxu0 %v5164
    %v5166 = vand.u32 %v409, 4294901760
    %v5167 = vsub.f32 %v409, %v5166
    %v5168 = vand.u32 %v5167, 4294901760
    %5169 = vmatpush.msra.mxu0 %v5168
    %v5170 = vand.u32 %v402, 4294901760
    %v5171 = vsub.f32 %v402, %v5170
    %v5172 = vand.u32 %v5171, 4294901760
    %5173 = vmatpush.msra.mxu0 %v5172
    %v5174 = vand.u32 %v395, 4294901760
    %v5175 = vsub.f32 %v395, %v5174
    %v5176 = vand.u32 %v5175, 4294901760
    %5177 = vmatpush.msra.mxu0 %v5176
    %v5178 = vand.u32 %v388, 4294901760
    %v5179 = vsub.f32 %v388, %v5178
    %v5180 = vand.u32 %v5179, 4294901760
    %5181 = vmatpush.msra.mxu0 %v5180
    %v5182 = vand.u32 %v381, 4294901760
    %v5183 = vsub.f32 %v381, %v5182
    %v5184 = vand.u32 %v5183, 4294901760
    %5185 = vmatpush.msra.mxu0 %v5184
    %v5186 = vand.u32 %v374, 4294901760
    %v5187 = vsub.f32 %v374, %v5186
    %v5188 = vand.u32 %v5187, 4294901760
    %5189 = vmatpush.msra.mxu0 %v5188
    %v5190 = vand.u32 %v367, 4294901760
    %v5191 = vsub.f32 %v367, %v5190
    %v5192 = vand.u32 %v5191, 4294901760
    %5193 = vmatpush.msra.mxu0 %v5192
    %v5194 = vand.u32 %v360, 4294901760
    %v5195 = vsub.f32 %v360, %v5194
    %v5196 = vand.u32 %v5195, 4294901760
    %5197 = vmatpush.msra.mxu0 %v5196
    %v5198 = vand.u32 %v16, 4294901760
    %5199 = vmatmul.f32.gmra.mxu0 %v5198
    %v5200 = vpop.f32.mrf.mxu0
    %v5201 = vadd.f32 %v5132, %v5200
    %5202 = vdwg.mxu0
    %v5203 = vand.u32 %v465, 4294901760
    %5204 = vmatpush.msra.mxu0 %v5203
    %v5205 = vand.u32 %v458, 4294901760
    %5206 = vmatpush.msra.mxu0 %v5205
    %v5207 = vand.u32 %v451, 4294901760
    %5208 = vmatpush.msra.mxu0 %v5207
    %v5209 = vand.u32 %v444, 4294901760
    %5210 = vmatpush.msra.mxu0 %v5209
    %v5211 = vand.u32 %v437, 4294901760
    %5212 = vmatpush.msra.mxu0 %v5211
    %v5213 = vand.u32 %v430, 4294901760
    %5214 = vmatpush.msra.mxu0 %v5213
    %v5215 = vand.u32 %v423, 4294901760
    %5216 = vmatpush.msra.mxu0 %v5215
    %v5217 = vand.u32 %v416, 4294901760
    %5218 = vmatpush.msra.mxu0 %v5217
    %v5219 = vand.u32 %v409, 4294901760
    %5220 = vmatpush.msra.mxu0 %v5219
    %v5221 = vand.u32 %v402, 4294901760
    %5222 = vmatpush.msra.mxu0 %v5221
    %v5223 = vand.u32 %v395, 4294901760
    %5224 = vmatpush.msra.mxu0 %v5223
    %v5225 = vand.u32 %v388, 4294901760
    %5226 = vmatpush.msra.mxu0 %v5225
    %v5227 = vand.u32 %v381, 4294901760
    %5228 = vmatpush.msra.mxu0 %v5227
    %v5229 = vand.u32 %v374, 4294901760
    %5230 = vmatpush.msra.mxu0 %v5229
    %v5231 = vand.u32 %v367, 4294901760
    %5232 = vmatpush.msra.mxu0 %v5231
    %v5233 = vand.u32 %v360, 4294901760
    %5234 = vmatpush.msra.mxu0 %v5233
    %v5235 = vand.u32 %v16, 4294901760
    %5236 = vmatmul.f32.gmra.mxu0 %v5235
    %v5237 = vpop.f32.mrf.mxu0
    %v5238 = vadd.f32 %v5201, %v5237
    %5239 = vdwg.mxu0
    %v5240 = vld [vmem:[%s2] sm:$0xff]
    %vm5241 = vcmask 64512
    %v5243 = vsel %vm5241, %v5240, 0
    %5245 = vmatpush.msra.mxu0 0.0
    %5246 = vmatpush.msra.mxu0 0.0
    %5247 = vmatpush.msra.mxu0 0.0
    %5248 = vmatpush.msra.mxu0 0.0
    %5249 = vmatpush.msra.mxu0 0.0
    %5250 = vmatpush.msra.mxu0 0.0
    %5251 = vmatpush.msra.mxu0 0.0
    %5252 = vmatpush.msra.mxu0 0.0
    %5253 = vmatpush.msra.mxu0 0.0
    %5254 = vmatpush.msra.mxu0 0.0
    %5255 = vmatpush.msra.mxu0 0.0
    %5256 = vmatpush.msra.mxu0 0.0
    %5257 = vmatpush.msra.mxu0 0.0
    %5258 = vmatpush.msra.mxu0 0.0
    %5259 = vmatpush.msra.mxu0 0.0
    %v5260 = vand.u32 %v1146, 4294901760
    %5261 = vmatpush.msra.mxu0 %v5260
    %v5262 = vand.u32 %v5243, 4294901760
    %v5263 = vsub.f32 %v5243, %v5262
    %v5264 = vand.u32 %v5263, 4294901760
    %v5265 = vsub.f32 %v5263, %v5264
    %v5266 = vand.u32 %v5265, 4294901760
    %5267 = vmatmul.f32.gmra.mxu0 %v5266
    %v5268 = vpop.f32.mrf.mxu0
    %v5269 = vadd.f32 0.0, %v5268
    %5270 = vdwg.mxu0
    %5271 = vmatpush.msra.mxu0 0.0
    %5272 = vmatpush.msra.mxu0 0.0
    %5273 = vmatpush.msra.mxu0 0.0
    %5274 = vmatpush.msra.mxu0 0.0
    %5275 = vmatpush.msra.mxu0 0.0
    %5276 = vmatpush.msra.mxu0 0.0
    %5277 = vmatpush.msra.mxu0 0.0
    %5278 = vmatpush.msra.mxu0 0.0
    %5279 = vmatpush.msra.mxu0 0.0
    %5280 = vmatpush.msra.mxu0 0.0
    %5281 = vmatpush.msra.mxu0 0.0
    %5282 = vmatpush.msra.mxu0 0.0
    %5283 = vmatpush.msra.mxu0 0.0
    %5284 = vmatpush.msra.mxu0 0.0
    %5285 = vmatpush.msra.mxu0 0.0
    %v5286 = vand.u32 %v1146, 4294901760
    %v5287 = vsub.f32 %v1146, %v5286
    %v5288 = vand.u32 %v5287, 4294901760
    %v5289 = vsub.f32 %v5287, %v5288
    %v5290 = vand.u32 %v5289, 4294901760
    %5291 = vmatpush.msra.mxu0 %v5290
    %v5292 = vand.u32 %v5243, 4294901760
    %5293 = vmatmul.f32.gmra.mxu0 %v5292
    %v5294 = vpop.f32.mrf.mxu0
    %v5295 = vadd.f32 %v5269, %v5294
    %5296 = vdwg.mxu0
    %5297 = vmatpush.msra.mxu0 0.0
    %5298 = vmatpush.msra.mxu0 0.0
    %5299 = vmatpush.msra.mxu0 0.0
    %5300 = vmatpush.msra.mxu0 0.0
    %5301 = vmatpush.msra.mxu0 0.0
    %5302 = vmatpush.msra.mxu0 0.0
    %5303 = vmatpush.msra.mxu0 0.0
    %5304 = vmatpush.msra.mxu0 0.0
    %5305 = vmatpush.msra.mxu0 0.0
    %5306 = vmatpush.msra.mxu0 0.0
    %5307 = vmatpush.msra.mxu0 0.0
    %5308 = vmatpush.msra.mxu0 0.0
    %5309 = vmatpush.msra.mxu0 0.0
    %5310 = vmatpush.msra.mxu0 0.0
    %5311 = vmatpush.msra.mxu0 0.0
    %v5312 = vand.u32 %v1146, 4294901760
    %v5313 = vsub.f32 %v1146, %v5312
    %5314 = vmatpush.msra.mxu0 %v5313
    %v5315 = vand.u32 %v5243, 4294901760
    %v5316 = vsub.f32 %v5243, %v5315
    %5317 = vmatmul.f32.gmra.mxu0 %v5316
    %v5318 = vpop.f32.mrf.mxu0
    %v5319 = vadd.f32 %v5295, %v5318
    %5320 = vdwg.mxu0
    %5321 = vmatpush.msra.mxu0 0.0
    %5322 = vmatpush.msra.mxu0 0.0
    %5323 = vmatpush.msra.mxu0 0.0
    %5324 = vmatpush.msra.mxu0 0.0
    %5325 = vmatpush.msra.mxu0 0.0
    %5326 = vmatpush.msra.mxu0 0.0
    %5327 = vmatpush.msra.mxu0 0.0
    %5328 = vmatpush.msra.mxu0 0.0
    %5329 = vmatpush.msra.mxu0 0.0
    %5330 = vmatpush.msra.mxu0 0.0
    %5331 = vmatpush.msra.mxu0 0.0
    %5332 = vmatpush.msra.mxu0 0.0
    %5333 = vmatpush.msra.mxu0 0.0
    %5334 = vmatpush.msra.mxu0 0.0
    %5335 = vmatpush.msra.mxu0 0.0
    %v5336 = vand.u32 %v1146, 4294901760
    %5337 = vmatpush.msra.mxu0 %v5336
    %v5338 = vand.u32 %v5243, 4294901760
    %v5339 = vsub.f32 %v5243, %v5338
    %v5340 = vand.u32 %v5339, 4294901760
    %5341 = vmatmul.f32.gmra.mxu0 %v5340
    %v5342 = vpop.f32.mrf.mxu0
    %v5343 = vadd.f32 %v5319, %v5342
    %5344 = vdwg.mxu0
    %5345 = vmatpush.msra.mxu0 0.0
    %5346 = vmatpush.msra.mxu0 0.0
    %5347 = vmatpush.msra.mxu0 0.0
    %5348 = vmatpush.msra.mxu0 0.0
    %5349 = vmatpush.msra.mxu0 0.0
    %5350 = vmatpush.msra.mxu0 0.0
    %5351 = vmatpush.msra.mxu0 0.0
    %5352 = vmatpush.msra.mxu0 0.0
    %5353 = vmatpush.msra.mxu0 0.0
    %5354 = vmatpush.msra.mxu0 0.0
    %5355 = vmatpush.msra.mxu0 0.0
    %5356 = vmatpush.msra.mxu0 0.0
    %5357 = vmatpush.msra.mxu0 0.0
    %5358 = vmatpush.msra.mxu0 0.0
    %5359 = vmatpush.msra.mxu0 0.0
    %v5360 = vand.u32 %v1146, 4294901760
    %v5361 = vsub.f32 %v1146, %v5360
    %v5362 = vand.u32 %v5361, 4294901760
    %5363 = vmatpush.msra.mxu0 %v5362
    %v5364 = vand.u32 %v5243, 4294901760
    %5365 = vmatmul.f32.gmra.mxu0 %v5364
    %v5366 = vpop.f32.mrf.mxu0
    %v5367 = vadd.f32 %v5343, %v5366
    %5368 = vdwg.mxu0
    %5369 = vmatpush.msra.mxu0 0.0
    %5370 = vmatpush.msra.mxu0 0.0
    %5371 = vmatpush.msra.mxu0 0.0
    %5372 = vmatpush.msra.mxu0 0.0
    %5373 = vmatpush.msra.mxu0 0.0
    %5374 = vmatpush.msra.mxu0 0.0
    %5375 = vmatpush.msra.mxu0 0.0
    %5376 = vmatpush.msra.mxu0 0.0
    %5377 = vmatpush.msra.mxu0 0.0
    %5378 = vmatpush.msra.mxu0 0.0
    %5379 = vmatpush.msra.mxu0 0.0
    %5380 = vmatpush.msra.mxu0 0.0
    %5381 = vmatpush.msra.mxu0 0.0
    %5382 = vmatpush.msra.mxu0 0.0
    %5383 = vmatpush.msra.mxu0 0.0
    %v5384 = vand.u32 %v1146, 4294901760
    %5385 = vmatpush.msra.mxu0 %v5384
    %v5386 = vand.u32 %v5243, 4294901760
    %5387 = vmatmul.f32.gmra.mxu0 %v5386
    %v5388 = vpop.f32.mrf.mxu0
    %v5389 = vadd.f32 %v5367, %v5388
    %5390 = vdwg.mxu0
    %5391 = vmatpush.msra.mxu0 0.0
    %5392 = vmatpush.msra.mxu0 0.0
    %5393 = vmatpush.msra.mxu0 0.0
    %5394 = vmatpush.msra.mxu0 0.0
    %5395 = vmatpush.msra.mxu0 0.0
    %5396 = vmatpush.msra.mxu0 0.0
    %5397 = vmatpush.msra.mxu0 0.0
    %5398 = vmatpush.msra.mxu0 0.0
    %5399 = vmatpush.msra.mxu0 0.0
    %5400 = vmatpush.msra.mxu0 0.0
    %5401 = vmatpush.msra.mxu0 0.0
    %5402 = vmatpush.msra.mxu0 0.0
    %5403 = vmatpush.msra.mxu0 0.0
    %5404 = vmatpush.msra.mxu0 0.0
    %5405 = vmatpush.msra.mxu0 0.0
    %v5406 = vand.u32 %v1828, 4294901760
    %5407 = vmatpush.msra.mxu0 %v5406
    %v5408 = vand.u32 %v5243, 4294901760
    %v5409 = vsub.f32 %v5243, %v5408
    %v5410 = vand.u32 %v5409, 4294901760
    %v5411 = vsub.f32 %v5409, %v5410
    %v5412 = vand.u32 %v5411, 4294901760
    %5413 = vmatmul.f32.gmra.mxu0 %v5412
    %v5414 = vpop.f32.mrf.mxu0
    %v5415 = vadd.f32 0.0, %v5414
    %5416 = vdwg.mxu0
    %5417 = vmatpush.msra.mxu0 0.0
    %5418 = vmatpush.msra.mxu0 0.0
    %5419 = vmatpush.msra.mxu0 0.0
    %5420 = vmatpush.msra.mxu0 0.0
    %5421 = vmatpush.msra.mxu0 0.0
    %5422 = vmatpush.msra.mxu0 0.0
    %5423 = vmatpush.msra.mxu0 0.0
    %5424 = vmatpush.msra.mxu0 0.0
    %5425 = vmatpush.msra.mxu0 0.0
    %5426 = vmatpush.msra.mxu0 0.0
    %5427 = vmatpush.msra.mxu0 0.0
    %5428 = vmatpush.msra.mxu0 0.0
    %5429 = vmatpush.msra.mxu0 0.0
    %5430 = vmatpush.msra.mxu0 0.0
    %5431 = vmatpush.msra.mxu0 0.0
    %v5432 = vand.u32 %v1828, 4294901760
    %v5433 = vsub.f32 %v1828, %v5432
    %v5434 = vand.u32 %v5433, 4294901760
    %v5435 = vsub.f32 %v5433, %v5434
    %v5436 = vand.u32 %v5435, 4294901760
    %5437 = vmatpush.msra.mxu0 %v5436
    %v5438 = vand.u32 %v5243, 4294901760
    %5439 = vmatmul.f32.gmra.mxu0 %v5438
    %v5440 = vpop.f32.mrf.mxu0
    %v5441 = vadd.f32 %v5415, %v5440
    %5442 = vdwg.mxu0
    %5443 = vmatpush.msra.mxu0 0.0
    %5444 = vmatpush.msra.mxu0 0.0
    %5445 = vmatpush.msra.mxu0 0.0
    %5446 = vmatpush.msra.mxu0 0.0
    %5447 = vmatpush.msra.mxu0 0.0
    %5448 = vmatpush.msra.mxu0 0.0
    %5449 = vmatpush.msra.mxu0 0.0
    %5450 = vmatpush.msra.mxu0 0.0
    %5451 = vmatpush.msra.mxu0 0.0
    %5452 = vmatpush.msra.mxu0 0.0
    %5453 = vmatpush.msra.mxu0 0.0
    %5454 = vmatpush.msra.mxu0 0.0
    %5455 = vmatpush.msra.mxu0 0.0
    %5456 = vmatpush.msra.mxu0 0.0
    %5457 = vmatpush.msra.mxu0 0.0
    %v5458 = vand.u32 %v1828, 4294901760
    %v5459 = vsub.f32 %v1828, %v5458
    %5460 = vmatpush.msra.mxu0 %v5459
    %v5461 = vand.u32 %v5243, 4294901760
    %v5462 = vsub.f32 %v5243, %v5461
    %5463 = vmatmul.f32.gmra.mxu0 %v5462
    %v5464 = vpop.f32.mrf.mxu0
    %v5465 = vadd.f32 %v5441, %v5464
    %5466 = vdwg.mxu0
    %5467 = vmatpush.msra.mxu0 0.0
    %5468 = vmatpush.msra.mxu0 0.0
    %5469 = vmatpush.msra.mxu0 0.0
    %5470 = vmatpush.msra.mxu0 0.0
    %5471 = vmatpush.msra.mxu0 0.0
    %5472 = vmatpush.msra.mxu0 0.0
    %5473 = vmatpush.msra.mxu0 0.0
    %5474 = vmatpush.msra.mxu0 0.0
    %5475 = vmatpush.msra.mxu0 0.0
    %5476 = vmatpush.msra.mxu0 0.0
    %5477 = vmatpush.msra.mxu0 0.0
    %5478 = vmatpush.msra.mxu0 0.0
    %5479 = vmatpush.msra.mxu0 0.0
    %5480 = vmatpush.msra.mxu0 0.0
    %5481 = vmatpush.msra.mxu0 0.0
    %v5482 = vand.u32 %v1828, 4294901760
    %5483 = vmatpush.msra.mxu0 %v5482
    %v5484 = vand.u32 %v5243, 4294901760
    %v5485 = vsub.f32 %v5243, %v5484
    %v5486 = vand.u32 %v5485, 4294901760
    %5487 = vmatmul.f32.gmra.mxu0 %v5486
    %v5488 = vpop.f32.mrf.mxu0
    %v5489 = vadd.f32 %v5465, %v5488
    %5490 = vdwg.mxu0
    %5491 = vmatpush.msra.mxu0 0.0
    %5492 = vmatpush.msra.mxu0 0.0
    %5493 = vmatpush.msra.mxu0 0.0
    %5494 = vmatpush.msra.mxu0 0.0
    %5495 = vmatpush.msra.mxu0 0.0
    %5496 = vmatpush.msra.mxu0 0.0
    %5497 = vmatpush.msra.mxu0 0.0
    %5498 = vmatpush.msra.mxu0 0.0
    %5499 = vmatpush.msra.mxu0 0.0
    %5500 = vmatpush.msra.mxu0 0.0
    %5501 = vmatpush.msra.mxu0 0.0
    %5502 = vmatpush.msra.mxu0 0.0
    %5503 = vmatpush.msra.mxu0 0.0
    %5504 = vmatpush.msra.mxu0 0.0
    %5505 = vmatpush.msra.mxu0 0.0
    %v5506 = vand.u32 %v1828, 4294901760
    %v5507 = vsub.f32 %v1828, %v5506
    %v5508 = vand.u32 %v5507, 4294901760
    %5509 = vmatpush.msra.mxu0 %v5508
    %v5510 = vand.u32 %v5243, 4294901760
    %5511 = vmatmul.f32.gmra.mxu0 %v5510
    %v5512 = vpop.f32.mrf.mxu0
    %v5513 = vadd.f32 %v5489, %v5512
    %5514 = vdwg.mxu0
    %5515 = vmatpush.msra.mxu0 0.0
    %5516 = vmatpush.msra.mxu0 0.0
    %5517 = vmatpush.msra.mxu0 0.0
    %5518 = vmatpush.msra.mxu0 0.0
    %5519 = vmatpush.msra.mxu0 0.0
    %5520 = vmatpush.msra.mxu0 0.0
    %5521 = vmatpush.msra.mxu0 0.0
    %5522 = vmatpush.msra.mxu0 0.0
    %5523 = vmatpush.msra.mxu0 0.0
    %5524 = vmatpush.msra.mxu0 0.0
    %5525 = vmatpush.msra.mxu0 0.0
    %5526 = vmatpush.msra.mxu0 0.0
    %5527 = vmatpush.msra.mxu0 0.0
    %5528 = vmatpush.msra.mxu0 0.0
    %5529 = vmatpush.msra.mxu0 0.0
    %v5530 = vand.u32 %v1828, 4294901760
    %5531 = vmatpush.msra.mxu0 %v5530
    %v5532 = vand.u32 %v5243, 4294901760
    %5533 = vmatmul.f32.gmra.mxu0 %v5532
    %v5534 = vpop.f32.mrf.mxu0
    %v5535 = vadd.f32 %v5513, %v5534
    %5536 = vdwg.mxu0
    %5537 = vmatpush.msra.mxu0 0.0
    %5538 = vmatpush.msra.mxu0 0.0
    %5539 = vmatpush.msra.mxu0 0.0
    %5540 = vmatpush.msra.mxu0 0.0
    %5541 = vmatpush.msra.mxu0 0.0
    %5542 = vmatpush.msra.mxu0 0.0
    %5543 = vmatpush.msra.mxu0 0.0
    %5544 = vmatpush.msra.mxu0 0.0
    %5545 = vmatpush.msra.mxu0 0.0
    %5546 = vmatpush.msra.mxu0 0.0
    %5547 = vmatpush.msra.mxu0 0.0
    %5548 = vmatpush.msra.mxu0 0.0
    %5549 = vmatpush.msra.mxu0 0.0
    %5550 = vmatpush.msra.mxu0 0.0
    %5551 = vmatpush.msra.mxu0 0.0
    %v5552 = vand.u32 %v2510, 4294901760
    %5553 = vmatpush.msra.mxu0 %v5552
    %v5554 = vand.u32 %v5243, 4294901760
    %v5555 = vsub.f32 %v5243, %v5554
    %v5556 = vand.u32 %v5555, 4294901760
    %v5557 = vsub.f32 %v5555, %v5556
    %v5558 = vand.u32 %v5557, 4294901760
    %5559 = vmatmul.f32.gmra.mxu0 %v5558
    %v5560 = vpop.f32.mrf.mxu0
    %v5561 = vadd.f32 0.0, %v5560
    %5562 = vdwg.mxu0
    %5563 = vmatpush.msra.mxu0 0.0
    %5564 = vmatpush.msra.mxu0 0.0
    %5565 = vmatpush.msra.mxu0 0.0
    %5566 = vmatpush.msra.mxu0 0.0
    %5567 = vmatpush.msra.mxu0 0.0
    %5568 = vmatpush.msra.mxu0 0.0
    %5569 = vmatpush.msra.mxu0 0.0
    %5570 = vmatpush.msra.mxu0 0.0
    %5571 = vmatpush.msra.mxu0 0.0
    %5572 = vmatpush.msra.mxu0 0.0
    %5573 = vmatpush.msra.mxu0 0.0
    %5574 = vmatpush.msra.mxu0 0.0
    %5575 = vmatpush.msra.mxu0 0.0
    %5576 = vmatpush.msra.mxu0 0.0
    %5577 = vmatpush.msra.mxu0 0.0
    %v5578 = vand.u32 %v2510, 4294901760
    %v5579 = vsub.f32 %v2510, %v5578
    %v5580 = vand.u32 %v5579, 4294901760
    %v5581 = vsub.f32 %v5579, %v5580
    %v5582 = vand.u32 %v5581, 4294901760
    %5583 = vmatpush.msra.mxu0 %v5582
    %v5584 = vand.u32 %v5243, 4294901760
    %5585 = vmatmul.f32.gmra.mxu0 %v5584
    %v5586 = vpop.f32.mrf.mxu0
    %v5587 = vadd.f32 %v5561, %v5586
    %5588 = vdwg.mxu0
    %5589 = vmatpush.msra.mxu0 0.0
    %5590 = vmatpush.msra.mxu0 0.0
    %5591 = vmatpush.msra.mxu0 0.0
    %5592 = vmatpush.msra.mxu0 0.0
    %5593 = vmatpush.msra.mxu0 0.0
    %5594 = vmatpush.msra.mxu0 0.0
    %5595 = vmatpush.msra.mxu0 0.0
    %5596 = vmatpush.msra.mxu0 0.0
    %5597 = vmatpush.msra.mxu0 0.0
    %5598 = vmatpush.msra.mxu0 0.0
    %5599 = vmatpush.msra.mxu0 0.0
    %5600 = vmatpush.msra.mxu0 0.0
    %5601 = vmatpush.msra.mxu0 0.0
    %5602 = vmatpush.msra.mxu0 0.0
    %5603 = vmatpush.msra.mxu0 0.0
    %v5604 = vand.u32 %v2510, 4294901760
    %v5605 = vsub.f32 %v2510, %v5604
    %5606 = vmatpush.msra.mxu0 %v5605
    %v5607 = vand.u32 %v5243, 4294901760
    %v5608 = vsub.f32 %v5243, %v5607
    %5609 = vmatmul.f32.gmra.mxu0 %v5608
    %v5610 = vpop.f32.mrf.mxu0
    %v5611 = vadd.f32 %v5587, %v5610
    %5612 = vdwg.mxu0
    %5613 = vmatpush.msra.mxu0 0.0
    %5614 = vmatpush.msra.mxu0 0.0
    %5615 = vmatpush.msra.mxu0 0.0
    %5616 = vmatpush.msra.mxu0 0.0
    %5617 = vmatpush.msra.mxu0 0.0
    %5618 = vmatpush.msra.mxu0 0.0
    %5619 = vmatpush.msra.mxu0 0.0
    %5620 = vmatpush.msra.mxu0 0.0
    %5621 = vmatpush.msra.mxu0 0.0
    %5622 = vmatpush.msra.mxu0 0.0
    %5623 = vmatpush.msra.mxu0 0.0
    %5624 = vmatpush.msra.mxu0 0.0
    %5625 = vmatpush.msra.mxu0 0.0
    %5626 = vmatpush.msra.mxu0 0.0
    %5627 = vmatpush.msra.mxu0 0.0
    %v5628 = vand.u32 %v2510, 4294901760
    %5629 = vmatpush.msra.mxu0 %v5628
    %v5630 = vand.u32 %v5243, 4294901760
    %v5631 = vsub.f32 %v5243, %v5630
    %v5632 = vand.u32 %v5631, 4294901760
    %5633 = vmatmul.f32.gmra.mxu0 %v5632
    %v5634 = vpop.f32.mrf.mxu0
    %v5635 = vadd.f32 %v5611, %v5634
    %5636 = vdwg.mxu0
    %5637 = vmatpush.msra.mxu0 0.0
    %5638 = vmatpush.msra.mxu0 0.0
    %5639 = vmatpush.msra.mxu0 0.0
    %5640 = vmatpush.msra.mxu0 0.0
    %5641 = vmatpush.msra.mxu0 0.0
    %5642 = vmatpush.msra.mxu0 0.0
    %5643 = vmatpush.msra.mxu0 0.0
    %5644 = vmatpush.msra.mxu0 0.0
    %5645 = vmatpush.msra.mxu0 0.0
    %5646 = vmatpush.msra.mxu0 0.0
    %5647 = vmatpush.msra.mxu0 0.0
    %5648 = vmatpush.msra.mxu0 0.0
    %5649 = vmatpush.msra.mxu0 0.0
    %5650 = vmatpush.msra.mxu0 0.0
    %5651 = vmatpush.msra.mxu0 0.0
    %v5652 = vand.u32 %v2510, 4294901760
    %v5653 = vsub.f32 %v2510, %v5652
    %v5654 = vand.u32 %v5653, 4294901760
    %5655 = vmatpush.msra.mxu0 %v5654
    %v5656 = vand.u32 %v5243, 4294901760
    %5657 = vmatmul.f32.gmra.mxu0 %v5656
    %v5658 = vpop.f32.mrf.mxu0
    %v5659 = vadd.f32 %v5635, %v5658
    %5660 = vdwg.mxu0
    %5661 = vmatpush.msra.mxu0 0.0
    %5662 = vmatpush.msra.mxu0 0.0
    %5663 = vmatpush.msra.mxu0 0.0
    %5664 = vmatpush.msra.mxu0 0.0
    %5665 = vmatpush.msra.mxu0 0.0
    %5666 = vmatpush.msra.mxu0 0.0
    %5667 = vmatpush.msra.mxu0 0.0
    %5668 = vmatpush.msra.mxu0 0.0
    %5669 = vmatpush.msra.mxu0 0.0
    %5670 = vmatpush.msra.mxu0 0.0
    %5671 = vmatpush.msra.mxu0 0.0
    %5672 = vmatpush.msra.mxu0 0.0
    %5673 = vmatpush.msra.mxu0 0.0
    %5674 = vmatpush.msra.mxu0 0.0
    %5675 = vmatpush.msra.mxu0 0.0
    %v5676 = vand.u32 %v2510, 4294901760
    %5677 = vmatpush.msra.mxu0 %v5676
    %v5678 = vand.u32 %v5243, 4294901760
    %5679 = vmatmul.f32.gmra.mxu0 %v5678
    %v5680 = vpop.f32.mrf.mxu0
    %v5681 = vadd.f32 %v5659, %v5680
    %5682 = vdwg.mxu0
    %5683 = vmatpush.msra.mxu0 0.0
    %5684 = vmatpush.msra.mxu0 0.0
    %5685 = vmatpush.msra.mxu0 0.0
    %5686 = vmatpush.msra.mxu0 0.0
    %5687 = vmatpush.msra.mxu0 0.0
    %5688 = vmatpush.msra.mxu0 0.0
    %5689 = vmatpush.msra.mxu0 0.0
    %5690 = vmatpush.msra.mxu0 0.0
    %5691 = vmatpush.msra.mxu0 0.0
    %5692 = vmatpush.msra.mxu0 0.0
    %5693 = vmatpush.msra.mxu0 0.0
    %5694 = vmatpush.msra.mxu0 0.0
    %5695 = vmatpush.msra.mxu0 0.0
    %5696 = vmatpush.msra.mxu0 0.0
    %5697 = vmatpush.msra.mxu0 0.0
    %v5698 = vand.u32 %v3192, 4294901760
    %5699 = vmatpush.msra.mxu0 %v5698
    %v5700 = vand.u32 %v5243, 4294901760
    %v5701 = vsub.f32 %v5243, %v5700
    %v5702 = vand.u32 %v5701, 4294901760
    %v5703 = vsub.f32 %v5701, %v5702
    %v5704 = vand.u32 %v5703, 4294901760
    %5705 = vmatmul.f32.gmra.mxu0 %v5704
    %v5706 = vpop.f32.mrf.mxu0
    %v5707 = vadd.f32 0.0, %v5706
    %5708 = vdwg.mxu0
    %5709 = vmatpush.msra.mxu0 0.0
    %5710 = vmatpush.msra.mxu0 0.0
    %5711 = vmatpush.msra.mxu0 0.0
    %5712 = vmatpush.msra.mxu0 0.0
    %5713 = vmatpush.msra.mxu0 0.0
    %5714 = vmatpush.msra.mxu0 0.0
    %5715 = vmatpush.msra.mxu0 0.0
    %5716 = vmatpush.msra.mxu0 0.0
    %5717 = vmatpush.msra.mxu0 0.0
    %5718 = vmatpush.msra.mxu0 0.0
    %5719 = vmatpush.msra.mxu0 0.0
    %5720 = vmatpush.msra.mxu0 0.0
    %5721 = vmatpush.msra.mxu0 0.0
    %5722 = vmatpush.msra.mxu0 0.0
    %5723 = vmatpush.msra.mxu0 0.0
    %v5724 = vand.u32 %v3192, 4294901760
    %v5725 = vsub.f32 %v3192, %v5724
    %v5726 = vand.u32 %v5725, 4294901760
    %v5727 = vsub.f32 %v5725, %v5726
    %v5728 = vand.u32 %v5727, 4294901760
    %5729 = vmatpush.msra.mxu0 %v5728
    %v5730 = vand.u32 %v5243, 4294901760
    %5731 = vmatmul.f32.gmra.mxu0 %v5730
    %v5732 = vpop.f32.mrf.mxu0
    %v5733 = vadd.f32 %v5707, %v5732
    %5734 = vdwg.mxu0
    %5735 = vmatpush.msra.mxu0 0.0
    %5736 = vmatpush.msra.mxu0 0.0
    %5737 = vmatpush.msra.mxu0 0.0
    %5738 = vmatpush.msra.mxu0 0.0
    %5739 = vmatpush.msra.mxu0 0.0
    %5740 = vmatpush.msra.mxu0 0.0
    %5741 = vmatpush.msra.mxu0 0.0
    %5742 = vmatpush.msra.mxu0 0.0
    %5743 = vmatpush.msra.mxu0 0.0
    %5744 = vmatpush.msra.mxu0 0.0
    %5745 = vmatpush.msra.mxu0 0.0
    %5746 = vmatpush.msra.mxu0 0.0
    %5747 = vmatpush.msra.mxu0 0.0
    %5748 = vmatpush.msra.mxu0 0.0
    %5749 = vmatpush.msra.mxu0 0.0
    %v5750 = vand.u32 %v3192, 4294901760
    %v5751 = vsub.f32 %v3192, %v5750
    %5752 = vmatpush.msra.mxu0 %v5751
    %v5753 = vand.u32 %v5243, 4294901760
    %v5754 = vsub.f32 %v5243, %v5753
    %5755 = vmatmul.f32.gmra.mxu0 %v5754
    %v5756 = vpop.f32.mrf.mxu0
    %v5757 = vadd.f32 %v5733, %v5756
    %5758 = vdwg.mxu0
    %5759 = vmatpush.msra.mxu0 0.0
    %5760 = vmatpush.msra.mxu0 0.0
    %5761 = vmatpush.msra.mxu0 0.0
    %5762 = vmatpush.msra.mxu0 0.0
    %5763 = vmatpush.msra.mxu0 0.0
    %5764 = vmatpush.msra.mxu0 0.0
    %5765 = vmatpush.msra.mxu0 0.0
    %5766 = vmatpush.msra.mxu0 0.0
    %5767 = vmatpush.msra.mxu0 0.0
    %5768 = vmatpush.msra.mxu0 0.0
    %5769 = vmatpush.msra.mxu0 0.0
    %5770 = vmatpush.msra.mxu0 0.0
    %5771 = vmatpush.msra.mxu0 0.0
    %5772 = vmatpush.msra.mxu0 0.0
    %5773 = vmatpush.msra.mxu0 0.0
    %v5774 = vand.u32 %v3192, 4294901760
    %5775 = vmatpush.msra.mxu0 %v5774
    %v5776 = vand.u32 %v5243, 4294901760
    %v5777 = vsub.f32 %v5243, %v5776
    %v5778 = vand.u32 %v5777, 4294901760
    %5779 = vmatmul.f32.gmra.mxu0 %v5778
    %v5780 = vpop.f32.mrf.mxu0
    %v5781 = vadd.f32 %v5757, %v5780
    %5782 = vdwg.mxu0
    %5783 = vmatpush.msra.mxu0 0.0
    %5784 = vmatpush.msra.mxu0 0.0
    %5785 = vmatpush.msra.mxu0 0.0
    %5786 = vmatpush.msra.mxu0 0.0
    %5787 = vmatpush.msra.mxu0 0.0
    %5788 = vmatpush.msra.mxu0 0.0
    %5789 = vmatpush.msra.mxu0 0.0
    %5790 = vmatpush.msra.mxu0 0.0
    %5791 = vmatpush.msra.mxu0 0.0
    %5792 = vmatpush.msra.mxu0 0.0
    %5793 = vmatpush.msra.mxu0 0.0
    %5794 = vmatpush.msra.mxu0 0.0
    %5795 = vmatpush.msra.mxu0 0.0
    %5796 = vmatpush.msra.mxu0 0.0
    %5797 = vmatpush.msra.mxu0 0.0
    %v5798 = vand.u32 %v3192, 4294901760
    %v5799 = vsub.f32 %v3192, %v5798
    %v5800 = vand.u32 %v5799, 4294901760
    %5801 = vmatpush.msra.mxu0 %v5800
    %v5802 = vand.u32 %v5243, 4294901760
    %5803 = vmatmul.f32.gmra.mxu0 %v5802
    %v5804 = vpop.f32.mrf.mxu0
    %v5805 = vadd.f32 %v5781, %v5804
    %5806 = vdwg.mxu0
    %5807 = vmatpush.msra.mxu0 0.0
    %5808 = vmatpush.msra.mxu0 0.0
    %5809 = vmatpush.msra.mxu0 0.0
    %5810 = vmatpush.msra.mxu0 0.0
    %5811 = vmatpush.msra.mxu0 0.0
    %5812 = vmatpush.msra.mxu0 0.0
    %5813 = vmatpush.msra.mxu0 0.0
    %5814 = vmatpush.msra.mxu0 0.0
    %5815 = vmatpush.msra.mxu0 0.0
    %5816 = vmatpush.msra.mxu0 0.0
    %5817 = vmatpush.msra.mxu0 0.0
    %5818 = vmatpush.msra.mxu0 0.0
    %5819 = vmatpush.msra.mxu0 0.0
    %5820 = vmatpush.msra.mxu0 0.0
    %5821 = vmatpush.msra.mxu0 0.0
    %v5822 = vand.u32 %v3192, 4294901760
    %5823 = vmatpush.msra.mxu0 %v5822
    %v5824 = vand.u32 %v5243, 4294901760
    %5825 = vmatmul.f32.gmra.mxu0 %v5824
    %v5826 = vpop.f32.mrf.mxu0
    %v5827 = vadd.f32 %v5805, %v5826
    %5828 = vdwg.mxu0
    %5829 = vmatpush.msra.mxu0 0.0
    %5830 = vmatpush.msra.mxu0 0.0
    %5831 = vmatpush.msra.mxu0 0.0
    %5832 = vmatpush.msra.mxu0 0.0
    %5833 = vmatpush.msra.mxu0 0.0
    %5834 = vmatpush.msra.mxu0 0.0
    %5835 = vmatpush.msra.mxu0 0.0
    %5836 = vmatpush.msra.mxu0 0.0
    %5837 = vmatpush.msra.mxu0 0.0
    %5838 = vmatpush.msra.mxu0 0.0
    %5839 = vmatpush.msra.mxu0 0.0
    %5840 = vmatpush.msra.mxu0 0.0
    %5841 = vmatpush.msra.mxu0 0.0
    %5842 = vmatpush.msra.mxu0 0.0
    %5843 = vmatpush.msra.mxu0 0.0
    %v5844 = vand.u32 %v3874, 4294901760
    %5845 = vmatpush.msra.mxu0 %v5844
    %v5846 = vand.u32 %v5243, 4294901760
    %v5847 = vsub.f32 %v5243, %v5846
    %v5848 = vand.u32 %v5847, 4294901760
    %v5849 = vsub.f32 %v5847, %v5848
    %v5850 = vand.u32 %v5849, 4294901760
    %5851 = vmatmul.f32.gmra.mxu0 %v5850
    %v5852 = vpop.f32.mrf.mxu0
    %v5853 = vadd.f32 0.0, %v5852
    %5854 = vdwg.mxu0
    %5855 = vmatpush.msra.mxu0 0.0
    %5856 = vmatpush.msra.mxu0 0.0
    %5857 = vmatpush.msra.mxu0 0.0
    %5858 = vmatpush.msra.mxu0 0.0
    %5859 = vmatpush.msra.mxu0 0.0
    %5860 = vmatpush.msra.mxu0 0.0
    %5861 = vmatpush.msra.mxu0 0.0
    %5862 = vmatpush.msra.mxu0 0.0
    %5863 = vmatpush.msra.mxu0 0.0
    %5864 = vmatpush.msra.mxu0 0.0
    %5865 = vmatpush.msra.mxu0 0.0
    %5866 = vmatpush.msra.mxu0 0.0
    %5867 = vmatpush.msra.mxu0 0.0
    %5868 = vmatpush.msra.mxu0 0.0
    %5869 = vmatpush.msra.mxu0 0.0
    %v5870 = vand.u32 %v3874, 4294901760
    %v5871 = vsub.f32 %v3874, %v5870
    %v5872 = vand.u32 %v5871, 4294901760
    %v5873 = vsub.f32 %v5871, %v5872
    %v5874 = vand.u32 %v5873, 4294901760
    %5875 = vmatpush.msra.mxu0 %v5874
    %v5876 = vand.u32 %v5243, 4294901760
    %5877 = vmatmul.f32.gmra.mxu0 %v5876
    %v5878 = vpop.f32.mrf.mxu0
    %v5879 = vadd.f32 %v5853, %v5878
    %5880 = vdwg.mxu0
    %5881 = vmatpush.msra.mxu0 0.0
    %5882 = vmatpush.msra.mxu0 0.0
    %5883 = vmatpush.msra.mxu0 0.0
    %5884 = vmatpush.msra.mxu0 0.0
    %5885 = vmatpush.msra.mxu0 0.0
    %5886 = vmatpush.msra.mxu0 0.0
    %5887 = vmatpush.msra.mxu0 0.0
    %5888 = vmatpush.msra.mxu0 0.0
    %5889 = vmatpush.msra.mxu0 0.0
    %5890 = vmatpush.msra.mxu0 0.0
    %5891 = vmatpush.msra.mxu0 0.0
    %5892 = vmatpush.msra.mxu0 0.0
    %5893 = vmatpush.msra.mxu0 0.0
    %5894 = vmatpush.msra.mxu0 0.0
    %5895 = vmatpush.msra.mxu0 0.0
    %v5896 = vand.u32 %v3874, 4294901760
    %v5897 = vsub.f32 %v3874, %v5896
    %5898 = vmatpush.msra.mxu0 %v5897
    %v5899 = vand.u32 %v5243, 4294901760
    %v5900 = vsub.f32 %v5243, %v5899
    %5901 = vmatmul.f32.gmra.mxu0 %v5900
    %v5902 = vpop.f32.mrf.mxu0
    %v5903 = vadd.f32 %v5879, %v5902
    %5904 = vdwg.mxu0
    %5905 = vmatpush.msra.mxu0 0.0
    %5906 = vmatpush.msra.mxu0 0.0
    %5907 = vmatpush.msra.mxu0 0.0
    %5908 = vmatpush.msra.mxu0 0.0
    %5909 = vmatpush.msra.mxu0 0.0
    %5910 = vmatpush.msra.mxu0 0.0
    %5911 = vmatpush.msra.mxu0 0.0
    %5912 = vmatpush.msra.mxu0 0.0
    %5913 = vmatpush.msra.mxu0 0.0
    %5914 = vmatpush.msra.mxu0 0.0
    %5915 = vmatpush.msra.mxu0 0.0
    %5916 = vmatpush.msra.mxu0 0.0
    %5917 = vmatpush.msra.mxu0 0.0
    %5918 = vmatpush.msra.mxu0 0.0
    %5919 = vmatpush.msra.mxu0 0.0
    %v5920 = vand.u32 %v3874, 4294901760
    %5921 = vmatpush.msra.mxu0 %v5920
    %v5922 = vand.u32 %v5243, 4294901760
    %v5923 = vsub.f32 %v5243, %v5922
    %v5924 = vand.u32 %v5923, 4294901760
    %5925 = vmatmul.f32.gmra.mxu0 %v5924
    %v5926 = vpop.f32.mrf.mxu0
    %v5927 = vadd.f32 %v5903, %v5926
    %5928 = vdwg.mxu0
    %5929 = vmatpush.msra.mxu0 0.0
    %5930 = vmatpush.msra.mxu0 0.0
    %5931 = vmatpush.msra.mxu0 0.0
    %5932 = vmatpush.msra.mxu0 0.0
    %5933 = vmatpush.msra.mxu0 0.0
    %5934 = vmatpush.msra.mxu0 0.0
    %5935 = vmatpush.msra.mxu0 0.0
    %5936 = vmatpush.msra.mxu0 0.0
    %5937 = vmatpush.msra.mxu0 0.0
    %5938 = vmatpush.msra.mxu0 0.0
    %5939 = vmatpush.msra.mxu0 0.0
    %5940 = vmatpush.msra.mxu0 0.0
    %5941 = vmatpush.msra.mxu0 0.0
    %5942 = vmatpush.msra.mxu0 0.0
    %5943 = vmatpush.msra.mxu0 0.0
    %v5944 = vand.u32 %v3874, 4294901760
    %v5945 = vsub.f32 %v3874, %v5944
    %v5946 = vand.u32 %v5945, 4294901760
    %5947 = vmatpush.msra.mxu0 %v5946
    %v5948 = vand.u32 %v5243, 4294901760
    %5949 = vmatmul.f32.gmra.mxu0 %v5948
    %v5950 = vpop.f32.mrf.mxu0
    %v5951 = vadd.f32 %v5927, %v5950
    %5952 = vdwg.mxu0
    %5953 = vmatpush.msra.mxu0 0.0
    %5954 = vmatpush.msra.mxu0 0.0
    %5955 = vmatpush.msra.mxu0 0.0
    %5956 = vmatpush.msra.mxu0 0.0
    %5957 = vmatpush.msra.mxu0 0.0
    %5958 = vmatpush.msra.mxu0 0.0
    %5959 = vmatpush.msra.mxu0 0.0
    %5960 = vmatpush.msra.mxu0 0.0
    %5961 = vmatpush.msra.mxu0 0.0
    %5962 = vmatpush.msra.mxu0 0.0
    %5963 = vmatpush.msra.mxu0 0.0
    %5964 = vmatpush.msra.mxu0 0.0
    %5965 = vmatpush.msra.mxu0 0.0
    %5966 = vmatpush.msra.mxu0 0.0
    %5967 = vmatpush.msra.mxu0 0.0
    %v5968 = vand.u32 %v3874, 4294901760
    %5969 = vmatpush.msra.mxu0 %v5968
    %v5970 = vand.u32 %v5243, 4294901760
    %5971 = vmatmul.f32.gmra.mxu0 %v5970
    %v5972 = vpop.f32.mrf.mxu0
    %v5973 = vadd.f32 %v5951, %v5972
    %5974 = vdwg.mxu0
    %5975 = vmatpush.msra.mxu0 0.0
    %5976 = vmatpush.msra.mxu0 0.0
    %5977 = vmatpush.msra.mxu0 0.0
    %5978 = vmatpush.msra.mxu0 0.0
    %5979 = vmatpush.msra.mxu0 0.0
    %5980 = vmatpush.msra.mxu0 0.0
    %5981 = vmatpush.msra.mxu0 0.0
    %5982 = vmatpush.msra.mxu0 0.0
    %5983 = vmatpush.msra.mxu0 0.0
    %5984 = vmatpush.msra.mxu0 0.0
    %5985 = vmatpush.msra.mxu0 0.0
    %5986 = vmatpush.msra.mxu0 0.0
    %5987 = vmatpush.msra.mxu0 0.0
    %5988 = vmatpush.msra.mxu0 0.0
    %5989 = vmatpush.msra.mxu0 0.0
    %v5990 = vand.u32 %v4556, 4294901760
    %5991 = vmatpush.msra.mxu0 %v5990
    %v5992 = vand.u32 %v5243, 4294901760
    %v5993 = vsub.f32 %v5243, %v5992
    %v5994 = vand.u32 %v5993, 4294901760
    %v5995 = vsub.f32 %v5993, %v5994
    %v5996 = vand.u32 %v5995, 4294901760
    %5997 = vmatmul.f32.gmra.mxu0 %v5996
    %v5998 = vpop.f32.mrf.mxu0
    %v5999 = vadd.f32 0.0, %v5998
    %6000 = vdwg.mxu0
    %6001 = vmatpush.msra.mxu0 0.0
    %6002 = vmatpush.msra.mxu0 0.0
    %6003 = vmatpush.msra.mxu0 0.0
    %6004 = vmatpush.msra.mxu0 0.0
    %6005 = vmatpush.msra.mxu0 0.0
    %6006 = vmatpush.msra.mxu0 0.0
    %6007 = vmatpush.msra.mxu0 0.0
    %6008 = vmatpush.msra.mxu0 0.0
    %6009 = vmatpush.msra.mxu0 0.0
    %6010 = vmatpush.msra.mxu0 0.0
    %6011 = vmatpush.msra.mxu0 0.0
    %6012 = vmatpush.msra.mxu0 0.0
    %6013 = vmatpush.msra.mxu0 0.0
    %6014 = vmatpush.msra.mxu0 0.0
    %6015 = vmatpush.msra.mxu0 0.0
    %v6016 = vand.u32 %v4556, 4294901760
    %v6017 = vsub.f32 %v4556, %v6016
    %v6018 = vand.u32 %v6017, 4294901760
    %v6019 = vsub.f32 %v6017, %v6018
    %v6020 = vand.u32 %v6019, 4294901760
    %6021 = vmatpush.msra.mxu0 %v6020
    %v6022 = vand.u32 %v5243, 4294901760
    %6023 = vmatmul.f32.gmra.mxu0 %v6022
    %v6024 = vpop.f32.mrf.mxu0
    %v6025 = vadd.f32 %v5999, %v6024
    %6026 = vdwg.mxu0
    %6027 = vmatpush.msra.mxu0 0.0
    %6028 = vmatpush.msra.mxu0 0.0
    %6029 = vmatpush.msra.mxu0 0.0
    %6030 = vmatpush.msra.mxu0 0.0
    %6031 = vmatpush.msra.mxu0 0.0
    %6032 = vmatpush.msra.mxu0 0.0
    %6033 = vmatpush.msra.mxu0 0.0
    %6034 = vmatpush.msra.mxu0 0.0
    %6035 = vmatpush.msra.mxu0 0.0
    %6036 = vmatpush.msra.mxu0 0.0
    %6037 = vmatpush.msra.mxu0 0.0
    %6038 = vmatpush.msra.mxu0 0.0
    %6039 = vmatpush.msra.mxu0 0.0
    %6040 = vmatpush.msra.mxu0 0.0
    %6041 = vmatpush.msra.mxu0 0.0
    %v6042 = vand.u32 %v4556, 4294901760
    %v6043 = vsub.f32 %v4556, %v6042
    %6044 = vmatpush.msra.mxu0 %v6043
    %v6045 = vand.u32 %v5243, 4294901760
    %v6046 = vsub.f32 %v5243, %v6045
    %6047 = vmatmul.f32.gmra.mxu0 %v6046
    %v6048 = vpop.f32.mrf.mxu0
    %v6049 = vadd.f32 %v6025, %v6048
    %6050 = vdwg.mxu0
    %6051 = vmatpush.msra.mxu0 0.0
    %6052 = vmatpush.msra.mxu0 0.0
    %6053 = vmatpush.msra.mxu0 0.0
    %6054 = vmatpush.msra.mxu0 0.0
    %6055 = vmatpush.msra.mxu0 0.0
    %6056 = vmatpush.msra.mxu0 0.0
    %6057 = vmatpush.msra.mxu0 0.0
    %6058 = vmatpush.msra.mxu0 0.0
    %6059 = vmatpush.msra.mxu0 0.0
    %6060 = vmatpush.msra.mxu0 0.0
    %6061 = vmatpush.msra.mxu0 0.0
    %6062 = vmatpush.msra.mxu0 0.0
    %6063 = vmatpush.msra.mxu0 0.0
    %6064 = vmatpush.msra.mxu0 0.0
    %6065 = vmatpush.msra.mxu0 0.0
    %v6066 = vand.u32 %v4556, 4294901760
    %6067 = vmatpush.msra.mxu0 %v6066
    %v6068 = vand.u32 %v5243, 4294901760
    %v6069 = vsub.f32 %v5243, %v6068
    %v6070 = vand.u32 %v6069, 4294901760
    %6071 = vmatmul.f32.gmra.mxu0 %v6070
    %v6072 = vpop.f32.mrf.mxu0
    %v6073 = vadd.f32 %v6049, %v6072
    %6074 = vdwg.mxu0
    %6075 = vmatpush.msra.mxu0 0.0
    %6076 = vmatpush.msra.mxu0 0.0
    %6077 = vmatpush.msra.mxu0 0.0
    %6078 = vmatpush.msra.mxu0 0.0
    %6079 = vmatpush.msra.mxu0 0.0
    %6080 = vmatpush.msra.mxu0 0.0
    %6081 = vmatpush.msra.mxu0 0.0
    %6082 = vmatpush.msra.mxu0 0.0
    %6083 = vmatpush.msra.mxu0 0.0
    %6084 = vmatpush.msra.mxu0 0.0
    %6085 = vmatpush.msra.mxu0 0.0
    %6086 = vmatpush.msra.mxu0 0.0
    %6087 = vmatpush.msra.mxu0 0.0
    %6088 = vmatpush.msra.mxu0 0.0
    %6089 = vmatpush.msra.mxu0 0.0
    %v6090 = vand.u32 %v4556, 4294901760
    %v6091 = vsub.f32 %v4556, %v6090
    %v6092 = vand.u32 %v6091, 4294901760
    %6093 = vmatpush.msra.mxu0 %v6092
    %v6094 = vand.u32 %v5243, 4294901760
    %6095 = vmatmul.f32.gmra.mxu0 %v6094
    %v6096 = vpop.f32.mrf.mxu0
    %v6097 = vadd.f32 %v6073, %v6096
    %6098 = vdwg.mxu0
    %6099 = vmatpush.msra.mxu0 0.0
    %6100 = vmatpush.msra.mxu0 0.0
    %6101 = vmatpush.msra.mxu0 0.0
    %6102 = vmatpush.msra.mxu0 0.0
    %6103 = vmatpush.msra.mxu0 0.0
    %6104 = vmatpush.msra.mxu0 0.0
    %6105 = vmatpush.msra.mxu0 0.0
    %6106 = vmatpush.msra.mxu0 0.0
    %6107 = vmatpush.msra.mxu0 0.0
    %6108 = vmatpush.msra.mxu0 0.0
    %6109 = vmatpush.msra.mxu0 0.0
    %6110 = vmatpush.msra.mxu0 0.0
    %6111 = vmatpush.msra.mxu0 0.0
    %6112 = vmatpush.msra.mxu0 0.0
    %6113 = vmatpush.msra.mxu0 0.0
    %v6114 = vand.u32 %v4556, 4294901760
    %6115 = vmatpush.msra.mxu0 %v6114
    %v6116 = vand.u32 %v5243, 4294901760
    %6117 = vmatmul.f32.gmra.mxu0 %v6116
    %v6118 = vpop.f32.mrf.mxu0
    %v6119 = vadd.f32 %v6097, %v6118
    %6120 = vdwg.mxu0
    %6121 = vmatpush.msra.mxu0 0.0
    %6122 = vmatpush.msra.mxu0 0.0
    %6123 = vmatpush.msra.mxu0 0.0
    %6124 = vmatpush.msra.mxu0 0.0
    %6125 = vmatpush.msra.mxu0 0.0
    %6126 = vmatpush.msra.mxu0 0.0
    %6127 = vmatpush.msra.mxu0 0.0
    %6128 = vmatpush.msra.mxu0 0.0
    %6129 = vmatpush.msra.mxu0 0.0
    %6130 = vmatpush.msra.mxu0 0.0
    %6131 = vmatpush.msra.mxu0 0.0
    %6132 = vmatpush.msra.mxu0 0.0
    %6133 = vmatpush.msra.mxu0 0.0
    %6134 = vmatpush.msra.mxu0 0.0
    %6135 = vmatpush.msra.mxu0 0.0
    %v6136 = vand.u32 %v5238, 4294901760
    %6137 = vmatpush.msra.mxu0 %v6136
    %v6138 = vand.u32 %v5243, 4294901760
    %v6139 = vsub.f32 %v5243, %v6138
    %v6140 = vand.u32 %v6139, 4294901760
    %v6141 = vsub.f32 %v6139, %v6140
    %v6142 = vand.u32 %v6141, 4294901760
    %6143 = vmatmul.f32.gmra.mxu0 %v6142
    %v6144 = vpop.f32.mrf.mxu0
    %v6145 = vadd.f32 0.0, %v6144
    %6146 = vdwg.mxu0
    %6147 = vmatpush.msra.mxu0 0.0
    %6148 = vmatpush.msra.mxu0 0.0
    %6149 = vmatpush.msra.mxu0 0.0
    %6150 = vmatpush.msra.mxu0 0.0
    %6151 = vmatpush.msra.mxu0 0.0
    %6152 = vmatpush.msra.mxu0 0.0
    %6153 = vmatpush.msra.mxu0 0.0
    %6154 = vmatpush.msra.mxu0 0.0
    %6155 = vmatpush.msra.mxu0 0.0
    %6156 = vmatpush.msra.mxu0 0.0
    %6157 = vmatpush.msra.mxu0 0.0
    %6158 = vmatpush.msra.mxu0 0.0
    %6159 = vmatpush.msra.mxu0 0.0
    %6160 = vmatpush.msra.mxu0 0.0
    %6161 = vmatpush.msra.mxu0 0.0
    %v6162 = vand.u32 %v5238, 4294901760
    %v6163 = vsub.f32 %v5238, %v6162
    %v6164 = vand.u32 %v6163, 4294901760
    %v6165 = vsub.f32 %v6163, %v6164
    %v6166 = vand.u32 %v6165, 4294901760
    %6167 = vmatpush.msra.mxu0 %v6166
    %v6168 = vand.u32 %v5243, 4294901760
    %6169 = vmatmul.f32.gmra.mxu0 %v6168
    %v6170 = vpop.f32.mrf.mxu0
    %v6171 = vadd.f32 %v6145, %v6170
    %6172 = vdwg.mxu0
    %6173 = vmatpush.msra.mxu0 0.0
    %6174 = vmatpush.msra.mxu0 0.0
    %6175 = vmatpush.msra.mxu0 0.0
    %6176 = vmatpush.msra.mxu0 0.0
    %6177 = vmatpush.msra.mxu0 0.0
    %6178 = vmatpush.msra.mxu0 0.0
    %6179 = vmatpush.msra.mxu0 0.0
    %6180 = vmatpush.msra.mxu0 0.0
    %6181 = vmatpush.msra.mxu0 0.0
    %6182 = vmatpush.msra.mxu0 0.0
    %6183 = vmatpush.msra.mxu0 0.0
    %6184 = vmatpush.msra.mxu0 0.0
    %6185 = vmatpush.msra.mxu0 0.0
    %6186 = vmatpush.msra.mxu0 0.0
    %6187 = vmatpush.msra.mxu0 0.0
    %v6188 = vand.u32 %v5238, 4294901760
    %v6189 = vsub.f32 %v5238, %v6188
    %6190 = vmatpush.msra.mxu0 %v6189
    %v6191 = vand.u32 %v5243, 4294901760
    %v6192 = vsub.f32 %v5243, %v6191
    %6193 = vmatmul.f32.gmra.mxu0 %v6192
    %v6194 = vpop.f32.mrf.mxu0
    %v6195 = vadd.f32 %v6171, %v6194
    %6196 = vdwg.mxu0
    %6197 = vmatpush.msra.mxu0 0.0
    %6198 = vmatpush.msra.mxu0 0.0
    %6199 = vmatpush.msra.mxu0 0.0
    %6200 = vmatpush.msra.mxu0 0.0
    %6201 = vmatpush.msra.mxu0 0.0
    %6202 = vmatpush.msra.mxu0 0.0
    %6203 = vmatpush.msra.mxu0 0.0
    %6204 = vmatpush.msra.mxu0 0.0
    %6205 = vmatpush.msra.mxu0 0.0
    %6206 = vmatpush.msra.mxu0 0.0
    %6207 = vmatpush.msra.mxu0 0.0
    %6208 = vmatpush.msra.mxu0 0.0
    %6209 = vmatpush.msra.mxu0 0.0
    %6210 = vmatpush.msra.mxu0 0.0
    %6211 = vmatpush.msra.mxu0 0.0
    %v6212 = vand.u32 %v5238, 4294901760
    %6213 = vmatpush.msra.mxu0 %v6212
    %v6214 = vand.u32 %v5243, 4294901760
    %v6215 = vsub.f32 %v5243, %v6214
    %v6216 = vand.u32 %v6215, 4294901760
    %6217 = vmatmul.f32.gmra.mxu0 %v6216
    %v6218 = vpop.f32.mrf.mxu0
    %v6219 = vadd.f32 %v6195, %v6218
    %6220 = vdwg.mxu0
    %6221 = vmatpush.msra.mxu0 0.0
    %6222 = vmatpush.msra.mxu0 0.0
    %6223 = vmatpush.msra.mxu0 0.0
    %6224 = vmatpush.msra.mxu0 0.0
    %6225 = vmatpush.msra.mxu0 0.0
    %6226 = vmatpush.msra.mxu0 0.0
    %6227 = vmatpush.msra.mxu0 0.0
    %6228 = vmatpush.msra.mxu0 0.0
    %6229 = vmatpush.msra.mxu0 0.0
    %6230 = vmatpush.msra.mxu0 0.0
    %6231 = vmatpush.msra.mxu0 0.0
    %6232 = vmatpush.msra.mxu0 0.0
    %6233 = vmatpush.msra.mxu0 0.0
    %6234 = vmatpush.msra.mxu0 0.0
    %6235 = vmatpush.msra.mxu0 0.0
    %v6236 = vand.u32 %v5238, 4294901760
    %v6237 = vsub.f32 %v5238, %v6236
    %v6238 = vand.u32 %v6237, 4294901760
    %6239 = vmatpush.msra.mxu0 %v6238
    %v6240 = vand.u32 %v5243, 4294901760
    %6241 = vmatmul.f32.gmra.mxu0 %v6240
    %v6242 = vpop.f32.mrf.mxu0
    %v6243 = vadd.f32 %v6219, %v6242
    %6244 = vdwg.mxu0
    %6245 = vmatpush.msra.mxu0 0.0
    %6246 = vmatpush.msra.mxu0 0.0
    %6247 = vmatpush.msra.mxu0 0.0
    %6248 = vmatpush.msra.mxu0 0.0
    %6249 = vmatpush.msra.mxu0 0.0
    %6250 = vmatpush.msra.mxu0 0.0
    %6251 = vmatpush.msra.mxu0 0.0
    %6252 = vmatpush.msra.mxu0 0.0
    %6253 = vmatpush.msra.mxu0 0.0
    %6254 = vmatpush.msra.mxu0 0.0
    %6255 = vmatpush.msra.mxu0 0.0
    %6256 = vmatpush.msra.mxu0 0.0
    %6257 = vmatpush.msra.mxu0 0.0
    %6258 = vmatpush.msra.mxu0 0.0
    %6259 = vmatpush.msra.mxu0 0.0
    %v6260 = vand.u32 %v5238, 4294901760
    %6261 = vmatpush.msra.mxu0 %v6260
    %v6262 = vand.u32 %v5243, 4294901760
    %6263 = vmatmul.f32.gmra.mxu0 %v6262
    %v6264 = vpop.f32.mrf.mxu0
    %v6265 = vadd.f32 %v6243, %v6264
    %6266 = vdwg.mxu0
    %v6267 = vand.u32 %v122, 4294901760
    %6268 = vmatpush.msra.mxu0 %v6267
    %v6269 = vand.u32 %v115, 4294901760
    %6270 = vmatpush.msra.mxu0 %v6269
    %v6271 = vand.u32 %v108, 4294901760
    %6272 = vmatpush.msra.mxu0 %v6271
    %v6273 = vand.u32 %v101, 4294901760
    %6274 = vmatpush.msra.mxu0 %v6273
    %v6275 = vand.u32 %v94, 4294901760
    %6276 = vmatpush.msra.mxu0 %v6275
    %v6277 = vand.u32 %v87, 4294901760
    %6278 = vmatpush.msra.mxu0 %v6277
    %v6279 = vand.u32 %v80, 4294901760
    %6280 = vmatpush.msra.mxu0 %v6279
    %v6281 = vand.u32 %v73, 4294901760
    %6282 = vmatpush.msra.mxu0 %v6281
    %v6283 = vand.u32 %v66, 4294901760
    %6284 = vmatpush.msra.mxu0 %v6283
    %v6285 = vand.u32 %v59, 4294901760
    %6286 = vmatpush.msra.mxu0 %v6285
    %v6287 = vand.u32 %v52, 4294901760
    %6288 = vmatpush.msra.mxu0 %v6287
    %v6289 = vand.u32 %v45, 4294901760
    %6290 = vmatpush.msra.mxu0 %v6289
    %v6291 = vand.u32 %v38, 4294901760
    %6292 = vmatpush.msra.mxu0 %v6291
    %v6293 = vand.u32 %v31, 4294901760
    %6294 = vmatpush.msra.mxu0 %v6293
    %v6295 = vand.u32 %v24, 4294901760
    %6296 = vmatpush.msra.mxu0 %v6295
    %v6297 = vand.u32 %v17, 4294901760
    %6298 = vmatpush.msra.mxu0 %v6297
    %v6299 = vand.u32 %v15, 4294901760
    %v6300 = vsub.f32 %v15, %v6299
    %v6301 = vand.u32 %v6300, 4294901760
    %v6302 = vsub.f32 %v6300, %v6301
    %v6303 = vand.u32 %v6302, 4294901760
    %6304 = vmatmul.f32.gmra.mxu0 %v6303
    %v6305 = vpop.f32.mrf.mxu0
    %v6306 = vadd.f32 %v5389, %v6305
    %6307 = vdwg.mxu0
    %v6308 = vand.u32 %v122, 4294901760
    %v6309 = vsub.f32 %v122, %v6308
    %v6310 = vand.u32 %v6309, 4294901760
    %v6311 = vsub.f32 %v6309, %v6310
    %v6312 = vand.u32 %v6311, 4294901760
    %6313 = vmatpush.msra.mxu0 %v6312
    %v6314 = vand.u32 %v115, 4294901760
    %v6315 = vsub.f32 %v115, %v6314
    %v6316 = vand.u32 %v6315, 4294901760
    %v6317 = vsub.f32 %v6315, %v6316
    %v6318 = vand.u32 %v6317, 4294901760
    %6319 = vmatpush.msra.mxu0 %v6318
    %v6320 = vand.u32 %v108, 4294901760
    %v6321 = vsub.f32 %v108, %v6320
    %v6322 = vand.u32 %v6321, 4294901760
    %v6323 = vsub.f32 %v6321, %v6322
    %v6324 = vand.u32 %v6323, 4294901760
    %6325 = vmatpush.msra.mxu0 %v6324
    %v6326 = vand.u32 %v101, 4294901760
    %v6327 = vsub.f32 %v101, %v6326
    %v6328 = vand.u32 %v6327, 4294901760
    %v6329 = vsub.f32 %v6327, %v6328
    %v6330 = vand.u32 %v6329, 4294901760
    %6331 = vmatpush.msra.mxu0 %v6330
    %v6332 = vand.u32 %v94, 4294901760
    %v6333 = vsub.f32 %v94, %v6332
    %v6334 = vand.u32 %v6333, 4294901760
    %v6335 = vsub.f32 %v6333, %v6334
    %v6336 = vand.u32 %v6335, 4294901760
    %6337 = vmatpush.msra.mxu0 %v6336
    %v6338 = vand.u32 %v87, 4294901760
    %v6339 = vsub.f32 %v87, %v6338
    %v6340 = vand.u32 %v6339, 4294901760
    %v6341 = vsub.f32 %v6339, %v6340
    %v6342 = vand.u32 %v6341, 4294901760
    %6343 = vmatpush.msra.mxu0 %v6342
    %v6344 = vand.u32 %v80, 4294901760
    %v6345 = vsub.f32 %v80, %v6344
    %v6346 = vand.u32 %v6345, 4294901760
    %v6347 = vsub.f32 %v6345, %v6346
    %v6348 = vand.u32 %v6347, 4294901760
    %6349 = vmatpush.msra.mxu0 %v6348
    %v6350 = vand.u32 %v73, 4294901760
    %v6351 = vsub.f32 %v73, %v6350
    %v6352 = vand.u32 %v6351, 4294901760
    %v6353 = vsub.f32 %v6351, %v6352
    %v6354 = vand.u32 %v6353, 4294901760
    %6355 = vmatpush.msra.mxu0 %v6354
    %v6356 = vand.u32 %v66, 4294901760
    %v6357 = vsub.f32 %v66, %v6356
    %v6358 = vand.u32 %v6357, 4294901760
    %v6359 = vsub.f32 %v6357, %v6358
    %v6360 = vand.u32 %v6359, 4294901760
    %6361 = vmatpush.msra.mxu0 %v6360
    %v6362 = vand.u32 %v59, 4294901760
    %v6363 = vsub.f32 %v59, %v6362
    %v6364 = vand.u32 %v6363, 4294901760
    %v6365 = vsub.f32 %v6363, %v6364
    %v6366 = vand.u32 %v6365, 4294901760
    %6367 = vmatpush.msra.mxu0 %v6366
    %v6368 = vand.u32 %v52, 4294901760
    %v6369 = vsub.f32 %v52, %v6368
    %v6370 = vand.u32 %v6369, 4294901760
    %v6371 = vsub.f32 %v6369, %v6370
    %v6372 = vand.u32 %v6371, 4294901760
    %6373 = vmatpush.msra.mxu0 %v6372
    %v6374 = vand.u32 %v45, 4294901760
    %v6375 = vsub.f32 %v45, %v6374
    %v6376 = vand.u32 %v6375, 4294901760
    %v6377 = vsub.f32 %v6375, %v6376
    %v6378 = vand.u32 %v6377, 4294901760
    %6379 = vmatpush.msra.mxu0 %v6378
    %v6380 = vand.u32 %v38, 4294901760
    %v6381 = vsub.f32 %v38, %v6380
    %v6382 = vand.u32 %v6381, 4294901760
    %v6383 = vsub.f32 %v6381, %v6382
    %v6384 = vand.u32 %v6383, 4294901760
    %6385 = vmatpush.msra.mxu0 %v6384
    %v6386 = vand.u32 %v31, 4294901760
    %v6387 = vsub.f32 %v31, %v6386
    %v6388 = vand.u32 %v6387, 4294901760
    %v6389 = vsub.f32 %v6387, %v6388
    %v6390 = vand.u32 %v6389, 4294901760
    %6391 = vmatpush.msra.mxu0 %v6390
    %v6392 = vand.u32 %v24, 4294901760
    %v6393 = vsub.f32 %v24, %v6392
    %v6394 = vand.u32 %v6393, 4294901760
    %v6395 = vsub.f32 %v6393, %v6394
    %v6396 = vand.u32 %v6395, 4294901760
    %6397 = vmatpush.msra.mxu0 %v6396
    %v6398 = vand.u32 %v17, 4294901760
    %v6399 = vsub.f32 %v17, %v6398
    %v6400 = vand.u32 %v6399, 4294901760
    %v6401 = vsub.f32 %v6399, %v6400
    %v6402 = vand.u32 %v6401, 4294901760
    %6403 = vmatpush.msra.mxu0 %v6402
    %v6404 = vand.u32 %v15, 4294901760
    %6405 = vmatmul.f32.gmra.mxu0 %v6404
    %v6406 = vpop.f32.mrf.mxu0
    %v6407 = vadd.f32 %v6306, %v6406
    %6408 = vdwg.mxu0
    %v6409 = vand.u32 %v122, 4294901760
    %v6410 = vsub.f32 %v122, %v6409
    %6411 = vmatpush.msra.mxu0 %v6410
    %v6412 = vand.u32 %v115, 4294901760
    %v6413 = vsub.f32 %v115, %v6412
    %6414 = vmatpush.msra.mxu0 %v6413
    %v6415 = vand.u32 %v108, 4294901760
    %v6416 = vsub.f32 %v108, %v6415
    %6417 = vmatpush.msra.mxu0 %v6416
    %v6418 = vand.u32 %v101, 4294901760
    %v6419 = vsub.f32 %v101, %v6418
    %6420 = vmatpush.msra.mxu0 %v6419
    %v6421 = vand.u32 %v94, 4294901760
    %v6422 = vsub.f32 %v94, %v6421
    %6423 = vmatpush.msra.mxu0 %v6422
    %v6424 = vand.u32 %v87, 4294901760
    %v6425 = vsub.f32 %v87, %v6424
    %6426 = vmatpush.msra.mxu0 %v6425
    %v6427 = vand.u32 %v80, 4294901760
    %v6428 = vsub.f32 %v80, %v6427
    %6429 = vmatpush.msra.mxu0 %v6428
    %v6430 = vand.u32 %v73, 4294901760
    %v6431 = vsub.f32 %v73, %v6430
    %6432 = vmatpush.msra.mxu0 %v6431
    %v6433 = vand.u32 %v66, 4294901760
    %v6434 = vsub.f32 %v66, %v6433
    %6435 = vmatpush.msra.mxu0 %v6434
    %v6436 = vand.u32 %v59, 4294901760
    %v6437 = vsub.f32 %v59, %v6436
    %6438 = vmatpush.msra.mxu0 %v6437
    %v6439 = vand.u32 %v52, 4294901760
    %v6440 = vsub.f32 %v52, %v6439
    %6441 = vmatpush.msra.mxu0 %v6440
    %v6442 = vand.u32 %v45, 4294901760
    %v6443 = vsub.f32 %v45, %v6442
    %6444 = vmatpush.msra.mxu0 %v6443
    %v6445 = vand.u32 %v38, 4294901760
    %v6446 = vsub.f32 %v38, %v6445
    %6447 = vmatpush.msra.mxu0 %v6446
    %v6448 = vand.u32 %v31, 4294901760
    %v6449 = vsub.f32 %v31, %v6448
    %6450 = vmatpush.msra.mxu0 %v6449
    %v6451 = vand.u32 %v24, 4294901760
    %v6452 = vsub.f32 %v24, %v6451
    %6453 = vmatpush.msra.mxu0 %v6452
    %v6454 = vand.u32 %v17, 4294901760
    %v6455 = vsub.f32 %v17, %v6454
    %6456 = vmatpush.msra.mxu0 %v6455
    %v6457 = vand.u32 %v15, 4294901760
    %v6458 = vsub.f32 %v15, %v6457
    %6459 = vmatmul.f32.gmra.mxu0 %v6458
    %v6460 = vpop.f32.mrf.mxu0
    %v6461 = vadd.f32 %v6407, %v6460
    %6462 = vdwg.mxu0
    %v6463 = vand.u32 %v122, 4294901760
    %6464 = vmatpush.msra.mxu0 %v6463
    %v6465 = vand.u32 %v115, 4294901760
    %6466 = vmatpush.msra.mxu0 %v6465
    %v6467 = vand.u32 %v108, 4294901760
    %6468 = vmatpush.msra.mxu0 %v6467
    %v6469 = vand.u32 %v101, 4294901760
    %6470 = vmatpush.msra.mxu0 %v6469
    %v6471 = vand.u32 %v94, 4294901760
    %6472 = vmatpush.msra.mxu0 %v6471
    %v6473 = vand.u32 %v87, 4294901760
    %6474 = vmatpush.msra.mxu0 %v6473
    %v6475 = vand.u32 %v80, 4294901760
    %6476 = vmatpush.msra.mxu0 %v6475
    %v6477 = vand.u32 %v73, 4294901760
    %6478 = vmatpush.msra.mxu0 %v6477
    %v6479 = vand.u32 %v66, 4294901760
    %6480 = vmatpush.msra.mxu0 %v6479
    %v6481 = vand.u32 %v59, 4294901760
    %6482 = vmatpush.msra.mxu0 %v6481
    %v6483 = vand.u32 %v52, 4294901760
    %6484 = vmatpush.msra.mxu0 %v6483
    %v6485 = vand.u32 %v45, 4294901760
    %6486 = vmatpush.msra.mxu0 %v6485
    %v6487 = vand.u32 %v38, 4294901760
    %6488 = vmatpush.msra.mxu0 %v6487
    %v6489 = vand.u32 %v31, 4294901760
    %6490 = vmatpush.msra.mxu0 %v6489
    %v6491 = vand.u32 %v24, 4294901760
    %6492 = vmatpush.msra.mxu0 %v6491
    %v6493 = vand.u32 %v17, 4294901760
    %6494 = vmatpush.msra.mxu0 %v6493
    %v6495 = vand.u32 %v15, 4294901760
    %v6496 = vsub.f32 %v15, %v6495
    %v6497 = vand.u32 %v6496, 4294901760
    %6498 = vmatmul.f32.gmra.mxu0 %v6497
    %v6499 = vpop.f32.mrf.mxu0
    %v6500 = vadd.f32 %v6461, %v6499
    %6501 = vdwg.mxu0
    %v6502 = vand.u32 %v122, 4294901760
    %v6503 = vsub.f32 %v122, %v6502
    %v6504 = vand.u32 %v6503, 4294901760
    %6505 = vmatpush.msra.mxu0 %v6504
    %v6506 = vand.u32 %v115, 4294901760
    %v6507 = vsub.f32 %v115, %v6506
    %v6508 = vand.u32 %v6507, 4294901760
    %6509 = vmatpush.msra.mxu0 %v6508
    %v6510 = vand.u32 %v108, 4294901760
    %v6511 = vsub.f32 %v108, %v6510
    %v6512 = vand.u32 %v6511, 4294901760
    %6513 = vmatpush.msra.mxu0 %v6512
    %v6514 = vand.u32 %v101, 4294901760
    %v6515 = vsub.f32 %v101, %v6514
    %v6516 = vand.u32 %v6515, 4294901760
    %6517 = vmatpush.msra.mxu0 %v6516
    %v6518 = vand.u32 %v94, 4294901760
    %v6519 = vsub.f32 %v94, %v6518
    %v6520 = vand.u32 %v6519, 4294901760
    %6521 = vmatpush.msra.mxu0 %v6520
    %v6522 = vand.u32 %v87, 4294901760
    %v6523 = vsub.f32 %v87, %v6522
    %v6524 = vand.u32 %v6523, 4294901760
    %6525 = vmatpush.msra.mxu0 %v6524
    %v6526 = vand.u32 %v80, 4294901760
    %v6527 = vsub.f32 %v80, %v6526
    %v6528 = vand.u32 %v6527, 4294901760
    %6529 = vmatpush.msra.mxu0 %v6528
    %v6530 = vand.u32 %v73, 4294901760
    %v6531 = vsub.f32 %v73, %v6530
    %v6532 = vand.u32 %v6531, 4294901760
    %6533 = vmatpush.msra.mxu0 %v6532
    %v6534 = vand.u32 %v66, 4294901760
    %v6535 = vsub.f32 %v66, %v6534
    %v6536 = vand.u32 %v6535, 4294901760
    %6537 = vmatpush.msra.mxu0 %v6536
    %v6538 = vand.u32 %v59, 4294901760
    %v6539 = vsub.f32 %v59, %v6538
    %v6540 = vand.u32 %v6539, 4294901760
    %6541 = vmatpush.msra.mxu0 %v6540
    %v6542 = vand.u32 %v52, 4294901760
    %v6543 = vsub.f32 %v52, %v6542
    %v6544 = vand.u32 %v6543, 4294901760
    %6545 = vmatpush.msra.mxu0 %v6544
    %v6546 = vand.u32 %v45, 4294901760
    %v6547 = vsub.f32 %v45, %v6546
    %v6548 = vand.u32 %v6547, 4294901760
    %6549 = vmatpush.msra.mxu0 %v6548
    %v6550 = vand.u32 %v38, 4294901760
    %v6551 = vsub.f32 %v38, %v6550
    %v6552 = vand.u32 %v6551, 4294901760
    %6553 = vmatpush.msra.mxu0 %v6552
    %v6554 = vand.u32 %v31, 4294901760
    %v6555 = vsub.f32 %v31, %v6554
    %v6556 = vand.u32 %v6555, 4294901760
    %6557 = vmatpush.msra.mxu0 %v6556
    %v6558 = vand.u32 %v24, 4294901760
    %v6559 = vsub.f32 %v24, %v6558
    %v6560 = vand.u32 %v6559, 4294901760
    %6561 = vmatpush.msra.mxu0 %v6560
    %v6562 = vand.u32 %v17, 4294901760
    %v6563 = vsub.f32 %v17, %v6562
    %v6564 = vand.u32 %v6563, 4294901760
    %6565 = vmatpush.msra.mxu0 %v6564
    %v6566 = vand.u32 %v15, 4294901760
    %6567 = vmatmul.f32.gmra.mxu0 %v6566
    %v6568 = vpop.f32.mrf.mxu0
    %v6569 = vadd.f32 %v6500, %v6568
    %6570 = vdwg.mxu0
    %v6571 = vand.u32 %v122, 4294901760
    %6572 = vmatpush.msra.mxu0 %v6571
    %v6573 = vand.u32 %v115, 4294901760
    %6574 = vmatpush.msra.mxu0 %v6573
    %v6575 = vand.u32 %v108, 4294901760
    %6576 = vmatpush.msra.mxu0 %v6575
    %v6577 = vand.u32 %v101, 4294901760
    %6578 = vmatpush.msra.mxu0 %v6577
    %v6579 = vand.u32 %v94, 4294901760
    %6580 = vmatpush.msra.mxu0 %v6579
    %v6581 = vand.u32 %v87, 4294901760
    %6582 = vmatpush.msra.mxu0 %v6581
    %v6583 = vand.u32 %v80, 4294901760
    %6584 = vmatpush.msra.mxu0 %v6583
    %v6585 = vand.u32 %v73, 4294901760
    %6586 = vmatpush.msra.mxu0 %v6585
    %v6587 = vand.u32 %v66, 4294901760
    %6588 = vmatpush.msra.mxu0 %v6587
    %v6589 = vand.u32 %v59, 4294901760
    %6590 = vmatpush.msra.mxu0 %v6589
    %v6591 = vand.u32 %v52, 4294901760
    %6592 = vmatpush.msra.mxu0 %v6591
    %v6593 = vand.u32 %v45, 4294901760
    %6594 = vmatpush.msra.mxu0 %v6593
    %v6595 = vand.u32 %v38, 4294901760
    %6596 = vmatpush.msra.mxu0 %v6595
    %v6597 = vand.u32 %v31, 4294901760
    %6598 = vmatpush.msra.mxu0 %v6597
    %v6599 = vand.u32 %v24, 4294901760
    %6600 = vmatpush.msra.mxu0 %v6599
    %v6601 = vand.u32 %v17, 4294901760
    %6602 = vmatpush.msra.mxu0 %v6601
    %v6603 = vand.u32 %v15, 4294901760
    %6604 = vmatmul.f32.gmra.mxu0 %v6603
    %v6605 = vpop.f32.mrf.mxu0
    %v6606 = vadd.f32 %v6569, %v6605
    %6607 = vdwg.mxu0
    %v6608 = vand.u32 %v234, 4294901760
    %6609 = vmatpush.msra.mxu0 %v6608
    %v6610 = vand.u32 %v227, 4294901760
    %6611 = vmatpush.msra.mxu0 %v6610
    %v6612 = vand.u32 %v220, 4294901760
    %6613 = vmatpush.msra.mxu0 %v6612
    %v6614 = vand.u32 %v213, 4294901760
    %6615 = vmatpush.msra.mxu0 %v6614
    %v6616 = vand.u32 %v206, 4294901760
    %6617 = vmatpush.msra.mxu0 %v6616
    %v6618 = vand.u32 %v199, 4294901760
    %6619 = vmatpush.msra.mxu0 %v6618
    %v6620 = vand.u32 %v192, 4294901760
    %6621 = vmatpush.msra.mxu0 %v6620
    %v6622 = vand.u32 %v185, 4294901760
    %6623 = vmatpush.msra.mxu0 %v6622
    %v6624 = vand.u32 %v178, 4294901760
    %6625 = vmatpush.msra.mxu0 %v6624
    %v6626 = vand.u32 %v171, 4294901760
    %6627 = vmatpush.msra.mxu0 %v6626
    %v6628 = vand.u32 %v164, 4294901760
    %6629 = vmatpush.msra.mxu0 %v6628
    %v6630 = vand.u32 %v157, 4294901760
    %6631 = vmatpush.msra.mxu0 %v6630
    %v6632 = vand.u32 %v150, 4294901760
    %6633 = vmatpush.msra.mxu0 %v6632
    %v6634 = vand.u32 %v143, 4294901760
    %6635 = vmatpush.msra.mxu0 %v6634
    %v6636 = vand.u32 %v136, 4294901760
    %6637 = vmatpush.msra.mxu0 %v6636
    %v6638 = vand.u32 %v129, 4294901760
    %6639 = vmatpush.msra.mxu0 %v6638
    %v6640 = vand.u32 %v16, 4294901760
    %v6641 = vsub.f32 %v16, %v6640
    %v6642 = vand.u32 %v6641, 4294901760
    %v6643 = vsub.f32 %v6641, %v6642
    %v6644 = vand.u32 %v6643, 4294901760
    %6645 = vmatmul.f32.gmra.mxu0 %v6644
    %v6646 = vpop.f32.mrf.mxu0
    %v6647 = vadd.f32 %v6606, %v6646
    %6648 = vdwg.mxu0
    %v6649 = vand.u32 %v234, 4294901760
    %v6650 = vsub.f32 %v234, %v6649
    %v6651 = vand.u32 %v6650, 4294901760
    %v6652 = vsub.f32 %v6650, %v6651
    %v6653 = vand.u32 %v6652, 4294901760
    %6654 = vmatpush.msra.mxu0 %v6653
    %v6655 = vand.u32 %v227, 4294901760
    %v6656 = vsub.f32 %v227, %v6655
    %v6657 = vand.u32 %v6656, 4294901760
    %v6658 = vsub.f32 %v6656, %v6657
    %v6659 = vand.u32 %v6658, 4294901760
    %6660 = vmatpush.msra.mxu0 %v6659
    %v6661 = vand.u32 %v220, 4294901760
    %v6662 = vsub.f32 %v220, %v6661
    %v6663 = vand.u32 %v6662, 4294901760
    %v6664 = vsub.f32 %v6662, %v6663
    %v6665 = vand.u32 %v6664, 4294901760
    %6666 = vmatpush.msra.mxu0 %v6665
    %v6667 = vand.u32 %v213, 4294901760
    %v6668 = vsub.f32 %v213, %v6667
    %v6669 = vand.u32 %v6668, 4294901760
    %v6670 = vsub.f32 %v6668, %v6669
    %v6671 = vand.u32 %v6670, 4294901760
    %6672 = vmatpush.msra.mxu0 %v6671
    %v6673 = vand.u32 %v206, 4294901760
    %v6674 = vsub.f32 %v206, %v6673
    %v6675 = vand.u32 %v6674, 4294901760
    %v6676 = vsub.f32 %v6674, %v6675
    %v6677 = vand.u32 %v6676, 4294901760
    %6678 = vmatpush.msra.mxu0 %v6677
    %v6679 = vand.u32 %v199, 4294901760
    %v6680 = vsub.f32 %v199, %v6679
    %v6681 = vand.u32 %v6680, 4294901760
    %v6682 = vsub.f32 %v6680, %v6681
    %v6683 = vand.u32 %v6682, 4294901760
    %6684 = vmatpush.msra.mxu0 %v6683
    %v6685 = vand.u32 %v192, 4294901760
    %v6686 = vsub.f32 %v192, %v6685
    %v6687 = vand.u32 %v6686, 4294901760
    %v6688 = vsub.f32 %v6686, %v6687
    %v6689 = vand.u32 %v6688, 4294901760
    %6690 = vmatpush.msra.mxu0 %v6689
    %v6691 = vand.u32 %v185, 4294901760
    %v6692 = vsub.f32 %v185, %v6691
    %v6693 = vand.u32 %v6692, 4294901760
    %v6694 = vsub.f32 %v6692, %v6693
    %v6695 = vand.u32 %v6694, 4294901760
    %6696 = vmatpush.msra.mxu0 %v6695
    %v6697 = vand.u32 %v178, 4294901760
    %v6698 = vsub.f32 %v178, %v6697
    %v6699 = vand.u32 %v6698, 4294901760
    %v6700 = vsub.f32 %v6698, %v6699
    %v6701 = vand.u32 %v6700, 4294901760
    %6702 = vmatpush.msra.mxu0 %v6701
    %v6703 = vand.u32 %v171, 4294901760
    %v6704 = vsub.f32 %v171, %v6703
    %v6705 = vand.u32 %v6704, 4294901760
    %v6706 = vsub.f32 %v6704, %v6705
    %v6707 = vand.u32 %v6706, 4294901760
    %6708 = vmatpush.msra.mxu0 %v6707
    %v6709 = vand.u32 %v164, 4294901760
    %v6710 = vsub.f32 %v164, %v6709
    %v6711 = vand.u32 %v6710, 4294901760
    %v6712 = vsub.f32 %v6710, %v6711
    %v6713 = vand.u32 %v6712, 4294901760
    %6714 = vmatpush.msra.mxu0 %v6713
    %v6715 = vand.u32 %v157, 4294901760
    %v6716 = vsub.f32 %v157, %v6715
    %v6717 = vand.u32 %v6716, 4294901760
    %v6718 = vsub.f32 %v6716, %v6717
    %v6719 = vand.u32 %v6718, 4294901760
    %6720 = vmatpush.msra.mxu0 %v6719
    %v6721 = vand.u32 %v150, 4294901760
    %v6722 = vsub.f32 %v150, %v6721
    %v6723 = vand.u32 %v6722, 4294901760
    %v6724 = vsub.f32 %v6722, %v6723
    %v6725 = vand.u32 %v6724, 4294901760
    %6726 = vmatpush.msra.mxu0 %v6725
    %v6727 = vand.u32 %v143, 4294901760
    %v6728 = vsub.f32 %v143, %v6727
    %v6729 = vand.u32 %v6728, 4294901760
    %v6730 = vsub.f32 %v6728, %v6729
    %v6731 = vand.u32 %v6730, 4294901760
    %6732 = vmatpush.msra.mxu0 %v6731
    %v6733 = vand.u32 %v136, 4294901760
    %v6734 = vsub.f32 %v136, %v6733
    %v6735 = vand.u32 %v6734, 4294901760
    %v6736 = vsub.f32 %v6734, %v6735
    %v6737 = vand.u32 %v6736, 4294901760
    %6738 = vmatpush.msra.mxu0 %v6737
    %v6739 = vand.u32 %v129, 4294901760
    %v6740 = vsub.f32 %v129, %v6739
    %v6741 = vand.u32 %v6740, 4294901760
    %v6742 = vsub.f32 %v6740, %v6741
    %v6743 = vand.u32 %v6742, 4294901760
    %6744 = vmatpush.msra.mxu0 %v6743
    %v6745 = vand.u32 %v16, 4294901760
    %6746 = vmatmul.f32.gmra.mxu0 %v6745
    %v6747 = vpop.f32.mrf.mxu0
    %v6748 = vadd.f32 %v6647, %v6747
    %6749 = vdwg.mxu0
    %v6750 = vand.u32 %v234, 4294901760
    %v6751 = vsub.f32 %v234, %v6750
    %6752 = vmatpush.msra.mxu0 %v6751
    %v6753 = vand.u32 %v227, 4294901760
    %v6754 = vsub.f32 %v227, %v6753
    %6755 = vmatpush.msra.mxu0 %v6754
    %v6756 = vand.u32 %v220, 4294901760
    %v6757 = vsub.f32 %v220, %v6756
    %6758 = vmatpush.msra.mxu0 %v6757
    %v6759 = vand.u32 %v213, 4294901760
    %v6760 = vsub.f32 %v213, %v6759
    %6761 = vmatpush.msra.mxu0 %v6760
    %v6762 = vand.u32 %v206, 4294901760
    %v6763 = vsub.f32 %v206, %v6762
    %6764 = vmatpush.msra.mxu0 %v6763
    %v6765 = vand.u32 %v199, 4294901760
    %v6766 = vsub.f32 %v199, %v6765
    %6767 = vmatpush.msra.mxu0 %v6766
    %v6768 = vand.u32 %v192, 4294901760
    %v6769 = vsub.f32 %v192, %v6768
    %6770 = vmatpush.msra.mxu0 %v6769
    %v6771 = vand.u32 %v185, 4294901760
    %v6772 = vsub.f32 %v185, %v6771
    %6773 = vmatpush.msra.mxu0 %v6772
    %v6774 = vand.u32 %v178, 4294901760
    %v6775 = vsub.f32 %v178, %v6774
    %6776 = vmatpush.msra.mxu0 %v6775
    %v6777 = vand.u32 %v171, 4294901760
    %v6778 = vsub.f32 %v171, %v6777
    %6779 = vmatpush.msra.mxu0 %v6778
    %v6780 = vand.u32 %v164, 4294901760
    %v6781 = vsub.f32 %v164, %v6780
    %6782 = vmatpush.msra.mxu0 %v6781
    %v6783 = vand.u32 %v157, 4294901760
    %v6784 = vsub.f32 %v157, %v6783
    %6785 = vmatpush.msra.mxu0 %v6784
    %v6786 = vand.u32 %v150, 4294901760
    %v6787 = vsub.f32 %v150, %v6786
    %6788 = vmatpush.msra.mxu0 %v6787
    %v6789 = vand.u32 %v143, 4294901760
    %v6790 = vsub.f32 %v143, %v6789
    %6791 = vmatpush.msra.mxu0 %v6790
    %v6792 = vand.u32 %v136, 4294901760
    %v6793 = vsub.f32 %v136, %v6792
    %6794 = vmatpush.msra.mxu0 %v6793
    %v6795 = vand.u32 %v129, 4294901760
    %v6796 = vsub.f32 %v129, %v6795
    %6797 = vmatpush.msra.mxu0 %v6796
    %v6798 = vand.u32 %v16, 4294901760
    %v6799 = vsub.f32 %v16, %v6798
    %6800 = vmatmul.f32.gmra.mxu0 %v6799
    %v6801 = vpop.f32.mrf.mxu0
    %v6802 = vadd.f32 %v6748, %v6801
    %6803 = vdwg.mxu0
    %v6804 = vand.u32 %v234, 4294901760
    %6805 = vmatpush.msra.mxu0 %v6804
    %v6806 = vand.u32 %v227, 4294901760
    %6807 = vmatpush.msra.mxu0 %v6806
    %v6808 = vand.u32 %v220, 4294901760
    %6809 = vmatpush.msra.mxu0 %v6808
    %v6810 = vand.u32 %v213, 4294901760
    %6811 = vmatpush.msra.mxu0 %v6810
    %v6812 = vand.u32 %v206, 4294901760
    %6813 = vmatpush.msra.mxu0 %v6812
    %v6814 = vand.u32 %v199, 4294901760
    %6815 = vmatpush.msra.mxu0 %v6814
    %v6816 = vand.u32 %v192, 4294901760
    %6817 = vmatpush.msra.mxu0 %v6816
    %v6818 = vand.u32 %v185, 4294901760
    %6819 = vmatpush.msra.mxu0 %v6818
    %v6820 = vand.u32 %v178, 4294901760
    %6821 = vmatpush.msra.mxu0 %v6820
    %v6822 = vand.u32 %v171, 4294901760
    %6823 = vmatpush.msra.mxu0 %v6822
    %v6824 = vand.u32 %v164, 4294901760
    %6825 = vmatpush.msra.mxu0 %v6824
    %v6826 = vand.u32 %v157, 4294901760
    %6827 = vmatpush.msra.mxu0 %v6826
    %v6828 = vand.u32 %v150, 4294901760
    %6829 = vmatpush.msra.mxu0 %v6828
    %v6830 = vand.u32 %v143, 4294901760
    %6831 = vmatpush.msra.mxu0 %v6830
    %v6832 = vand.u32 %v136, 4294901760
    %6833 = vmatpush.msra.mxu0 %v6832
    %v6834 = vand.u32 %v129, 4294901760
    %6835 = vmatpush.msra.mxu0 %v6834
    %v6836 = vand.u32 %v16, 4294901760
    %v6837 = vsub.f32 %v16, %v6836
    %v6838 = vand.u32 %v6837, 4294901760
    %6839 = vmatmul.f32.gmra.mxu0 %v6838
    %v6840 = vpop.f32.mrf.mxu0
    %v6841 = vadd.f32 %v6802, %v6840
    %6842 = vdwg.mxu0
    %v6843 = vand.u32 %v234, 4294901760
    %v6844 = vsub.f32 %v234, %v6843
    %v6845 = vand.u32 %v6844, 4294901760
    %6846 = vmatpush.msra.mxu0 %v6845
    %v6847 = vand.u32 %v227, 4294901760
    %v6848 = vsub.f32 %v227, %v6847
    %v6849 = vand.u32 %v6848, 4294901760
    %6850 = vmatpush.msra.mxu0 %v6849
    %v6851 = vand.u32 %v220, 4294901760
    %v6852 = vsub.f32 %v220, %v6851
    %v6853 = vand.u32 %v6852, 4294901760
    %6854 = vmatpush.msra.mxu0 %v6853
    %v6855 = vand.u32 %v213, 4294901760
    %v6856 = vsub.f32 %v213, %v6855
    %v6857 = vand.u32 %v6856, 4294901760
    %6858 = vmatpush.msra.mxu0 %v6857
    %v6859 = vand.u32 %v206, 4294901760
    %v6860 = vsub.f32 %v206, %v6859
    %v6861 = vand.u32 %v6860, 4294901760
    %6862 = vmatpush.msra.mxu0 %v6861
    %v6863 = vand.u32 %v199, 4294901760
    %v6864 = vsub.f32 %v199, %v6863
    %v6865 = vand.u32 %v6864, 4294901760
    %6866 = vmatpush.msra.mxu0 %v6865
    %v6867 = vand.u32 %v192, 4294901760
    %v6868 = vsub.f32 %v192, %v6867
    %v6869 = vand.u32 %v6868, 4294901760
    %6870 = vmatpush.msra.mxu0 %v6869
    %v6871 = vand.u32 %v185, 4294901760
    %v6872 = vsub.f32 %v185, %v6871
    %v6873 = vand.u32 %v6872, 4294901760
    %6874 = vmatpush.msra.mxu0 %v6873
    %v6875 = vand.u32 %v178, 4294901760
    %v6876 = vsub.f32 %v178, %v6875
    %v6877 = vand.u32 %v6876, 4294901760
    %6878 = vmatpush.msra.mxu0 %v6877
    %v6879 = vand.u32 %v171, 4294901760
    %v6880 = vsub.f32 %v171, %v6879
    %v6881 = vand.u32 %v6880, 4294901760
    %6882 = vmatpush.msra.mxu0 %v6881
    %v6883 = vand.u32 %v164, 4294901760
    %v6884 = vsub.f32 %v164, %v6883
    %v6885 = vand.u32 %v6884, 4294901760
    %6886 = vmatpush.msra.mxu0 %v6885
    %v6887 = vand.u32 %v157, 4294901760
    %v6888 = vsub.f32 %v157, %v6887
    %v6889 = vand.u32 %v6888, 4294901760
    %6890 = vmatpush.msra.mxu0 %v6889
    %v6891 = vand.u32 %v150, 4294901760
    %v6892 = vsub.f32 %v150, %v6891
    %v6893 = vand.u32 %v6892, 4294901760
    %6894 = vmatpush.msra.mxu0 %v6893
    %v6895 = vand.u32 %v143, 4294901760
    %v6896 = vsub.f32 %v143, %v6895
    %v6897 = vand.u32 %v6896, 4294901760
    %6898 = vmatpush.msra.mxu0 %v6897
    %v6899 = vand.u32 %v136, 4294901760
    %v6900 = vsub.f32 %v136, %v6899
    %v6901 = vand.u32 %v6900, 4294901760
    %6902 = vmatpush.msra.mxu0 %v6901
    %v6903 = vand.u32 %v129, 4294901760
    %v6904 = vsub.f32 %v129, %v6903
    %v6905 = vand.u32 %v6904, 4294901760
    %6906 = vmatpush.msra.mxu0 %v6905
    %v6907 = vand.u32 %v16, 4294901760
    %6908 = vmatmul.f32.gmra.mxu0 %v6907
    %v6909 = vpop.f32.mrf.mxu0
    %v6910 = vadd.f32 %v6841, %v6909
    %6911 = vdwg.mxu0
    %v6912 = vand.u32 %v234, 4294901760
    %6913 = vmatpush.msra.mxu0 %v6912
    %v6914 = vand.u32 %v227, 4294901760
    %6915 = vmatpush.msra.mxu0 %v6914
    %v6916 = vand.u32 %v220, 4294901760
    %6917 = vmatpush.msra.mxu0 %v6916
    %v6918 = vand.u32 %v213, 4294901760
    %6919 = vmatpush.msra.mxu0 %v6918
    %v6920 = vand.u32 %v206, 4294901760
    %6921 = vmatpush.msra.mxu0 %v6920
    %v6922 = vand.u32 %v199, 4294901760
    %6923 = vmatpush.msra.mxu0 %v6922
    %v6924 = vand.u32 %v192, 4294901760
    %6925 = vmatpush.msra.mxu0 %v6924
    %v6926 = vand.u32 %v185, 4294901760
    %6927 = vmatpush.msra.mxu0 %v6926
    %v6928 = vand.u32 %v178, 4294901760
    %6929 = vmatpush.msra.mxu0 %v6928
    %v6930 = vand.u32 %v171, 4294901760
    %6931 = vmatpush.msra.mxu0 %v6930
    %v6932 = vand.u32 %v164, 4294901760
    %6933 = vmatpush.msra.mxu0 %v6932
    %v6934 = vand.u32 %v157, 4294901760
    %6935 = vmatpush.msra.mxu0 %v6934
    %v6936 = vand.u32 %v150, 4294901760
    %6937 = vmatpush.msra.mxu0 %v6936
    %v6938 = vand.u32 %v143, 4294901760
    %6939 = vmatpush.msra.mxu0 %v6938
    %v6940 = vand.u32 %v136, 4294901760
    %6941 = vmatpush.msra.mxu0 %v6940
    %v6942 = vand.u32 %v129, 4294901760
    %6943 = vmatpush.msra.mxu0 %v6942
    %v6944 = vand.u32 %v16, 4294901760
    %6945 = vmatmul.f32.gmra.mxu0 %v6944
    %v6946 = vpop.f32.mrf.mxu0
    %v6947 = vadd.f32 %v6910, %v6946
    %6948 = vdwg.mxu0
    %v6949 = vand.u32 %v123, 4294901760
    %6950 = vmatpush.msra.mxu0 %v6949
    %v6951 = vand.u32 %v116, 4294901760
    %6952 = vmatpush.msra.mxu0 %v6951
    %v6953 = vand.u32 %v109, 4294901760
    %6954 = vmatpush.msra.mxu0 %v6953
    %v6955 = vand.u32 %v102, 4294901760
    %6956 = vmatpush.msra.mxu0 %v6955
    %v6957 = vand.u32 %v95, 4294901760
    %6958 = vmatpush.msra.mxu0 %v6957
    %v6959 = vand.u32 %v88, 4294901760
    %6960 = vmatpush.msra.mxu0 %v6959
    %v6961 = vand.u32 %v81, 4294901760
    %6962 = vmatpush.msra.mxu0 %v6961
    %v6963 = vand.u32 %v74, 4294901760
    %6964 = vmatpush.msra.mxu0 %v6963
    %v6965 = vand.u32 %v67, 4294901760
    %6966 = vmatpush.msra.mxu0 %v6965
    %v6967 = vand.u32 %v60, 4294901760
    %6968 = vmatpush.msra.mxu0 %v6967
    %v6969 = vand.u32 %v53, 4294901760
    %6970 = vmatpush.msra.mxu0 %v6969
    %v6971 = vand.u32 %v46, 4294901760
    %6972 = vmatpush.msra.mxu0 %v6971
    %v6973 = vand.u32 %v39, 4294901760
    %6974 = vmatpush.msra.mxu0 %v6973
    %v6975 = vand.u32 %v32, 4294901760
    %6976 = vmatpush.msra.mxu0 %v6975
    %v6977 = vand.u32 %v25, 4294901760
    %6978 = vmatpush.msra.mxu0 %v6977
    %v6979 = vand.u32 %v18, 4294901760
    %6980 = vmatpush.msra.mxu0 %v6979
    %v6981 = vand.u32 %v15, 4294901760
    %v6982 = vsub.f32 %v15, %v6981
    %v6983 = vand.u32 %v6982, 4294901760
    %v6984 = vsub.f32 %v6982, %v6983
    %v6985 = vand.u32 %v6984, 4294901760
    %6986 = vmatmul.f32.gmra.mxu0 %v6985
    %v6987 = vpop.f32.mrf.mxu0
    %v6988 = vadd.f32 %v5535, %v6987
    %6989 = vdwg.mxu0
    %v6990 = vand.u32 %v123, 4294901760
    %v6991 = vsub.f32 %v123, %v6990
    %v6992 = vand.u32 %v6991, 4294901760
    %v6993 = vsub.f32 %v6991, %v6992
    %v6994 = vand.u32 %v6993, 4294901760
    %6995 = vmatpush.msra.mxu0 %v6994
    %v6996 = vand.u32 %v116, 4294901760
    %v6997 = vsub.f32 %v116, %v6996
    %v6998 = vand.u32 %v6997, 4294901760
    %v6999 = vsub.f32 %v6997, %v6998
    %v7000 = vand.u32 %v6999, 4294901760
    %7001 = vmatpush.msra.mxu0 %v7000
    %v7002 = vand.u32 %v109, 4294901760
    %v7003 = vsub.f32 %v109, %v7002
    %v7004 = vand.u32 %v7003, 4294901760
    %v7005 = vsub.f32 %v7003, %v7004
    %v7006 = vand.u32 %v7005, 4294901760
    %7007 = vmatpush.msra.mxu0 %v7006
    %v7008 = vand.u32 %v102, 4294901760
    %v7009 = vsub.f32 %v102, %v7008
    %v7010 = vand.u32 %v7009, 4294901760
    %v7011 = vsub.f32 %v7009, %v7010
    %v7012 = vand.u32 %v7011, 4294901760
    %7013 = vmatpush.msra.mxu0 %v7012
    %v7014 = vand.u32 %v95, 4294901760
    %v7015 = vsub.f32 %v95, %v7014
    %v7016 = vand.u32 %v7015, 4294901760
    %v7017 = vsub.f32 %v7015, %v7016
    %v7018 = vand.u32 %v7017, 4294901760
    %7019 = vmatpush.msra.mxu0 %v7018
    %v7020 = vand.u32 %v88, 4294901760
    %v7021 = vsub.f32 %v88, %v7020
    %v7022 = vand.u32 %v7021, 4294901760
    %v7023 = vsub.f32 %v7021, %v7022
    %v7024 = vand.u32 %v7023, 4294901760
    %7025 = vmatpush.msra.mxu0 %v7024
    %v7026 = vand.u32 %v81, 4294901760
    %v7027 = vsub.f32 %v81, %v7026
    %v7028 = vand.u32 %v7027, 4294901760
    %v7029 = vsub.f32 %v7027, %v7028
    %v7030 = vand.u32 %v7029, 4294901760
    %7031 = vmatpush.msra.mxu0 %v7030
    %v7032 = vand.u32 %v74, 4294901760
    %v7033 = vsub.f32 %v74, %v7032
    %v7034 = vand.u32 %v7033, 4294901760
    %v7035 = vsub.f32 %v7033, %v7034
    %v7036 = vand.u32 %v7035, 4294901760
    %7037 = vmatpush.msra.mxu0 %v7036
    %v7038 = vand.u32 %v67, 4294901760
    %v7039 = vsub.f32 %v67, %v7038
    %v7040 = vand.u32 %v7039, 4294901760
    %v7041 = vsub.f32 %v7039, %v7040
    %v7042 = vand.u32 %v7041, 4294901760
    %7043 = vmatpush.msra.mxu0 %v7042
    %v7044 = vand.u32 %v60, 4294901760
    %v7045 = vsub.f32 %v60, %v7044
    %v7046 = vand.u32 %v7045, 4294901760
    %v7047 = vsub.f32 %v7045, %v7046
    %v7048 = vand.u32 %v7047, 4294901760
    %7049 = vmatpush.msra.mxu0 %v7048
    %v7050 = vand.u32 %v53, 4294901760
    %v7051 = vsub.f32 %v53, %v7050
    %v7052 = vand.u32 %v7051, 4294901760
    %v7053 = vsub.f32 %v7051, %v7052
    %v7054 = vand.u32 %v7053, 4294901760
    %7055 = vmatpush.msra.mxu0 %v7054
    %v7056 = vand.u32 %v46, 4294901760
    %v7057 = vsub.f32 %v46, %v7056
    %v7058 = vand.u32 %v7057, 4294901760
    %v7059 = vsub.f32 %v7057, %v7058
    %v7060 = vand.u32 %v7059, 4294901760
    %7061 = vmatpush.msra.mxu0 %v7060
    %v7062 = vand.u32 %v39, 4294901760
    %v7063 = vsub.f32 %v39, %v7062
    %v7064 = vand.u32 %v7063, 4294901760
    %v7065 = vsub.f32 %v7063, %v7064
    %v7066 = vand.u32 %v7065, 4294901760
    %7067 = vmatpush.msra.mxu0 %v7066
    %v7068 = vand.u32 %v32, 4294901760
    %v7069 = vsub.f32 %v32, %v7068
    %v7070 = vand.u32 %v7069, 4294901760
    %v7071 = vsub.f32 %v7069, %v7070
    %v7072 = vand.u32 %v7071, 4294901760
    %7073 = vmatpush.msra.mxu0 %v7072
    %v7074 = vand.u32 %v25, 4294901760
    %v7075 = vsub.f32 %v25, %v7074
    %v7076 = vand.u32 %v7075, 4294901760
    %v7077 = vsub.f32 %v7075, %v7076
    %v7078 = vand.u32 %v7077, 4294901760
    %7079 = vmatpush.msra.mxu0 %v7078
    %v7080 = vand.u32 %v18, 4294901760
    %v7081 = vsub.f32 %v18, %v7080
    %v7082 = vand.u32 %v7081, 4294901760
    %v7083 = vsub.f32 %v7081, %v7082
    %v7084 = vand.u32 %v7083, 4294901760
    %7085 = vmatpush.msra.mxu0 %v7084
    %v7086 = vand.u32 %v15, 4294901760
    %7087 = vmatmul.f32.gmra.mxu0 %v7086
    %v7088 = vpop.f32.mrf.mxu0
    %v7089 = vadd.f32 %v6988, %v7088
    %7090 = vdwg.mxu0
    %v7091 = vand.u32 %v123, 4294901760
    %v7092 = vsub.f32 %v123, %v7091
    %7093 = vmatpush.msra.mxu0 %v7092
    %v7094 = vand.u32 %v116, 4294901760
    %v7095 = vsub.f32 %v116, %v7094
    %7096 = vmatpush.msra.mxu0 %v7095
    %v7097 = vand.u32 %v109, 4294901760
    %v7098 = vsub.f32 %v109, %v7097
    %7099 = vmatpush.msra.mxu0 %v7098
    %v7100 = vand.u32 %v102, 4294901760
    %v7101 = vsub.f32 %v102, %v7100
    %7102 = vmatpush.msra.mxu0 %v7101
    %v7103 = vand.u32 %v95, 4294901760
    %v7104 = vsub.f32 %v95, %v7103
    %7105 = vmatpush.msra.mxu0 %v7104
    %v7106 = vand.u32 %v88, 4294901760
    %v7107 = vsub.f32 %v88, %v7106
    %7108 = vmatpush.msra.mxu0 %v7107
    %v7109 = vand.u32 %v81, 4294901760
    %v7110 = vsub.f32 %v81, %v7109
    %7111 = vmatpush.msra.mxu0 %v7110
    %v7112 = vand.u32 %v74, 4294901760
    %v7113 = vsub.f32 %v74, %v7112
    %7114 = vmatpush.msra.mxu0 %v7113
    %v7115 = vand.u32 %v67, 4294901760
    %v7116 = vsub.f32 %v67, %v7115
    %7117 = vmatpush.msra.mxu0 %v7116
    %v7118 = vand.u32 %v60, 4294901760
    %v7119 = vsub.f32 %v60, %v7118
    %7120 = vmatpush.msra.mxu0 %v7119
    %v7121 = vand.u32 %v53, 4294901760
    %v7122 = vsub.f32 %v53, %v7121
    %7123 = vmatpush.msra.mxu0 %v7122
    %v7124 = vand.u32 %v46, 4294901760
    %v7125 = vsub.f32 %v46, %v7124
    %7126 = vmatpush.msra.mxu0 %v7125
    %v7127 = vand.u32 %v39, 4294901760
    %v7128 = vsub.f32 %v39, %v7127
    %7129 = vmatpush.msra.mxu0 %v7128
    %v7130 = vand.u32 %v32, 4294901760
    %v7131 = vsub.f32 %v32, %v7130
    %7132 = vmatpush.msra.mxu0 %v7131
    %v7133 = vand.u32 %v25, 4294901760
    %v7134 = vsub.f32 %v25, %v7133
    %7135 = vmatpush.msra.mxu0 %v7134
    %v7136 = vand.u32 %v18, 4294901760
    %v7137 = vsub.f32 %v18, %v7136
    %7138 = vmatpush.msra.mxu0 %v7137
    %v7139 = vand.u32 %v15, 4294901760
    %v7140 = vsub.f32 %v15, %v7139
    %7141 = vmatmul.f32.gmra.mxu0 %v7140
    %v7142 = vpop.f32.mrf.mxu0
    %v7143 = vadd.f32 %v7089, %v7142
    %7144 = vdwg.mxu0
    %v7145 = vand.u32 %v123, 4294901760
    %7146 = vmatpush.msra.mxu0 %v7145
    %v7147 = vand.u32 %v116, 4294901760
    %7148 = vmatpush.msra.mxu0 %v7147
    %v7149 = vand.u32 %v109, 4294901760
    %7150 = vmatpush.msra.mxu0 %v7149
    %v7151 = vand.u32 %v102, 4294901760
    %7152 = vmatpush.msra.mxu0 %v7151
    %v7153 = vand.u32 %v95, 4294901760
    %7154 = vmatpush.msra.mxu0 %v7153
    %v7155 = vand.u32 %v88, 4294901760
    %7156 = vmatpush.msra.mxu0 %v7155
    %v7157 = vand.u32 %v81, 4294901760
    %7158 = vmatpush.msra.mxu0 %v7157
    %v7159 = vand.u32 %v74, 4294901760
    %7160 = vmatpush.msra.mxu0 %v7159
    %v7161 = vand.u32 %v67, 4294901760
    %7162 = vmatpush.msra.mxu0 %v7161
    %v7163 = vand.u32 %v60, 4294901760
    %7164 = vmatpush.msra.mxu0 %v7163
    %v7165 = vand.u32 %v53, 4294901760
    %7166 = vmatpush.msra.mxu0 %v7165
    %v7167 = vand.u32 %v46, 4294901760
    %7168 = vmatpush.msra.mxu0 %v7167
    %v7169 = vand.u32 %v39, 4294901760
    %7170 = vmatpush.msra.mxu0 %v7169
    %v7171 = vand.u32 %v32, 4294901760
    %7172 = vmatpush.msra.mxu0 %v7171
    %v7173 = vand.u32 %v25, 4294901760
    %7174 = vmatpush.msra.mxu0 %v7173
    %v7175 = vand.u32 %v18, 4294901760
    %7176 = vmatpush.msra.mxu0 %v7175
    %v7177 = vand.u32 %v15, 4294901760
    %v7178 = vsub.f32 %v15, %v7177
    %v7179 = vand.u32 %v7178, 4294901760
    %7180 = vmatmul.f32.gmra.mxu0 %v7179
    %v7181 = vpop.f32.mrf.mxu0
    %v7182 = vadd.f32 %v7143, %v7181
    %7183 = vdwg.mxu0
    %v7184 = vand.u32 %v123, 4294901760
    %v7185 = vsub.f32 %v123, %v7184
    %v7186 = vand.u32 %v7185, 4294901760
    %7187 = vmatpush.msra.mxu0 %v7186
    %v7188 = vand.u32 %v116, 4294901760
    %v7189 = vsub.f32 %v116, %v7188
    %v7190 = vand.u32 %v7189, 4294901760
    %7191 = vmatpush.msra.mxu0 %v7190
    %v7192 = vand.u32 %v109, 4294901760
    %v7193 = vsub.f32 %v109, %v7192
    %v7194 = vand.u32 %v7193, 4294901760
    %7195 = vmatpush.msra.mxu0 %v7194
    %v7196 = vand.u32 %v102, 4294901760
    %v7197 = vsub.f32 %v102, %v7196
    %v7198 = vand.u32 %v7197, 4294901760
    %7199 = vmatpush.msra.mxu0 %v7198
    %v7200 = vand.u32 %v95, 4294901760
    %v7201 = vsub.f32 %v95, %v7200
    %v7202 = vand.u32 %v7201, 4294901760
    %7203 = vmatpush.msra.mxu0 %v7202
    %v7204 = vand.u32 %v88, 4294901760
    %v7205 = vsub.f32 %v88, %v7204
    %v7206 = vand.u32 %v7205, 4294901760
    %7207 = vmatpush.msra.mxu0 %v7206
    %v7208 = vand.u32 %v81, 4294901760
    %v7209 = vsub.f32 %v81, %v7208
    %v7210 = vand.u32 %v7209, 4294901760
    %7211 = vmatpush.msra.mxu0 %v7210
    %v7212 = vand.u32 %v74, 4294901760
    %v7213 = vsub.f32 %v74, %v7212
    %v7214 = vand.u32 %v7213, 4294901760
    %7215 = vmatpush.msra.mxu0 %v7214
    %v7216 = vand.u32 %v67, 4294901760
    %v7217 = vsub.f32 %v67, %v7216
    %v7218 = vand.u32 %v7217, 4294901760
    %7219 = vmatpush.msra.mxu0 %v7218
    %v7220 = vand.u32 %v60, 4294901760
    %v7221 = vsub.f32 %v60, %v7220
    %v7222 = vand.u32 %v7221, 4294901760
    %7223 = vmatpush.msra.mxu0 %v7222
    %v7224 = vand.u32 %v53, 4294901760
    %v7225 = vsub.f32 %v53, %v7224
    %v7226 = vand.u32 %v7225, 4294901760
    %7227 = vmatpush.msra.mxu0 %v7226
    %v7228 = vand.u32 %v46, 4294901760
    %v7229 = vsub.f32 %v46, %v7228
    %v7230 = vand.u32 %v7229, 4294901760
    %7231 = vmatpush.msra.mxu0 %v7230
    %v7232 = vand.u32 %v39, 4294901760
    %v7233 = vsub.f32 %v39, %v7232
    %v7234 = vand.u32 %v7233, 4294901760
    %7235 = vmatpush.msra.mxu0 %v7234
    %v7236 = vand.u32 %v32, 4294901760
    %v7237 = vsub.f32 %v32, %v7236
    %v7238 = vand.u32 %v7237, 4294901760
    %7239 = vmatpush.msra.mxu0 %v7238
    %v7240 = vand.u32 %v25, 4294901760
    %v7241 = vsub.f32 %v25, %v7240
    %v7242 = vand.u32 %v7241, 4294901760
    %7243 = vmatpush.msra.mxu0 %v7242
    %v7244 = vand.u32 %v18, 4294901760
    %v7245 = vsub.f32 %v18, %v7244
    %v7246 = vand.u32 %v7245, 4294901760
    %7247 = vmatpush.msra.mxu0 %v7246
    %v7248 = vand.u32 %v15, 4294901760
    %7249 = vmatmul.f32.gmra.mxu0 %v7248
    %v7250 = vpop.f32.mrf.mxu0
    %v7251 = vadd.f32 %v7182, %v7250
    %7252 = vdwg.mxu0
    %v7253 = vand.u32 %v123, 4294901760
    %7254 = vmatpush.msra.mxu0 %v7253
    %v7255 = vand.u32 %v116, 4294901760
    %7256 = vmatpush.msra.mxu0 %v7255
    %v7257 = vand.u32 %v109, 4294901760
    %7258 = vmatpush.msra.mxu0 %v7257
    %v7259 = vand.u32 %v102, 4294901760
    %7260 = vmatpush.msra.mxu0 %v7259
    %v7261 = vand.u32 %v95, 4294901760
    %7262 = vmatpush.msra.mxu0 %v7261
    %v7263 = vand.u32 %v88, 4294901760
    %7264 = vmatpush.msra.mxu0 %v7263
    %v7265 = vand.u32 %v81, 4294901760
    %7266 = vmatpush.msra.mxu0 %v7265
    %v7267 = vand.u32 %v74, 4294901760
    %7268 = vmatpush.msra.mxu0 %v7267
    %v7269 = vand.u32 %v67, 4294901760
    %7270 = vmatpush.msra.mxu0 %v7269
    %v7271 = vand.u32 %v60, 4294901760
    %7272 = vmatpush.msra.mxu0 %v7271
    %v7273 = vand.u32 %v53, 4294901760
    %7274 = vmatpush.msra.mxu0 %v7273
    %v7275 = vand.u32 %v46, 4294901760
    %7276 = vmatpush.msra.mxu0 %v7275
    %v7277 = vand.u32 %v39, 4294901760
    %7278 = vmatpush.msra.mxu0 %v7277
    %v7279 = vand.u32 %v32, 4294901760
    %7280 = vmatpush.msra.mxu0 %v7279
    %v7281 = vand.u32 %v25, 4294901760
    %7282 = vmatpush.msra.mxu0 %v7281
    %v7283 = vand.u32 %v18, 4294901760
    %7284 = vmatpush.msra.mxu0 %v7283
    %v7285 = vand.u32 %v15, 4294901760
    %7286 = vmatmul.f32.gmra.mxu0 %v7285
    %v7287 = vpop.f32.mrf.mxu0
    %v7288 = vadd.f32 %v7251, %v7287
    %7289 = vdwg.mxu0
    %v7290 = vand.u32 %v235, 4294901760
    %7291 = vmatpush.msra.mxu0 %v7290
    %v7292 = vand.u32 %v228, 4294901760
    %7293 = vmatpush.msra.mxu0 %v7292
    %v7294 = vand.u32 %v221, 4294901760
    %7295 = vmatpush.msra.mxu0 %v7294
    %v7296 = vand.u32 %v214, 4294901760
    %7297 = vmatpush.msra.mxu0 %v7296
    %v7298 = vand.u32 %v207, 4294901760
    %7299 = vmatpush.msra.mxu0 %v7298
    %v7300 = vand.u32 %v200, 4294901760
    %7301 = vmatpush.msra.mxu0 %v7300
    %v7302 = vand.u32 %v193, 4294901760
    %7303 = vmatpush.msra.mxu0 %v7302
    %v7304 = vand.u32 %v186, 4294901760
    %7305 = vmatpush.msra.mxu0 %v7304
    %v7306 = vand.u32 %v179, 4294901760
    %7307 = vmatpush.msra.mxu0 %v7306
    %v7308 = vand.u32 %v172, 4294901760
    %7309 = vmatpush.msra.mxu0 %v7308
    %v7310 = vand.u32 %v165, 4294901760
    %7311 = vmatpush.msra.mxu0 %v7310
    %v7312 = vand.u32 %v158, 4294901760
    %7313 = vmatpush.msra.mxu0 %v7312
    %v7314 = vand.u32 %v151, 4294901760
    %7315 = vmatpush.msra.mxu0 %v7314
    %v7316 = vand.u32 %v144, 4294901760
    %7317 = vmatpush.msra.mxu0 %v7316
    %v7318 = vand.u32 %v137, 4294901760
    %7319 = vmatpush.msra.mxu0 %v7318
    %v7320 = vand.u32 %v130, 4294901760
    %7321 = vmatpush.msra.mxu0 %v7320
    %v7322 = vand.u32 %v16, 4294901760
    %v7323 = vsub.f32 %v16, %v7322
    %v7324 = vand.u32 %v7323, 4294901760
    %v7325 = vsub.f32 %v7323, %v7324
    %v7326 = vand.u32 %v7325, 4294901760
    %7327 = vmatmul.f32.gmra.mxu0 %v7326
    %v7328 = vpop.f32.mrf.mxu0
    %v7329 = vadd.f32 %v7288, %v7328
    %7330 = vdwg.mxu0
    %v7331 = vand.u32 %v235, 4294901760
    %v7332 = vsub.f32 %v235, %v7331
    %v7333 = vand.u32 %v7332, 4294901760
    %v7334 = vsub.f32 %v7332, %v7333
    %v7335 = vand.u32 %v7334, 4294901760
    %7336 = vmatpush.msra.mxu0 %v7335
    %v7337 = vand.u32 %v228, 4294901760
    %v7338 = vsub.f32 %v228, %v7337
    %v7339 = vand.u32 %v7338, 4294901760
    %v7340 = vsub.f32 %v7338, %v7339
    %v7341 = vand.u32 %v7340, 4294901760
    %7342 = vmatpush.msra.mxu0 %v7341
    %v7343 = vand.u32 %v221, 4294901760
    %v7344 = vsub.f32 %v221, %v7343
    %v7345 = vand.u32 %v7344, 4294901760
    %v7346 = vsub.f32 %v7344, %v7345
    %v7347 = vand.u32 %v7346, 4294901760
    %7348 = vmatpush.msra.mxu0 %v7347
    %v7349 = vand.u32 %v214, 4294901760
    %v7350 = vsub.f32 %v214, %v7349
    %v7351 = vand.u32 %v7350, 4294901760
    %v7352 = vsub.f32 %v7350, %v7351
    %v7353 = vand.u32 %v7352, 4294901760
    %7354 = vmatpush.msra.mxu0 %v7353
    %v7355 = vand.u32 %v207, 4294901760
    %v7356 = vsub.f32 %v207, %v7355
    %v7357 = vand.u32 %v7356, 4294901760
    %v7358 = vsub.f32 %v7356, %v7357
    %v7359 = vand.u32 %v7358, 4294901760
    %7360 = vmatpush.msra.mxu0 %v7359
    %v7361 = vand.u32 %v200, 4294901760
    %v7362 = vsub.f32 %v200, %v7361
    %v7363 = vand.u32 %v7362, 4294901760
    %v7364 = vsub.f32 %v7362, %v7363
    %v7365 = vand.u32 %v7364, 4294901760
    %7366 = vmatpush.msra.mxu0 %v7365
    %v7367 = vand.u32 %v193, 4294901760
    %v7368 = vsub.f32 %v193, %v7367
    %v7369 = vand.u32 %v7368, 4294901760
    %v7370 = vsub.f32 %v7368, %v7369
    %v7371 = vand.u32 %v7370, 4294901760
    %7372 = vmatpush.msra.mxu0 %v7371
    %v7373 = vand.u32 %v186, 4294901760
    %v7374 = vsub.f32 %v186, %v7373
    %v7375 = vand.u32 %v7374, 4294901760
    %v7376 = vsub.f32 %v7374, %v7375
    %v7377 = vand.u32 %v7376, 4294901760
    %7378 = vmatpush.msra.mxu0 %v7377
    %v7379 = vand.u32 %v179, 4294901760
    %v7380 = vsub.f32 %v179, %v7379
    %v7381 = vand.u32 %v7380, 4294901760
    %v7382 = vsub.f32 %v7380, %v7381
    %v7383 = vand.u32 %v7382, 4294901760
    %7384 = vmatpush.msra.mxu0 %v7383
    %v7385 = vand.u32 %v172, 4294901760
    %v7386 = vsub.f32 %v172, %v7385
    %v7387 = vand.u32 %v7386, 4294901760
    %v7388 = vsub.f32 %v7386, %v7387
    %v7389 = vand.u32 %v7388, 4294901760
    %7390 = vmatpush.msra.mxu0 %v7389
    %v7391 = vand.u32 %v165, 4294901760
    %v7392 = vsub.f32 %v165, %v7391
    %v7393 = vand.u32 %v7392, 4294901760
    %v7394 = vsub.f32 %v7392, %v7393
    %v7395 = vand.u32 %v7394, 4294901760
    %7396 = vmatpush.msra.mxu0 %v7395
    %v7397 = vand.u32 %v158, 4294901760
    %v7398 = vsub.f32 %v158, %v7397
    %v7399 = vand.u32 %v7398, 4294901760
    %v7400 = vsub.f32 %v7398, %v7399
    %v7401 = vand.u32 %v7400, 4294901760
    %7402 = vmatpush.msra.mxu0 %v7401
    %v7403 = vand.u32 %v151, 4294901760
    %v7404 = vsub.f32 %v151, %v7403
    %v7405 = vand.u32 %v7404, 4294901760
    %v7406 = vsub.f32 %v7404, %v7405
    %v7407 = vand.u32 %v7406, 4294901760
    %7408 = vmatpush.msra.mxu0 %v7407
    %v7409 = vand.u32 %v144, 4294901760
    %v7410 = vsub.f32 %v144, %v7409
    %v7411 = vand.u32 %v7410, 4294901760
    %v7412 = vsub.f32 %v7410, %v7411
    %v7413 = vand.u32 %v7412, 4294901760
    %7414 = vmatpush.msra.mxu0 %v7413
    %v7415 = vand.u32 %v137, 4294901760
    %v7416 = vsub.f32 %v137, %v7415
    %v7417 = vand.u32 %v7416, 4294901760
    %v7418 = vsub.f32 %v7416, %v7417
    %v7419 = vand.u32 %v7418, 4294901760
    %7420 = vmatpush.msra.mxu0 %v7419
    %v7421 = vand.u32 %v130, 4294901760
    %v7422 = vsub.f32 %v130, %v7421
    %v7423 = vand.u32 %v7422, 4294901760
    %v7424 = vsub.f32 %v7422, %v7423
    %v7425 = vand.u32 %v7424, 4294901760
    %7426 = vmatpush.msra.mxu0 %v7425
    %v7427 = vand.u32 %v16, 4294901760
    %7428 = vmatmul.f32.gmra.mxu0 %v7427
    %v7429 = vpop.f32.mrf.mxu0
    %v7430 = vadd.f32 %v7329, %v7429
    %7431 = vdwg.mxu0
    %v7432 = vand.u32 %v235, 4294901760
    %v7433 = vsub.f32 %v235, %v7432
    %7434 = vmatpush.msra.mxu0 %v7433
    %v7435 = vand.u32 %v228, 4294901760
    %v7436 = vsub.f32 %v228, %v7435
    %7437 = vmatpush.msra.mxu0 %v7436
    %v7438 = vand.u32 %v221, 4294901760
    %v7439 = vsub.f32 %v221, %v7438
    %7440 = vmatpush.msra.mxu0 %v7439
    %v7441 = vand.u32 %v214, 4294901760
    %v7442 = vsub.f32 %v214, %v7441
    %7443 = vmatpush.msra.mxu0 %v7442
    %v7444 = vand.u32 %v207, 4294901760
    %v7445 = vsub.f32 %v207, %v7444
    %7446 = vmatpush.msra.mxu0 %v7445
    %v7447 = vand.u32 %v200, 4294901760
    %v7448 = vsub.f32 %v200, %v7447
    %7449 = vmatpush.msra.mxu0 %v7448
    %v7450 = vand.u32 %v193, 4294901760
    %v7451 = vsub.f32 %v193, %v7450
    %7452 = vmatpush.msra.mxu0 %v7451
    %v7453 = vand.u32 %v186, 4294901760
    %v7454 = vsub.f32 %v186, %v7453
    %7455 = vmatpush.msra.mxu0 %v7454
    %v7456 = vand.u32 %v179, 4294901760
    %v7457 = vsub.f32 %v179, %v7456
    %7458 = vmatpush.msra.mxu0 %v7457
    %v7459 = vand.u32 %v172, 4294901760
    %v7460 = vsub.f32 %v172, %v7459
    %7461 = vmatpush.msra.mxu0 %v7460
    %v7462 = vand.u32 %v165, 4294901760
    %v7463 = vsub.f32 %v165, %v7462
    %7464 = vmatpush.msra.mxu0 %v7463
    %v7465 = vand.u32 %v158, 4294901760
    %v7466 = vsub.f32 %v158, %v7465
    %7467 = vmatpush.msra.mxu0 %v7466
    %v7468 = vand.u32 %v151, 4294901760
    %v7469 = vsub.f32 %v151, %v7468
    %7470 = vmatpush.msra.mxu0 %v7469
    %v7471 = vand.u32 %v144, 4294901760
    %v7472 = vsub.f32 %v144, %v7471
    %7473 = vmatpush.msra.mxu0 %v7472
    %v7474 = vand.u32 %v137, 4294901760
    %v7475 = vsub.f32 %v137, %v7474
    %7476 = vmatpush.msra.mxu0 %v7475
    %v7477 = vand.u32 %v130, 4294901760
    %v7478 = vsub.f32 %v130, %v7477
    %7479 = vmatpush.msra.mxu0 %v7478
    %v7480 = vand.u32 %v16, 4294901760
    %v7481 = vsub.f32 %v16, %v7480
    %7482 = vmatmul.f32.gmra.mxu0 %v7481
    %v7483 = vpop.f32.mrf.mxu0
    %v7484 = vadd.f32 %v7430, %v7483
    %7485 = vdwg.mxu0
    %v7486 = vand.u32 %v235, 4294901760
    %7487 = vmatpush.msra.mxu0 %v7486
    %v7488 = vand.u32 %v228, 4294901760
    %7489 = vmatpush.msra.mxu0 %v7488
    %v7490 = vand.u32 %v221, 4294901760
    %7491 = vmatpush.msra.mxu0 %v7490
    %v7492 = vand.u32 %v214, 4294901760
    %7493 = vmatpush.msra.mxu0 %v7492
    %v7494 = vand.u32 %v207, 4294901760
    %7495 = vmatpush.msra.mxu0 %v7494
    %v7496 = vand.u32 %v200, 4294901760
    %7497 = vmatpush.msra.mxu0 %v7496
    %v7498 = vand.u32 %v193, 4294901760
    %7499 = vmatpush.msra.mxu0 %v7498
    %v7500 = vand.u32 %v186, 4294901760
    %7501 = vmatpush.msra.mxu0 %v7500
    %v7502 = vand.u32 %v179, 4294901760
    %7503 = vmatpush.msra.mxu0 %v7502
    %v7504 = vand.u32 %v172, 4294901760
    %7505 = vmatpush.msra.mxu0 %v7504
    %v7506 = vand.u32 %v165, 4294901760
    %7507 = vmatpush.msra.mxu0 %v7506
    %v7508 = vand.u32 %v158, 4294901760
    %7509 = vmatpush.msra.mxu0 %v7508
    %v7510 = vand.u32 %v151, 4294901760
    %7511 = vmatpush.msra.mxu0 %v7510
    %v7512 = vand.u32 %v144, 4294901760
    %7513 = vmatpush.msra.mxu0 %v7512
    %v7514 = vand.u32 %v137, 4294901760
    %7515 = vmatpush.msra.mxu0 %v7514
    %v7516 = vand.u32 %v130, 4294901760
    %7517 = vmatpush.msra.mxu0 %v7516
    %v7518 = vand.u32 %v16, 4294901760
    %v7519 = vsub.f32 %v16, %v7518
    %v7520 = vand.u32 %v7519, 4294901760
    %7521 = vmatmul.f32.gmra.mxu0 %v7520
    %v7522 = vpop.f32.mrf.mxu0
    %v7523 = vadd.f32 %v7484, %v7522
    %7524 = vdwg.mxu0
    %v7525 = vand.u32 %v235, 4294901760
    %v7526 = vsub.f32 %v235, %v7525
    %v7527 = vand.u32 %v7526, 4294901760
    %7528 = vmatpush.msra.mxu0 %v7527
    %v7529 = vand.u32 %v228, 4294901760
    %v7530 = vsub.f32 %v228, %v7529
    %v7531 = vand.u32 %v7530, 4294901760
    %7532 = vmatpush.msra.mxu0 %v7531
    %v7533 = vand.u32 %v221, 4294901760
    %v7534 = vsub.f32 %v221, %v7533
    %v7535 = vand.u32 %v7534, 4294901760
    %7536 = vmatpush.msra.mxu0 %v7535
    %v7537 = vand.u32 %v214, 4294901760
    %v7538 = vsub.f32 %v214, %v7537
    %v7539 = vand.u32 %v7538, 4294901760
    %7540 = vmatpush.msra.mxu0 %v7539
    %v7541 = vand.u32 %v207, 4294901760
    %v7542 = vsub.f32 %v207, %v7541
    %v7543 = vand.u32 %v7542, 4294901760
    %7544 = vmatpush.msra.mxu0 %v7543
    %v7545 = vand.u32 %v200, 4294901760
    %v7546 = vsub.f32 %v200, %v7545
    %v7547 = vand.u32 %v7546, 4294901760
    %7548 = vmatpush.msra.mxu0 %v7547
    %v7549 = vand.u32 %v193, 4294901760
    %v7550 = vsub.f32 %v193, %v7549
    %v7551 = vand.u32 %v7550, 4294901760
    %7552 = vmatpush.msra.mxu0 %v7551
    %v7553 = vand.u32 %v186, 4294901760
    %v7554 = vsub.f32 %v186, %v7553
    %v7555 = vand.u32 %v7554, 4294901760
    %7556 = vmatpush.msra.mxu0 %v7555
    %v7557 = vand.u32 %v179, 4294901760
    %v7558 = vsub.f32 %v179, %v7557
    %v7559 = vand.u32 %v7558, 4294901760
    %7560 = vmatpush.msra.mxu0 %v7559
    %v7561 = vand.u32 %v172, 4294901760
    %v7562 = vsub.f32 %v172, %v7561
    %v7563 = vand.u32 %v7562, 4294901760
    %7564 = vmatpush.msra.mxu0 %v7563
    %v7565 = vand.u32 %v165, 4294901760
    %v7566 = vsub.f32 %v165, %v7565
    %v7567 = vand.u32 %v7566, 4294901760
    %7568 = vmatpush.msra.mxu0 %v7567
    %v7569 = vand.u32 %v158, 4294901760
    %v7570 = vsub.f32 %v158, %v7569
    %v7571 = vand.u32 %v7570, 4294901760
    %7572 = vmatpush.msra.mxu0 %v7571
    %v7573 = vand.u32 %v151, 4294901760
    %v7574 = vsub.f32 %v151, %v7573
    %v7575 = vand.u32 %v7574, 4294901760
    %7576 = vmatpush.msra.mxu0 %v7575
    %v7577 = vand.u32 %v144, 4294901760
    %v7578 = vsub.f32 %v144, %v7577
    %v7579 = vand.u32 %v7578, 4294901760
    %7580 = vmatpush.msra.mxu0 %v7579
    %v7581 = vand.u32 %v137, 4294901760
    %v7582 = vsub.f32 %v137, %v7581
    %v7583 = vand.u32 %v7582, 4294901760
    %7584 = vmatpush.msra.mxu0 %v7583
    %v7585 = vand.u32 %v130, 4294901760
    %v7586 = vsub.f32 %v130, %v7585
    %v7587 = vand.u32 %v7586, 4294901760
    %7588 = vmatpush.msra.mxu0 %v7587
    %v7589 = vand.u32 %v16, 4294901760
    %7590 = vmatmul.f32.gmra.mxu0 %v7589
    %v7591 = vpop.f32.mrf.mxu0
    %v7592 = vadd.f32 %v7523, %v7591
    %7593 = vdwg.mxu0
    %v7594 = vand.u32 %v235, 4294901760
    %7595 = vmatpush.msra.mxu0 %v7594
    %v7596 = vand.u32 %v228, 4294901760
    %7597 = vmatpush.msra.mxu0 %v7596
    %v7598 = vand.u32 %v221, 4294901760
    %7599 = vmatpush.msra.mxu0 %v7598
    %v7600 = vand.u32 %v214, 4294901760
    %7601 = vmatpush.msra.mxu0 %v7600
    %v7602 = vand.u32 %v207, 4294901760
    %7603 = vmatpush.msra.mxu0 %v7602
    %v7604 = vand.u32 %v200, 4294901760
    %7605 = vmatpush.msra.mxu0 %v7604
    %v7606 = vand.u32 %v193, 4294901760
    %7607 = vmatpush.msra.mxu0 %v7606
    %v7608 = vand.u32 %v186, 4294901760
    %7609 = vmatpush.msra.mxu0 %v7608
    %v7610 = vand.u32 %v179, 4294901760
    %7611 = vmatpush.msra.mxu0 %v7610
    %v7612 = vand.u32 %v172, 4294901760
    %7613 = vmatpush.msra.mxu0 %v7612
    %v7614 = vand.u32 %v165, 4294901760
    %7615 = vmatpush.msra.mxu0 %v7614
    %v7616 = vand.u32 %v158, 4294901760
    %7617 = vmatpush.msra.mxu0 %v7616
    %v7618 = vand.u32 %v151, 4294901760
    %7619 = vmatpush.msra.mxu0 %v7618
    %v7620 = vand.u32 %v144, 4294901760
    %7621 = vmatpush.msra.mxu0 %v7620
    %v7622 = vand.u32 %v137, 4294901760
    %7623 = vmatpush.msra.mxu0 %v7622
    %v7624 = vand.u32 %v130, 4294901760
    %7625 = vmatpush.msra.mxu0 %v7624
    %v7626 = vand.u32 %v16, 4294901760
    %7627 = vmatmul.f32.gmra.mxu0 %v7626
    %v7628 = vpop.f32.mrf.mxu0
    %v7629 = vadd.f32 %v7592, %v7628
    %7630 = vdwg.mxu0
    %v7631 = vand.u32 %v124, 4294901760
    %7632 = vmatpush.msra.mxu0 %v7631
    %v7633 = vand.u32 %v117, 4294901760
    %7634 = vmatpush.msra.mxu0 %v7633
    %v7635 = vand.u32 %v110, 4294901760
    %7636 = vmatpush.msra.mxu0 %v7635
    %v7637 = vand.u32 %v103, 4294901760
    %7638 = vmatpush.msra.mxu0 %v7637
    %v7639 = vand.u32 %v96, 4294901760
    %7640 = vmatpush.msra.mxu0 %v7639
    %v7641 = vand.u32 %v89, 4294901760
    %7642 = vmatpush.msra.mxu0 %v7641
    %v7643 = vand.u32 %v82, 4294901760
    %7644 = vmatpush.msra.mxu0 %v7643
    %v7645 = vand.u32 %v75, 4294901760
    %7646 = vmatpush.msra.mxu0 %v7645
    %v7647 = vand.u32 %v68, 4294901760
    %7648 = vmatpush.msra.mxu0 %v7647
    %v7649 = vand.u32 %v61, 4294901760
    %7650 = vmatpush.msra.mxu0 %v7649
    %v7651 = vand.u32 %v54, 4294901760
    %7652 = vmatpush.msra.mxu0 %v7651
    %v7653 = vand.u32 %v47, 4294901760
    %7654 = vmatpush.msra.mxu0 %v7653
    %v7655 = vand.u32 %v40, 4294901760
    %7656 = vmatpush.msra.mxu0 %v7655
    %v7657 = vand.u32 %v33, 4294901760
    %7658 = vmatpush.msra.mxu0 %v7657
    %v7659 = vand.u32 %v26, 4294901760
    %7660 = vmatpush.msra.mxu0 %v7659
    %v7661 = vand.u32 %v19, 4294901760
    %7662 = vmatpush.msra.mxu0 %v7661
    %v7663 = vand.u32 %v15, 4294901760
    %v7664 = vsub.f32 %v15, %v7663
    %v7665 = vand.u32 %v7664, 4294901760
    %v7666 = vsub.f32 %v7664, %v7665
    %v7667 = vand.u32 %v7666, 4294901760
    %7668 = vmatmul.f32.gmra.mxu0 %v7667
    %v7669 = vpop.f32.mrf.mxu0
    %v7670 = vadd.f32 %v5681, %v7669
    %7671 = vdwg.mxu0
    %v7672 = vand.u32 %v124, 4294901760
    %v7673 = vsub.f32 %v124, %v7672
    %v7674 = vand.u32 %v7673, 4294901760
    %v7675 = vsub.f32 %v7673, %v7674
    %v7676 = vand.u32 %v7675, 4294901760
    %7677 = vmatpush.msra.mxu0 %v7676
    %v7678 = vand.u32 %v117, 4294901760
    %v7679 = vsub.f32 %v117, %v7678
    %v7680 = vand.u32 %v7679, 4294901760
    %v7681 = vsub.f32 %v7679, %v7680
    %v7682 = vand.u32 %v7681, 4294901760
    %7683 = vmatpush.msra.mxu0 %v7682
    %v7684 = vand.u32 %v110, 4294901760
    %v7685 = vsub.f32 %v110, %v7684
    %v7686 = vand.u32 %v7685, 4294901760
    %v7687 = vsub.f32 %v7685, %v7686
    %v7688 = vand.u32 %v7687, 4294901760
    %7689 = vmatpush.msra.mxu0 %v7688
    %v7690 = vand.u32 %v103, 4294901760
    %v7691 = vsub.f32 %v103, %v7690
    %v7692 = vand.u32 %v7691, 4294901760
    %v7693 = vsub.f32 %v7691, %v7692
    %v7694 = vand.u32 %v7693, 4294901760
    %7695 = vmatpush.msra.mxu0 %v7694
    %v7696 = vand.u32 %v96, 4294901760
    %v7697 = vsub.f32 %v96, %v7696
    %v7698 = vand.u32 %v7697, 4294901760
    %v7699 = vsub.f32 %v7697, %v7698
    %v7700 = vand.u32 %v7699, 4294901760
    %7701 = vmatpush.msra.mxu0 %v7700
    %v7702 = vand.u32 %v89, 4294901760
    %v7703 = vsub.f32 %v89, %v7702
    %v7704 = vand.u32 %v7703, 4294901760
    %v7705 = vsub.f32 %v7703, %v7704
    %v7706 = vand.u32 %v7705, 4294901760
    %7707 = vmatpush.msra.mxu0 %v7706
    %v7708 = vand.u32 %v82, 4294901760
    %v7709 = vsub.f32 %v82, %v7708
    %v7710 = vand.u32 %v7709, 4294901760
    %v7711 = vsub.f32 %v7709, %v7710
    %v7712 = vand.u32 %v7711, 4294901760
    %7713 = vmatpush.msra.mxu0 %v7712
    %v7714 = vand.u32 %v75, 4294901760
    %v7715 = vsub.f32 %v75, %v7714
    %v7716 = vand.u32 %v7715, 4294901760
    %v7717 = vsub.f32 %v7715, %v7716
    %v7718 = vand.u32 %v7717, 4294901760
    %7719 = vmatpush.msra.mxu0 %v7718
    %v7720 = vand.u32 %v68, 4294901760
    %v7721 = vsub.f32 %v68, %v7720
    %v7722 = vand.u32 %v7721, 4294901760
    %v7723 = vsub.f32 %v7721, %v7722
    %v7724 = vand.u32 %v7723, 4294901760
    %7725 = vmatpush.msra.mxu0 %v7724
    %v7726 = vand.u32 %v61, 4294901760
    %v7727 = vsub.f32 %v61, %v7726
    %v7728 = vand.u32 %v7727, 4294901760
    %v7729 = vsub.f32 %v7727, %v7728
    %v7730 = vand.u32 %v7729, 4294901760
    %7731 = vmatpush.msra.mxu0 %v7730
    %v7732 = vand.u32 %v54, 4294901760
    %v7733 = vsub.f32 %v54, %v7732
    %v7734 = vand.u32 %v7733, 4294901760
    %v7735 = vsub.f32 %v7733, %v7734
    %v7736 = vand.u32 %v7735, 4294901760
    %7737 = vmatpush.msra.mxu0 %v7736
    %v7738 = vand.u32 %v47, 4294901760
    %v7739 = vsub.f32 %v47, %v7738
    %v7740 = vand.u32 %v7739, 4294901760
    %v7741 = vsub.f32 %v7739, %v7740
    %v7742 = vand.u32 %v7741, 4294901760
    %7743 = vmatpush.msra.mxu0 %v7742
    %v7744 = vand.u32 %v40, 4294901760
    %v7745 = vsub.f32 %v40, %v7744
    %v7746 = vand.u32 %v7745, 4294901760
    %v7747 = vsub.f32 %v7745, %v7746
    %v7748 = vand.u32 %v7747, 4294901760
    %7749 = vmatpush.msra.mxu0 %v7748
    %v7750 = vand.u32 %v33, 4294901760
    %v7751 = vsub.f32 %v33, %v7750
    %v7752 = vand.u32 %v7751, 4294901760
    %v7753 = vsub.f32 %v7751, %v7752
    %v7754 = vand.u32 %v7753, 4294901760
    %7755 = vmatpush.msra.mxu0 %v7754
    %v7756 = vand.u32 %v26, 4294901760
    %v7757 = vsub.f32 %v26, %v7756
    %v7758 = vand.u32 %v7757, 4294901760
    %v7759 = vsub.f32 %v7757, %v7758
    %v7760 = vand.u32 %v7759, 4294901760
    %7761 = vmatpush.msra.mxu0 %v7760
    %v7762 = vand.u32 %v19, 4294901760
    %v7763 = vsub.f32 %v19, %v7762
    %v7764 = vand.u32 %v7763, 4294901760
    %v7765 = vsub.f32 %v7763, %v7764
    %v7766 = vand.u32 %v7765, 4294901760
    %7767 = vmatpush.msra.mxu0 %v7766
    %v7768 = vand.u32 %v15, 4294901760
    %7769 = vmatmul.f32.gmra.mxu0 %v7768
    %v7770 = vpop.f32.mrf.mxu0
    %v7771 = vadd.f32 %v7670, %v7770
    %7772 = vdwg.mxu0
    %v7773 = vand.u32 %v124, 4294901760
    %v7774 = vsub.f32 %v124, %v7773
    %7775 = vmatpush.msra.mxu0 %v7774
    %v7776 = vand.u32 %v117, 4294901760
    %v7777 = vsub.f32 %v117, %v7776
    %7778 = vmatpush.msra.mxu0 %v7777
    %v7779 = vand.u32 %v110, 4294901760
    %v7780 = vsub.f32 %v110, %v7779
    %7781 = vmatpush.msra.mxu0 %v7780
    %v7782 = vand.u32 %v103, 4294901760
    %v7783 = vsub.f32 %v103, %v7782
    %7784 = vmatpush.msra.mxu0 %v7783
    %v7785 = vand.u32 %v96, 4294901760
    %v7786 = vsub.f32 %v96, %v7785
    %7787 = vmatpush.msra.mxu0 %v7786
    %v7788 = vand.u32 %v89, 4294901760
    %v7789 = vsub.f32 %v89, %v7788
    %7790 = vmatpush.msra.mxu0 %v7789
    %v7791 = vand.u32 %v82, 4294901760
    %v7792 = vsub.f32 %v82, %v7791
    %7793 = vmatpush.msra.mxu0 %v7792
    %v7794 = vand.u32 %v75, 4294901760
    %v7795 = vsub.f32 %v75, %v7794
    %7796 = vmatpush.msra.mxu0 %v7795
    %v7797 = vand.u32 %v68, 4294901760
    %v7798 = vsub.f32 %v68, %v7797
    %7799 = vmatpush.msra.mxu0 %v7798
    %v7800 = vand.u32 %v61, 4294901760
    %v7801 = vsub.f32 %v61, %v7800
    %7802 = vmatpush.msra.mxu0 %v7801
    %v7803 = vand.u32 %v54, 4294901760
    %v7804 = vsub.f32 %v54, %v7803
    %7805 = vmatpush.msra.mxu0 %v7804
    %v7806 = vand.u32 %v47, 4294901760
    %v7807 = vsub.f32 %v47, %v7806
    %7808 = vmatpush.msra.mxu0 %v7807
    %v7809 = vand.u32 %v40, 4294901760
    %v7810 = vsub.f32 %v40, %v7809
    %7811 = vmatpush.msra.mxu0 %v7810
    %v7812 = vand.u32 %v33, 4294901760
    %v7813 = vsub.f32 %v33, %v7812
    %7814 = vmatpush.msra.mxu0 %v7813
    %v7815 = vand.u32 %v26, 4294901760
    %v7816 = vsub.f32 %v26, %v7815
    %7817 = vmatpush.msra.mxu0 %v7816
    %v7818 = vand.u32 %v19, 4294901760
    %v7819 = vsub.f32 %v19, %v7818
    %7820 = vmatpush.msra.mxu0 %v7819
    %v7821 = vand.u32 %v15, 4294901760
    %v7822 = vsub.f32 %v15, %v7821
    %7823 = vmatmul.f32.gmra.mxu0 %v7822
    %v7824 = vpop.f32.mrf.mxu0
    %v7825 = vadd.f32 %v7771, %v7824
    %7826 = vdwg.mxu0
    %v7827 = vand.u32 %v124, 4294901760
    %7828 = vmatpush.msra.mxu0 %v7827
    %v7829 = vand.u32 %v117, 4294901760
    %7830 = vmatpush.msra.mxu0 %v7829
    %v7831 = vand.u32 %v110, 4294901760
    %7832 = vmatpush.msra.mxu0 %v7831
    %v7833 = vand.u32 %v103, 4294901760
    %7834 = vmatpush.msra.mxu0 %v7833
    %v7835 = vand.u32 %v96, 4294901760
    %7836 = vmatpush.msra.mxu0 %v7835
    %v7837 = vand.u32 %v89, 4294901760
    %7838 = vmatpush.msra.mxu0 %v7837
    %v7839 = vand.u32 %v82, 4294901760
    %7840 = vmatpush.msra.mxu0 %v7839
    %v7841 = vand.u32 %v75, 4294901760
    %7842 = vmatpush.msra.mxu0 %v7841
    %v7843 = vand.u32 %v68, 4294901760
    %7844 = vmatpush.msra.mxu0 %v7843
    %v7845 = vand.u32 %v61, 4294901760
    %7846 = vmatpush.msra.mxu0 %v7845
    %v7847 = vand.u32 %v54, 4294901760
    %7848 = vmatpush.msra.mxu0 %v7847
    %v7849 = vand.u32 %v47, 4294901760
    %7850 = vmatpush.msra.mxu0 %v7849
    %v7851 = vand.u32 %v40, 4294901760
    %7852 = vmatpush.msra.mxu0 %v7851
    %v7853 = vand.u32 %v33, 4294901760
    %7854 = vmatpush.msra.mxu0 %v7853
    %v7855 = vand.u32 %v26, 4294901760
    %7856 = vmatpush.msra.mxu0 %v7855
    %v7857 = vand.u32 %v19, 4294901760
    %7858 = vmatpush.msra.mxu0 %v7857
    %v7859 = vand.u32 %v15, 4294901760
    %v7860 = vsub.f32 %v15, %v7859
    %v7861 = vand.u32 %v7860, 4294901760
    %7862 = vmatmul.f32.gmra.mxu0 %v7861
    %v7863 = vpop.f32.mrf.mxu0
    %v7864 = vadd.f32 %v7825, %v7863
    %7865 = vdwg.mxu0
    %v7866 = vand.u32 %v124, 4294901760
    %v7867 = vsub.f32 %v124, %v7866
    %v7868 = vand.u32 %v7867, 4294901760
    %7869 = vmatpush.msra.mxu0 %v7868
    %v7870 = vand.u32 %v117, 4294901760
    %v7871 = vsub.f32 %v117, %v7870
    %v7872 = vand.u32 %v7871, 4294901760
    %7873 = vmatpush.msra.mxu0 %v7872
    %v7874 = vand.u32 %v110, 4294901760
    %v7875 = vsub.f32 %v110, %v7874
    %v7876 = vand.u32 %v7875, 4294901760
    %7877 = vmatpush.msra.mxu0 %v7876
    %v7878 = vand.u32 %v103, 4294901760
    %v7879 = vsub.f32 %v103, %v7878
    %v7880 = vand.u32 %v7879, 4294901760
    %7881 = vmatpush.msra.mxu0 %v7880
    %v7882 = vand.u32 %v96, 4294901760
    %v7883 = vsub.f32 %v96, %v7882
    %v7884 = vand.u32 %v7883, 4294901760
    %7885 = vmatpush.msra.mxu0 %v7884
    %v7886 = vand.u32 %v89, 4294901760
    %v7887 = vsub.f32 %v89, %v7886
    %v7888 = vand.u32 %v7887, 4294901760
    %7889 = vmatpush.msra.mxu0 %v7888
    %v7890 = vand.u32 %v82, 4294901760
    %v7891 = vsub.f32 %v82, %v7890
    %v7892 = vand.u32 %v7891, 4294901760
    %7893 = vmatpush.msra.mxu0 %v7892
    %v7894 = vand.u32 %v75, 4294901760
    %v7895 = vsub.f32 %v75, %v7894
    %v7896 = vand.u32 %v7895, 4294901760
    %7897 = vmatpush.msra.mxu0 %v7896
    %v7898 = vand.u32 %v68, 4294901760
    %v7899 = vsub.f32 %v68, %v7898
    %v7900 = vand.u32 %v7899, 4294901760
    %7901 = vmatpush.msra.mxu0 %v7900
    %v7902 = vand.u32 %v61, 4294901760
    %v7903 = vsub.f32 %v61, %v7902
    %v7904 = vand.u32 %v7903, 4294901760
    %7905 = vmatpush.msra.mxu0 %v7904
    %v7906 = vand.u32 %v54, 4294901760
    %v7907 = vsub.f32 %v54, %v7906
    %v7908 = vand.u32 %v7907, 4294901760
    %7909 = vmatpush.msra.mxu0 %v7908
    %v7910 = vand.u32 %v47, 4294901760
    %v7911 = vsub.f32 %v47, %v7910
    %v7912 = vand.u32 %v7911, 4294901760
    %7913 = vmatpush.msra.mxu0 %v7912
    %v7914 = vand.u32 %v40, 4294901760
    %v7915 = vsub.f32 %v40, %v7914
    %v7916 = vand.u32 %v7915, 4294901760
    %7917 = vmatpush.msra.mxu0 %v7916
    %v7918 = vand.u32 %v33, 4294901760
    %v7919 = vsub.f32 %v33, %v7918
    %v7920 = vand.u32 %v7919, 4294901760
    %7921 = vmatpush.msra.mxu0 %v7920
    %v7922 = vand.u32 %v26, 4294901760
    %v7923 = vsub.f32 %v26, %v7922
    %v7924 = vand.u32 %v7923, 4294901760
    %7925 = vmatpush.msra.mxu0 %v7924
    %v7926 = vand.u32 %v19, 4294901760
    %v7927 = vsub.f32 %v19, %v7926
    %v7928 = vand.u32 %v7927, 4294901760
    %7929 = vmatpush.msra.mxu0 %v7928
    %v7930 = vand.u32 %v15, 4294901760
    %7931 = vmatmul.f32.gmra.mxu0 %v7930
    %v7932 = vpop.f32.mrf.mxu0
    %v7933 = vadd.f32 %v7864, %v7932
    %7934 = vdwg.mxu0
    %v7935 = vand.u32 %v124, 4294901760
    %7936 = vmatpush.msra.mxu0 %v7935
    %v7937 = vand.u32 %v117, 4294901760
    %7938 = vmatpush.msra.mxu0 %v7937
    %v7939 = vand.u32 %v110, 4294901760
    %7940 = vmatpush.msra.mxu0 %v7939
    %v7941 = vand.u32 %v103, 4294901760
    %7942 = vmatpush.msra.mxu0 %v7941
    %v7943 = vand.u32 %v96, 4294901760
    %7944 = vmatpush.msra.mxu0 %v7943
    %v7945 = vand.u32 %v89, 4294901760
    %7946 = vmatpush.msra.mxu0 %v7945
    %v7947 = vand.u32 %v82, 4294901760
    %7948 = vmatpush.msra.mxu0 %v7947
    %v7949 = vand.u32 %v75, 4294901760
    %7950 = vmatpush.msra.mxu0 %v7949
    %v7951 = vand.u32 %v68, 4294901760
    %7952 = vmatpush.msra.mxu0 %v7951
    %v7953 = vand.u32 %v61, 4294901760
    %7954 = vmatpush.msra.mxu0 %v7953
    %v7955 = vand.u32 %v54, 4294901760
    %7956 = vmatpush.msra.mxu0 %v7955
    %v7957 = vand.u32 %v47, 4294901760
    %7958 = vmatpush.msra.mxu0 %v7957
    %v7959 = vand.u32 %v40, 4294901760
    %7960 = vmatpush.msra.mxu0 %v7959
    %v7961 = vand.u32 %v33, 4294901760
    %7962 = vmatpush.msra.mxu0 %v7961
    %v7963 = vand.u32 %v26, 4294901760
    %7964 = vmatpush.msra.mxu0 %v7963
    %v7965 = vand.u32 %v19, 4294901760
    %7966 = vmatpush.msra.mxu0 %v7965
    %v7967 = vand.u32 %v15, 4294901760
    %7968 = vmatmul.f32.gmra.mxu0 %v7967
    %v7969 = vpop.f32.mrf.mxu0
    %v7970 = vadd.f32 %v7933, %v7969
    %7971 = vdwg.mxu0
    %v7972 = vand.u32 %v236, 4294901760
    %7973 = vmatpush.msra.mxu0 %v7972
    %v7974 = vand.u32 %v229, 4294901760
    %7975 = vmatpush.msra.mxu0 %v7974
    %v7976 = vand.u32 %v222, 4294901760
    %7977 = vmatpush.msra.mxu0 %v7976
    %v7978 = vand.u32 %v215, 4294901760
    %7979 = vmatpush.msra.mxu0 %v7978
    %v7980 = vand.u32 %v208, 4294901760
    %7981 = vmatpush.msra.mxu0 %v7980
    %v7982 = vand.u32 %v201, 4294901760
    %7983 = vmatpush.msra.mxu0 %v7982
    %v7984 = vand.u32 %v194, 4294901760
    %7985 = vmatpush.msra.mxu0 %v7984
    %v7986 = vand.u32 %v187, 4294901760
    %7987 = vmatpush.msra.mxu0 %v7986
    %v7988 = vand.u32 %v180, 4294901760
    %7989 = vmatpush.msra.mxu0 %v7988
    %v7990 = vand.u32 %v173, 4294901760
    %7991 = vmatpush.msra.mxu0 %v7990
    %v7992 = vand.u32 %v166, 4294901760
    %7993 = vmatpush.msra.mxu0 %v7992
    %v7994 = vand.u32 %v159, 4294901760
    %7995 = vmatpush.msra.mxu0 %v7994
    %v7996 = vand.u32 %v152, 4294901760
    %7997 = vmatpush.msra.mxu0 %v7996
    %v7998 = vand.u32 %v145, 4294901760
    %7999 = vmatpush.msra.mxu0 %v7998
    %v8000 = vand.u32 %v138, 4294901760
    %8001 = vmatpush.msra.mxu0 %v8000
    %v8002 = vand.u32 %v131, 4294901760
    %8003 = vmatpush.msra.mxu0 %v8002
    %v8004 = vand.u32 %v16, 4294901760
    %v8005 = vsub.f32 %v16, %v8004
    %v8006 = vand.u32 %v8005, 4294901760
    %v8007 = vsub.f32 %v8005, %v8006
    %v8008 = vand.u32 %v8007, 4294901760
    %8009 = vmatmul.f32.gmra.mxu0 %v8008
    %v8010 = vpop.f32.mrf.mxu0
    %v8011 = vadd.f32 %v7970, %v8010
    %8012 = vdwg.mxu0
    %v8013 = vand.u32 %v236, 4294901760
    %v8014 = vsub.f32 %v236, %v8013
    %v8015 = vand.u32 %v8014, 4294901760
    %v8016 = vsub.f32 %v8014, %v8015
    %v8017 = vand.u32 %v8016, 4294901760
    %8018 = vmatpush.msra.mxu0 %v8017
    %v8019 = vand.u32 %v229, 4294901760
    %v8020 = vsub.f32 %v229, %v8019
    %v8021 = vand.u32 %v8020, 4294901760
    %v8022 = vsub.f32 %v8020, %v8021
    %v8023 = vand.u32 %v8022, 4294901760
    %8024 = vmatpush.msra.mxu0 %v8023
    %v8025 = vand.u32 %v222, 4294901760
    %v8026 = vsub.f32 %v222, %v8025
    %v8027 = vand.u32 %v8026, 4294901760
    %v8028 = vsub.f32 %v8026, %v8027
    %v8029 = vand.u32 %v8028, 4294901760
    %8030 = vmatpush.msra.mxu0 %v8029
    %v8031 = vand.u32 %v215, 4294901760
    %v8032 = vsub.f32 %v215, %v8031
    %v8033 = vand.u32 %v8032, 4294901760
    %v8034 = vsub.f32 %v8032, %v8033
    %v8035 = vand.u32 %v8034, 4294901760
    %8036 = vmatpush.msra.mxu0 %v8035
    %v8037 = vand.u32 %v208, 4294901760
    %v8038 = vsub.f32 %v208, %v8037
    %v8039 = vand.u32 %v8038, 4294901760
    %v8040 = vsub.f32 %v8038, %v8039
    %v8041 = vand.u32 %v8040, 4294901760
    %8042 = vmatpush.msra.mxu0 %v8041
    %v8043 = vand.u32 %v201, 4294901760
    %v8044 = vsub.f32 %v201, %v8043
    %v8045 = vand.u32 %v8044, 4294901760
    %v8046 = vsub.f32 %v8044, %v8045
    %v8047 = vand.u32 %v8046, 4294901760
    %8048 = vmatpush.msra.mxu0 %v8047
    %v8049 = vand.u32 %v194, 4294901760
    %v8050 = vsub.f32 %v194, %v8049
    %v8051 = vand.u32 %v8050, 4294901760
    %v8052 = vsub.f32 %v8050, %v8051
    %v8053 = vand.u32 %v8052, 4294901760
    %8054 = vmatpush.msra.mxu0 %v8053
    %v8055 = vand.u32 %v187, 4294901760
    %v8056 = vsub.f32 %v187, %v8055
    %v8057 = vand.u32 %v8056, 4294901760
    %v8058 = vsub.f32 %v8056, %v8057
    %v8059 = vand.u32 %v8058, 4294901760
    %8060 = vmatpush.msra.mxu0 %v8059
    %v8061 = vand.u32 %v180, 4294901760
    %v8062 = vsub.f32 %v180, %v8061
    %v8063 = vand.u32 %v8062, 4294901760
    %v8064 = vsub.f32 %v8062, %v8063
    %v8065 = vand.u32 %v8064, 4294901760
    %8066 = vmatpush.msra.mxu0 %v8065
    %v8067 = vand.u32 %v173, 4294901760
    %v8068 = vsub.f32 %v173, %v8067
    %v8069 = vand.u32 %v8068, 4294901760
    %v8070 = vsub.f32 %v8068, %v8069
    %v8071 = vand.u32 %v8070, 4294901760
    %8072 = vmatpush.msra.mxu0 %v8071
    %v8073 = vand.u32 %v166, 4294901760
    %v8074 = vsub.f32 %v166, %v8073
    %v8075 = vand.u32 %v8074, 4294901760
    %v8076 = vsub.f32 %v8074, %v8075
    %v8077 = vand.u32 %v8076, 4294901760
    %8078 = vmatpush.msra.mxu0 %v8077
    %v8079 = vand.u32 %v159, 4294901760
    %v8080 = vsub.f32 %v159, %v8079
    %v8081 = vand.u32 %v8080, 4294901760
    %v8082 = vsub.f32 %v8080, %v8081
    %v8083 = vand.u32 %v8082, 4294901760
    %8084 = vmatpush.msra.mxu0 %v8083
    %v8085 = vand.u32 %v152, 4294901760
    %v8086 = vsub.f32 %v152, %v8085
    %v8087 = vand.u32 %v8086, 4294901760
    %v8088 = vsub.f32 %v8086, %v8087
    %v8089 = vand.u32 %v8088, 4294901760
    %8090 = vmatpush.msra.mxu0 %v8089
    %v8091 = vand.u32 %v145, 4294901760
    %v8092 = vsub.f32 %v145, %v8091
    %v8093 = vand.u32 %v8092, 4294901760
    %v8094 = vsub.f32 %v8092, %v8093
    %v8095 = vand.u32 %v8094, 4294901760
    %8096 = vmatpush.msra.mxu0 %v8095
    %v8097 = vand.u32 %v138, 4294901760
    %v8098 = vsub.f32 %v138, %v8097
    %v8099 = vand.u32 %v8098, 4294901760
    %v8100 = vsub.f32 %v8098, %v8099
    %v8101 = vand.u32 %v8100, 4294901760
    %8102 = vmatpush.msra.mxu0 %v8101
    %v8103 = vand.u32 %v131, 4294901760
    %v8104 = vsub.f32 %v131, %v8103
    %v8105 = vand.u32 %v8104, 4294901760
    %v8106 = vsub.f32 %v8104, %v8105
    %v8107 = vand.u32 %v8106, 4294901760
    %8108 = vmatpush.msra.mxu0 %v8107
    %v8109 = vand.u32 %v16, 4294901760
    %8110 = vmatmul.f32.gmra.mxu0 %v8109
    %v8111 = vpop.f32.mrf.mxu0
    %v8112 = vadd.f32 %v8011, %v8111
    %8113 = vdwg.mxu0
    %v8114 = vand.u32 %v236, 4294901760
    %v8115 = vsub.f32 %v236, %v8114
    %8116 = vmatpush.msra.mxu0 %v8115
    %v8117 = vand.u32 %v229, 4294901760
    %v8118 = vsub.f32 %v229, %v8117
    %8119 = vmatpush.msra.mxu0 %v8118
    %v8120 = vand.u32 %v222, 4294901760
    %v8121 = vsub.f32 %v222, %v8120
    %8122 = vmatpush.msra.mxu0 %v8121
    %v8123 = vand.u32 %v215, 4294901760
    %v8124 = vsub.f32 %v215, %v8123
    %8125 = vmatpush.msra.mxu0 %v8124
    %v8126 = vand.u32 %v208, 4294901760
    %v8127 = vsub.f32 %v208, %v8126
    %8128 = vmatpush.msra.mxu0 %v8127
    %v8129 = vand.u32 %v201, 4294901760
    %v8130 = vsub.f32 %v201, %v8129
    %8131 = vmatpush.msra.mxu0 %v8130
    %v8132 = vand.u32 %v194, 4294901760
    %v8133 = vsub.f32 %v194, %v8132
    %8134 = vmatpush.msra.mxu0 %v8133
    %v8135 = vand.u32 %v187, 4294901760
    %v8136 = vsub.f32 %v187, %v8135
    %8137 = vmatpush.msra.mxu0 %v8136
    %v8138 = vand.u32 %v180, 4294901760
    %v8139 = vsub.f32 %v180, %v8138
    %8140 = vmatpush.msra.mxu0 %v8139
    %v8141 = vand.u32 %v173, 4294901760
    %v8142 = vsub.f32 %v173, %v8141
    %8143 = vmatpush.msra.mxu0 %v8142
    %v8144 = vand.u32 %v166, 4294901760
    %v8145 = vsub.f32 %v166, %v8144
    %8146 = vmatpush.msra.mxu0 %v8145
    %v8147 = vand.u32 %v159, 4294901760
    %v8148 = vsub.f32 %v159, %v8147
    %8149 = vmatpush.msra.mxu0 %v8148
    %v8150 = vand.u32 %v152, 4294901760
    %v8151 = vsub.f32 %v152, %v8150
    %8152 = vmatpush.msra.mxu0 %v8151
    %v8153 = vand.u32 %v145, 4294901760
    %v8154 = vsub.f32 %v145, %v8153
    %8155 = vmatpush.msra.mxu0 %v8154
    %v8156 = vand.u32 %v138, 4294901760
    %v8157 = vsub.f32 %v138, %v8156
    %8158 = vmatpush.msra.mxu0 %v8157
    %v8159 = vand.u32 %v131, 4294901760
    %v8160 = vsub.f32 %v131, %v8159
    %8161 = vmatpush.msra.mxu0 %v8160
    %v8162 = vand.u32 %v16, 4294901760
    %v8163 = vsub.f32 %v16, %v8162
    %8164 = vmatmul.f32.gmra.mxu0 %v8163
    %v8165 = vpop.f32.mrf.mxu0
    %v8166 = vadd.f32 %v8112, %v8165
    %8167 = vdwg.mxu0
    %v8168 = vand.u32 %v236, 4294901760
    %8169 = vmatpush.msra.mxu0 %v8168
    %v8170 = vand.u32 %v229, 4294901760
    %8171 = vmatpush.msra.mxu0 %v8170
    %v8172 = vand.u32 %v222, 4294901760
    %8173 = vmatpush.msra.mxu0 %v8172
    %v8174 = vand.u32 %v215, 4294901760
    %8175 = vmatpush.msra.mxu0 %v8174
    %v8176 = vand.u32 %v208, 4294901760
    %8177 = vmatpush.msra.mxu0 %v8176
    %v8178 = vand.u32 %v201, 4294901760
    %8179 = vmatpush.msra.mxu0 %v8178
    %v8180 = vand.u32 %v194, 4294901760
    %8181 = vmatpush.msra.mxu0 %v8180
    %v8182 = vand.u32 %v187, 4294901760
    %8183 = vmatpush.msra.mxu0 %v8182
    %v8184 = vand.u32 %v180, 4294901760
    %8185 = vmatpush.msra.mxu0 %v8184
    %v8186 = vand.u32 %v173, 4294901760
    %8187 = vmatpush.msra.mxu0 %v8186
    %v8188 = vand.u32 %v166, 4294901760
    %8189 = vmatpush.msra.mxu0 %v8188
    %v8190 = vand.u32 %v159, 4294901760
    %8191 = vmatpush.msra.mxu0 %v8190
    %v8192 = vand.u32 %v152, 4294901760
    %8193 = vmatpush.msra.mxu0 %v8192
    %v8194 = vand.u32 %v145, 4294901760
    %8195 = vmatpush.msra.mxu0 %v8194
    %v8196 = vand.u32 %v138, 4294901760
    %8197 = vmatpush.msra.mxu0 %v8196
    %v8198 = vand.u32 %v131, 4294901760
    %8199 = vmatpush.msra.mxu0 %v8198
    %v8200 = vand.u32 %v16, 4294901760
    %v8201 = vsub.f32 %v16, %v8200
    %v8202 = vand.u32 %v8201, 4294901760
    %8203 = vmatmul.f32.gmra.mxu0 %v8202
    %v8204 = vpop.f32.mrf.mxu0
    %v8205 = vadd.f32 %v8166, %v8204
    %8206 = vdwg.mxu0
    %v8207 = vand.u32 %v236, 4294901760
    %v8208 = vsub.f32 %v236, %v8207
    %v8209 = vand.u32 %v8208, 4294901760
    %8210 = vmatpush.msra.mxu0 %v8209
    %v8211 = vand.u32 %v229, 4294901760
    %v8212 = vsub.f32 %v229, %v8211
    %v8213 = vand.u32 %v8212, 4294901760
    %8214 = vmatpush.msra.mxu0 %v8213
    %v8215 = vand.u32 %v222, 4294901760
    %v8216 = vsub.f32 %v222, %v8215
    %v8217 = vand.u32 %v8216, 4294901760
    %8218 = vmatpush.msra.mxu0 %v8217
    %v8219 = vand.u32 %v215, 4294901760
    %v8220 = vsub.f32 %v215, %v8219
    %v8221 = vand.u32 %v8220, 4294901760
    %8222 = vmatpush.msra.mxu0 %v8221
    %v8223 = vand.u32 %v208, 4294901760
    %v8224 = vsub.f32 %v208, %v8223
    %v8225 = vand.u32 %v8224, 4294901760
    %8226 = vmatpush.msra.mxu0 %v8225
    %v8227 = vand.u32 %v201, 4294901760
    %v8228 = vsub.f32 %v201, %v8227
    %v8229 = vand.u32 %v8228, 4294901760
    %8230 = vmatpush.msra.mxu0 %v8229
    %v8231 = vand.u32 %v194, 4294901760
    %v8232 = vsub.f32 %v194, %v8231
    %v8233 = vand.u32 %v8232, 4294901760
    %8234 = vmatpush.msra.mxu0 %v8233
    %v8235 = vand.u32 %v187, 4294901760
    %v8236 = vsub.f32 %v187, %v8235
    %v8237 = vand.u32 %v8236, 4294901760
    %8238 = vmatpush.msra.mxu0 %v8237
    %v8239 = vand.u32 %v180, 4294901760
    %v8240 = vsub.f32 %v180, %v8239
    %v8241 = vand.u32 %v8240, 4294901760
    %8242 = vmatpush.msra.mxu0 %v8241
    %v8243 = vand.u32 %v173, 4294901760
    %v8244 = vsub.f32 %v173, %v8243
    %v8245 = vand.u32 %v8244, 4294901760
    %8246 = vmatpush.msra.mxu0 %v8245
    %v8247 = vand.u32 %v166, 4294901760
    %v8248 = vsub.f32 %v166, %v8247
    %v8249 = vand.u32 %v8248, 4294901760
    %8250 = vmatpush.msra.mxu0 %v8249
    %v8251 = vand.u32 %v159, 4294901760
    %v8252 = vsub.f32 %v159, %v8251
    %v8253 = vand.u32 %v8252, 4294901760
    %8254 = vmatpush.msra.mxu0 %v8253
    %v8255 = vand.u32 %v152, 4294901760
    %v8256 = vsub.f32 %v152, %v8255
    %v8257 = vand.u32 %v8256, 4294901760
    %8258 = vmatpush.msra.mxu0 %v8257
    %v8259 = vand.u32 %v145, 4294901760
    %v8260 = vsub.f32 %v145, %v8259
    %v8261 = vand.u32 %v8260, 4294901760
    %8262 = vmatpush.msra.mxu0 %v8261
    %v8263 = vand.u32 %v138, 4294901760
    %v8264 = vsub.f32 %v138, %v8263
    %v8265 = vand.u32 %v8264, 4294901760
    %8266 = vmatpush.msra.mxu0 %v8265
    %v8267 = vand.u32 %v131, 4294901760
    %v8268 = vsub.f32 %v131, %v8267
    %v8269 = vand.u32 %v8268, 4294901760
    %8270 = vmatpush.msra.mxu0 %v8269
    %v8271 = vand.u32 %v16, 4294901760
    %8272 = vmatmul.f32.gmra.mxu0 %v8271
    %v8273 = vpop.f32.mrf.mxu0
    %v8274 = vadd.f32 %v8205, %v8273
    %8275 = vdwg.mxu0
    %v8276 = vand.u32 %v236, 4294901760
    %8277 = vmatpush.msra.mxu0 %v8276
    %v8278 = vand.u32 %v229, 4294901760
    %8279 = vmatpush.msra.mxu0 %v8278
    %v8280 = vand.u32 %v222, 4294901760
    %8281 = vmatpush.msra.mxu0 %v8280
    %v8282 = vand.u32 %v215, 4294901760
    %8283 = vmatpush.msra.mxu0 %v8282
    %v8284 = vand.u32 %v208, 4294901760
    %8285 = vmatpush.msra.mxu0 %v8284
    %v8286 = vand.u32 %v201, 4294901760
    %8287 = vmatpush.msra.mxu0 %v8286
    %v8288 = vand.u32 %v194, 4294901760
    %8289 = vmatpush.msra.mxu0 %v8288
    %v8290 = vand.u32 %v187, 4294901760
    %8291 = vmatpush.msra.mxu0 %v8290
    %v8292 = vand.u32 %v180, 4294901760
    %8293 = vmatpush.msra.mxu0 %v8292
    %v8294 = vand.u32 %v173, 4294901760
    %8295 = vmatpush.msra.mxu0 %v8294
    %v8296 = vand.u32 %v166, 4294901760
    %8297 = vmatpush.msra.mxu0 %v8296
    %v8298 = vand.u32 %v159, 4294901760
    %8299 = vmatpush.msra.mxu0 %v8298
    %v8300 = vand.u32 %v152, 4294901760
    %8301 = vmatpush.msra.mxu0 %v8300
    %v8302 = vand.u32 %v145, 4294901760
    %8303 = vmatpush.msra.mxu0 %v8302
    %v8304 = vand.u32 %v138, 4294901760
    %8305 = vmatpush.msra.mxu0 %v8304
    %v8306 = vand.u32 %v131, 4294901760
    %8307 = vmatpush.msra.mxu0 %v8306
    %v8308 = vand.u32 %v16, 4294901760
    %8309 = vmatmul.f32.gmra.mxu0 %v8308
    %v8310 = vpop.f32.mrf.mxu0
    %v8311 = vadd.f32 %v8274, %v8310
    %8312 = vdwg.mxu0
    %v8313 = vand.u32 %v125, 4294901760
    %8314 = vmatpush.msra.mxu0 %v8313
    %v8315 = vand.u32 %v118, 4294901760
    %8316 = vmatpush.msra.mxu0 %v8315
    %v8317 = vand.u32 %v111, 4294901760
    %8318 = vmatpush.msra.mxu0 %v8317
    %v8319 = vand.u32 %v104, 4294901760
    %8320 = vmatpush.msra.mxu0 %v8319
    %v8321 = vand.u32 %v97, 4294901760
    %8322 = vmatpush.msra.mxu0 %v8321
    %v8323 = vand.u32 %v90, 4294901760
    %8324 = vmatpush.msra.mxu0 %v8323
    %v8325 = vand.u32 %v83, 4294901760
    %8326 = vmatpush.msra.mxu0 %v8325
    %v8327 = vand.u32 %v76, 4294901760
    %8328 = vmatpush.msra.mxu0 %v8327
    %v8329 = vand.u32 %v69, 4294901760
    %8330 = vmatpush.msra.mxu0 %v8329
    %v8331 = vand.u32 %v62, 4294901760
    %8332 = vmatpush.msra.mxu0 %v8331
    %v8333 = vand.u32 %v55, 4294901760
    %8334 = vmatpush.msra.mxu0 %v8333
    %v8335 = vand.u32 %v48, 4294901760
    %8336 = vmatpush.msra.mxu0 %v8335
    %v8337 = vand.u32 %v41, 4294901760
    %8338 = vmatpush.msra.mxu0 %v8337
    %v8339 = vand.u32 %v34, 4294901760
    %8340 = vmatpush.msra.mxu0 %v8339
    %v8341 = vand.u32 %v27, 4294901760
    %8342 = vmatpush.msra.mxu0 %v8341
    %v8343 = vand.u32 %v20, 4294901760
    %8344 = vmatpush.msra.mxu0 %v8343
    %v8345 = vand.u32 %v15, 4294901760
    %v8346 = vsub.f32 %v15, %v8345
    %v8347 = vand.u32 %v8346, 4294901760
    %v8348 = vsub.f32 %v8346, %v8347
    %v8349 = vand.u32 %v8348, 4294901760
    %8350 = vmatmul.f32.gmra.mxu0 %v8349
    %v8351 = vpop.f32.mrf.mxu0
    %v8352 = vadd.f32 %v5827, %v8351
    %8353 = vdwg.mxu0
    %v8354 = vand.u32 %v125, 4294901760
    %v8355 = vsub.f32 %v125, %v8354
    %v8356 = vand.u32 %v8355, 4294901760
    %v8357 = vsub.f32 %v8355, %v8356
    %v8358 = vand.u32 %v8357, 4294901760
    %8359 = vmatpush.msra.mxu0 %v8358
    %v8360 = vand.u32 %v118, 4294901760
    %v8361 = vsub.f32 %v118, %v8360
    %v8362 = vand.u32 %v8361, 4294901760
    %v8363 = vsub.f32 %v8361, %v8362
    %v8364 = vand.u32 %v8363, 4294901760
    %8365 = vmatpush.msra.mxu0 %v8364
    %v8366 = vand.u32 %v111, 4294901760
    %v8367 = vsub.f32 %v111, %v8366
    %v8368 = vand.u32 %v8367, 4294901760
    %v8369 = vsub.f32 %v8367, %v8368
    %v8370 = vand.u32 %v8369, 4294901760
    %8371 = vmatpush.msra.mxu0 %v8370
    %v8372 = vand.u32 %v104, 4294901760
    %v8373 = vsub.f32 %v104, %v8372
    %v8374 = vand.u32 %v8373, 4294901760
    %v8375 = vsub.f32 %v8373, %v8374
    %v8376 = vand.u32 %v8375, 4294901760
    %8377 = vmatpush.msra.mxu0 %v8376
    %v8378 = vand.u32 %v97, 4294901760
    %v8379 = vsub.f32 %v97, %v8378
    %v8380 = vand.u32 %v8379, 4294901760
    %v8381 = vsub.f32 %v8379, %v8380
    %v8382 = vand.u32 %v8381, 4294901760
    %8383 = vmatpush.msra.mxu0 %v8382
    %v8384 = vand.u32 %v90, 4294901760
    %v8385 = vsub.f32 %v90, %v8384
    %v8386 = vand.u32 %v8385, 4294901760
    %v8387 = vsub.f32 %v8385, %v8386
    %v8388 = vand.u32 %v8387, 4294901760
    %8389 = vmatpush.msra.mxu0 %v8388
    %v8390 = vand.u32 %v83, 4294901760
    %v8391 = vsub.f32 %v83, %v8390
    %v8392 = vand.u32 %v8391, 4294901760
    %v8393 = vsub.f32 %v8391, %v8392
    %v8394 = vand.u32 %v8393, 4294901760
    %8395 = vmatpush.msra.mxu0 %v8394
    %v8396 = vand.u32 %v76, 4294901760
    %v8397 = vsub.f32 %v76, %v8396
    %v8398 = vand.u32 %v8397, 4294901760
    %v8399 = vsub.f32 %v8397, %v8398
    %v8400 = vand.u32 %v8399, 4294901760
    %8401 = vmatpush.msra.mxu0 %v8400
    %v8402 = vand.u32 %v69, 4294901760
    %v8403 = vsub.f32 %v69, %v8402
    %v8404 = vand.u32 %v8403, 4294901760
    %v8405 = vsub.f32 %v8403, %v8404
    %v8406 = vand.u32 %v8405, 4294901760
    %8407 = vmatpush.msra.mxu0 %v8406
    %v8408 = vand.u32 %v62, 4294901760
    %v8409 = vsub.f32 %v62, %v8408
    %v8410 = vand.u32 %v8409, 4294901760
    %v8411 = vsub.f32 %v8409, %v8410
    %v8412 = vand.u32 %v8411, 4294901760
    %8413 = vmatpush.msra.mxu0 %v8412
    %v8414 = vand.u32 %v55, 4294901760
    %v8415 = vsub.f32 %v55, %v8414
    %v8416 = vand.u32 %v8415, 4294901760
    %v8417 = vsub.f32 %v8415, %v8416
    %v8418 = vand.u32 %v8417, 4294901760
    %8419 = vmatpush.msra.mxu0 %v8418
    %v8420 = vand.u32 %v48, 4294901760
    %v8421 = vsub.f32 %v48, %v8420
    %v8422 = vand.u32 %v8421, 4294901760
    %v8423 = vsub.f32 %v8421, %v8422
    %v8424 = vand.u32 %v8423, 4294901760
    %8425 = vmatpush.msra.mxu0 %v8424
    %v8426 = vand.u32 %v41, 4294901760
    %v8427 = vsub.f32 %v41, %v8426
    %v8428 = vand.u32 %v8427, 4294901760
    %v8429 = vsub.f32 %v8427, %v8428
    %v8430 = vand.u32 %v8429, 4294901760
    %8431 = vmatpush.msra.mxu0 %v8430
    %v8432 = vand.u32 %v34, 4294901760
    %v8433 = vsub.f32 %v34, %v8432
    %v8434 = vand.u32 %v8433, 4294901760
    %v8435 = vsub.f32 %v8433, %v8434
    %v8436 = vand.u32 %v8435, 4294901760
    %8437 = vmatpush.msra.mxu0 %v8436
    %v8438 = vand.u32 %v27, 4294901760
    %v8439 = vsub.f32 %v27, %v8438
    %v8440 = vand.u32 %v8439, 4294901760
    %v8441 = vsub.f32 %v8439, %v8440
    %v8442 = vand.u32 %v8441, 4294901760
    %8443 = vmatpush.msra.mxu0 %v8442
    %v8444 = vand.u32 %v20, 4294901760
    %v8445 = vsub.f32 %v20, %v8444
    %v8446 = vand.u32 %v8445, 4294901760
    %v8447 = vsub.f32 %v8445, %v8446
    %v8448 = vand.u32 %v8447, 4294901760
    %8449 = vmatpush.msra.mxu0 %v8448
    %v8450 = vand.u32 %v15, 4294901760
    %8451 = vmatmul.f32.gmra.mxu0 %v8450
    %v8452 = vpop.f32.mrf.mxu0
    %v8453 = vadd.f32 %v8352, %v8452
    %8454 = vdwg.mxu0
    %v8455 = vand.u32 %v125, 4294901760
    %v8456 = vsub.f32 %v125, %v8455
    %8457 = vmatpush.msra.mxu0 %v8456
    %v8458 = vand.u32 %v118, 4294901760
    %v8459 = vsub.f32 %v118, %v8458
    %8460 = vmatpush.msra.mxu0 %v8459
    %v8461 = vand.u32 %v111, 4294901760
    %v8462 = vsub.f32 %v111, %v8461
    %8463 = vmatpush.msra.mxu0 %v8462
    %v8464 = vand.u32 %v104, 4294901760
    %v8465 = vsub.f32 %v104, %v8464
    %8466 = vmatpush.msra.mxu0 %v8465
    %v8467 = vand.u32 %v97, 4294901760
    %v8468 = vsub.f32 %v97, %v8467
    %8469 = vmatpush.msra.mxu0 %v8468
    %v8470 = vand.u32 %v90, 4294901760
    %v8471 = vsub.f32 %v90, %v8470
    %8472 = vmatpush.msra.mxu0 %v8471
    %v8473 = vand.u32 %v83, 4294901760
    %v8474 = vsub.f32 %v83, %v8473
    %8475 = vmatpush.msra.mxu0 %v8474
    %v8476 = vand.u32 %v76, 4294901760
    %v8477 = vsub.f32 %v76, %v8476
    %8478 = vmatpush.msra.mxu0 %v8477
    %v8479 = vand.u32 %v69, 4294901760
    %v8480 = vsub.f32 %v69, %v8479
    %8481 = vmatpush.msra.mxu0 %v8480
    %v8482 = vand.u32 %v62, 4294901760
    %v8483 = vsub.f32 %v62, %v8482
    %8484 = vmatpush.msra.mxu0 %v8483
    %v8485 = vand.u32 %v55, 4294901760
    %v8486 = vsub.f32 %v55, %v8485
    %8487 = vmatpush.msra.mxu0 %v8486
    %v8488 = vand.u32 %v48, 4294901760
    %v8489 = vsub.f32 %v48, %v8488
    %8490 = vmatpush.msra.mxu0 %v8489
    %v8491 = vand.u32 %v41, 4294901760
    %v8492 = vsub.f32 %v41, %v8491
    %8493 = vmatpush.msra.mxu0 %v8492
    %v8494 = vand.u32 %v34, 4294901760
    %v8495 = vsub.f32 %v34, %v8494
    %8496 = vmatpush.msra.mxu0 %v8495
    %v8497 = vand.u32 %v27, 4294901760
    %v8498 = vsub.f32 %v27, %v8497
    %8499 = vmatpush.msra.mxu0 %v8498
    %v8500 = vand.u32 %v20, 4294901760
    %v8501 = vsub.f32 %v20, %v8500
    %8502 = vmatpush.msra.mxu0 %v8501
    %v8503 = vand.u32 %v15, 4294901760
    %v8504 = vsub.f32 %v15, %v8503
    %8505 = vmatmul.f32.gmra.mxu0 %v8504
    %v8506 = vpop.f32.mrf.mxu0
    %v8507 = vadd.f32 %v8453, %v8506
    %8508 = vdwg.mxu0
    %v8509 = vand.u32 %v125, 4294901760
    %8510 = vmatpush.msra.mxu0 %v8509
    %v8511 = vand.u32 %v118, 4294901760
    %8512 = vmatpush.msra.mxu0 %v8511
    %v8513 = vand.u32 %v111, 4294901760
    %8514 = vmatpush.msra.mxu0 %v8513
    %v8515 = vand.u32 %v104, 4294901760
    %8516 = vmatpush.msra.mxu0 %v8515
    %v8517 = vand.u32 %v97, 4294901760
    %8518 = vmatpush.msra.mxu0 %v8517
    %v8519 = vand.u32 %v90, 4294901760
    %8520 = vmatpush.msra.mxu0 %v8519
    %v8521 = vand.u32 %v83, 4294901760
    %8522 = vmatpush.msra.mxu0 %v8521
    %v8523 = vand.u32 %v76, 4294901760
    %8524 = vmatpush.msra.mxu0 %v8523
    %v8525 = vand.u32 %v69, 4294901760
    %8526 = vmatpush.msra.mxu0 %v8525
    %v8527 = vand.u32 %v62, 4294901760
    %8528 = vmatpush.msra.mxu0 %v8527
    %v8529 = vand.u32 %v55, 4294901760
    %8530 = vmatpush.msra.mxu0 %v8529
    %v8531 = vand.u32 %v48, 4294901760
    %8532 = vmatpush.msra.mxu0 %v8531
    %v8533 = vand.u32 %v41, 4294901760
    %8534 = vmatpush.msra.mxu0 %v8533
    %v8535 = vand.u32 %v34, 4294901760
    %8536 = vmatpush.msra.mxu0 %v8535
    %v8537 = vand.u32 %v27, 4294901760
    %8538 = vmatpush.msra.mxu0 %v8537
    %v8539 = vand.u32 %v20, 4294901760
    %8540 = vmatpush.msra.mxu0 %v8539
    %v8541 = vand.u32 %v15, 4294901760
    %v8542 = vsub.f32 %v15, %v8541
    %v8543 = vand.u32 %v8542, 4294901760
    %8544 = vmatmul.f32.gmra.mxu0 %v8543
    %v8545 = vpop.f32.mrf.mxu0
    %v8546 = vadd.f32 %v8507, %v8545
    %8547 = vdwg.mxu0
    %v8548 = vand.u32 %v125, 4294901760
    %v8549 = vsub.f32 %v125, %v8548
    %v8550 = vand.u32 %v8549, 4294901760
    %8551 = vmatpush.msra.mxu0 %v8550
    %v8552 = vand.u32 %v118, 4294901760
    %v8553 = vsub.f32 %v118, %v8552
    %v8554 = vand.u32 %v8553, 4294901760
    %8555 = vmatpush.msra.mxu0 %v8554
    %v8556 = vand.u32 %v111, 4294901760
    %v8557 = vsub.f32 %v111, %v8556
    %v8558 = vand.u32 %v8557, 4294901760
    %8559 = vmatpush.msra.mxu0 %v8558
    %v8560 = vand.u32 %v104, 4294901760
    %v8561 = vsub.f32 %v104, %v8560
    %v8562 = vand.u32 %v8561, 4294901760
    %8563 = vmatpush.msra.mxu0 %v8562
    %v8564 = vand.u32 %v97, 4294901760
    %v8565 = vsub.f32 %v97, %v8564
    %v8566 = vand.u32 %v8565, 4294901760
    %8567 = vmatpush.msra.mxu0 %v8566
    %v8568 = vand.u32 %v90, 4294901760
    %v8569 = vsub.f32 %v90, %v8568
    %v8570 = vand.u32 %v8569, 4294901760
    %8571 = vmatpush.msra.mxu0 %v8570
    %v8572 = vand.u32 %v83, 4294901760
    %v8573 = vsub.f32 %v83, %v8572
    %v8574 = vand.u32 %v8573, 4294901760
    %8575 = vmatpush.msra.mxu0 %v8574
    %v8576 = vand.u32 %v76, 4294901760
    %v8577 = vsub.f32 %v76, %v8576
    %v8578 = vand.u32 %v8577, 4294901760
    %8579 = vmatpush.msra.mxu0 %v8578
    %v8580 = vand.u32 %v69, 4294901760
    %v8581 = vsub.f32 %v69, %v8580
    %v8582 = vand.u32 %v8581, 4294901760
    %8583 = vmatpush.msra.mxu0 %v8582
    %v8584 = vand.u32 %v62, 4294901760
    %v8585 = vsub.f32 %v62, %v8584
    %v8586 = vand.u32 %v8585, 4294901760
    %8587 = vmatpush.msra.mxu0 %v8586
    %v8588 = vand.u32 %v55, 4294901760
    %v8589 = vsub.f32 %v55, %v8588
    %v8590 = vand.u32 %v8589, 4294901760
    %8591 = vmatpush.msra.mxu0 %v8590
    %v8592 = vand.u32 %v48, 4294901760
    %v8593 = vsub.f32 %v48, %v8592
    %v8594 = vand.u32 %v8593, 4294901760
    %8595 = vmatpush.msra.mxu0 %v8594
    %v8596 = vand.u32 %v41, 4294901760
    %v8597 = vsub.f32 %v41, %v8596
    %v8598 = vand.u32 %v8597, 4294901760
    %8599 = vmatpush.msra.mxu0 %v8598
    %v8600 = vand.u32 %v34, 4294901760
    %v8601 = vsub.f32 %v34, %v8600
    %v8602 = vand.u32 %v8601, 4294901760
    %8603 = vmatpush.msra.mxu0 %v8602
    %v8604 = vand.u32 %v27, 4294901760
    %v8605 = vsub.f32 %v27, %v8604
    %v8606 = vand.u32 %v8605, 4294901760
    %8607 = vmatpush.msra.mxu0 %v8606
    %v8608 = vand.u32 %v20, 4294901760
    %v8609 = vsub.f32 %v20, %v8608
    %v8610 = vand.u32 %v8609, 4294901760
    %8611 = vmatpush.msra.mxu0 %v8610
    %v8612 = vand.u32 %v15, 4294901760
    %8613 = vmatmul.f32.gmra.mxu0 %v8612
    %v8614 = vpop.f32.mrf.mxu0
    %v8615 = vadd.f32 %v8546, %v8614
    %8616 = vdwg.mxu0
    %v8617 = vand.u32 %v125, 4294901760
    %8618 = vmatpush.msra.mxu0 %v8617
    %v8619 = vand.u32 %v118, 4294901760
    %8620 = vmatpush.msra.mxu0 %v8619
    %v8621 = vand.u32 %v111, 4294901760
    %8622 = vmatpush.msra.mxu0 %v8621
    %v8623 = vand.u32 %v104, 4294901760
    %8624 = vmatpush.msra.mxu0 %v8623
    %v8625 = vand.u32 %v97, 4294901760
    %8626 = vmatpush.msra.mxu0 %v8625
    %v8627 = vand.u32 %v90, 4294901760
    %8628 = vmatpush.msra.mxu0 %v8627
    %v8629 = vand.u32 %v83, 4294901760
    %8630 = vmatpush.msra.mxu0 %v8629
    %v8631 = vand.u32 %v76, 4294901760
    %8632 = vmatpush.msra.mxu0 %v8631
    %v8633 = vand.u32 %v69, 4294901760
    %8634 = vmatpush.msra.mxu0 %v8633
    %v8635 = vand.u32 %v62, 4294901760
    %8636 = vmatpush.msra.mxu0 %v8635
    %v8637 = vand.u32 %v55, 4294901760
    %8638 = vmatpush.msra.mxu0 %v8637
    %v8639 = vand.u32 %v48, 4294901760
    %8640 = vmatpush.msra.mxu0 %v8639
    %v8641 = vand.u32 %v41, 4294901760
    %8642 = vmatpush.msra.mxu0 %v8641
    %v8643 = vand.u32 %v34, 4294901760
    %8644 = vmatpush.msra.mxu0 %v8643
    %v8645 = vand.u32 %v27, 4294901760
    %8646 = vmatpush.msra.mxu0 %v8645
    %v8647 = vand.u32 %v20, 4294901760
    %8648 = vmatpush.msra.mxu0 %v8647
    %v8649 = vand.u32 %v15, 4294901760
    %8650 = vmatmul.f32.gmra.mxu0 %v8649
    %v8651 = vpop.f32.mrf.mxu0
    %v8652 = vadd.f32 %v8615, %v8651
    %8653 = vdwg.mxu0
    %v8654 = vand.u32 %v237, 4294901760
    %8655 = vmatpush.msra.mxu0 %v8654
    %v8656 = vand.u32 %v230, 4294901760
    %8657 = vmatpush.msra.mxu0 %v8656
    %v8658 = vand.u32 %v223, 4294901760
    %8659 = vmatpush.msra.mxu0 %v8658
    %v8660 = vand.u32 %v216, 4294901760
    %8661 = vmatpush.msra.mxu0 %v8660
    %v8662 = vand.u32 %v209, 4294901760
    %8663 = vmatpush.msra.mxu0 %v8662
    %v8664 = vand.u32 %v202, 4294901760
    %8665 = vmatpush.msra.mxu0 %v8664
    %v8666 = vand.u32 %v195, 4294901760
    %8667 = vmatpush.msra.mxu0 %v8666
    %v8668 = vand.u32 %v188, 4294901760
    %8669 = vmatpush.msra.mxu0 %v8668
    %v8670 = vand.u32 %v181, 4294901760
    %8671 = vmatpush.msra.mxu0 %v8670
    %v8672 = vand.u32 %v174, 4294901760
    %8673 = vmatpush.msra.mxu0 %v8672
    %v8674 = vand.u32 %v167, 4294901760
    %8675 = vmatpush.msra.mxu0 %v8674
    %v8676 = vand.u32 %v160, 4294901760
    %8677 = vmatpush.msra.mxu0 %v8676
    %v8678 = vand.u32 %v153, 4294901760
    %8679 = vmatpush.msra.mxu0 %v8678
    %v8680 = vand.u32 %v146, 4294901760
    %8681 = vmatpush.msra.mxu0 %v8680
    %v8682 = vand.u32 %v139, 4294901760
    %8683 = vmatpush.msra.mxu0 %v8682
    %v8684 = vand.u32 %v132, 4294901760
    %8685 = vmatpush.msra.mxu0 %v8684
    %v8686 = vand.u32 %v16, 4294901760
    %v8687 = vsub.f32 %v16, %v8686
    %v8688 = vand.u32 %v8687, 4294901760
    %v8689 = vsub.f32 %v8687, %v8688
    %v8690 = vand.u32 %v8689, 4294901760
    %8691 = vmatmul.f32.gmra.mxu0 %v8690
    %v8692 = vpop.f32.mrf.mxu0
    %v8693 = vadd.f32 %v8652, %v8692
    %8694 = vdwg.mxu0
    %v8695 = vand.u32 %v237, 4294901760
    %v8696 = vsub.f32 %v237, %v8695
    %v8697 = vand.u32 %v8696, 4294901760
    %v8698 = vsub.f32 %v8696, %v8697
    %v8699 = vand.u32 %v8698, 4294901760
    %8700 = vmatpush.msra.mxu0 %v8699
    %v8701 = vand.u32 %v230, 4294901760
    %v8702 = vsub.f32 %v230, %v8701
    %v8703 = vand.u32 %v8702, 4294901760
    %v8704 = vsub.f32 %v8702, %v8703
    %v8705 = vand.u32 %v8704, 4294901760
    %8706 = vmatpush.msra.mxu0 %v8705
    %v8707 = vand.u32 %v223, 4294901760
    %v8708 = vsub.f32 %v223, %v8707
    %v8709 = vand.u32 %v8708, 4294901760
    %v8710 = vsub.f32 %v8708, %v8709
    %v8711 = vand.u32 %v8710, 4294901760
    %8712 = vmatpush.msra.mxu0 %v8711
    %v8713 = vand.u32 %v216, 4294901760
    %v8714 = vsub.f32 %v216, %v8713
    %v8715 = vand.u32 %v8714, 4294901760
    %v8716 = vsub.f32 %v8714, %v8715
    %v8717 = vand.u32 %v8716, 4294901760
    %8718 = vmatpush.msra.mxu0 %v8717
    %v8719 = vand.u32 %v209, 4294901760
    %v8720 = vsub.f32 %v209, %v8719
    %v8721 = vand.u32 %v8720, 4294901760
    %v8722 = vsub.f32 %v8720, %v8721
    %v8723 = vand.u32 %v8722, 4294901760
    %8724 = vmatpush.msra.mxu0 %v8723
    %v8725 = vand.u32 %v202, 4294901760
    %v8726 = vsub.f32 %v202, %v8725
    %v8727 = vand.u32 %v8726, 4294901760
    %v8728 = vsub.f32 %v8726, %v8727
    %v8729 = vand.u32 %v8728, 4294901760
    %8730 = vmatpush.msra.mxu0 %v8729
    %v8731 = vand.u32 %v195, 4294901760
    %v8732 = vsub.f32 %v195, %v8731
    %v8733 = vand.u32 %v8732, 4294901760
    %v8734 = vsub.f32 %v8732, %v8733
    %v8735 = vand.u32 %v8734, 4294901760
    %8736 = vmatpush.msra.mxu0 %v8735
    %v8737 = vand.u32 %v188, 4294901760
    %v8738 = vsub.f32 %v188, %v8737
    %v8739 = vand.u32 %v8738, 4294901760
    %v8740 = vsub.f32 %v8738, %v8739
    %v8741 = vand.u32 %v8740, 4294901760
    %8742 = vmatpush.msra.mxu0 %v8741
    %v8743 = vand.u32 %v181, 4294901760
    %v8744 = vsub.f32 %v181, %v8743
    %v8745 = vand.u32 %v8744, 4294901760
    %v8746 = vsub.f32 %v8744, %v8745
    %v8747 = vand.u32 %v8746, 4294901760
    %8748 = vmatpush.msra.mxu0 %v8747
    %v8749 = vand.u32 %v174, 4294901760
    %v8750 = vsub.f32 %v174, %v8749
    %v8751 = vand.u32 %v8750, 4294901760
    %v8752 = vsub.f32 %v8750, %v8751
    %v8753 = vand.u32 %v8752, 4294901760
    %8754 = vmatpush.msra.mxu0 %v8753
    %v8755 = vand.u32 %v167, 4294901760
    %v8756 = vsub.f32 %v167, %v8755
    %v8757 = vand.u32 %v8756, 4294901760
    %v8758 = vsub.f32 %v8756, %v8757
    %v8759 = vand.u32 %v8758, 4294901760
    %8760 = vmatpush.msra.mxu0 %v8759
    %v8761 = vand.u32 %v160, 4294901760
    %v8762 = vsub.f32 %v160, %v8761
    %v8763 = vand.u32 %v8762, 4294901760
    %v8764 = vsub.f32 %v8762, %v8763
    %v8765 = vand.u32 %v8764, 4294901760
    %8766 = vmatpush.msra.mxu0 %v8765
    %v8767 = vand.u32 %v153, 4294901760
    %v8768 = vsub.f32 %v153, %v8767
    %v8769 = vand.u32 %v8768, 4294901760
    %v8770 = vsub.f32 %v8768, %v8769
    %v8771 = vand.u32 %v8770, 4294901760
    %8772 = vmatpush.msra.mxu0 %v8771
    %v8773 = vand.u32 %v146, 4294901760
    %v8774 = vsub.f32 %v146, %v8773
    %v8775 = vand.u32 %v8774, 4294901760
    %v8776 = vsub.f32 %v8774, %v8775
    %v8777 = vand.u32 %v8776, 4294901760
    %8778 = vmatpush.msra.mxu0 %v8777
    %v8779 = vand.u32 %v139, 4294901760
    %v8780 = vsub.f32 %v139, %v8779
    %v8781 = vand.u32 %v8780, 4294901760
    %v8782 = vsub.f32 %v8780, %v8781
    %v8783 = vand.u32 %v8782, 4294901760
    %8784 = vmatpush.msra.mxu0 %v8783
    %v8785 = vand.u32 %v132, 4294901760
    %v8786 = vsub.f32 %v132, %v8785
    %v8787 = vand.u32 %v8786, 4294901760
    %v8788 = vsub.f32 %v8786, %v8787
    %v8789 = vand.u32 %v8788, 4294901760
    %8790 = vmatpush.msra.mxu0 %v8789
    %v8791 = vand.u32 %v16, 4294901760
    %8792 = vmatmul.f32.gmra.mxu0 %v8791
    %v8793 = vpop.f32.mrf.mxu0
    %v8794 = vadd.f32 %v8693, %v8793
    %8795 = vdwg.mxu0
    %v8796 = vand.u32 %v237, 4294901760
    %v8797 = vsub.f32 %v237, %v8796
    %8798 = vmatpush.msra.mxu0 %v8797
    %v8799 = vand.u32 %v230, 4294901760
    %v8800 = vsub.f32 %v230, %v8799
    %8801 = vmatpush.msra.mxu0 %v8800
    %v8802 = vand.u32 %v223, 4294901760
    %v8803 = vsub.f32 %v223, %v8802
    %8804 = vmatpush.msra.mxu0 %v8803
    %v8805 = vand.u32 %v216, 4294901760
    %v8806 = vsub.f32 %v216, %v8805
    %8807 = vmatpush.msra.mxu0 %v8806
    %v8808 = vand.u32 %v209, 4294901760
    %v8809 = vsub.f32 %v209, %v8808
    %8810 = vmatpush.msra.mxu0 %v8809
    %v8811 = vand.u32 %v202, 4294901760
    %v8812 = vsub.f32 %v202, %v8811
    %8813 = vmatpush.msra.mxu0 %v8812
    %v8814 = vand.u32 %v195, 4294901760
    %v8815 = vsub.f32 %v195, %v8814
    %8816 = vmatpush.msra.mxu0 %v8815
    %v8817 = vand.u32 %v188, 4294901760
    %v8818 = vsub.f32 %v188, %v8817
    %8819 = vmatpush.msra.mxu0 %v8818
    %v8820 = vand.u32 %v181, 4294901760
    %v8821 = vsub.f32 %v181, %v8820
    %8822 = vmatpush.msra.mxu0 %v8821
    %v8823 = vand.u32 %v174, 4294901760
    %v8824 = vsub.f32 %v174, %v8823
    %8825 = vmatpush.msra.mxu0 %v8824
    %v8826 = vand.u32 %v167, 4294901760
    %v8827 = vsub.f32 %v167, %v8826
    %8828 = vmatpush.msra.mxu0 %v8827
    %v8829 = vand.u32 %v160, 4294901760
    %v8830 = vsub.f32 %v160, %v8829
    %8831 = vmatpush.msra.mxu0 %v8830
    %v8832 = vand.u32 %v153, 4294901760
    %v8833 = vsub.f32 %v153, %v8832
    %8834 = vmatpush.msra.mxu0 %v8833
    %v8835 = vand.u32 %v146, 4294901760
    %v8836 = vsub.f32 %v146, %v8835
    %8837 = vmatpush.msra.mxu0 %v8836
    %v8838 = vand.u32 %v139, 4294901760
    %v8839 = vsub.f32 %v139, %v8838
    %8840 = vmatpush.msra.mxu0 %v8839
    %v8841 = vand.u32 %v132, 4294901760
    %v8842 = vsub.f32 %v132, %v8841
    %8843 = vmatpush.msra.mxu0 %v8842
    %v8844 = vand.u32 %v16, 4294901760
    %v8845 = vsub.f32 %v16, %v8844
    %8846 = vmatmul.f32.gmra.mxu0 %v8845
    %v8847 = vpop.f32.mrf.mxu0
    %v8848 = vadd.f32 %v8794, %v8847
    %8849 = vdwg.mxu0
    %v8850 = vand.u32 %v237, 4294901760
    %8851 = vmatpush.msra.mxu0 %v8850
    %v8852 = vand.u32 %v230, 4294901760
    %8853 = vmatpush.msra.mxu0 %v8852
    %v8854 = vand.u32 %v223, 4294901760
    %8855 = vmatpush.msra.mxu0 %v8854
    %v8856 = vand.u32 %v216, 4294901760
    %8857 = vmatpush.msra.mxu0 %v8856
    %v8858 = vand.u32 %v209, 4294901760
    %8859 = vmatpush.msra.mxu0 %v8858
    %v8860 = vand.u32 %v202, 4294901760
    %8861 = vmatpush.msra.mxu0 %v8860
    %v8862 = vand.u32 %v195, 4294901760
    %8863 = vmatpush.msra.mxu0 %v8862
    %v8864 = vand.u32 %v188, 4294901760
    %8865 = vmatpush.msra.mxu0 %v8864
    %v8866 = vand.u32 %v181, 4294901760
    %8867 = vmatpush.msra.mxu0 %v8866
    %v8868 = vand.u32 %v174, 4294901760
    %8869 = vmatpush.msra.mxu0 %v8868
    %v8870 = vand.u32 %v167, 4294901760
    %8871 = vmatpush.msra.mxu0 %v8870
    %v8872 = vand.u32 %v160, 4294901760
    %8873 = vmatpush.msra.mxu0 %v8872
    %v8874 = vand.u32 %v153, 4294901760
    %8875 = vmatpush.msra.mxu0 %v8874
    %v8876 = vand.u32 %v146, 4294901760
    %8877 = vmatpush.msra.mxu0 %v8876
    %v8878 = vand.u32 %v139, 4294901760
    %8879 = vmatpush.msra.mxu0 %v8878
    %v8880 = vand.u32 %v132, 4294901760
    %8881 = vmatpush.msra.mxu0 %v8880
    %v8882 = vand.u32 %v16, 4294901760
    %v8883 = vsub.f32 %v16, %v8882
    %v8884 = vand.u32 %v8883, 4294901760
    %8885 = vmatmul.f32.gmra.mxu0 %v8884
    %v8886 = vpop.f32.mrf.mxu0
    %v8887 = vadd.f32 %v8848, %v8886
    %8888 = vdwg.mxu0
    %v8889 = vand.u32 %v237, 4294901760
    %v8890 = vsub.f32 %v237, %v8889
    %v8891 = vand.u32 %v8890, 4294901760
    %8892 = vmatpush.msra.mxu0 %v8891
    %v8893 = vand.u32 %v230, 4294901760
    %v8894 = vsub.f32 %v230, %v8893
    %v8895 = vand.u32 %v8894, 4294901760
    %8896 = vmatpush.msra.mxu0 %v8895
    %v8897 = vand.u32 %v223, 4294901760
    %v8898 = vsub.f32 %v223, %v8897
    %v8899 = vand.u32 %v8898, 4294901760
    %8900 = vmatpush.msra.mxu0 %v8899
    %v8901 = vand.u32 %v216, 4294901760
    %v8902 = vsub.f32 %v216, %v8901
    %v8903 = vand.u32 %v8902, 4294901760
    %8904 = vmatpush.msra.mxu0 %v8903
    %v8905 = vand.u32 %v209, 4294901760
    %v8906 = vsub.f32 %v209, %v8905
    %v8907 = vand.u32 %v8906, 4294901760
    %8908 = vmatpush.msra.mxu0 %v8907
    %v8909 = vand.u32 %v202, 4294901760
    %v8910 = vsub.f32 %v202, %v8909
    %v8911 = vand.u32 %v8910, 4294901760
    %8912 = vmatpush.msra.mxu0 %v8911
    %v8913 = vand.u32 %v195, 4294901760
    %v8914 = vsub.f32 %v195, %v8913
    %v8915 = vand.u32 %v8914, 4294901760
    %8916 = vmatpush.msra.mxu0 %v8915
    %v8917 = vand.u32 %v188, 4294901760
    %v8918 = vsub.f32 %v188, %v8917
    %v8919 = vand.u32 %v8918, 4294901760
    %8920 = vmatpush.msra.mxu0 %v8919
    %v8921 = vand.u32 %v181, 4294901760
    %v8922 = vsub.f32 %v181, %v8921
    %v8923 = vand.u32 %v8922, 4294901760
    %8924 = vmatpush.msra.mxu0 %v8923
    %v8925 = vand.u32 %v174, 4294901760
    %v8926 = vsub.f32 %v174, %v8925
    %v8927 = vand.u32 %v8926, 4294901760
    %8928 = vmatpush.msra.mxu0 %v8927
    %v8929 = vand.u32 %v167, 4294901760
    %v8930 = vsub.f32 %v167, %v8929
    %v8931 = vand.u32 %v8930, 4294901760
    %8932 = vmatpush.msra.mxu0 %v8931
    %v8933 = vand.u32 %v160, 4294901760
    %v8934 = vsub.f32 %v160, %v8933
    %v8935 = vand.u32 %v8934, 4294901760
    %8936 = vmatpush.msra.mxu0 %v8935
    %v8937 = vand.u32 %v153, 4294901760
    %v8938 = vsub.f32 %v153, %v8937
    %v8939 = vand.u32 %v8938, 4294901760
    %8940 = vmatpush.msra.mxu0 %v8939
    %v8941 = vand.u32 %v146, 4294901760
    %v8942 = vsub.f32 %v146, %v8941
    %v8943 = vand.u32 %v8942, 4294901760
    %8944 = vmatpush.msra.mxu0 %v8943
    %v8945 = vand.u32 %v139, 4294901760
    %v8946 = vsub.f32 %v139, %v8945
    %v8947 = vand.u32 %v8946, 4294901760
    %8948 = vmatpush.msra.mxu0 %v8947
    %v8949 = vand.u32 %v132, 4294901760
    %v8950 = vsub.f32 %v132, %v8949
    %v8951 = vand.u32 %v8950, 4294901760
    %8952 = vmatpush.msra.mxu0 %v8951
    %v8953 = vand.u32 %v16, 4294901760
    %8954 = vmatmul.f32.gmra.mxu0 %v8953
    %v8955 = vpop.f32.mrf.mxu0
    %v8956 = vadd.f32 %v8887, %v8955
    %8957 = vdwg.mxu0
    %v8958 = vand.u32 %v237, 4294901760
    %8959 = vmatpush.msra.mxu0 %v8958
    %v8960 = vand.u32 %v230, 4294901760
    %8961 = vmatpush.msra.mxu0 %v8960
    %v8962 = vand.u32 %v223, 4294901760
    %8963 = vmatpush.msra.mxu0 %v8962
    %v8964 = vand.u32 %v216, 4294901760
    %8965 = vmatpush.msra.mxu0 %v8964
    %v8966 = vand.u32 %v209, 4294901760
    %8967 = vmatpush.msra.mxu0 %v8966
    %v8968 = vand.u32 %v202, 4294901760
    %8969 = vmatpush.msra.mxu0 %v8968
    %v8970 = vand.u32 %v195, 4294901760
    %8971 = vmatpush.msra.mxu0 %v8970
    %v8972 = vand.u32 %v188, 4294901760
    %8973 = vmatpush.msra.mxu0 %v8972
    %v8974 = vand.u32 %v181, 4294901760
    %8975 = vmatpush.msra.mxu0 %v8974
    %v8976 = vand.u32 %v174, 4294901760
    %8977 = vmatpush.msra.mxu0 %v8976
    %v8978 = vand.u32 %v167, 4294901760
    %8979 = vmatpush.msra.mxu0 %v8978
    %v8980 = vand.u32 %v160, 4294901760
    %8981 = vmatpush.msra.mxu0 %v8980
    %v8982 = vand.u32 %v153, 4294901760
    %8983 = vmatpush.msra.mxu0 %v8982
    %v8984 = vand.u32 %v146, 4294901760
    %8985 = vmatpush.msra.mxu0 %v8984
    %v8986 = vand.u32 %v139, 4294901760
    %8987 = vmatpush.msra.mxu0 %v8986
    %v8988 = vand.u32 %v132, 4294901760
    %8989 = vmatpush.msra.mxu0 %v8988
    %v8990 = vand.u32 %v16, 4294901760
    %8991 = vmatmul.f32.gmra.mxu0 %v8990
    %v8992 = vpop.f32.mrf.mxu0
    %v8993 = vadd.f32 %v8956, %v8992
    %8994 = vdwg.mxu0
    %v8995 = vand.u32 %v126, 4294901760
    %8996 = vmatpush.msra.mxu0 %v8995
    %v8997 = vand.u32 %v119, 4294901760
    %8998 = vmatpush.msra.mxu0 %v8997
    %v8999 = vand.u32 %v112, 4294901760
    %9000 = vmatpush.msra.mxu0 %v8999
    %v9001 = vand.u32 %v105, 4294901760
    %9002 = vmatpush.msra.mxu0 %v9001
    %v9003 = vand.u32 %v98, 4294901760
    %9004 = vmatpush.msra.mxu0 %v9003
    %v9005 = vand.u32 %v91, 4294901760
    %9006 = vmatpush.msra.mxu0 %v9005
    %v9007 = vand.u32 %v84, 4294901760
    %9008 = vmatpush.msra.mxu0 %v9007
    %v9009 = vand.u32 %v77, 4294901760
    %9010 = vmatpush.msra.mxu0 %v9009
    %v9011 = vand.u32 %v70, 4294901760
    %9012 = vmatpush.msra.mxu0 %v9011
    %v9013 = vand.u32 %v63, 4294901760
    %9014 = vmatpush.msra.mxu0 %v9013
    %v9015 = vand.u32 %v56, 4294901760
    %9016 = vmatpush.msra.mxu0 %v9015
    %v9017 = vand.u32 %v49, 4294901760
    %9018 = vmatpush.msra.mxu0 %v9017
    %v9019 = vand.u32 %v42, 4294901760
    %9020 = vmatpush.msra.mxu0 %v9019
    %v9021 = vand.u32 %v35, 4294901760
    %9022 = vmatpush.msra.mxu0 %v9021
    %v9023 = vand.u32 %v28, 4294901760
    %9024 = vmatpush.msra.mxu0 %v9023
    %v9025 = vand.u32 %v21, 4294901760
    %9026 = vmatpush.msra.mxu0 %v9025
    %v9027 = vand.u32 %v15, 4294901760
    %v9028 = vsub.f32 %v15, %v9027
    %v9029 = vand.u32 %v9028, 4294901760
    %v9030 = vsub.f32 %v9028, %v9029
    %v9031 = vand.u32 %v9030, 4294901760
    %9032 = vmatmul.f32.gmra.mxu0 %v9031
    %v9033 = vpop.f32.mrf.mxu0
    %v9034 = vadd.f32 %v5973, %v9033
    %9035 = vdwg.mxu0
    %v9036 = vand.u32 %v126, 4294901760
    %v9037 = vsub.f32 %v126, %v9036
    %v9038 = vand.u32 %v9037, 4294901760
    %v9039 = vsub.f32 %v9037, %v9038
    %v9040 = vand.u32 %v9039, 4294901760
    %9041 = vmatpush.msra.mxu0 %v9040
    %v9042 = vand.u32 %v119, 4294901760
    %v9043 = vsub.f32 %v119, %v9042
    %v9044 = vand.u32 %v9043, 4294901760
    %v9045 = vsub.f32 %v9043, %v9044
    %v9046 = vand.u32 %v9045, 4294901760
    %9047 = vmatpush.msra.mxu0 %v9046
    %v9048 = vand.u32 %v112, 4294901760
    %v9049 = vsub.f32 %v112, %v9048
    %v9050 = vand.u32 %v9049, 4294901760
    %v9051 = vsub.f32 %v9049, %v9050
    %v9052 = vand.u32 %v9051, 4294901760
    %9053 = vmatpush.msra.mxu0 %v9052
    %v9054 = vand.u32 %v105, 4294901760
    %v9055 = vsub.f32 %v105, %v9054
    %v9056 = vand.u32 %v9055, 4294901760
    %v9057 = vsub.f32 %v9055, %v9056
    %v9058 = vand.u32 %v9057, 4294901760
    %9059 = vmatpush.msra.mxu0 %v9058
    %v9060 = vand.u32 %v98, 4294901760
    %v9061 = vsub.f32 %v98, %v9060
    %v9062 = vand.u32 %v9061, 4294901760
    %v9063 = vsub.f32 %v9061, %v9062
    %v9064 = vand.u32 %v9063, 4294901760
    %9065 = vmatpush.msra.mxu0 %v9064
    %v9066 = vand.u32 %v91, 4294901760
    %v9067 = vsub.f32 %v91, %v9066
    %v9068 = vand.u32 %v9067, 4294901760
    %v9069 = vsub.f32 %v9067, %v9068
    %v9070 = vand.u32 %v9069, 4294901760
    %9071 = vmatpush.msra.mxu0 %v9070
    %v9072 = vand.u32 %v84, 4294901760
    %v9073 = vsub.f32 %v84, %v9072
    %v9074 = vand.u32 %v9073, 4294901760
    %v9075 = vsub.f32 %v9073, %v9074
    %v9076 = vand.u32 %v9075, 4294901760
    %9077 = vmatpush.msra.mxu0 %v9076
    %v9078 = vand.u32 %v77, 4294901760
    %v9079 = vsub.f32 %v77, %v9078
    %v9080 = vand.u32 %v9079, 4294901760
    %v9081 = vsub.f32 %v9079, %v9080
    %v9082 = vand.u32 %v9081, 4294901760
    %9083 = vmatpush.msra.mxu0 %v9082
    %v9084 = vand.u32 %v70, 4294901760
    %v9085 = vsub.f32 %v70, %v9084
    %v9086 = vand.u32 %v9085, 4294901760
    %v9087 = vsub.f32 %v9085, %v9086
    %v9088 = vand.u32 %v9087, 4294901760
    %9089 = vmatpush.msra.mxu0 %v9088
    %v9090 = vand.u32 %v63, 4294901760
    %v9091 = vsub.f32 %v63, %v9090
    %v9092 = vand.u32 %v9091, 4294901760
    %v9093 = vsub.f32 %v9091, %v9092
    %v9094 = vand.u32 %v9093, 4294901760
    %9095 = vmatpush.msra.mxu0 %v9094
    %v9096 = vand.u32 %v56, 4294901760
    %v9097 = vsub.f32 %v56, %v9096
    %v9098 = vand.u32 %v9097, 4294901760
    %v9099 = vsub.f32 %v9097, %v9098
    %v9100 = vand.u32 %v9099, 4294901760
    %9101 = vmatpush.msra.mxu0 %v9100
    %v9102 = vand.u32 %v49, 4294901760
    %v9103 = vsub.f32 %v49, %v9102
    %v9104 = vand.u32 %v9103, 4294901760
    %v9105 = vsub.f32 %v9103, %v9104
    %v9106 = vand.u32 %v9105, 4294901760
    %9107 = vmatpush.msra.mxu0 %v9106
    %v9108 = vand.u32 %v42, 4294901760
    %v9109 = vsub.f32 %v42, %v9108
    %v9110 = vand.u32 %v9109, 4294901760
    %v9111 = vsub.f32 %v9109, %v9110
    %v9112 = vand.u32 %v9111, 4294901760
    %9113 = vmatpush.msra.mxu0 %v9112
    %v9114 = vand.u32 %v35, 4294901760
    %v9115 = vsub.f32 %v35, %v9114
    %v9116 = vand.u32 %v9115, 4294901760
    %v9117 = vsub.f32 %v9115, %v9116
    %v9118 = vand.u32 %v9117, 4294901760
    %9119 = vmatpush.msra.mxu0 %v9118
    %v9120 = vand.u32 %v28, 4294901760
    %v9121 = vsub.f32 %v28, %v9120
    %v9122 = vand.u32 %v9121, 4294901760
    %v9123 = vsub.f32 %v9121, %v9122
    %v9124 = vand.u32 %v9123, 4294901760
    %9125 = vmatpush.msra.mxu0 %v9124
    %v9126 = vand.u32 %v21, 4294901760
    %v9127 = vsub.f32 %v21, %v9126
    %v9128 = vand.u32 %v9127, 4294901760
    %v9129 = vsub.f32 %v9127, %v9128
    %v9130 = vand.u32 %v9129, 4294901760
    %9131 = vmatpush.msra.mxu0 %v9130
    %v9132 = vand.u32 %v15, 4294901760
    %9133 = vmatmul.f32.gmra.mxu0 %v9132
    %v9134 = vpop.f32.mrf.mxu0
    %v9135 = vadd.f32 %v9034, %v9134
    %9136 = vdwg.mxu0
    %v9137 = vand.u32 %v126, 4294901760
    %v9138 = vsub.f32 %v126, %v9137
    %9139 = vmatpush.msra.mxu0 %v9138
    %v9140 = vand.u32 %v119, 4294901760
    %v9141 = vsub.f32 %v119, %v9140
    %9142 = vmatpush.msra.mxu0 %v9141
    %v9143 = vand.u32 %v112, 4294901760
    %v9144 = vsub.f32 %v112, %v9143
    %9145 = vmatpush.msra.mxu0 %v9144
    %v9146 = vand.u32 %v105, 4294901760
    %v9147 = vsub.f32 %v105, %v9146
    %9148 = vmatpush.msra.mxu0 %v9147
    %v9149 = vand.u32 %v98, 4294901760
    %v9150 = vsub.f32 %v98, %v9149
    %9151 = vmatpush.msra.mxu0 %v9150
    %v9152 = vand.u32 %v91, 4294901760
    %v9153 = vsub.f32 %v91, %v9152
    %9154 = vmatpush.msra.mxu0 %v9153
    %v9155 = vand.u32 %v84, 4294901760
    %v9156 = vsub.f32 %v84, %v9155
    %9157 = vmatpush.msra.mxu0 %v9156
    %v9158 = vand.u32 %v77, 4294901760
    %v9159 = vsub.f32 %v77, %v9158
    %9160 = vmatpush.msra.mxu0 %v9159
    %v9161 = vand.u32 %v70, 4294901760
    %v9162 = vsub.f32 %v70, %v9161
    %9163 = vmatpush.msra.mxu0 %v9162
    %v9164 = vand.u32 %v63, 4294901760
    %v9165 = vsub.f32 %v63, %v9164
    %9166 = vmatpush.msra.mxu0 %v9165
    %v9167 = vand.u32 %v56, 4294901760
    %v9168 = vsub.f32 %v56, %v9167
    %9169 = vmatpush.msra.mxu0 %v9168
    %v9170 = vand.u32 %v49, 4294901760
    %v9171 = vsub.f32 %v49, %v9170
    %9172 = vmatpush.msra.mxu0 %v9171
    %v9173 = vand.u32 %v42, 4294901760
    %v9174 = vsub.f32 %v42, %v9173
    %9175 = vmatpush.msra.mxu0 %v9174
    %v9176 = vand.u32 %v35, 4294901760
    %v9177 = vsub.f32 %v35, %v9176
    %9178 = vmatpush.msra.mxu0 %v9177
    %v9179 = vand.u32 %v28, 4294901760
    %v9180 = vsub.f32 %v28, %v9179
    %9181 = vmatpush.msra.mxu0 %v9180
    %v9182 = vand.u32 %v21, 4294901760
    %v9183 = vsub.f32 %v21, %v9182
    %9184 = vmatpush.msra.mxu0 %v9183
    %v9185 = vand.u32 %v15, 4294901760
    %v9186 = vsub.f32 %v15, %v9185
    %9187 = vmatmul.f32.gmra.mxu0 %v9186
    %v9188 = vpop.f32.mrf.mxu0
    %v9189 = vadd.f32 %v9135, %v9188
    %9190 = vdwg.mxu0
    %v9191 = vand.u32 %v126, 4294901760
    %9192 = vmatpush.msra.mxu0 %v9191
    %v9193 = vand.u32 %v119, 4294901760
    %9194 = vmatpush.msra.mxu0 %v9193
    %v9195 = vand.u32 %v112, 4294901760
    %9196 = vmatpush.msra.mxu0 %v9195
    %v9197 = vand.u32 %v105, 4294901760
    %9198 = vmatpush.msra.mxu0 %v9197
    %v9199 = vand.u32 %v98, 4294901760
    %9200 = vmatpush.msra.mxu0 %v9199
    %v9201 = vand.u32 %v91, 4294901760
    %9202 = vmatpush.msra.mxu0 %v9201
    %v9203 = vand.u32 %v84, 4294901760
    %9204 = vmatpush.msra.mxu0 %v9203
    %v9205 = vand.u32 %v77, 4294901760
    %9206 = vmatpush.msra.mxu0 %v9205
    %v9207 = vand.u32 %v70, 4294901760
    %9208 = vmatpush.msra.mxu0 %v9207
    %v9209 = vand.u32 %v63, 4294901760
    %9210 = vmatpush.msra.mxu0 %v9209
    %v9211 = vand.u32 %v56, 4294901760
    %9212 = vmatpush.msra.mxu0 %v9211
    %v9213 = vand.u32 %v49, 4294901760
    %9214 = vmatpush.msra.mxu0 %v9213
    %v9215 = vand.u32 %v42, 4294901760
    %9216 = vmatpush.msra.mxu0 %v9215
    %v9217 = vand.u32 %v35, 4294901760
    %9218 = vmatpush.msra.mxu0 %v9217
    %v9219 = vand.u32 %v28, 4294901760
    %9220 = vmatpush.msra.mxu0 %v9219
    %v9221 = vand.u32 %v21, 4294901760
    %9222 = vmatpush.msra.mxu0 %v9221
    %v9223 = vand.u32 %v15, 4294901760
    %v9224 = vsub.f32 %v15, %v9223
    %v9225 = vand.u32 %v9224, 4294901760
    %9226 = vmatmul.f32.gmra.mxu0 %v9225
    %v9227 = vpop.f32.mrf.mxu0
    %v9228 = vadd.f32 %v9189, %v9227
    %9229 = vdwg.mxu0
    %v9230 = vand.u32 %v126, 4294901760
    %v9231 = vsub.f32 %v126, %v9230
    %v9232 = vand.u32 %v9231, 4294901760
    %9233 = vmatpush.msra.mxu0 %v9232
    %v9234 = vand.u32 %v119, 4294901760
    %v9235 = vsub.f32 %v119, %v9234
    %v9236 = vand.u32 %v9235, 4294901760
    %9237 = vmatpush.msra.mxu0 %v9236
    %v9238 = vand.u32 %v112, 4294901760
    %v9239 = vsub.f32 %v112, %v9238
    %v9240 = vand.u32 %v9239, 4294901760
    %9241 = vmatpush.msra.mxu0 %v9240
    %v9242 = vand.u32 %v105, 4294901760
    %v9243 = vsub.f32 %v105, %v9242
    %v9244 = vand.u32 %v9243, 4294901760
    %9245 = vmatpush.msra.mxu0 %v9244
    %v9246 = vand.u32 %v98, 4294901760
    %v9247 = vsub.f32 %v98, %v9246
    %v9248 = vand.u32 %v9247, 4294901760
    %9249 = vmatpush.msra.mxu0 %v9248
    %v9250 = vand.u32 %v91, 4294901760
    %v9251 = vsub.f32 %v91, %v9250
    %v9252 = vand.u32 %v9251, 4294901760
    %9253 = vmatpush.msra.mxu0 %v9252
    %v9254 = vand.u32 %v84, 4294901760
    %v9255 = vsub.f32 %v84, %v9254
    %v9256 = vand.u32 %v9255, 4294901760
    %9257 = vmatpush.msra.mxu0 %v9256
    %v9258 = vand.u32 %v77, 4294901760
    %v9259 = vsub.f32 %v77, %v9258
    %v9260 = vand.u32 %v9259, 4294901760
    %9261 = vmatpush.msra.mxu0 %v9260
    %v9262 = vand.u32 %v70, 4294901760
    %v9263 = vsub.f32 %v70, %v9262
    %v9264 = vand.u32 %v9263, 4294901760
    %9265 = vmatpush.msra.mxu0 %v9264
    %v9266 = vand.u32 %v63, 4294901760
    %v9267 = vsub.f32 %v63, %v9266
    %v9268 = vand.u32 %v9267, 4294901760
    %9269 = vmatpush.msra.mxu0 %v9268
    %v9270 = vand.u32 %v56, 4294901760
    %v9271 = vsub.f32 %v56, %v9270
    %v9272 = vand.u32 %v9271, 4294901760
    %9273 = vmatpush.msra.mxu0 %v9272
    %v9274 = vand.u32 %v49, 4294901760
    %v9275 = vsub.f32 %v49, %v9274
    %v9276 = vand.u32 %v9275, 4294901760
    %9277 = vmatpush.msra.mxu0 %v9276
    %v9278 = vand.u32 %v42, 4294901760
    %v9279 = vsub.f32 %v42, %v9278
    %v9280 = vand.u32 %v9279, 4294901760
    %9281 = vmatpush.msra.mxu0 %v9280
    %v9282 = vand.u32 %v35, 4294901760
    %v9283 = vsub.f32 %v35, %v9282
    %v9284 = vand.u32 %v9283, 4294901760
    %9285 = vmatpush.msra.mxu0 %v9284
    %v9286 = vand.u32 %v28, 4294901760
    %v9287 = vsub.f32 %v28, %v9286
    %v9288 = vand.u32 %v9287, 4294901760
    %9289 = vmatpush.msra.mxu0 %v9288
    %v9290 = vand.u32 %v21, 4294901760
    %v9291 = vsub.f32 %v21, %v9290
    %v9292 = vand.u32 %v9291, 4294901760
    %9293 = vmatpush.msra.mxu0 %v9292
    %v9294 = vand.u32 %v15, 4294901760
    %9295 = vmatmul.f32.gmra.mxu0 %v9294
    %v9296 = vpop.f32.mrf.mxu0
    %v9297 = vadd.f32 %v9228, %v9296
    %9298 = vdwg.mxu0
    %v9299 = vand.u32 %v126, 4294901760
    %9300 = vmatpush.msra.mxu0 %v9299
    %v9301 = vand.u32 %v119, 4294901760
    %9302 = vmatpush.msra.mxu0 %v9301
    %v9303 = vand.u32 %v112, 4294901760
    %9304 = vmatpush.msra.mxu0 %v9303
    %v9305 = vand.u32 %v105, 4294901760
    %9306 = vmatpush.msra.mxu0 %v9305
    %v9307 = vand.u32 %v98, 4294901760
    %9308 = vmatpush.msra.mxu0 %v9307
    %v9309 = vand.u32 %v91, 4294901760
    %9310 = vmatpush.msra.mxu0 %v9309
    %v9311 = vand.u32 %v84, 4294901760
    %9312 = vmatpush.msra.mxu0 %v9311
    %v9313 = vand.u32 %v77, 4294901760
    %9314 = vmatpush.msra.mxu0 %v9313
    %v9315 = vand.u32 %v70, 4294901760
    %9316 = vmatpush.msra.mxu0 %v9315
    %v9317 = vand.u32 %v63, 4294901760
    %9318 = vmatpush.msra.mxu0 %v9317
    %v9319 = vand.u32 %v56, 4294901760
    %9320 = vmatpush.msra.mxu0 %v9319
    %v9321 = vand.u32 %v49, 4294901760
    %9322 = vmatpush.msra.mxu0 %v9321
    %v9323 = vand.u32 %v42, 4294901760
    %9324 = vmatpush.msra.mxu0 %v9323
    %v9325 = vand.u32 %v35, 4294901760
    %9326 = vmatpush.msra.mxu0 %v9325
    %v9327 = vand.u32 %v28, 4294901760
    %9328 = vmatpush.msra.mxu0 %v9327
    %v9329 = vand.u32 %v21, 4294901760
    %9330 = vmatpush.msra.mxu0 %v9329
    %v9331 = vand.u32 %v15, 4294901760
    %9332 = vmatmul.f32.gmra.mxu0 %v9331
    %v9333 = vpop.f32.mrf.mxu0
    %v9334 = vadd.f32 %v9297, %v9333
    %9335 = vdwg.mxu0
    %v9336 = vand.u32 %v238, 4294901760
    %9337 = vmatpush.msra.mxu0 %v9336
    %v9338 = vand.u32 %v231, 4294901760
    %9339 = vmatpush.msra.mxu0 %v9338
    %v9340 = vand.u32 %v224, 4294901760
    %9341 = vmatpush.msra.mxu0 %v9340
    %v9342 = vand.u32 %v217, 4294901760
    %9343 = vmatpush.msra.mxu0 %v9342
    %v9344 = vand.u32 %v210, 4294901760
    %9345 = vmatpush.msra.mxu0 %v9344
    %v9346 = vand.u32 %v203, 4294901760
    %9347 = vmatpush.msra.mxu0 %v9346
    %v9348 = vand.u32 %v196, 4294901760
    %9349 = vmatpush.msra.mxu0 %v9348
    %v9350 = vand.u32 %v189, 4294901760
    %9351 = vmatpush.msra.mxu0 %v9350
    %v9352 = vand.u32 %v182, 4294901760
    %9353 = vmatpush.msra.mxu0 %v9352
    %v9354 = vand.u32 %v175, 4294901760
    %9355 = vmatpush.msra.mxu0 %v9354
    %v9356 = vand.u32 %v168, 4294901760
    %9357 = vmatpush.msra.mxu0 %v9356
    %v9358 = vand.u32 %v161, 4294901760
    %9359 = vmatpush.msra.mxu0 %v9358
    %v9360 = vand.u32 %v154, 4294901760
    %9361 = vmatpush.msra.mxu0 %v9360
    %v9362 = vand.u32 %v147, 4294901760
    %9363 = vmatpush.msra.mxu0 %v9362
    %v9364 = vand.u32 %v140, 4294901760
    %9365 = vmatpush.msra.mxu0 %v9364
    %v9366 = vand.u32 %v133, 4294901760
    %9367 = vmatpush.msra.mxu0 %v9366
    %v9368 = vand.u32 %v16, 4294901760
    %v9369 = vsub.f32 %v16, %v9368
    %v9370 = vand.u32 %v9369, 4294901760
    %v9371 = vsub.f32 %v9369, %v9370
    %v9372 = vand.u32 %v9371, 4294901760
    %9373 = vmatmul.f32.gmra.mxu0 %v9372
    %v9374 = vpop.f32.mrf.mxu0
    %v9375 = vadd.f32 %v9334, %v9374
    %9376 = vdwg.mxu0
    %v9377 = vand.u32 %v238, 4294901760
    %v9378 = vsub.f32 %v238, %v9377
    %v9379 = vand.u32 %v9378, 4294901760
    %v9380 = vsub.f32 %v9378, %v9379
    %v9381 = vand.u32 %v9380, 4294901760
    %9382 = vmatpush.msra.mxu0 %v9381
    %v9383 = vand.u32 %v231, 4294901760
    %v9384 = vsub.f32 %v231, %v9383
    %v9385 = vand.u32 %v9384, 4294901760
    %v9386 = vsub.f32 %v9384, %v9385
    %v9387 = vand.u32 %v9386, 4294901760
    %9388 = vmatpush.msra.mxu0 %v9387
    %v9389 = vand.u32 %v224, 4294901760
    %v9390 = vsub.f32 %v224, %v9389
    %v9391 = vand.u32 %v9390, 4294901760
    %v9392 = vsub.f32 %v9390, %v9391
    %v9393 = vand.u32 %v9392, 4294901760
    %9394 = vmatpush.msra.mxu0 %v9393
    %v9395 = vand.u32 %v217, 4294901760
    %v9396 = vsub.f32 %v217, %v9395
    %v9397 = vand.u32 %v9396, 4294901760
    %v9398 = vsub.f32 %v9396, %v9397
    %v9399 = vand.u32 %v9398, 4294901760
    %9400 = vmatpush.msra.mxu0 %v9399
    %v9401 = vand.u32 %v210, 4294901760
    %v9402 = vsub.f32 %v210, %v9401
    %v9403 = vand.u32 %v9402, 4294901760
    %v9404 = vsub.f32 %v9402, %v9403
    %v9405 = vand.u32 %v9404, 4294901760
    %9406 = vmatpush.msra.mxu0 %v9405
    %v9407 = vand.u32 %v203, 4294901760
    %v9408 = vsub.f32 %v203, %v9407
    %v9409 = vand.u32 %v9408, 4294901760
    %v9410 = vsub.f32 %v9408, %v9409
    %v9411 = vand.u32 %v9410, 4294901760
    %9412 = vmatpush.msra.mxu0 %v9411
    %v9413 = vand.u32 %v196, 4294901760
    %v9414 = vsub.f32 %v196, %v9413
    %v9415 = vand.u32 %v9414, 4294901760
    %v9416 = vsub.f32 %v9414, %v9415
    %v9417 = vand.u32 %v9416, 4294901760
    %9418 = vmatpush.msra.mxu0 %v9417
    %v9419 = vand.u32 %v189, 4294901760
    %v9420 = vsub.f32 %v189, %v9419
    %v9421 = vand.u32 %v9420, 4294901760
    %v9422 = vsub.f32 %v9420, %v9421
    %v9423 = vand.u32 %v9422, 4294901760
    %9424 = vmatpush.msra.mxu0 %v9423
    %v9425 = vand.u32 %v182, 4294901760
    %v9426 = vsub.f32 %v182, %v9425
    %v9427 = vand.u32 %v9426, 4294901760
    %v9428 = vsub.f32 %v9426, %v9427
    %v9429 = vand.u32 %v9428, 4294901760
    %9430 = vmatpush.msra.mxu0 %v9429
    %v9431 = vand.u32 %v175, 4294901760
    %v9432 = vsub.f32 %v175, %v9431
    %v9433 = vand.u32 %v9432, 4294901760
    %v9434 = vsub.f32 %v9432, %v9433
    %v9435 = vand.u32 %v9434, 4294901760
    %9436 = vmatpush.msra.mxu0 %v9435
    %v9437 = vand.u32 %v168, 4294901760
    %v9438 = vsub.f32 %v168, %v9437
    %v9439 = vand.u32 %v9438, 4294901760
    %v9440 = vsub.f32 %v9438, %v9439
    %v9441 = vand.u32 %v9440, 4294901760
    %9442 = vmatpush.msra.mxu0 %v9441
    %v9443 = vand.u32 %v161, 4294901760
    %v9444 = vsub.f32 %v161, %v9443
    %v9445 = vand.u32 %v9444, 4294901760
    %v9446 = vsub.f32 %v9444, %v9445
    %v9447 = vand.u32 %v9446, 4294901760
    %9448 = vmatpush.msra.mxu0 %v9447
    %v9449 = vand.u32 %v154, 4294901760
    %v9450 = vsub.f32 %v154, %v9449
    %v9451 = vand.u32 %v9450, 4294901760
    %v9452 = vsub.f32 %v9450, %v9451
    %v9453 = vand.u32 %v9452, 4294901760
    %9454 = vmatpush.msra.mxu0 %v9453
    %v9455 = vand.u32 %v147, 4294901760
    %v9456 = vsub.f32 %v147, %v9455
    %v9457 = vand.u32 %v9456, 4294901760
    %v9458 = vsub.f32 %v9456, %v9457
    %v9459 = vand.u32 %v9458, 4294901760
    %9460 = vmatpush.msra.mxu0 %v9459
    %v9461 = vand.u32 %v140, 4294901760
    %v9462 = vsub.f32 %v140, %v9461
    %v9463 = vand.u32 %v9462, 4294901760
    %v9464 = vsub.f32 %v9462, %v9463
    %v9465 = vand.u32 %v9464, 4294901760
    %9466 = vmatpush.msra.mxu0 %v9465
    %v9467 = vand.u32 %v133, 4294901760
    %v9468 = vsub.f32 %v133, %v9467
    %v9469 = vand.u32 %v9468, 4294901760
    %v9470 = vsub.f32 %v9468, %v9469
    %v9471 = vand.u32 %v9470, 4294901760
    %9472 = vmatpush.msra.mxu0 %v9471
    %v9473 = vand.u32 %v16, 4294901760
    %9474 = vmatmul.f32.gmra.mxu0 %v9473
    %v9475 = vpop.f32.mrf.mxu0
    %v9476 = vadd.f32 %v9375, %v9475
    %9477 = vdwg.mxu0
    %v9478 = vand.u32 %v238, 4294901760
    %v9479 = vsub.f32 %v238, %v9478
    %9480 = vmatpush.msra.mxu0 %v9479
    %v9481 = vand.u32 %v231, 4294901760
    %v9482 = vsub.f32 %v231, %v9481
    %9483 = vmatpush.msra.mxu0 %v9482
    %v9484 = vand.u32 %v224, 4294901760
    %v9485 = vsub.f32 %v224, %v9484
    %9486 = vmatpush.msra.mxu0 %v9485
    %v9487 = vand.u32 %v217, 4294901760
    %v9488 = vsub.f32 %v217, %v9487
    %9489 = vmatpush.msra.mxu0 %v9488
    %v9490 = vand.u32 %v210, 4294901760
    %v9491 = vsub.f32 %v210, %v9490
    %9492 = vmatpush.msra.mxu0 %v9491
    %v9493 = vand.u32 %v203, 4294901760
    %v9494 = vsub.f32 %v203, %v9493
    %9495 = vmatpush.msra.mxu0 %v9494
    %v9496 = vand.u32 %v196, 4294901760
    %v9497 = vsub.f32 %v196, %v9496
    %9498 = vmatpush.msra.mxu0 %v9497
    %v9499 = vand.u32 %v189, 4294901760
    %v9500 = vsub.f32 %v189, %v9499
    %9501 = vmatpush.msra.mxu0 %v9500
    %v9502 = vand.u32 %v182, 4294901760
    %v9503 = vsub.f32 %v182, %v9502
    %9504 = vmatpush.msra.mxu0 %v9503
    %v9505 = vand.u32 %v175, 4294901760
    %v9506 = vsub.f32 %v175, %v9505
    %9507 = vmatpush.msra.mxu0 %v9506
    %v9508 = vand.u32 %v168, 4294901760
    %v9509 = vsub.f32 %v168, %v9508
    %9510 = vmatpush.msra.mxu0 %v9509
    %v9511 = vand.u32 %v161, 4294901760
    %v9512 = vsub.f32 %v161, %v9511
    %9513 = vmatpush.msra.mxu0 %v9512
    %v9514 = vand.u32 %v154, 4294901760
    %v9515 = vsub.f32 %v154, %v9514
    %9516 = vmatpush.msra.mxu0 %v9515
    %v9517 = vand.u32 %v147, 4294901760
    %v9518 = vsub.f32 %v147, %v9517
    %9519 = vmatpush.msra.mxu0 %v9518
    %v9520 = vand.u32 %v140, 4294901760
    %v9521 = vsub.f32 %v140, %v9520
    %9522 = vmatpush.msra.mxu0 %v9521
    %v9523 = vand.u32 %v133, 4294901760
    %v9524 = vsub.f32 %v133, %v9523
    %9525 = vmatpush.msra.mxu0 %v9524
    %v9526 = vand.u32 %v16, 4294901760
    %v9527 = vsub.f32 %v16, %v9526
    %9528 = vmatmul.f32.gmra.mxu0 %v9527
    %v9529 = vpop.f32.mrf.mxu0
    %v9530 = vadd.f32 %v9476, %v9529
    %9531 = vdwg.mxu0
    %v9532 = vand.u32 %v238, 4294901760
    %9533 = vmatpush.msra.mxu0 %v9532
    %v9534 = vand.u32 %v231, 4294901760
    %9535 = vmatpush.msra.mxu0 %v9534
    %v9536 = vand.u32 %v224, 4294901760
    %9537 = vmatpush.msra.mxu0 %v9536
    %v9538 = vand.u32 %v217, 4294901760
    %9539 = vmatpush.msra.mxu0 %v9538
    %v9540 = vand.u32 %v210, 4294901760
    %9541 = vmatpush.msra.mxu0 %v9540
    %v9542 = vand.u32 %v203, 4294901760
    %9543 = vmatpush.msra.mxu0 %v9542
    %v9544 = vand.u32 %v196, 4294901760
    %9545 = vmatpush.msra.mxu0 %v9544
    %v9546 = vand.u32 %v189, 4294901760
    %9547 = vmatpush.msra.mxu0 %v9546
    %v9548 = vand.u32 %v182, 4294901760
    %9549 = vmatpush.msra.mxu0 %v9548
    %v9550 = vand.u32 %v175, 4294901760
    %9551 = vmatpush.msra.mxu0 %v9550
    %v9552 = vand.u32 %v168, 4294901760
    %9553 = vmatpush.msra.mxu0 %v9552
    %v9554 = vand.u32 %v161, 4294901760
    %9555 = vmatpush.msra.mxu0 %v9554
    %v9556 = vand.u32 %v154, 4294901760
    %9557 = vmatpush.msra.mxu0 %v9556
    %v9558 = vand.u32 %v147, 4294901760
    %9559 = vmatpush.msra.mxu0 %v9558
    %v9560 = vand.u32 %v140, 4294901760
    %9561 = vmatpush.msra.mxu0 %v9560
    %v9562 = vand.u32 %v133, 4294901760
    %9563 = vmatpush.msra.mxu0 %v9562
    %v9564 = vand.u32 %v16, 4294901760
    %v9565 = vsub.f32 %v16, %v9564
    %v9566 = vand.u32 %v9565, 4294901760
    %9567 = vmatmul.f32.gmra.mxu0 %v9566
    %v9568 = vpop.f32.mrf.mxu0
    %v9569 = vadd.f32 %v9530, %v9568
    %9570 = vdwg.mxu0
    %v9571 = vand.u32 %v238, 4294901760
    %v9572 = vsub.f32 %v238, %v9571
    %v9573 = vand.u32 %v9572, 4294901760
    %9574 = vmatpush.msra.mxu0 %v9573
    %v9575 = vand.u32 %v231, 4294901760
    %v9576 = vsub.f32 %v231, %v9575
    %v9577 = vand.u32 %v9576, 4294901760
    %9578 = vmatpush.msra.mxu0 %v9577
    %v9579 = vand.u32 %v224, 4294901760
    %v9580 = vsub.f32 %v224, %v9579
    %v9581 = vand.u32 %v9580, 4294901760
    %9582 = vmatpush.msra.mxu0 %v9581
    %v9583 = vand.u32 %v217, 4294901760
    %v9584 = vsub.f32 %v217, %v9583
    %v9585 = vand.u32 %v9584, 4294901760
    %9586 = vmatpush.msra.mxu0 %v9585
    %v9587 = vand.u32 %v210, 4294901760
    %v9588 = vsub.f32 %v210, %v9587
    %v9589 = vand.u32 %v9588, 4294901760
    %9590 = vmatpush.msra.mxu0 %v9589
    %v9591 = vand.u32 %v203, 4294901760
    %v9592 = vsub.f32 %v203, %v9591
    %v9593 = vand.u32 %v9592, 4294901760
    %9594 = vmatpush.msra.mxu0 %v9593
    %v9595 = vand.u32 %v196, 4294901760
    %v9596 = vsub.f32 %v196, %v9595
    %v9597 = vand.u32 %v9596, 4294901760
    %9598 = vmatpush.msra.mxu0 %v9597
    %v9599 = vand.u32 %v189, 4294901760
    %v9600 = vsub.f32 %v189, %v9599
    %v9601 = vand.u32 %v9600, 4294901760
    %9602 = vmatpush.msra.mxu0 %v9601
    %v9603 = vand.u32 %v182, 4294901760
    %v9604 = vsub.f32 %v182, %v9603
    %v9605 = vand.u32 %v9604, 4294901760
    %9606 = vmatpush.msra.mxu0 %v9605
    %v9607 = vand.u32 %v175, 4294901760
    %v9608 = vsub.f32 %v175, %v9607
    %v9609 = vand.u32 %v9608, 4294901760
    %9610 = vmatpush.msra.mxu0 %v9609
    %v9611 = vand.u32 %v168, 4294901760
    %v9612 = vsub.f32 %v168, %v9611
    %v9613 = vand.u32 %v9612, 4294901760
    %9614 = vmatpush.msra.mxu0 %v9613
    %v9615 = vand.u32 %v161, 4294901760
    %v9616 = vsub.f32 %v161, %v9615
    %v9617 = vand.u32 %v9616, 4294901760
    %9618 = vmatpush.msra.mxu0 %v9617
    %v9619 = vand.u32 %v154, 4294901760
    %v9620 = vsub.f32 %v154, %v9619
    %v9621 = vand.u32 %v9620, 4294901760
    %9622 = vmatpush.msra.mxu0 %v9621
    %v9623 = vand.u32 %v147, 4294901760
    %v9624 = vsub.f32 %v147, %v9623
    %v9625 = vand.u32 %v9624, 4294901760
    %9626 = vmatpush.msra.mxu0 %v9625
    %v9627 = vand.u32 %v140, 4294901760
    %v9628 = vsub.f32 %v140, %v9627
    %v9629 = vand.u32 %v9628, 4294901760
    %9630 = vmatpush.msra.mxu0 %v9629
    %v9631 = vand.u32 %v133, 4294901760
    %v9632 = vsub.f32 %v133, %v9631
    %v9633 = vand.u32 %v9632, 4294901760
    %9634 = vmatpush.msra.mxu0 %v9633
    %v9635 = vand.u32 %v16, 4294901760
    %9636 = vmatmul.f32.gmra.mxu0 %v9635
    %v9637 = vpop.f32.mrf.mxu0
    %v9638 = vadd.f32 %v9569, %v9637
    %9639 = vdwg.mxu0
    %v9640 = vand.u32 %v238, 4294901760
    %9641 = vmatpush.msra.mxu0 %v9640
    %v9642 = vand.u32 %v231, 4294901760
    %9643 = vmatpush.msra.mxu0 %v9642
    %v9644 = vand.u32 %v224, 4294901760
    %9645 = vmatpush.msra.mxu0 %v9644
    %v9646 = vand.u32 %v217, 4294901760
    %9647 = vmatpush.msra.mxu0 %v9646
    %v9648 = vand.u32 %v210, 4294901760
    %9649 = vmatpush.msra.mxu0 %v9648
    %v9650 = vand.u32 %v203, 4294901760
    %9651 = vmatpush.msra.mxu0 %v9650
    %v9652 = vand.u32 %v196, 4294901760
    %9653 = vmatpush.msra.mxu0 %v9652
    %v9654 = vand.u32 %v189, 4294901760
    %9655 = vmatpush.msra.mxu0 %v9654
    %v9656 = vand.u32 %v182, 4294901760
    %9657 = vmatpush.msra.mxu0 %v9656
    %v9658 = vand.u32 %v175, 4294901760
    %9659 = vmatpush.msra.mxu0 %v9658
    %v9660 = vand.u32 %v168, 4294901760
    %9661 = vmatpush.msra.mxu0 %v9660
    %v9662 = vand.u32 %v161, 4294901760
    %9663 = vmatpush.msra.mxu0 %v9662
    %v9664 = vand.u32 %v154, 4294901760
    %9665 = vmatpush.msra.mxu0 %v9664
    %v9666 = vand.u32 %v147, 4294901760
    %9667 = vmatpush.msra.mxu0 %v9666
    %v9668 = vand.u32 %v140, 4294901760
    %9669 = vmatpush.msra.mxu0 %v9668
    %v9670 = vand.u32 %v133, 4294901760
    %9671 = vmatpush.msra.mxu0 %v9670
    %v9672 = vand.u32 %v16, 4294901760
    %9673 = vmatmul.f32.gmra.mxu0 %v9672
    %v9674 = vpop.f32.mrf.mxu0
    %v9675 = vadd.f32 %v9638, %v9674
    %9676 = vdwg.mxu0
    %v9677 = vand.u32 %v127, 4294901760
    %9678 = vmatpush.msra.mxu0 %v9677
    %v9679 = vand.u32 %v120, 4294901760
    %9680 = vmatpush.msra.mxu0 %v9679
    %v9681 = vand.u32 %v113, 4294901760
    %9682 = vmatpush.msra.mxu0 %v9681
    %v9683 = vand.u32 %v106, 4294901760
    %9684 = vmatpush.msra.mxu0 %v9683
    %v9685 = vand.u32 %v99, 4294901760
    %9686 = vmatpush.msra.mxu0 %v9685
    %v9687 = vand.u32 %v92, 4294901760
    %9688 = vmatpush.msra.mxu0 %v9687
    %v9689 = vand.u32 %v85, 4294901760
    %9690 = vmatpush.msra.mxu0 %v9689
    %v9691 = vand.u32 %v78, 4294901760
    %9692 = vmatpush.msra.mxu0 %v9691
    %v9693 = vand.u32 %v71, 4294901760
    %9694 = vmatpush.msra.mxu0 %v9693
    %v9695 = vand.u32 %v64, 4294901760
    %9696 = vmatpush.msra.mxu0 %v9695
    %v9697 = vand.u32 %v57, 4294901760
    %9698 = vmatpush.msra.mxu0 %v9697
    %v9699 = vand.u32 %v50, 4294901760
    %9700 = vmatpush.msra.mxu0 %v9699
    %v9701 = vand.u32 %v43, 4294901760
    %9702 = vmatpush.msra.mxu0 %v9701
    %v9703 = vand.u32 %v36, 4294901760
    %9704 = vmatpush.msra.mxu0 %v9703
    %v9705 = vand.u32 %v29, 4294901760
    %9706 = vmatpush.msra.mxu0 %v9705
    %v9707 = vand.u32 %v22, 4294901760
    %9708 = vmatpush.msra.mxu0 %v9707
    %v9709 = vand.u32 %v15, 4294901760
    %v9710 = vsub.f32 %v15, %v9709
    %v9711 = vand.u32 %v9710, 4294901760
    %v9712 = vsub.f32 %v9710, %v9711
    %v9713 = vand.u32 %v9712, 4294901760
    %9714 = vmatmul.f32.gmra.mxu0 %v9713
    %v9715 = vpop.f32.mrf.mxu0
    %v9716 = vadd.f32 %v6119, %v9715
    %9717 = vdwg.mxu0
    %v9718 = vand.u32 %v127, 4294901760
    %v9719 = vsub.f32 %v127, %v9718
    %v9720 = vand.u32 %v9719, 4294901760
    %v9721 = vsub.f32 %v9719, %v9720
    %v9722 = vand.u32 %v9721, 4294901760
    %9723 = vmatpush.msra.mxu0 %v9722
    %v9724 = vand.u32 %v120, 4294901760
    %v9725 = vsub.f32 %v120, %v9724
    %v9726 = vand.u32 %v9725, 4294901760
    %v9727 = vsub.f32 %v9725, %v9726
    %v9728 = vand.u32 %v9727, 4294901760
    %9729 = vmatpush.msra.mxu0 %v9728
    %v9730 = vand.u32 %v113, 4294901760
    %v9731 = vsub.f32 %v113, %v9730
    %v9732 = vand.u32 %v9731, 4294901760
    %v9733 = vsub.f32 %v9731, %v9732
    %v9734 = vand.u32 %v9733, 4294901760
    %9735 = vmatpush.msra.mxu0 %v9734
    %v9736 = vand.u32 %v106, 4294901760
    %v9737 = vsub.f32 %v106, %v9736
    %v9738 = vand.u32 %v9737, 4294901760
    %v9739 = vsub.f32 %v9737, %v9738
    %v9740 = vand.u32 %v9739, 4294901760
    %9741 = vmatpush.msra.mxu0 %v9740
    %v9742 = vand.u32 %v99, 4294901760
    %v9743 = vsub.f32 %v99, %v9742
    %v9744 = vand.u32 %v9743, 4294901760
    %v9745 = vsub.f32 %v9743, %v9744
    %v9746 = vand.u32 %v9745, 4294901760
    %9747 = vmatpush.msra.mxu0 %v9746
    %v9748 = vand.u32 %v92, 4294901760
    %v9749 = vsub.f32 %v92, %v9748
    %v9750 = vand.u32 %v9749, 4294901760
    %v9751 = vsub.f32 %v9749, %v9750
    %v9752 = vand.u32 %v9751, 4294901760
    %9753 = vmatpush.msra.mxu0 %v9752
    %v9754 = vand.u32 %v85, 4294901760
    %v9755 = vsub.f32 %v85, %v9754
    %v9756 = vand.u32 %v9755, 4294901760
    %v9757 = vsub.f32 %v9755, %v9756
    %v9758 = vand.u32 %v9757, 4294901760
    %9759 = vmatpush.msra.mxu0 %v9758
    %v9760 = vand.u32 %v78, 4294901760
    %v9761 = vsub.f32 %v78, %v9760
    %v9762 = vand.u32 %v9761, 4294901760
    %v9763 = vsub.f32 %v9761, %v9762
    %v9764 = vand.u32 %v9763, 4294901760
    %9765 = vmatpush.msra.mxu0 %v9764
    %v9766 = vand.u32 %v71, 4294901760
    %v9767 = vsub.f32 %v71, %v9766
    %v9768 = vand.u32 %v9767, 4294901760
    %v9769 = vsub.f32 %v9767, %v9768
    %v9770 = vand.u32 %v9769, 4294901760
    %9771 = vmatpush.msra.mxu0 %v9770
    %v9772 = vand.u32 %v64, 4294901760
    %v9773 = vsub.f32 %v64, %v9772
    %v9774 = vand.u32 %v9773, 4294901760
    %v9775 = vsub.f32 %v9773, %v9774
    %v9776 = vand.u32 %v9775, 4294901760
    %9777 = vmatpush.msra.mxu0 %v9776
    %v9778 = vand.u32 %v57, 4294901760
    %v9779 = vsub.f32 %v57, %v9778
    %v9780 = vand.u32 %v9779, 4294901760
    %v9781 = vsub.f32 %v9779, %v9780
    %v9782 = vand.u32 %v9781, 4294901760
    %9783 = vmatpush.msra.mxu0 %v9782
    %v9784 = vand.u32 %v50, 4294901760
    %v9785 = vsub.f32 %v50, %v9784
    %v9786 = vand.u32 %v9785, 4294901760
    %v9787 = vsub.f32 %v9785, %v9786
    %v9788 = vand.u32 %v9787, 4294901760
    %9789 = vmatpush.msra.mxu0 %v9788
    %v9790 = vand.u32 %v43, 4294901760
    %v9791 = vsub.f32 %v43, %v9790
    %v9792 = vand.u32 %v9791, 4294901760
    %v9793 = vsub.f32 %v9791, %v9792
    %v9794 = vand.u32 %v9793, 4294901760
    %9795 = vmatpush.msra.mxu0 %v9794
    %v9796 = vand.u32 %v36, 4294901760
    %v9797 = vsub.f32 %v36, %v9796
    %v9798 = vand.u32 %v9797, 4294901760
    %v9799 = vsub.f32 %v9797, %v9798
    %v9800 = vand.u32 %v9799, 4294901760
    %9801 = vmatpush.msra.mxu0 %v9800
    %v9802 = vand.u32 %v29, 4294901760
    %v9803 = vsub.f32 %v29, %v9802
    %v9804 = vand.u32 %v9803, 4294901760
    %v9805 = vsub.f32 %v9803, %v9804
    %v9806 = vand.u32 %v9805, 4294901760
    %9807 = vmatpush.msra.mxu0 %v9806
    %v9808 = vand.u32 %v22, 4294901760
    %v9809 = vsub.f32 %v22, %v9808
    %v9810 = vand.u32 %v9809, 4294901760
    %v9811 = vsub.f32 %v9809, %v9810
    %v9812 = vand.u32 %v9811, 4294901760
    %9813 = vmatpush.msra.mxu0 %v9812
    %v9814 = vand.u32 %v15, 4294901760
    %9815 = vmatmul.f32.gmra.mxu0 %v9814
    %v9816 = vpop.f32.mrf.mxu0
    %v9817 = vadd.f32 %v9716, %v9816
    %9818 = vdwg.mxu0
    %v9819 = vand.u32 %v127, 4294901760
    %v9820 = vsub.f32 %v127, %v9819
    %9821 = vmatpush.msra.mxu0 %v9820
    %v9822 = vand.u32 %v120, 4294901760
    %v9823 = vsub.f32 %v120, %v9822
    %9824 = vmatpush.msra.mxu0 %v9823
    %v9825 = vand.u32 %v113, 4294901760
    %v9826 = vsub.f32 %v113, %v9825
    %9827 = vmatpush.msra.mxu0 %v9826
    %v9828 = vand.u32 %v106, 4294901760
    %v9829 = vsub.f32 %v106, %v9828
    %9830 = vmatpush.msra.mxu0 %v9829
    %v9831 = vand.u32 %v99, 4294901760
    %v9832 = vsub.f32 %v99, %v9831
    %9833 = vmatpush.msra.mxu0 %v9832
    %v9834 = vand.u32 %v92, 4294901760
    %v9835 = vsub.f32 %v92, %v9834
    %9836 = vmatpush.msra.mxu0 %v9835
    %v9837 = vand.u32 %v85, 4294901760
    %v9838 = vsub.f32 %v85, %v9837
    %9839 = vmatpush.msra.mxu0 %v9838
    %v9840 = vand.u32 %v78, 4294901760
    %v9841 = vsub.f32 %v78, %v9840
    %9842 = vmatpush.msra.mxu0 %v9841
    %v9843 = vand.u32 %v71, 4294901760
    %v9844 = vsub.f32 %v71, %v9843
    %9845 = vmatpush.msra.mxu0 %v9844
    %v9846 = vand.u32 %v64, 4294901760
    %v9847 = vsub.f32 %v64, %v9846
    %9848 = vmatpush.msra.mxu0 %v9847
    %v9849 = vand.u32 %v57, 4294901760
    %v9850 = vsub.f32 %v57, %v9849
    %9851 = vmatpush.msra.mxu0 %v9850
    %v9852 = vand.u32 %v50, 4294901760
    %v9853 = vsub.f32 %v50, %v9852
    %9854 = vmatpush.msra.mxu0 %v9853
    %v9855 = vand.u32 %v43, 4294901760
    %v9856 = vsub.f32 %v43, %v9855
    %9857 = vmatpush.msra.mxu0 %v9856
    %v9858 = vand.u32 %v36, 4294901760
    %v9859 = vsub.f32 %v36, %v9858
    %9860 = vmatpush.msra.mxu0 %v9859
    %v9861 = vand.u32 %v29, 4294901760
    %v9862 = vsub.f32 %v29, %v9861
    %9863 = vmatpush.msra.mxu0 %v9862
    %v9864 = vand.u32 %v22, 4294901760
    %v9865 = vsub.f32 %v22, %v9864
    %9866 = vmatpush.msra.mxu0 %v9865
    %v9867 = vand.u32 %v15, 4294901760
    %v9868 = vsub.f32 %v15, %v9867
    %9869 = vmatmul.f32.gmra.mxu0 %v9868
    %v9870 = vpop.f32.mrf.mxu0
    %v9871 = vadd.f32 %v9817, %v9870
    %9872 = vdwg.mxu0
    %v9873 = vand.u32 %v127, 4294901760
    %9874 = vmatpush.msra.mxu0 %v9873
    %v9875 = vand.u32 %v120, 4294901760
    %9876 = vmatpush.msra.mxu0 %v9875
    %v9877 = vand.u32 %v113, 4294901760
    %9878 = vmatpush.msra.mxu0 %v9877
    %v9879 = vand.u32 %v106, 4294901760
    %9880 = vmatpush.msra.mxu0 %v9879
    %v9881 = vand.u32 %v99, 4294901760
    %9882 = vmatpush.msra.mxu0 %v9881
    %v9883 = vand.u32 %v92, 4294901760
    %9884 = vmatpush.msra.mxu0 %v9883
    %v9885 = vand.u32 %v85, 4294901760
    %9886 = vmatpush.msra.mxu0 %v9885
    %v9887 = vand.u32 %v78, 4294901760
    %9888 = vmatpush.msra.mxu0 %v9887
    %v9889 = vand.u32 %v71, 4294901760
    %9890 = vmatpush.msra.mxu0 %v9889
    %v9891 = vand.u32 %v64, 4294901760
    %9892 = vmatpush.msra.mxu0 %v9891
    %v9893 = vand.u32 %v57, 4294901760
    %9894 = vmatpush.msra.mxu0 %v9893
    %v9895 = vand.u32 %v50, 4294901760
    %9896 = vmatpush.msra.mxu0 %v9895
    %v9897 = vand.u32 %v43, 4294901760
    %9898 = vmatpush.msra.mxu0 %v9897
    %v9899 = vand.u32 %v36, 4294901760
    %9900 = vmatpush.msra.mxu0 %v9899
    %v9901 = vand.u32 %v29, 4294901760
    %9902 = vmatpush.msra.mxu0 %v9901
    %v9903 = vand.u32 %v22, 4294901760
    %9904 = vmatpush.msra.mxu0 %v9903
    %v9905 = vand.u32 %v15, 4294901760
    %v9906 = vsub.f32 %v15, %v9905
    %v9907 = vand.u32 %v9906, 4294901760
    %9908 = vmatmul.f32.gmra.mxu0 %v9907
    %v9909 = vpop.f32.mrf.mxu0
    %v9910 = vadd.f32 %v9871, %v9909
    %9911 = vdwg.mxu0
    %v9912 = vand.u32 %v127, 4294901760
    %v9913 = vsub.f32 %v127, %v9912
    %v9914 = vand.u32 %v9913, 4294901760
    %9915 = vmatpush.msra.mxu0 %v9914
    %v9916 = vand.u32 %v120, 4294901760
    %v9917 = vsub.f32 %v120, %v9916
    %v9918 = vand.u32 %v9917, 4294901760
    %9919 = vmatpush.msra.mxu0 %v9918
    %v9920 = vand.u32 %v113, 4294901760
    %v9921 = vsub.f32 %v113, %v9920
    %v9922 = vand.u32 %v9921, 4294901760
    %9923 = vmatpush.msra.mxu0 %v9922
    %v9924 = vand.u32 %v106, 4294901760
    %v9925 = vsub.f32 %v106, %v9924
    %v9926 = vand.u32 %v9925, 4294901760
    %9927 = vmatpush.msra.mxu0 %v9926
    %v9928 = vand.u32 %v99, 4294901760
    %v9929 = vsub.f32 %v99, %v9928
    %v9930 = vand.u32 %v9929, 4294901760
    %9931 = vmatpush.msra.mxu0 %v9930
    %v9932 = vand.u32 %v92, 4294901760
    %v9933 = vsub.f32 %v92, %v9932
    %v9934 = vand.u32 %v9933, 4294901760
    %9935 = vmatpush.msra.mxu0 %v9934
    %v9936 = vand.u32 %v85, 4294901760
    %v9937 = vsub.f32 %v85, %v9936
    %v9938 = vand.u32 %v9937, 4294901760
    %9939 = vmatpush.msra.mxu0 %v9938
    %v9940 = vand.u32 %v78, 4294901760
    %v9941 = vsub.f32 %v78, %v9940
    %v9942 = vand.u32 %v9941, 4294901760
    %9943 = vmatpush.msra.mxu0 %v9942
    %v9944 = vand.u32 %v71, 4294901760
    %v9945 = vsub.f32 %v71, %v9944
    %v9946 = vand.u32 %v9945, 4294901760
    %9947 = vmatpush.msra.mxu0 %v9946
    %v9948 = vand.u32 %v64, 4294901760
    %v9949 = vsub.f32 %v64, %v9948
    %v9950 = vand.u32 %v9949, 4294901760
    %9951 = vmatpush.msra.mxu0 %v9950
    %v9952 = vand.u32 %v57, 4294901760
    %v9953 = vsub.f32 %v57, %v9952
    %v9954 = vand.u32 %v9953, 4294901760
    %9955 = vmatpush.msra.mxu0 %v9954
    %v9956 = vand.u32 %v50, 4294901760
    %v9957 = vsub.f32 %v50, %v9956
    %v9958 = vand.u32 %v9957, 4294901760
    %9959 = vmatpush.msra.mxu0 %v9958
    %v9960 = vand.u32 %v43, 4294901760
    %v9961 = vsub.f32 %v43, %v9960
    %v9962 = vand.u32 %v9961, 4294901760
    %9963 = vmatpush.msra.mxu0 %v9962
    %v9964 = vand.u32 %v36, 4294901760
    %v9965 = vsub.f32 %v36, %v9964
    %v9966 = vand.u32 %v9965, 4294901760
    %9967 = vmatpush.msra.mxu0 %v9966
    %v9968 = vand.u32 %v29, 4294901760
    %v9969 = vsub.f32 %v29, %v9968
    %v9970 = vand.u32 %v9969, 4294901760
    %9971 = vmatpush.msra.mxu0 %v9970
    %v9972 = vand.u32 %v22, 4294901760
    %v9973 = vsub.f32 %v22, %v9972
    %v9974 = vand.u32 %v9973, 4294901760
    %9975 = vmatpush.msra.mxu0 %v9974
    %v9976 = vand.u32 %v15, 4294901760
    %9977 = vmatmul.f32.gmra.mxu0 %v9976
    %v9978 = vpop.f32.mrf.mxu0
    %v9979 = vadd.f32 %v9910, %v9978
    %9980 = vdwg.mxu0
    %v9981 = vand.u32 %v127, 4294901760
    %9982 = vmatpush.msra.mxu0 %v9981
    %v9983 = vand.u32 %v120, 4294901760
    %9984 = vmatpush.msra.mxu0 %v9983
    %v9985 = vand.u32 %v113, 4294901760
    %9986 = vmatpush.msra.mxu0 %v9985
    %v9987 = vand.u32 %v106, 4294901760
    %9988 = vmatpush.msra.mxu0 %v9987
    %v9989 = vand.u32 %v99, 4294901760
    %9990 = vmatpush.msra.mxu0 %v9989
    %v9991 = vand.u32 %v92, 4294901760
    %9992 = vmatpush.msra.mxu0 %v9991
    %v9993 = vand.u32 %v85, 4294901760
    %9994 = vmatpush.msra.mxu0 %v9993
    %v9995 = vand.u32 %v78, 4294901760
    %9996 = vmatpush.msra.mxu0 %v9995
    %v9997 = vand.u32 %v71, 4294901760
    %9998 = vmatpush.msra.mxu0 %v9997
    %v9999 = vand.u32 %v64, 4294901760
    %10000 = vmatpush.msra.mxu0 %v9999
    %v10001 = vand.u32 %v57, 4294901760
    %10002 = vmatpush.msra.mxu0 %v10001
    %v10003 = vand.u32 %v50, 4294901760
    %10004 = vmatpush.msra.mxu0 %v10003
    %v10005 = vand.u32 %v43, 4294901760
    %10006 = vmatpush.msra.mxu0 %v10005
    %v10007 = vand.u32 %v36, 4294901760
    %10008 = vmatpush.msra.mxu0 %v10007
    %v10009 = vand.u32 %v29, 4294901760
    %10010 = vmatpush.msra.mxu0 %v10009
    %v10011 = vand.u32 %v22, 4294901760
    %10012 = vmatpush.msra.mxu0 %v10011
    %v10013 = vand.u32 %v15, 4294901760
    %10014 = vmatmul.f32.gmra.mxu0 %v10013
    %v10015 = vpop.f32.mrf.mxu0
    %v10016 = vadd.f32 %v9979, %v10015
    %10017 = vdwg.mxu0
    %v10018 = vand.u32 %v239, 4294901760
    %10019 = vmatpush.msra.mxu0 %v10018
    %v10020 = vand.u32 %v232, 4294901760
    %10021 = vmatpush.msra.mxu0 %v10020
    %v10022 = vand.u32 %v225, 4294901760
    %10023 = vmatpush.msra.mxu0 %v10022
    %v10024 = vand.u32 %v218, 4294901760
    %10025 = vmatpush.msra.mxu0 %v10024
    %v10026 = vand.u32 %v211, 4294901760
    %10027 = vmatpush.msra.mxu0 %v10026
    %v10028 = vand.u32 %v204, 4294901760
    %10029 = vmatpush.msra.mxu0 %v10028
    %v10030 = vand.u32 %v197, 4294901760
    %10031 = vmatpush.msra.mxu0 %v10030
    %v10032 = vand.u32 %v190, 4294901760
    %10033 = vmatpush.msra.mxu0 %v10032
    %v10034 = vand.u32 %v183, 4294901760
    %10035 = vmatpush.msra.mxu0 %v10034
    %v10036 = vand.u32 %v176, 4294901760
    %10037 = vmatpush.msra.mxu0 %v10036
    %v10038 = vand.u32 %v169, 4294901760
    %10039 = vmatpush.msra.mxu0 %v10038
    %v10040 = vand.u32 %v162, 4294901760
    %10041 = vmatpush.msra.mxu0 %v10040
    %v10042 = vand.u32 %v155, 4294901760
    %10043 = vmatpush.msra.mxu0 %v10042
    %v10044 = vand.u32 %v148, 4294901760
    %10045 = vmatpush.msra.mxu0 %v10044
    %v10046 = vand.u32 %v141, 4294901760
    %10047 = vmatpush.msra.mxu0 %v10046
    %v10048 = vand.u32 %v134, 4294901760
    %10049 = vmatpush.msra.mxu0 %v10048
    %v10050 = vand.u32 %v16, 4294901760
    %v10051 = vsub.f32 %v16, %v10050
    %v10052 = vand.u32 %v10051, 4294901760
    %v10053 = vsub.f32 %v10051, %v10052
    %v10054 = vand.u32 %v10053, 4294901760
    %10055 = vmatmul.f32.gmra.mxu0 %v10054
    %v10056 = vpop.f32.mrf.mxu0
    %v10057 = vadd.f32 %v10016, %v10056
    %10058 = vdwg.mxu0
    %v10059 = vand.u32 %v239, 4294901760
    %v10060 = vsub.f32 %v239, %v10059
    %v10061 = vand.u32 %v10060, 4294901760
    %v10062 = vsub.f32 %v10060, %v10061
    %v10063 = vand.u32 %v10062, 4294901760
    %10064 = vmatpush.msra.mxu0 %v10063
    %v10065 = vand.u32 %v232, 4294901760
    %v10066 = vsub.f32 %v232, %v10065
    %v10067 = vand.u32 %v10066, 4294901760
    %v10068 = vsub.f32 %v10066, %v10067
    %v10069 = vand.u32 %v10068, 4294901760
    %10070 = vmatpush.msra.mxu0 %v10069
    %v10071 = vand.u32 %v225, 4294901760
    %v10072 = vsub.f32 %v225, %v10071
    %v10073 = vand.u32 %v10072, 4294901760
    %v10074 = vsub.f32 %v10072, %v10073
    %v10075 = vand.u32 %v10074, 4294901760
    %10076 = vmatpush.msra.mxu0 %v10075
    %v10077 = vand.u32 %v218, 4294901760
    %v10078 = vsub.f32 %v218, %v10077
    %v10079 = vand.u32 %v10078, 4294901760
    %v10080 = vsub.f32 %v10078, %v10079
    %v10081 = vand.u32 %v10080, 4294901760
    %10082 = vmatpush.msra.mxu0 %v10081
    %v10083 = vand.u32 %v211, 4294901760
    %v10084 = vsub.f32 %v211, %v10083
    %v10085 = vand.u32 %v10084, 4294901760
    %v10086 = vsub.f32 %v10084, %v10085
    %v10087 = vand.u32 %v10086, 4294901760
    %10088 = vmatpush.msra.mxu0 %v10087
    %v10089 = vand.u32 %v204, 4294901760
    %v10090 = vsub.f32 %v204, %v10089
    %v10091 = vand.u32 %v10090, 4294901760
    %v10092 = vsub.f32 %v10090, %v10091
    %v10093 = vand.u32 %v10092, 4294901760
    %10094 = vmatpush.msra.mxu0 %v10093
    %v10095 = vand.u32 %v197, 4294901760
    %v10096 = vsub.f32 %v197, %v10095
    %v10097 = vand.u32 %v10096, 4294901760
    %v10098 = vsub.f32 %v10096, %v10097
    %v10099 = vand.u32 %v10098, 4294901760
    %10100 = vmatpush.msra.mxu0 %v10099
    %v10101 = vand.u32 %v190, 4294901760
    %v10102 = vsub.f32 %v190, %v10101
    %v10103 = vand.u32 %v10102, 4294901760
    %v10104 = vsub.f32 %v10102, %v10103
    %v10105 = vand.u32 %v10104, 4294901760
    %10106 = vmatpush.msra.mxu0 %v10105
    %v10107 = vand.u32 %v183, 4294901760
    %v10108 = vsub.f32 %v183, %v10107
    %v10109 = vand.u32 %v10108, 4294901760
    %v10110 = vsub.f32 %v10108, %v10109
    %v10111 = vand.u32 %v10110, 4294901760
    %10112 = vmatpush.msra.mxu0 %v10111
    %v10113 = vand.u32 %v176, 4294901760
    %v10114 = vsub.f32 %v176, %v10113
    %v10115 = vand.u32 %v10114, 4294901760
    %v10116 = vsub.f32 %v10114, %v10115
    %v10117 = vand.u32 %v10116, 4294901760
    %10118 = vmatpush.msra.mxu0 %v10117
    %v10119 = vand.u32 %v169, 4294901760
    %v10120 = vsub.f32 %v169, %v10119
    %v10121 = vand.u32 %v10120, 4294901760
    %v10122 = vsub.f32 %v10120, %v10121
    %v10123 = vand.u32 %v10122, 4294901760
    %10124 = vmatpush.msra.mxu0 %v10123
    %v10125 = vand.u32 %v162, 4294901760
    %v10126 = vsub.f32 %v162, %v10125
    %v10127 = vand.u32 %v10126, 4294901760
    %v10128 = vsub.f32 %v10126, %v10127
    %v10129 = vand.u32 %v10128, 4294901760
    %10130 = vmatpush.msra.mxu0 %v10129
    %v10131 = vand.u32 %v155, 4294901760
    %v10132 = vsub.f32 %v155, %v10131
    %v10133 = vand.u32 %v10132, 4294901760
    %v10134 = vsub.f32 %v10132, %v10133
    %v10135 = vand.u32 %v10134, 4294901760
    %10136 = vmatpush.msra.mxu0 %v10135
    %v10137 = vand.u32 %v148, 4294901760
    %v10138 = vsub.f32 %v148, %v10137
    %v10139 = vand.u32 %v10138, 4294901760
    %v10140 = vsub.f32 %v10138, %v10139
    %v10141 = vand.u32 %v10140, 4294901760
    %10142 = vmatpush.msra.mxu0 %v10141
    %v10143 = vand.u32 %v141, 4294901760
    %v10144 = vsub.f32 %v141, %v10143
    %v10145 = vand.u32 %v10144, 4294901760
    %v10146 = vsub.f32 %v10144, %v10145
    %v10147 = vand.u32 %v10146, 4294901760
    %10148 = vmatpush.msra.mxu0 %v10147
    %v10149 = vand.u32 %v134, 4294901760
    %v10150 = vsub.f32 %v134, %v10149
    %v10151 = vand.u32 %v10150, 4294901760
    %v10152 = vsub.f32 %v10150, %v10151
    %v10153 = vand.u32 %v10152, 4294901760
    %10154 = vmatpush.msra.mxu0 %v10153
    %v10155 = vand.u32 %v16, 4294901760
    %10156 = vmatmul.f32.gmra.mxu0 %v10155
    %v10157 = vpop.f32.mrf.mxu0
    %v10158 = vadd.f32 %v10057, %v10157
    %10159 = vdwg.mxu0
    %v10160 = vand.u32 %v239, 4294901760
    %v10161 = vsub.f32 %v239, %v10160
    %10162 = vmatpush.msra.mxu0 %v10161
    %v10163 = vand.u32 %v232, 4294901760
    %v10164 = vsub.f32 %v232, %v10163
    %10165 = vmatpush.msra.mxu0 %v10164
    %v10166 = vand.u32 %v225, 4294901760
    %v10167 = vsub.f32 %v225, %v10166
    %10168 = vmatpush.msra.mxu0 %v10167
    %v10169 = vand.u32 %v218, 4294901760
    %v10170 = vsub.f32 %v218, %v10169
    %10171 = vmatpush.msra.mxu0 %v10170
    %v10172 = vand.u32 %v211, 4294901760
    %v10173 = vsub.f32 %v211, %v10172
    %10174 = vmatpush.msra.mxu0 %v10173
    %v10175 = vand.u32 %v204, 4294901760
    %v10176 = vsub.f32 %v204, %v10175
    %10177 = vmatpush.msra.mxu0 %v10176
    %v10178 = vand.u32 %v197, 4294901760
    %v10179 = vsub.f32 %v197, %v10178
    %10180 = vmatpush.msra.mxu0 %v10179
    %v10181 = vand.u32 %v190, 4294901760
    %v10182 = vsub.f32 %v190, %v10181
    %10183 = vmatpush.msra.mxu0 %v10182
    %v10184 = vand.u32 %v183, 4294901760
    %v10185 = vsub.f32 %v183, %v10184
    %10186 = vmatpush.msra.mxu0 %v10185
    %v10187 = vand.u32 %v176, 4294901760
    %v10188 = vsub.f32 %v176, %v10187
    %10189 = vmatpush.msra.mxu0 %v10188
    %v10190 = vand.u32 %v169, 4294901760
    %v10191 = vsub.f32 %v169, %v10190
    %10192 = vmatpush.msra.mxu0 %v10191
    %v10193 = vand.u32 %v162, 4294901760
    %v10194 = vsub.f32 %v162, %v10193
    %10195 = vmatpush.msra.mxu0 %v10194
    %v10196 = vand.u32 %v155, 4294901760
    %v10197 = vsub.f32 %v155, %v10196
    %10198 = vmatpush.msra.mxu0 %v10197
    %v10199 = vand.u32 %v148, 4294901760
    %v10200 = vsub.f32 %v148, %v10199
    %10201 = vmatpush.msra.mxu0 %v10200
    %v10202 = vand.u32 %v141, 4294901760
    %v10203 = vsub.f32 %v141, %v10202
    %10204 = vmatpush.msra.mxu0 %v10203
    %v10205 = vand.u32 %v134, 4294901760
    %v10206 = vsub.f32 %v134, %v10205
    %10207 = vmatpush.msra.mxu0 %v10206
    %v10208 = vand.u32 %v16, 4294901760
    %v10209 = vsub.f32 %v16, %v10208
    %10210 = vmatmul.f32.gmra.mxu0 %v10209
    %v10211 = vpop.f32.mrf.mxu0
    %v10212 = vadd.f32 %v10158, %v10211
    %10213 = vdwg.mxu0
    %v10214 = vand.u32 %v239, 4294901760
    %10215 = vmatpush.msra.mxu0 %v10214
    %v10216 = vand.u32 %v232, 4294901760
    %10217 = vmatpush.msra.mxu0 %v10216
    %v10218 = vand.u32 %v225, 4294901760
    %10219 = vmatpush.msra.mxu0 %v10218
    %v10220 = vand.u32 %v218, 4294901760
    %10221 = vmatpush.msra.mxu0 %v10220
    %v10222 = vand.u32 %v211, 4294901760
    %10223 = vmatpush.msra.mxu0 %v10222
    %v10224 = vand.u32 %v204, 4294901760
    %10225 = vmatpush.msra.mxu0 %v10224
    %v10226 = vand.u32 %v197, 4294901760
    %10227 = vmatpush.msra.mxu0 %v10226
    %v10228 = vand.u32 %v190, 4294901760
    %10229 = vmatpush.msra.mxu0 %v10228
    %v10230 = vand.u32 %v183, 4294901760
    %10231 = vmatpush.msra.mxu0 %v10230
    %v10232 = vand.u32 %v176, 4294901760
    %10233 = vmatpush.msra.mxu0 %v10232
    %v10234 = vand.u32 %v169, 4294901760
    %10235 = vmatpush.msra.mxu0 %v10234
    %v10236 = vand.u32 %v162, 4294901760
    %10237 = vmatpush.msra.mxu0 %v10236
    %v10238 = vand.u32 %v155, 4294901760
    %10239 = vmatpush.msra.mxu0 %v10238
    %v10240 = vand.u32 %v148, 4294901760
    %10241 = vmatpush.msra.mxu0 %v10240
    %v10242 = vand.u32 %v141, 4294901760
    %10243 = vmatpush.msra.mxu0 %v10242
    %v10244 = vand.u32 %v134, 4294901760
    %10245 = vmatpush.msra.mxu0 %v10244
    %v10246 = vand.u32 %v16, 4294901760
    %v10247 = vsub.f32 %v16, %v10246
    %v10248 = vand.u32 %v10247, 4294901760
    %10249 = vmatmul.f32.gmra.mxu0 %v10248
    %v10250 = vpop.f32.mrf.mxu0
    %v10251 = vadd.f32 %v10212, %v10250
    %10252 = vdwg.mxu0
    %v10253 = vand.u32 %v239, 4294901760
    %v10254 = vsub.f32 %v239, %v10253
    %v10255 = vand.u32 %v10254, 4294901760
    %10256 = vmatpush.msra.mxu0 %v10255
    %v10257 = vand.u32 %v232, 4294901760
    %v10258 = vsub.f32 %v232, %v10257
    %v10259 = vand.u32 %v10258, 4294901760
    %10260 = vmatpush.msra.mxu0 %v10259
    %v10261 = vand.u32 %v225, 4294901760
    %v10262 = vsub.f32 %v225, %v10261
    %v10263 = vand.u32 %v10262, 4294901760
    %10264 = vmatpush.msra.mxu0 %v10263
    %v10265 = vand.u32 %v218, 4294901760
    %v10266 = vsub.f32 %v218, %v10265
    %v10267 = vand.u32 %v10266, 4294901760
    %10268 = vmatpush.msra.mxu0 %v10267
    %v10269 = vand.u32 %v211, 4294901760
    %v10270 = vsub.f32 %v211, %v10269
    %v10271 = vand.u32 %v10270, 4294901760
    %10272 = vmatpush.msra.mxu0 %v10271
    %v10273 = vand.u32 %v204, 4294901760
    %v10274 = vsub.f32 %v204, %v10273
    %v10275 = vand.u32 %v10274, 4294901760
    %10276 = vmatpush.msra.mxu0 %v10275
    %v10277 = vand.u32 %v197, 4294901760
    %v10278 = vsub.f32 %v197, %v10277
    %v10279 = vand.u32 %v10278, 4294901760
    %10280 = vmatpush.msra.mxu0 %v10279
    %v10281 = vand.u32 %v190, 4294901760
    %v10282 = vsub.f32 %v190, %v10281
    %v10283 = vand.u32 %v10282, 4294901760
    %10284 = vmatpush.msra.mxu0 %v10283
    %v10285 = vand.u32 %v183, 4294901760
    %v10286 = vsub.f32 %v183, %v10285
    %v10287 = vand.u32 %v10286, 4294901760
    %10288 = vmatpush.msra.mxu0 %v10287
    %v10289 = vand.u32 %v176, 4294901760
    %v10290 = vsub.f32 %v176, %v10289
    %v10291 = vand.u32 %v10290, 4294901760
    %10292 = vmatpush.msra.mxu0 %v10291
    %v10293 = vand.u32 %v169, 4294901760
    %v10294 = vsub.f32 %v169, %v10293
    %v10295 = vand.u32 %v10294, 4294901760
    %10296 = vmatpush.msra.mxu0 %v10295
    %v10297 = vand.u32 %v162, 4294901760
    %v10298 = vsub.f32 %v162, %v10297
    %v10299 = vand.u32 %v10298, 4294901760
    %10300 = vmatpush.msra.mxu0 %v10299
    %v10301 = vand.u32 %v155, 4294901760
    %v10302 = vsub.f32 %v155, %v10301
    %v10303 = vand.u32 %v10302, 4294901760
    %10304 = vmatpush.msra.mxu0 %v10303
    %v10305 = vand.u32 %v148, 4294901760
    %v10306 = vsub.f32 %v148, %v10305
    %v10307 = vand.u32 %v10306, 4294901760
    %10308 = vmatpush.msra.mxu0 %v10307
    %v10309 = vand.u32 %v141, 4294901760
    %v10310 = vsub.f32 %v141, %v10309
    %v10311 = vand.u32 %v10310, 4294901760
    %10312 = vmatpush.msra.mxu0 %v10311
    %v10313 = vand.u32 %v134, 4294901760
    %v10314 = vsub.f32 %v134, %v10313
    %v10315 = vand.u32 %v10314, 4294901760
    %10316 = vmatpush.msra.mxu0 %v10315
    %v10317 = vand.u32 %v16, 4294901760
    %10318 = vmatmul.f32.gmra.mxu0 %v10317
    %v10319 = vpop.f32.mrf.mxu0
    %v10320 = vadd.f32 %v10251, %v10319
    %10321 = vdwg.mxu0
    %v10322 = vand.u32 %v239, 4294901760
    %10323 = vmatpush.msra.mxu0 %v10322
    %v10324 = vand.u32 %v232, 4294901760
    %10325 = vmatpush.msra.mxu0 %v10324
    %v10326 = vand.u32 %v225, 4294901760
    %10327 = vmatpush.msra.mxu0 %v10326
    %v10328 = vand.u32 %v218, 4294901760
    %10329 = vmatpush.msra.mxu0 %v10328
    %v10330 = vand.u32 %v211, 4294901760
    %10331 = vmatpush.msra.mxu0 %v10330
    %v10332 = vand.u32 %v204, 4294901760
    %10333 = vmatpush.msra.mxu0 %v10332
    %v10334 = vand.u32 %v197, 4294901760
    %10335 = vmatpush.msra.mxu0 %v10334
    %v10336 = vand.u32 %v190, 4294901760
    %10337 = vmatpush.msra.mxu0 %v10336
    %v10338 = vand.u32 %v183, 4294901760
    %10339 = vmatpush.msra.mxu0 %v10338
    %v10340 = vand.u32 %v176, 4294901760
    %10341 = vmatpush.msra.mxu0 %v10340
    %v10342 = vand.u32 %v169, 4294901760
    %10343 = vmatpush.msra.mxu0 %v10342
    %v10344 = vand.u32 %v162, 4294901760
    %10345 = vmatpush.msra.mxu0 %v10344
    %v10346 = vand.u32 %v155, 4294901760
    %10347 = vmatpush.msra.mxu0 %v10346
    %v10348 = vand.u32 %v148, 4294901760
    %10349 = vmatpush.msra.mxu0 %v10348
    %v10350 = vand.u32 %v141, 4294901760
    %10351 = vmatpush.msra.mxu0 %v10350
    %v10352 = vand.u32 %v134, 4294901760
    %10353 = vmatpush.msra.mxu0 %v10352
    %v10354 = vand.u32 %v16, 4294901760
    %10355 = vmatmul.f32.gmra.mxu0 %v10354
    %v10356 = vpop.f32.mrf.mxu0
    %v10357 = vadd.f32 %v10320, %v10356
    %10358 = vdwg.mxu0
    %v10359 = vand.u32 %v128, 4294901760
    %10360 = vmatpush.msra.mxu0 %v10359
    %v10361 = vand.u32 %v121, 4294901760
    %10362 = vmatpush.msra.mxu0 %v10361
    %v10363 = vand.u32 %v114, 4294901760
    %10364 = vmatpush.msra.mxu0 %v10363
    %v10365 = vand.u32 %v107, 4294901760
    %10366 = vmatpush.msra.mxu0 %v10365
    %v10367 = vand.u32 %v100, 4294901760
    %10368 = vmatpush.msra.mxu0 %v10367
    %v10369 = vand.u32 %v93, 4294901760
    %10370 = vmatpush.msra.mxu0 %v10369
    %v10371 = vand.u32 %v86, 4294901760
    %10372 = vmatpush.msra.mxu0 %v10371
    %v10373 = vand.u32 %v79, 4294901760
    %10374 = vmatpush.msra.mxu0 %v10373
    %v10375 = vand.u32 %v72, 4294901760
    %10376 = vmatpush.msra.mxu0 %v10375
    %v10377 = vand.u32 %v65, 4294901760
    %10378 = vmatpush.msra.mxu0 %v10377
    %v10379 = vand.u32 %v58, 4294901760
    %10380 = vmatpush.msra.mxu0 %v10379
    %v10381 = vand.u32 %v51, 4294901760
    %10382 = vmatpush.msra.mxu0 %v10381
    %v10383 = vand.u32 %v44, 4294901760
    %10384 = vmatpush.msra.mxu0 %v10383
    %v10385 = vand.u32 %v37, 4294901760
    %10386 = vmatpush.msra.mxu0 %v10385
    %v10387 = vand.u32 %v30, 4294901760
    %10388 = vmatpush.msra.mxu0 %v10387
    %v10389 = vand.u32 %v23, 4294901760
    %10390 = vmatpush.msra.mxu0 %v10389
    %v10391 = vand.u32 %v15, 4294901760
    %v10392 = vsub.f32 %v15, %v10391
    %v10393 = vand.u32 %v10392, 4294901760
    %v10394 = vsub.f32 %v10392, %v10393
    %v10395 = vand.u32 %v10394, 4294901760
    %10396 = vmatmul.f32.gmra.mxu0 %v10395
    %v10397 = vpop.f32.mrf.mxu0
    %v10398 = vadd.f32 %v6265, %v10397
    %10399 = vdwg.mxu0
    %v10400 = vand.u32 %v128, 4294901760
    %v10401 = vsub.f32 %v128, %v10400
    %v10402 = vand.u32 %v10401, 4294901760
    %v10403 = vsub.f32 %v10401, %v10402
    %v10404 = vand.u32 %v10403, 4294901760
    %10405 = vmatpush.msra.mxu0 %v10404
    %v10406 = vand.u32 %v121, 4294901760
    %v10407 = vsub.f32 %v121, %v10406
    %v10408 = vand.u32 %v10407, 4294901760
    %v10409 = vsub.f32 %v10407, %v10408
    %v10410 = vand.u32 %v10409, 4294901760
    %10411 = vmatpush.msra.mxu0 %v10410
    %v10412 = vand.u32 %v114, 4294901760
    %v10413 = vsub.f32 %v114, %v10412
    %v10414 = vand.u32 %v10413, 4294901760
    %v10415 = vsub.f32 %v10413, %v10414
    %v10416 = vand.u32 %v10415, 4294901760
    %10417 = vmatpush.msra.mxu0 %v10416
    %v10418 = vand.u32 %v107, 4294901760
    %v10419 = vsub.f32 %v107, %v10418
    %v10420 = vand.u32 %v10419, 4294901760
    %v10421 = vsub.f32 %v10419, %v10420
    %v10422 = vand.u32 %v10421, 4294901760
    %10423 = vmatpush.msra.mxu0 %v10422
    %v10424 = vand.u32 %v100, 4294901760
    %v10425 = vsub.f32 %v100, %v10424
    %v10426 = vand.u32 %v10425, 4294901760
    %v10427 = vsub.f32 %v10425, %v10426
    %v10428 = vand.u32 %v10427, 4294901760
    %10429 = vmatpush.msra.mxu0 %v10428
    %v10430 = vand.u32 %v93, 4294901760
    %v10431 = vsub.f32 %v93, %v10430
    %v10432 = vand.u32 %v10431, 4294901760
    %v10433 = vsub.f32 %v10431, %v10432
    %v10434 = vand.u32 %v10433, 4294901760
    %10435 = vmatpush.msra.mxu0 %v10434
    %v10436 = vand.u32 %v86, 4294901760
    %v10437 = vsub.f32 %v86, %v10436
    %v10438 = vand.u32 %v10437, 4294901760
    %v10439 = vsub.f32 %v10437, %v10438
    %v10440 = vand.u32 %v10439, 4294901760
    %10441 = vmatpush.msra.mxu0 %v10440
    %v10442 = vand.u32 %v79, 4294901760
    %v10443 = vsub.f32 %v79, %v10442
    %v10444 = vand.u32 %v10443, 4294901760
    %v10445 = vsub.f32 %v10443, %v10444
    %v10446 = vand.u32 %v10445, 4294901760
    %10447 = vmatpush.msra.mxu0 %v10446
    %v10448 = vand.u32 %v72, 4294901760
    %v10449 = vsub.f32 %v72, %v10448
    %v10450 = vand.u32 %v10449, 4294901760
    %v10451 = vsub.f32 %v10449, %v10450
    %v10452 = vand.u32 %v10451, 4294901760
    %10453 = vmatpush.msra.mxu0 %v10452
    %v10454 = vand.u32 %v65, 4294901760
    %v10455 = vsub.f32 %v65, %v10454
    %v10456 = vand.u32 %v10455, 4294901760
    %v10457 = vsub.f32 %v10455, %v10456
    %v10458 = vand.u32 %v10457, 4294901760
    %10459 = vmatpush.msra.mxu0 %v10458
    %v10460 = vand.u32 %v58, 4294901760
    %v10461 = vsub.f32 %v58, %v10460
    %v10462 = vand.u32 %v10461, 4294901760
    %v10463 = vsub.f32 %v10461, %v10462
    %v10464 = vand.u32 %v10463, 4294901760
    %10465 = vmatpush.msra.mxu0 %v10464
    %v10466 = vand.u32 %v51, 4294901760
    %v10467 = vsub.f32 %v51, %v10466
    %v10468 = vand.u32 %v10467, 4294901760
    %v10469 = vsub.f32 %v10467, %v10468
    %v10470 = vand.u32 %v10469, 4294901760
    %10471 = vmatpush.msra.mxu0 %v10470
    %v10472 = vand.u32 %v44, 4294901760
    %v10473 = vsub.f32 %v44, %v10472
    %v10474 = vand.u32 %v10473, 4294901760
    %v10475 = vsub.f32 %v10473, %v10474
    %v10476 = vand.u32 %v10475, 4294901760
    %10477 = vmatpush.msra.mxu0 %v10476
    %v10478 = vand.u32 %v37, 4294901760
    %v10479 = vsub.f32 %v37, %v10478
    %v10480 = vand.u32 %v10479, 4294901760
    %v10481 = vsub.f32 %v10479, %v10480
    %v10482 = vand.u32 %v10481, 4294901760
    %10483 = vmatpush.msra.mxu0 %v10482
    %v10484 = vand.u32 %v30, 4294901760
    %v10485 = vsub.f32 %v30, %v10484
    %v10486 = vand.u32 %v10485, 4294901760
    %v10487 = vsub.f32 %v10485, %v10486
    %v10488 = vand.u32 %v10487, 4294901760
    %10489 = vmatpush.msra.mxu0 %v10488
    %v10490 = vand.u32 %v23, 4294901760
    %v10491 = vsub.f32 %v23, %v10490
    %v10492 = vand.u32 %v10491, 4294901760
    %v10493 = vsub.f32 %v10491, %v10492
    %v10494 = vand.u32 %v10493, 4294901760
    %10495 = vmatpush.msra.mxu0 %v10494
    %v10496 = vand.u32 %v15, 4294901760
    %10497 = vmatmul.f32.gmra.mxu0 %v10496
    %v10498 = vpop.f32.mrf.mxu0
    %v10499 = vadd.f32 %v10398, %v10498
    %10500 = vdwg.mxu0
    %v10501 = vand.u32 %v128, 4294901760
    %v10502 = vsub.f32 %v128, %v10501
    %10503 = vmatpush.msra.mxu0 %v10502
    %v10504 = vand.u32 %v121, 4294901760
    %v10505 = vsub.f32 %v121, %v10504
    %10506 = vmatpush.msra.mxu0 %v10505
    %v10507 = vand.u32 %v114, 4294901760
    %v10508 = vsub.f32 %v114, %v10507
    %10509 = vmatpush.msra.mxu0 %v10508
    %v10510 = vand.u32 %v107, 4294901760
    %v10511 = vsub.f32 %v107, %v10510
    %10512 = vmatpush.msra.mxu0 %v10511
    %v10513 = vand.u32 %v100, 4294901760
    %v10514 = vsub.f32 %v100, %v10513
    %10515 = vmatpush.msra.mxu0 %v10514
    %v10516 = vand.u32 %v93, 4294901760
    %v10517 = vsub.f32 %v93, %v10516
    %10518 = vmatpush.msra.mxu0 %v10517
    %v10519 = vand.u32 %v86, 4294901760
    %v10520 = vsub.f32 %v86, %v10519
    %10521 = vmatpush.msra.mxu0 %v10520
    %v10522 = vand.u32 %v79, 4294901760
    %v10523 = vsub.f32 %v79, %v10522
    %10524 = vmatpush.msra.mxu0 %v10523
    %v10525 = vand.u32 %v72, 4294901760
    %v10526 = vsub.f32 %v72, %v10525
    %10527 = vmatpush.msra.mxu0 %v10526
    %v10528 = vand.u32 %v65, 4294901760
    %v10529 = vsub.f32 %v65, %v10528
    %10530 = vmatpush.msra.mxu0 %v10529
    %v10531 = vand.u32 %v58, 4294901760
    %v10532 = vsub.f32 %v58, %v10531
    %10533 = vmatpush.msra.mxu0 %v10532
    %v10534 = vand.u32 %v51, 4294901760
    %v10535 = vsub.f32 %v51, %v10534
    %10536 = vmatpush.msra.mxu0 %v10535
    %v10537 = vand.u32 %v44, 4294901760
    %v10538 = vsub.f32 %v44, %v10537
    %10539 = vmatpush.msra.mxu0 %v10538
    %v10540 = vand.u32 %v37, 4294901760
    %v10541 = vsub.f32 %v37, %v10540
    %10542 = vmatpush.msra.mxu0 %v10541
    %v10543 = vand.u32 %v30, 4294901760
    %v10544 = vsub.f32 %v30, %v10543
    %10545 = vmatpush.msra.mxu0 %v10544
    %v10546 = vand.u32 %v23, 4294901760
    %v10547 = vsub.f32 %v23, %v10546
    %10548 = vmatpush.msra.mxu0 %v10547
    %v10549 = vand.u32 %v15, 4294901760
    %v10550 = vsub.f32 %v15, %v10549
    %10551 = vmatmul.f32.gmra.mxu0 %v10550
    %v10552 = vpop.f32.mrf.mxu0
    %v10553 = vadd.f32 %v10499, %v10552
    %10554 = vdwg.mxu0
    %v10555 = vand.u32 %v128, 4294901760
    %10556 = vmatpush.msra.mxu0 %v10555
    %v10557 = vand.u32 %v121, 4294901760
    %10558 = vmatpush.msra.mxu0 %v10557
    %v10559 = vand.u32 %v114, 4294901760
    %10560 = vmatpush.msra.mxu0 %v10559
    %v10561 = vand.u32 %v107, 4294901760
    %10562 = vmatpush.msra.mxu0 %v10561
    %v10563 = vand.u32 %v100, 4294901760
    %10564 = vmatpush.msra.mxu0 %v10563
    %v10565 = vand.u32 %v93, 4294901760
    %10566 = vmatpush.msra.mxu0 %v10565
    %v10567 = vand.u32 %v86, 4294901760
    %10568 = vmatpush.msra.mxu0 %v10567
    %v10569 = vand.u32 %v79, 4294901760
    %10570 = vmatpush.msra.mxu0 %v10569
    %v10571 = vand.u32 %v72, 4294901760
    %10572 = vmatpush.msra.mxu0 %v10571
    %v10573 = vand.u32 %v65, 4294901760
    %10574 = vmatpush.msra.mxu0 %v10573
    %v10575 = vand.u32 %v58, 4294901760
    %10576 = vmatpush.msra.mxu0 %v10575
    %v10577 = vand.u32 %v51, 4294901760
    %10578 = vmatpush.msra.mxu0 %v10577
    %v10579 = vand.u32 %v44, 4294901760
    %10580 = vmatpush.msra.mxu0 %v10579
    %v10581 = vand.u32 %v37, 4294901760
    %10582 = vmatpush.msra.mxu0 %v10581
    %v10583 = vand.u32 %v30, 4294901760
    %10584 = vmatpush.msra.mxu0 %v10583
    %v10585 = vand.u32 %v23, 4294901760
    %10586 = vmatpush.msra.mxu0 %v10585
    %v10587 = vand.u32 %v15, 4294901760
    %v10588 = vsub.f32 %v15, %v10587
    %v10589 = vand.u32 %v10588, 4294901760
    %10590 = vmatmul.f32.gmra.mxu0 %v10589
    %v10591 = vpop.f32.mrf.mxu0
    %v10592 = vadd.f32 %v10553, %v10591
    %10593 = vdwg.mxu0
    %v10594 = vand.u32 %v128, 4294901760
    %v10595 = vsub.f32 %v128, %v10594
    %v10596 = vand.u32 %v10595, 4294901760
    %10597 = vmatpush.msra.mxu0 %v10596
    %v10598 = vand.u32 %v121, 4294901760
    %v10599 = vsub.f32 %v121, %v10598
    %v10600 = vand.u32 %v10599, 4294901760
    %10601 = vmatpush.msra.mxu0 %v10600
    %v10602 = vand.u32 %v114, 4294901760
    %v10603 = vsub.f32 %v114, %v10602
    %v10604 = vand.u32 %v10603, 4294901760
    %10605 = vmatpush.msra.mxu0 %v10604
    %v10606 = vand.u32 %v107, 4294901760
    %v10607 = vsub.f32 %v107, %v10606
    %v10608 = vand.u32 %v10607, 4294901760
    %10609 = vmatpush.msra.mxu0 %v10608
    %v10610 = vand.u32 %v100, 4294901760
    %v10611 = vsub.f32 %v100, %v10610
    %v10612 = vand.u32 %v10611, 4294901760
    %10613 = vmatpush.msra.mxu0 %v10612
    %v10614 = vand.u32 %v93, 4294901760
    %v10615 = vsub.f32 %v93, %v10614
    %v10616 = vand.u32 %v10615, 4294901760
    %10617 = vmatpush.msra.mxu0 %v10616
    %v10618 = vand.u32 %v86, 4294901760
    %v10619 = vsub.f32 %v86, %v10618
    %v10620 = vand.u32 %v10619, 4294901760
    %10621 = vmatpush.msra.mxu0 %v10620
    %v10622 = vand.u32 %v79, 4294901760
    %v10623 = vsub.f32 %v79, %v10622
    %v10624 = vand.u32 %v10623, 4294901760
    %10625 = vmatpush.msra.mxu0 %v10624
    %v10626 = vand.u32 %v72, 4294901760
    %v10627 = vsub.f32 %v72, %v10626
    %v10628 = vand.u32 %v10627, 4294901760
    %10629 = vmatpush.msra.mxu0 %v10628
    %v10630 = vand.u32 %v65, 4294901760
    %v10631 = vsub.f32 %v65, %v10630
    %v10632 = vand.u32 %v10631, 4294901760
    %10633 = vmatpush.msra.mxu0 %v10632
    %v10634 = vand.u32 %v58, 4294901760
    %v10635 = vsub.f32 %v58, %v10634
    %v10636 = vand.u32 %v10635, 4294901760
    %10637 = vmatpush.msra.mxu0 %v10636
    %v10638 = vand.u32 %v51, 4294901760
    %v10639 = vsub.f32 %v51, %v10638
    %v10640 = vand.u32 %v10639, 4294901760
    %10641 = vmatpush.msra.mxu0 %v10640
    %v10642 = vand.u32 %v44, 4294901760
    %v10643 = vsub.f32 %v44, %v10642
    %v10644 = vand.u32 %v10643, 4294901760
    %10645 = vmatpush.msra.mxu0 %v10644
    %v10646 = vand.u32 %v37, 4294901760
    %v10647 = vsub.f32 %v37, %v10646
    %v10648 = vand.u32 %v10647, 4294901760
    %10649 = vmatpush.msra.mxu0 %v10648
    %v10650 = vand.u32 %v30, 4294901760
    %v10651 = vsub.f32 %v30, %v10650
    %v10652 = vand.u32 %v10651, 4294901760
    %10653 = vmatpush.msra.mxu0 %v10652
    %v10654 = vand.u32 %v23, 4294901760
    %v10655 = vsub.f32 %v23, %v10654
    %v10656 = vand.u32 %v10655, 4294901760
    %10657 = vmatpush.msra.mxu0 %v10656
    %v10658 = vand.u32 %v15, 4294901760
    %10659 = vmatmul.f32.gmra.mxu0 %v10658
    %v10660 = vpop.f32.mrf.mxu0
    %v10661 = vadd.f32 %v10592, %v10660
    %10662 = vdwg.mxu0
    %v10663 = vand.u32 %v128, 4294901760
    %10664 = vmatpush.msra.mxu0 %v10663
    %v10665 = vand.u32 %v121, 4294901760
    %10666 = vmatpush.msra.mxu0 %v10665
    %v10667 = vand.u32 %v114, 4294901760
    %10668 = vmatpush.msra.mxu0 %v10667
    %v10669 = vand.u32 %v107, 4294901760
    %10670 = vmatpush.msra.mxu0 %v10669
    %v10671 = vand.u32 %v100, 4294901760
    %10672 = vmatpush.msra.mxu0 %v10671
    %v10673 = vand.u32 %v93, 4294901760
    %10674 = vmatpush.msra.mxu0 %v10673
    %v10675 = vand.u32 %v86, 4294901760
    %10676 = vmatpush.msra.mxu0 %v10675
    %v10677 = vand.u32 %v79, 4294901760
    %10678 = vmatpush.msra.mxu0 %v10677
    %v10679 = vand.u32 %v72, 4294901760
    %10680 = vmatpush.msra.mxu0 %v10679
    %v10681 = vand.u32 %v65, 4294901760
    %10682 = vmatpush.msra.mxu0 %v10681
    %v10683 = vand.u32 %v58, 4294901760
    %10684 = vmatpush.msra.mxu0 %v10683
    %v10685 = vand.u32 %v51, 4294901760
    %10686 = vmatpush.msra.mxu0 %v10685
    %v10687 = vand.u32 %v44, 4294901760
    %10688 = vmatpush.msra.mxu0 %v10687
    %v10689 = vand.u32 %v37, 4294901760
    %10690 = vmatpush.msra.mxu0 %v10689
    %v10691 = vand.u32 %v30, 4294901760
    %10692 = vmatpush.msra.mxu0 %v10691
    %v10693 = vand.u32 %v23, 4294901760
    %10694 = vmatpush.msra.mxu0 %v10693
    %v10695 = vand.u32 %v15, 4294901760
    %10696 = vmatmul.f32.gmra.mxu0 %v10695
    %v10697 = vpop.f32.mrf.mxu0
    %v10698 = vadd.f32 %v10661, %v10697
    %10699 = vdwg.mxu0
    %v10700 = vand.u32 %v240, 4294901760
    %10701 = vmatpush.msra.mxu0 %v10700
    %v10702 = vand.u32 %v233, 4294901760
    %10703 = vmatpush.msra.mxu0 %v10702
    %v10704 = vand.u32 %v226, 4294901760
    %10705 = vmatpush.msra.mxu0 %v10704
    %v10706 = vand.u32 %v219, 4294901760
    %10707 = vmatpush.msra.mxu0 %v10706
    %v10708 = vand.u32 %v212, 4294901760
    %10709 = vmatpush.msra.mxu0 %v10708
    %v10710 = vand.u32 %v205, 4294901760
    %10711 = vmatpush.msra.mxu0 %v10710
    %v10712 = vand.u32 %v198, 4294901760
    %10713 = vmatpush.msra.mxu0 %v10712
    %v10714 = vand.u32 %v191, 4294901760
    %10715 = vmatpush.msra.mxu0 %v10714
    %v10716 = vand.u32 %v184, 4294901760
    %10717 = vmatpush.msra.mxu0 %v10716
    %v10718 = vand.u32 %v177, 4294901760
    %10719 = vmatpush.msra.mxu0 %v10718
    %v10720 = vand.u32 %v170, 4294901760
    %10721 = vmatpush.msra.mxu0 %v10720
    %v10722 = vand.u32 %v163, 4294901760
    %10723 = vmatpush.msra.mxu0 %v10722
    %v10724 = vand.u32 %v156, 4294901760
    %10725 = vmatpush.msra.mxu0 %v10724
    %v10726 = vand.u32 %v149, 4294901760
    %10727 = vmatpush.msra.mxu0 %v10726
    %v10728 = vand.u32 %v142, 4294901760
    %10729 = vmatpush.msra.mxu0 %v10728
    %v10730 = vand.u32 %v135, 4294901760
    %10731 = vmatpush.msra.mxu0 %v10730
    %v10732 = vand.u32 %v16, 4294901760
    %v10733 = vsub.f32 %v16, %v10732
    %v10734 = vand.u32 %v10733, 4294901760
    %v10735 = vsub.f32 %v10733, %v10734
    %v10736 = vand.u32 %v10735, 4294901760
    %10737 = vmatmul.f32.gmra.mxu0 %v10736
    %v10738 = vpop.f32.mrf.mxu0
    %v10739 = vadd.f32 %v10698, %v10738
    %10740 = vdwg.mxu0
    %v10741 = vand.u32 %v240, 4294901760
    %v10742 = vsub.f32 %v240, %v10741
    %v10743 = vand.u32 %v10742, 4294901760
    %v10744 = vsub.f32 %v10742, %v10743
    %v10745 = vand.u32 %v10744, 4294901760
    %10746 = vmatpush.msra.mxu0 %v10745
    %v10747 = vand.u32 %v233, 4294901760
    %v10748 = vsub.f32 %v233, %v10747
    %v10749 = vand.u32 %v10748, 4294901760
    %v10750 = vsub.f32 %v10748, %v10749
    %v10751 = vand.u32 %v10750, 4294901760
    %10752 = vmatpush.msra.mxu0 %v10751
    %v10753 = vand.u32 %v226, 4294901760
    %v10754 = vsub.f32 %v226, %v10753
    %v10755 = vand.u32 %v10754, 4294901760
    %v10756 = vsub.f32 %v10754, %v10755
    %v10757 = vand.u32 %v10756, 4294901760
    %10758 = vmatpush.msra.mxu0 %v10757
    %v10759 = vand.u32 %v219, 4294901760
    %v10760 = vsub.f32 %v219, %v10759
    %v10761 = vand.u32 %v10760, 4294901760
    %v10762 = vsub.f32 %v10760, %v10761
    %v10763 = vand.u32 %v10762, 4294901760
    %10764 = vmatpush.msra.mxu0 %v10763
    %v10765 = vand.u32 %v212, 4294901760
    %v10766 = vsub.f32 %v212, %v10765
    %v10767 = vand.u32 %v10766, 4294901760
    %v10768 = vsub.f32 %v10766, %v10767
    %v10769 = vand.u32 %v10768, 4294901760
    %10770 = vmatpush.msra.mxu0 %v10769
    %v10771 = vand.u32 %v205, 4294901760
    %v10772 = vsub.f32 %v205, %v10771
    %v10773 = vand.u32 %v10772, 4294901760
    %v10774 = vsub.f32 %v10772, %v10773
    %v10775 = vand.u32 %v10774, 4294901760
    %10776 = vmatpush.msra.mxu0 %v10775
    %v10777 = vand.u32 %v198, 4294901760
    %v10778 = vsub.f32 %v198, %v10777
    %v10779 = vand.u32 %v10778, 4294901760
    %v10780 = vsub.f32 %v10778, %v10779
    %v10781 = vand.u32 %v10780, 4294901760
    %10782 = vmatpush.msra.mxu0 %v10781
    %v10783 = vand.u32 %v191, 4294901760
    %v10784 = vsub.f32 %v191, %v10783
    %v10785 = vand.u32 %v10784, 4294901760
    %v10786 = vsub.f32 %v10784, %v10785
    %v10787 = vand.u32 %v10786, 4294901760
    %10788 = vmatpush.msra.mxu0 %v10787
    %v10789 = vand.u32 %v184, 4294901760
    %v10790 = vsub.f32 %v184, %v10789
    %v10791 = vand.u32 %v10790, 4294901760
    %v10792 = vsub.f32 %v10790, %v10791
    %v10793 = vand.u32 %v10792, 4294901760
    %10794 = vmatpush.msra.mxu0 %v10793
    %v10795 = vand.u32 %v177, 4294901760
    %v10796 = vsub.f32 %v177, %v10795
    %v10797 = vand.u32 %v10796, 4294901760
    %v10798 = vsub.f32 %v10796, %v10797
    %v10799 = vand.u32 %v10798, 4294901760
    %10800 = vmatpush.msra.mxu0 %v10799
    %v10801 = vand.u32 %v170, 4294901760
    %v10802 = vsub.f32 %v170, %v10801
    %v10803 = vand.u32 %v10802, 4294901760
    %v10804 = vsub.f32 %v10802, %v10803
    %v10805 = vand.u32 %v10804, 4294901760
    %10806 = vmatpush.msra.mxu0 %v10805
    %v10807 = vand.u32 %v163, 4294901760
    %v10808 = vsub.f32 %v163, %v10807
    %v10809 = vand.u32 %v10808, 4294901760
    %v10810 = vsub.f32 %v10808, %v10809
    %v10811 = vand.u32 %v10810, 4294901760
    %10812 = vmatpush.msra.mxu0 %v10811
    %v10813 = vand.u32 %v156, 4294901760
    %v10814 = vsub.f32 %v156, %v10813
    %v10815 = vand.u32 %v10814, 4294901760
    %v10816 = vsub.f32 %v10814, %v10815
    %v10817 = vand.u32 %v10816, 4294901760
    %10818 = vmatpush.msra.mxu0 %v10817
    %v10819 = vand.u32 %v149, 4294901760
    %v10820 = vsub.f32 %v149, %v10819
    %v10821 = vand.u32 %v10820, 4294901760
    %v10822 = vsub.f32 %v10820, %v10821
    %v10823 = vand.u32 %v10822, 4294901760
    %10824 = vmatpush.msra.mxu0 %v10823
    %v10825 = vand.u32 %v142, 4294901760
    %v10826 = vsub.f32 %v142, %v10825
    %v10827 = vand.u32 %v10826, 4294901760
    %v10828 = vsub.f32 %v10826, %v10827
    %v10829 = vand.u32 %v10828, 4294901760
    %10830 = vmatpush.msra.mxu0 %v10829
    %v10831 = vand.u32 %v135, 4294901760
    %v10832 = vsub.f32 %v135, %v10831
    %v10833 = vand.u32 %v10832, 4294901760
    %v10834 = vsub.f32 %v10832, %v10833
    %v10835 = vand.u32 %v10834, 4294901760
    %10836 = vmatpush.msra.mxu0 %v10835
    %v10837 = vand.u32 %v16, 4294901760
    %10838 = vmatmul.f32.gmra.mxu0 %v10837
    %v10839 = vpop.f32.mrf.mxu0
    %v10840 = vadd.f32 %v10739, %v10839
    %10841 = vdwg.mxu0
    %v10842 = vand.u32 %v240, 4294901760
    %v10843 = vsub.f32 %v240, %v10842
    %10844 = vmatpush.msra.mxu0 %v10843
    %v10845 = vand.u32 %v233, 4294901760
    %v10846 = vsub.f32 %v233, %v10845
    %10847 = vmatpush.msra.mxu0 %v10846
    %v10848 = vand.u32 %v226, 4294901760
    %v10849 = vsub.f32 %v226, %v10848
    %10850 = vmatpush.msra.mxu0 %v10849
    %v10851 = vand.u32 %v219, 4294901760
    %v10852 = vsub.f32 %v219, %v10851
    %10853 = vmatpush.msra.mxu0 %v10852
    %v10854 = vand.u32 %v212, 4294901760
    %v10855 = vsub.f32 %v212, %v10854
    %10856 = vmatpush.msra.mxu0 %v10855
    %v10857 = vand.u32 %v205, 4294901760
    %v10858 = vsub.f32 %v205, %v10857
    %10859 = vmatpush.msra.mxu0 %v10858
    %v10860 = vand.u32 %v198, 4294901760
    %v10861 = vsub.f32 %v198, %v10860
    %10862 = vmatpush.msra.mxu0 %v10861
    %v10863 = vand.u32 %v191, 4294901760
    %v10864 = vsub.f32 %v191, %v10863
    %10865 = vmatpush.msra.mxu0 %v10864
    %v10866 = vand.u32 %v184, 4294901760
    %v10867 = vsub.f32 %v184, %v10866
    %10868 = vmatpush.msra.mxu0 %v10867
    %v10869 = vand.u32 %v177, 4294901760
    %v10870 = vsub.f32 %v177, %v10869
    %10871 = vmatpush.msra.mxu0 %v10870
    %v10872 = vand.u32 %v170, 4294901760
    %v10873 = vsub.f32 %v170, %v10872
    %10874 = vmatpush.msra.mxu0 %v10873
    %v10875 = vand.u32 %v163, 4294901760
    %v10876 = vsub.f32 %v163, %v10875
    %10877 = vmatpush.msra.mxu0 %v10876
    %v10878 = vand.u32 %v156, 4294901760
    %v10879 = vsub.f32 %v156, %v10878
    %10880 = vmatpush.msra.mxu0 %v10879
    %v10881 = vand.u32 %v149, 4294901760
    %v10882 = vsub.f32 %v149, %v10881
    %10883 = vmatpush.msra.mxu0 %v10882
    %v10884 = vand.u32 %v142, 4294901760
    %v10885 = vsub.f32 %v142, %v10884
    %10886 = vmatpush.msra.mxu0 %v10885
    %v10887 = vand.u32 %v135, 4294901760
    %v10888 = vsub.f32 %v135, %v10887
    %10889 = vmatpush.msra.mxu0 %v10888
    %v10890 = vand.u32 %v16, 4294901760
    %v10891 = vsub.f32 %v16, %v10890
    %10892 = vmatmul.f32.gmra.mxu0 %v10891
    %v10893 = vpop.f32.mrf.mxu0
    %v10894 = vadd.f32 %v10840, %v10893
    %10895 = vdwg.mxu0
    %v10896 = vand.u32 %v240, 4294901760
    %10897 = vmatpush.msra.mxu0 %v10896
    %v10898 = vand.u32 %v233, 4294901760
    %10899 = vmatpush.msra.mxu0 %v10898
    %v10900 = vand.u32 %v226, 4294901760
    %10901 = vmatpush.msra.mxu0 %v10900
    %v10902 = vand.u32 %v219, 4294901760
    %10903 = vmatpush.msra.mxu0 %v10902
    %v10904 = vand.u32 %v212, 4294901760
    %10905 = vmatpush.msra.mxu0 %v10904
    %v10906 = vand.u32 %v205, 4294901760
    %10907 = vmatpush.msra.mxu0 %v10906
    %v10908 = vand.u32 %v198, 4294901760
    %10909 = vmatpush.msra.mxu0 %v10908
    %v10910 = vand.u32 %v191, 4294901760
    %10911 = vmatpush.msra.mxu0 %v10910
    %v10912 = vand.u32 %v184, 4294901760
    %10913 = vmatpush.msra.mxu0 %v10912
    %v10914 = vand.u32 %v177, 4294901760
    %10915 = vmatpush.msra.mxu0 %v10914
    %v10916 = vand.u32 %v170, 4294901760
    %10917 = vmatpush.msra.mxu0 %v10916
    %v10918 = vand.u32 %v163, 4294901760
    %10919 = vmatpush.msra.mxu0 %v10918
    %v10920 = vand.u32 %v156, 4294901760
    %10921 = vmatpush.msra.mxu0 %v10920
    %v10922 = vand.u32 %v149, 4294901760
    %10923 = vmatpush.msra.mxu0 %v10922
    %v10924 = vand.u32 %v142, 4294901760
    %10925 = vmatpush.msra.mxu0 %v10924
    %v10926 = vand.u32 %v135, 4294901760
    %10927 = vmatpush.msra.mxu0 %v10926
    %v10928 = vand.u32 %v16, 4294901760
    %v10929 = vsub.f32 %v16, %v10928
    %v10930 = vand.u32 %v10929, 4294901760
    %10931 = vmatmul.f32.gmra.mxu0 %v10930
    %v10932 = vpop.f32.mrf.mxu0
    %v10933 = vadd.f32 %v10894, %v10932
    %10934 = vdwg.mxu0
    %v10935 = vand.u32 %v240, 4294901760
    %v10936 = vsub.f32 %v240, %v10935
    %v10937 = vand.u32 %v10936, 4294901760
    %10938 = vmatpush.msra.mxu0 %v10937
    %v10939 = vand.u32 %v233, 4294901760
    %v10940 = vsub.f32 %v233, %v10939
    %v10941 = vand.u32 %v10940, 4294901760
    %10942 = vmatpush.msra.mxu0 %v10941
    %v10943 = vand.u32 %v226, 4294901760
    %v10944 = vsub.f32 %v226, %v10943
    %v10945 = vand.u32 %v10944, 4294901760
    %10946 = vmatpush.msra.mxu0 %v10945
    %v10947 = vand.u32 %v219, 4294901760
    %v10948 = vsub.f32 %v219, %v10947
    %v10949 = vand.u32 %v10948, 4294901760
    %10950 = vmatpush.msra.mxu0 %v10949
    %v10951 = vand.u32 %v212, 4294901760
    %v10952 = vsub.f32 %v212, %v10951
    %v10953 = vand.u32 %v10952, 4294901760
    %10954 = vmatpush.msra.mxu0 %v10953
    %v10955 = vand.u32 %v205, 4294901760
    %v10956 = vsub.f32 %v205, %v10955
    %v10957 = vand.u32 %v10956, 4294901760
    %10958 = vmatpush.msra.mxu0 %v10957
    %v10959 = vand.u32 %v198, 4294901760
    %v10960 = vsub.f32 %v198, %v10959
    %v10961 = vand.u32 %v10960, 4294901760
    %10962 = vmatpush.msra.mxu0 %v10961
    %v10963 = vand.u32 %v191, 4294901760
    %v10964 = vsub.f32 %v191, %v10963
    %v10965 = vand.u32 %v10964, 4294901760
    %10966 = vmatpush.msra.mxu0 %v10965
    %v10967 = vand.u32 %v184, 4294901760
    %v10968 = vsub.f32 %v184, %v10967
    %v10969 = vand.u32 %v10968, 4294901760
    %10970 = vmatpush.msra.mxu0 %v10969
    %v10971 = vand.u32 %v177, 4294901760
    %v10972 = vsub.f32 %v177, %v10971
    %v10973 = vand.u32 %v10972, 4294901760
    %10974 = vmatpush.msra.mxu0 %v10973
    %v10975 = vand.u32 %v170, 4294901760
    %v10976 = vsub.f32 %v170, %v10975
    %v10977 = vand.u32 %v10976, 4294901760
    %10978 = vmatpush.msra.mxu0 %v10977
    %v10979 = vand.u32 %v163, 4294901760
    %v10980 = vsub.f32 %v163, %v10979
    %v10981 = vand.u32 %v10980, 4294901760
    %10982 = vmatpush.msra.mxu0 %v10981
    %v10983 = vand.u32 %v156, 4294901760
    %v10984 = vsub.f32 %v156, %v10983
    %v10985 = vand.u32 %v10984, 4294901760
    %10986 = vmatpush.msra.mxu0 %v10985
    %v10987 = vand.u32 %v149, 4294901760
    %v10988 = vsub.f32 %v149, %v10987
    %v10989 = vand.u32 %v10988, 4294901760
    %10990 = vmatpush.msra.mxu0 %v10989
    %v10991 = vand.u32 %v142, 4294901760
    %v10992 = vsub.f32 %v142, %v10991
    %v10993 = vand.u32 %v10992, 4294901760
    %10994 = vmatpush.msra.mxu0 %v10993
    %v10995 = vand.u32 %v135, 4294901760
    %v10996 = vsub.f32 %v135, %v10995
    %v10997 = vand.u32 %v10996, 4294901760
    %10998 = vmatpush.msra.mxu0 %v10997
    %v10999 = vand.u32 %v16, 4294901760
    %11000 = vmatmul.f32.gmra.mxu0 %v10999
    %v11001 = vpop.f32.mrf.mxu0
    %v11002 = vadd.f32 %v10933, %v11001
    %11003 = vdwg.mxu0
    %v11004 = vand.u32 %v240, 4294901760
    %11005 = vmatpush.msra.mxu0 %v11004
    %v11006 = vand.u32 %v233, 4294901760
    %11007 = vmatpush.msra.mxu0 %v11006
    %v11008 = vand.u32 %v226, 4294901760
    %11009 = vmatpush.msra.mxu0 %v11008
    %v11010 = vand.u32 %v219, 4294901760
    %11011 = vmatpush.msra.mxu0 %v11010
    %v11012 = vand.u32 %v212, 4294901760
    %11013 = vmatpush.msra.mxu0 %v11012
    %v11014 = vand.u32 %v205, 4294901760
    %11015 = vmatpush.msra.mxu0 %v11014
    %v11016 = vand.u32 %v198, 4294901760
    %11017 = vmatpush.msra.mxu0 %v11016
    %v11018 = vand.u32 %v191, 4294901760
    %11019 = vmatpush.msra.mxu0 %v11018
    %v11020 = vand.u32 %v184, 4294901760
    %11021 = vmatpush.msra.mxu0 %v11020
    %v11022 = vand.u32 %v177, 4294901760
    %11023 = vmatpush.msra.mxu0 %v11022
    %v11024 = vand.u32 %v170, 4294901760
    %11025 = vmatpush.msra.mxu0 %v11024
    %v11026 = vand.u32 %v163, 4294901760
    %11027 = vmatpush.msra.mxu0 %v11026
    %v11028 = vand.u32 %v156, 4294901760
    %11029 = vmatpush.msra.mxu0 %v11028
    %v11030 = vand.u32 %v149, 4294901760
    %11031 = vmatpush.msra.mxu0 %v11030
    %v11032 = vand.u32 %v142, 4294901760
    %11033 = vmatpush.msra.mxu0 %v11032
    %v11034 = vand.u32 %v135, 4294901760
    %11035 = vmatpush.msra.mxu0 %v11034
    %v11036 = vand.u32 %v16, 4294901760
    %11037 = vmatmul.f32.gmra.mxu0 %v11036
    %v11038 = vpop.f32.mrf.mxu0
    %v11039 = vadd.f32 %v11002, %v11038
    %11040 = vdwg.mxu0
    %11041 = vst [vmem:[#allocation2] sm:$0xff] %v6947
    %11042 = vst [vmem:[#allocation2 + $0x8] sm:$0xff] %v7629
    %11043 = vst [vmem:[#allocation2 + $0x10] sm:$0xff] %v8311
    %11044 = vst [vmem:[#allocation2 + $0x18] sm:$0xff] %v8993
    %11045 = vst [vmem:[#allocation2 + $0x20] sm:$0xff] %v9675
    %11046 = vst [vmem:[#allocation2 + $0x28] sm:$0xff] %v10357
    %vm11047 = vcmask 785408
    %11048 = vst.msk [vmem:[#allocation2 + $0x30] sm:$0xff] %vm11047, %v11039
    // Predicated region
    $region14: #{tpu_custom_call.1} parent=1 // pred_check
      _
    $region15: #{tpu_custom_call.1} parent=1 // pred_check_branch
      %11050 = sbr.rel (0) target = $region17
    $region16: #{tpu_custom_call.1} parent=1 // pred_region
      %11052 = vsyncadd [#allocation3], 0
      %s11054 = sshll.u32 [#allocation2], 4
      %s11055 = int_to_ptr.vmem [resolvable:$true] %s11054
      %s11056 = sshll.u32 %s3, 4
      %s11057 = int_to_ptr.hbm [resolvable:$true] %s11056
      %11059 = dma.vmem_to_hbm [thread:$0]  %s11055, 896, %s11057, [#allocation3]
    $region17: #{tpu_custom_call.1} parent=1 // pred_fallthru
      _
    // Predicated region
    $region18: #{tpu_custom_call.1} parent=1 // pred_check
      _
    $region19: #{tpu_custom_call.1} parent=1 // pred_check_branch
      %11061 = sbr.rel (0) target = $region21
    $region20: #{tpu_custom_call.1} parent=1 // pred_region
      %11063 = dma.done [#allocation3], 896
    $region21: #{tpu_custom_call.1} parent=1 // pred_fallthru
      _
    %11064 = vsyncpa [#allocation3], 1

</llo_original>
